<compile_context>
chip_gen: v7x
topology: tpu7x:2x2x1
jax: 0.10.0
libtpu: 0.0.40
codegen_flags: <defaults>
</compile_context>

<pallas_src>
import functools

import jax
import jax.numpy as jnp
from jax import lax
from jax.experimental import pallas as pl
from jax.experimental.pallas import tpu as pltpu

MXU_DTYPE = jnp.bfloat16          # MXU-native on v5e/v6e/v7x; accumulation stays f32.
_LANE = 128


def _round_up(x, m):
    return (x + m - 1) // m * m


def _largest_divisor_leq(n, cap):
    cap = max(1, min(n, cap))
    for c in range(cap, 0, -1):
        if n % c == 0:
            return c
    return 1


def _batch_pad():
    # bf16 packs 16 rows per sublane-tile; keep batch 16-aligned so reshapes/stores
    # stay dense views.  (8 suffices for f32.)
    return 16 if jnp.dtype(MXU_DTYPE) == jnp.dtype(jnp.bfloat16) else 8


def _tensorcores_per_chip():
    try:
        kind = jax.devices()[0].device_kind.lower()
        if "v7" in kind:
            return 2
    except Exception:
        pass
    return 1


def _vmem_limit_bytes():
    try:
        cap = int(pltpu.get_tpu_info().vmem_capacity_bytes)
    except Exception:
        cap = 128 * 1024 * 1024
    return int(min(max(cap * 3 // 4, 32 * 1024 * 1024), 100 * 1024 * 1024))


# ----------------------------------------------------------------------------
# GRU layer kernel (one time-chunk of one batch block per grid step).
#   x_ref  : (Tc, Bb, Din)   time-major input chunk (padded)
#   wih_ref: (Din, 3*Hp)     input->hidden weights, gates [r|z|n], lane-aligned (bf16)
#   whh_ref: (Hp, 3*Hp)      hidden->hidden weights (bf16)
#   gib_ref: (1, 3*Hp)       folded bias: bih + [bhh_r | bhh_z | 0]   (f32)
#   bhn_ref: (1, Hp)         bhh_n (must stay inside r*(gh_n + bhh_n))
#   out_ref: (Tc, Bb, Hp)    hidden sequence for this chunk (bf16)
#   h_sc   : (Bb, Hp)        persistent f32 hidden state (carried across time chunks)
#   gi_sc  : (Tc, Bb, 3*Hp)  chunk-wide input projection (f32)
# ----------------------------------------------------------------------------
def gru_layer_kernel(x_ref, wih_ref, whh_ref, gib_ref, bhn_ref, out_ref, h_sc, gi_sc):
    Tc, Bb, Din = x_ref.shape
    Hp = h_sc.shape[1]

    # Reset hidden state at the start of each batch block's time sweep (h0 = 0).
    @pl.when(pl.program_id(1) == 0)
    def _():
        h_sc[...] = jnp.zeros_like(h_sc)

    # Hoisted input projection: one well-shaped MXU matmul (M = Tc*Bb) for the whole
    # chunk instead of Tc tiny matmuls on the serial critical path.  All biases except
    # bhh_n are folded into gib.
    x2 = x_ref[...].reshape(Tc * Bb, Din).astype(wih_ref.dtype)
    gi2 = jnp.dot(x2, wih_ref[...], preferred_element_type=jnp.float32) + gib_ref[...]
    gi_sc[...] = gi2.reshape(Tc, Bb, 3 * Hp)

    whh = whh_ref[...]           # hoisted weight load (loop-invariant)
    bhn = bhn_ref[...]           # hoisted bhh_n load  (loop-invariant)

    def step(i, carry):
        h = h_sc[...]                                          # (Bb, Hp) f32
        gi = gi_sc[i]                                          # (Bb, 3*Hp) f32
        gh = jnp.dot(h.astype(whh.dtype), whh,
                     preferred_element_type=jnp.float32)       # (Bb, 3*Hp)
        r = jax.nn.sigmoid(gi[:, 0:Hp] + gh[:, 0:Hp])
        z = jax.nn.sigmoid(gi[:, Hp:2 * Hp] + gh[:, Hp:2 * Hp])
        n = jnp.tanh(gi[:, 2 * Hp:3 * Hp] + r * (gh[:, 2 * Hp:3 * Hp] + bhn))
        h_new = n + z * (h - n)                                # == (1-z)*n + z*h
        h_sc[...] = h_new
        out_ref[i] = h_new.astype(out_ref.dtype)
        return carry

    # Partial unroll: enough LLO visibility to overlap step i's EUP/VPU work with
    # step i+1's Whh matmul push, without vreg spills when Tc is large.
    lax.fori_loop(0, Tc, step, 0, unroll=min(Tc, 8))


def gru_layer(seq, wih_t, whh_t, gib, bhn, *, t_chunk, b_block, out_dtype,
              vmem_limit, single_buffer_weights):
    T, Bp, Din = seq.shape
    Hp = whh_t.shape[0]
    nb = Bp // b_block
    nt = T // t_chunk
    # Grid-invariant inputs: no double-buffering needed -> don't burn VMEM on it.
    wmode = dict(pipeline_mode=pl.Buffered(1)) if single_buffer_weights else {}
    return pl.pallas_call(
        gru_layer_kernel,
        out_shape=jax.ShapeDtypeStruct((T, Bp, Hp), out_dtype),
        grid_spec=pltpu.PrefetchScalarGridSpec(
            num_scalar_prefetch=0,
            grid=(nb, nt),
            in_specs=[
                pl.BlockSpec((t_chunk, b_block, Din), lambda b, t: (t, b, 0)),
                pl.BlockSpec((Din, 3 * Hp), lambda b, t: (0, 0), **wmode),
                pl.BlockSpec((Hp, 3 * Hp), lambda b, t: (0, 0), **wmode),
                pl.BlockSpec((1, 3 * Hp), lambda b, t: (0, 0), **wmode),
                pl.BlockSpec((1, Hp), lambda b, t: (0, 0), **wmode),
            ],
            out_specs=pl.BlockSpec((t_chunk, b_block, Hp), lambda b, t: (t, b, 0)),
            scratch_shapes=[
                pltpu.VMEM((b_block, Hp), jnp.float32),
                pltpu.VMEM((t_chunk, b_block, 3 * Hp), jnp.float32),
            ],
        ),
        compiler_params=pltpu.CompilerParams(
            dimension_semantics=("parallel", "arbitrary"),
            vmem_limit_bytes=vmem_limit,
        ),
    )(seq, wih_t, whh_t, gib, bhn)


# ----------------------------------------------------------------------------
# Final head: fc(last hidden) + softmax(dim=1), padded classes masked out.
#   h_ref : (Bp, Hp), w_ref : (Hp, Op), b_ref : (1, Op), out_ref : (Bp, Op)
# ----------------------------------------------------------------------------
def fc_softmax_kernel(h_ref, w_ref, b_ref, out_ref, *, n_valid):
    logits = jnp.dot(h_ref[...].astype(w_ref.dtype), w_ref[...],
                     preferred_element_type=jnp.float32) + b_ref[...]
    col = lax.broadcasted_iota(jnp.int32, logits.shape, 1)
    logits = jnp.where(col < n_valid, logits, -1e30)      # mask padded classes
    m = jnp.max(logits, axis=1, keepdims=True)
    e = jnp.exp(logits - m)
    s = jnp.sum(e, axis=1, keepdims=True)
    inv = pl.reciprocal(s, approx=True)                   # EUP slot (nearly free)
    inv = inv * (2.0 - s * inv)                           # Newton refinement -> f32 accuracy
    inv = inv * (2.0 - s * inv)
    out_ref[...] = e * inv


def fc_softmax(h_last, w_t, b, n_valid):
    Bp = h_last.shape[0]
    Op = w_t.shape[1]
    return pl.pallas_call(
        functools.partial(fc_softmax_kernel, n_valid=n_valid),
        out_shape=jax.ShapeDtypeStruct((Bp, Op), jnp.float32),
        in_specs=[pl.BlockSpec(memory_space=pltpu.MemorySpace.VMEM)] * 3,
        out_specs=pl.BlockSpec(memory_space=pltpu.MemorySpace.VMEM),
    )(h_last, w_t, b)


# ----------------------------------------------------------------------------
# Parameter init (deterministic, PyTorch-style U(-1/sqrt(H), 1/sqrt(H))), raw layout.
# ----------------------------------------------------------------------------
def init_params(key, input_size, hidden_size, output_size, num_layers):
    params = {"gru": [], "fc": None}
    bound = 1.0 / jnp.sqrt(jnp.float32(hidden_size))
    for layer in range(num_layers):
        d_in = input_size if layer == 0 else hidden_size
        key, k1, k2, k3, k4 = jax.random.split(key, 5)
        wih = jax.random.uniform(k1, (3 * hidden_size, d_in), jnp.float32, -bound, bound)
        whh = jax.random.uniform(k2, (3 * hidden_size, hidden_size), jnp.float32, -bound, bound)
        bih = jax.random.uniform(k3, (3 * hidden_size,), jnp.float32, -bound, bound)
        bhh = jax.random.uniform(k4, (3 * hidden_size,), jnp.float32, -bound, bound)
        params["gru"].append((wih, whh, bih, bhh))
    key, k1, k2 = jax.random.split(key, 3)
    fc_w = jax.random.uniform(k1, (output_size, hidden_size), jnp.float32, -bound, bound)
    fc_b = jax.random.uniform(k2, (output_size,), jnp.float32, -bound, bound)
    params["fc"] = (fc_w, fc_b)
    return params


# ----------------------------------------------------------------------------
# One-time (outside jit) weight padding / transposition into kernel layout.
# ----------------------------------------------------------------------------
def _pad_gate_matrix(w, d_in_pad, Hp):
    # w: (3H, d_in) PyTorch layout -> (d_in_pad, 3*Hp), each gate lane-aligned to Hp.
    threeH, d_in = w.shape
    H = threeH // 3
    wt = jnp.transpose(w).astype(jnp.float32)
    out = jnp.zeros((d_in_pad, 3 * Hp), jnp.float32)
    for g in range(3):
        out = out.at[:d_in, g * Hp:g * Hp + H].set(wt[:, g * H:(g + 1) * H])
    return out


def _pad_gate_bias(b, Hp):
    H = b.shape[0] // 3
    out = jnp.zeros((1, 3 * Hp), jnp.float32)
    for g in range(3):
        out = out.at[0, g * Hp:g * Hp + H].set(b[g * H:(g + 1) * H])
    return out


def prepare_params(params):
    whh0 = params["gru"][0][1]
    hidden = whh0.shape[1]
    Hp = _round_up(hidden, _LANE)
    gru = []
    for (wih, whh, bih, bhh) in params["gru"]:
        d_in_pad = _round_up(wih.shape[1], _LANE)
        wih_t = _pad_gate_matrix(wih, d_in_pad, Hp).astype(MXU_DTYPE)   # (Din_p, 3Hp)
        whh_t = _pad_gate_matrix(whh, Hp, Hp).astype(MXU_DTYPE)         # (Hp, 3Hp)
        bih_p = _pad_gate_bias(bih, Hp)                                 # (1, 3Hp) f32
        bhh_p = _pad_gate_bias(bhh, Hp)                                 # (1, 3Hp) f32
        # Fold bih and the r/z thirds of bhh into one hoisted bias; bhh_n must stay
        # inside r*(gh_n + bhh_n) per PyTorch GRU semantics.
        gib = bih_p + bhh_p.at[0, 2 * Hp:].set(0.0)
        bhn = bhh_p[:, 2 * Hp:3 * Hp]                                   # (1, Hp)
        gru.append((wih_t, whh_t, gib, bhn))
    fc_w, fc_b = params["fc"]
    out_size = fc_w.shape[0]
    Op = _round_up(out_size, _LANE)
    fcw_t = jnp.zeros((Hp, Op), jnp.float32).at[:hidden, :out_size].set(
        jnp.transpose(fc_w)).astype(MXU_DTYPE)
    fcb = jnp.zeros((1, Op), jnp.float32).at[0, :out_size].set(fc_b)
    return {"gru": gru, "fc": (fcw_t, fcb)}


# ----------------------------------------------------------------------------
# Full forward: x (B, T, input_size) -> (B, output_size)
# ----------------------------------------------------------------------------
@functools.partial(jax.jit, static_argnames=("output_size", "single_buffer_weights"))
def gru_model_forward(x, prepared, *, output_size, single_buffer_weights=True):
    B, T, D = x.shape
    Dp = prepared["gru"][0][0].shape[0]
    Hp = prepared["gru"][0][1].shape[0]
    Bp = _round_up(B, _batch_pad())

    # Zero-pad batch (sublanes) and features (lanes); single small transpose to
    # time-major so timesteps are cheap leading-axis slices everywhere downstream.
    xp = jnp.zeros((Bp, T, Dp), jnp.float32).at[:B, :, :D].set(x.astype(jnp.float32))
    seq = jnp.transpose(xp, (1, 0, 2))                       # (T, Bp, Dp)

    # Batch split: only useful on v7x (2 TCs), and only a 2-way split.
    n_tc = _tensorcores_per_chip()
    if n_tc >= 2 and Bp % 32 == 0 and (Bp // 2) >= 64:
        b_block = Bp // 2
    else:
        b_block = Bp

    # Time chunk: ~8 MiB working set (x + out double-buffered, gi scratch), counted
    # conservatively as f32.  Bigger chunks amortize per-grid-step overhead and give
    # the hoisted gi matmul a larger M.
    budget = 8 * 1024 * 1024
    row_bytes = 4 * b_block * (2 * max(Dp, Hp) + 2 * Hp + 3 * Hp)
    t_cap = max(1, budget // row_bytes)
    t_chunk = _largest_divisor_leq(T, min(128, t_cap))

    vmem_limit = _vmem_limit_bytes()
    inter_dtype = MXU_DTYPE if jnp.dtype(MXU_DTYPE) == jnp.dtype(jnp.bfloat16) else jnp.float32

    for (wih_t, whh_t, gib, bhn) in prepared["gru"]:
        seq = gru_layer(seq, wih_t, whh_t, gib, bhn,
                        t_chunk=t_chunk, b_block=b_block,
                        out_dtype=inter_dtype, vmem_limit=vmem_limit,
                        single_buffer_weights=single_buffer_weights)   # (T, Bp, Hp)

    h_last = seq[T - 1]                                      # == out[:, -1, :]
    fcw_t, fcb = prepared["fc"]
    probs = fc_softmax(h_last, fcw_t, fcb, output_size)      # (Bp, Op)
    return probs[:B, :output_size]


# ----------------------------------------------------------------------------
# Pure-JAX reference (same math, unpadded, f32) for a correctness sanity check.
# ----------------------------------------------------------------------------
def gru_model_reference(x, params):
    B = x.shape[0]
    seq = jnp.transpose(x, (1, 0, 2)).astype(jnp.float32)
    for (wih, whh, bih, bhh) in params["gru"]:
        H = whh.shape[1]
        h = jnp.zeros((B, H), jnp.float32)
        outs = []
        for t in range(seq.shape[0]):
            gi = seq[t] @ wih.T + bih
            gh = h @ whh.T + bhh
            r = jax.nn.sigmoid(gi[:, :H] + gh[:, :H])
            z = jax.nn.sigmoid(gi[:, H:2 * H] + gh[:, H:2 * H])
            n = jnp.tanh(gi[:, 2 * H:] + r * gh[:, 2 * H:])
            h = (1.0 - z) * n + z * h
            outs.append(h)
        seq = jnp.stack(outs, axis=0)
    fc_w, fc_b = params["fc"]
    logits = seq[-1] @ fc_w.T + fc_b
    return jax.nn.softmax(logits, axis=1)


if __name__ == "__main__":
    B, T = 2, 8
    input_size, hidden_size, output_size, num_layers = 16, 32, 8, 2

    key = jax.random.PRNGKey(0)
    kx, kp = jax.random.split(key)
    x = jax.random.normal(kx, (B, T, input_size), dtype=jnp.float32)
    params = init_params(kp, input_size, hidden_size, output_size, num_layers)
    prepared = prepare_params(params)    # pad/transpose ONCE, outside jit

    try:
        out = gru_model_forward(x, prepared, output_size=output_size)
        out = jax.block_until_ready(out)
    except Exception:
        # Fallback path without single-buffered weight specs (older Pallas versions).
        out = gru_model_forward(x, prepared, output_size=output_size,
                                single_buffer_weights=False)
        out = jax.block_until_ready(out)

    ref = gru_model_reference(x, params)
    assert out.shape == (B, output_size)
    # bf16 weights / inter-layer activations => loosened tolerance vs f32 reference.
    assert jnp.allclose(out, ref, atol=2e-2, rtol=2e-2), (
        f"mismatch vs reference, max abs err {jnp.max(jnp.abs(out - ref))}")
    assert jnp.allclose(jnp.sum(out, axis=1), 1.0, atol=1e-4), "softmax rows must sum to 1"

    print("KERNEL_OK")
</pallas_src>

<mosaic_0001>
module attributes {stable_mosaic.version = 11 : i64} {
  func.func @gru_layer_kernel(%arg0: i32, %arg1: i32, %arg2: memref<8x16x128xf32, #tpu.memory_space<vmem>>, %arg3: memref<128x384xbf16, #tpu.memory_space<vmem>>, %arg4: memref<128x384xbf16, #tpu.memory_space<vmem>>, %arg5: memref<1x384xf32, #tpu.memory_space<vmem>>, %arg6: memref<1x128xf32, #tpu.memory_space<vmem>>, %arg7: memref<8x16x128xbf16, #tpu.memory_space<vmem>>, %arg8: memref<16x128xf32, #tpu.memory_space<vmem>>, %arg9: memref<8x16x384xf32, #tpu.memory_space<vmem>>) attributes {dimension_semantics = [#tpu.dimension_semantics<parallel>, #tpu.dimension_semantics<arbitrary>], iteration_bounds = array<i64: 1, 1>, scalar_prefetch = 0 : i64, scratch_operands = 2 : i64, tpu.core_type = #tpu.core_type<tc>, window_params = [{transform_indices = @transform_0, window_bounds = array<i64: 8, 16, 128>}, {pipeline_mode = #tpu.pipeline_mode<synchronous>, transform_indices = @transform_1, window_bounds = array<i64: 128, 384>}, {pipeline_mode = #tpu.pipeline_mode<synchronous>, transform_indices = @transform_2, window_bounds = array<i64: 128, 384>}, {pipeline_mode = #tpu.pipeline_mode<synchronous>, transform_indices = @transform_3, window_bounds = array<i64: 1, 384>}, {pipeline_mode = #tpu.pipeline_mode<synchronous>, transform_indices = @transform_4, window_bounds = array<i64: 1, 128>}, {transform_indices = @transform_5, window_bounds = array<i64: 8, 16, 128>}]} {
    %c0_i32 = arith.constant 0 : i32
    %0 = arith.cmpi eq, %arg1, %c0_i32 : i32
    %1 = arith.extui %0 : i1 to i32
    %c0_i32_0 = arith.constant 0 : i32
    %2 = arith.cmpi ne, %1, %c0_i32_0 : i32
    scf.if %2 {
      %cst_103 = arith.constant 0.000000e+00 : f32
      %319 = vector.broadcast %cst_103 : f32 to vector<16x128xf32>
      %c0_104 = arith.constant 0 : index
      %c0_105 = arith.constant 0 : index
      %320 = vector.load %arg8[%c0_104, %c0_105] : memref<16x128xf32, #tpu.memory_space<vmem>>, vector<16x128xf32>
      tpu.vector_store %arg8[%c0_104, %c0_105], %319 {strides = array<i32>} : memref<16x128xf32, #tpu.memory_space<vmem>>, vector<16x128xf32>,
    } else {
    }
    %c0 = arith.constant 0 : index
    %c0_1 = arith.constant 0 : index
    %c0_2 = arith.constant 0 : index
    %3 = vector.load %arg2[%c0, %c0_1, %c0_2] : memref<8x16x128xf32, #tpu.memory_space<vmem>>, vector<8x16x128xf32>
    %4 = vector.shape_cast %3 : vector<8x16x128xf32> to vector<128x128xf32>
    %5 = arith.truncf %4 : vector<128x128xf32> to vector<128x128xbf16>
    %c0_3 = arith.constant 0 : index
    %c0_4 = arith.constant 0 : index
    %6 = vector.load %arg3[%c0_3, %c0_4] : memref<128x384xbf16, #tpu.memory_space<vmem>>, vector<128x384xbf16>
    %cst = arith.constant dense<0.000000e+00> : vector<128x384xf32>
    %7 = tpu.matmul %5, %6, %cst {dimension_numbers = #tpu.dot_dimension_numbers<[1], [0], [0], [1], [0, 0, 1, 1], [], []>} : vector<128x128xbf16>, vector<128x384xbf16>, vector<128x384xf32> -> vector<128x384xf32>
    %c0_5 = arith.constant 0 : index
    %c0_6 = arith.constant 0 : index
    %8 = vector.load %arg5[%c0_5, %c0_6] : memref<1x384xf32, #tpu.memory_space<vmem>>, vector<1x384xf32>
    %9 = vector.broadcast %8 : vector<1x384xf32> to vector<128x384xf32>
    %10 = arith.addf %7, %9 : vector<128x384xf32>
    %11 = vector.shape_cast %10 : vector<128x384xf32> to vector<8x16x384xf32>
    %c0_7 = arith.constant 0 : index
    %c0_8 = arith.constant 0 : index
    %c0_9 = arith.constant 0 : index
    %12 = vector.load %arg9[%c0_7, %c0_8, %c0_9] : memref<8x16x384xf32, #tpu.memory_space<vmem>>, vector<8x16x384xf32>
    tpu.vector_store %arg9[%c0_7, %c0_8, %c0_9], %11 {strides = array<i32>} : memref<8x16x384xf32, #tpu.memory_space<vmem>>, vector<8x16x384xf32>,
    %c0_10 = arith.constant 0 : index
    %c0_11 = arith.constant 0 : index
    %13 = vector.load %arg4[%c0_10, %c0_11] : memref<128x384xbf16, #tpu.memory_space<vmem>>, vector<128x384xbf16>
    %c0_12 = arith.constant 0 : index
    %c0_13 = arith.constant 0 : index
    %14 = vector.load %arg6[%c0_12, %c0_13] : memref<1x128xf32, #tpu.memory_space<vmem>>, vector<1x128xf32>
    %c0_i32_14 = arith.constant 0 : i32
    %c0_15 = arith.constant 0 : index
    %c0_16 = arith.constant 0 : index
    %15 = vector.load %arg8[%c0_15, %c0_16] : memref<16x128xf32, #tpu.memory_space<vmem>>, vector<16x128xf32>
    %16 = arith.index_cast %c0_i32_14 : i32 to index
    %c0_17 = arith.constant 0 : index
    %c0_18 = arith.constant 0 : index
    %17 = vector.load %arg9[%16, %c0_17, %c0_18] : memref<8x16x384xf32, #tpu.memory_space<vmem>>, vector<1x16x384xf32>
    %18 = vector.shape_cast %17 : vector<1x16x384xf32> to vector<16x384xf32>
    %19 = arith.truncf %15 : vector<16x128xf32> to vector<16x128xbf16>
    %cst_19 = arith.constant dense<0.000000e+00> : vector<16x384xf32>
    %20 = tpu.matmul %19, %13, %cst_19 {dimension_numbers = #tpu.dot_dimension_numbers<[1], [0], [0], [1], [0, 0, 1, 1], [], []>} : vector<16x128xbf16>, vector<128x384xbf16>, vector<16x384xf32> -> vector<16x384xf32>
    %21 = vector.extract_strided_slice %18 {offsets = [0, 0], sizes = [16, 128], strides = [1, 1]} : vector<16x384xf32> to vector<16x128xf32>
    %22 = vector.extract_strided_slice %20 {offsets = [0, 0], sizes = [16, 128], strides = [1, 1]} : vector<16x384xf32> to vector<16x128xf32>
    %23 = arith.addf %21, %22 : vector<16x128xf32>
    %24 = arith.negf %23 : vector<16x128xf32>
    %25 = math.exp %24 : vector<16x128xf32>
    %cst_20 = arith.constant 1.000000e+00 : f32
    %26 = vector.broadcast %cst_20 : f32 to vector<16x128xf32>
    %27 = arith.addf %26, %25 : vector<16x128xf32>
    %28 = arith.divf %26, %27 : vector<16x128xf32>
    %29 = vector.extract_strided_slice %18 {offsets = [0, 128], sizes = [16, 128], strides = [1, 1]} : vector<16x384xf32> to vector<16x128xf32>
    %30 = vector.extract_strided_slice %20 {offsets = [0, 128], sizes = [16, 128], strides = [1, 1]} : vector<16x384xf32> to vector<16x128xf32>
    %31 = arith.addf %29, %30 : vector<16x128xf32>
    %32 = arith.negf %31 : vector<16x128xf32>
    %33 = math.exp %32 : vector<16x128xf32>
    %cst_21 = arith.constant 1.000000e+00 : f32
    %34 = vector.broadcast %cst_21 : f32 to vector<16x128xf32>
    %35 = arith.addf %34, %33 : vector<16x128xf32>
    %36 = arith.divf %34, %35 : vector<16x128xf32>
    %37 = vector.extract_strided_slice %18 {offsets = [0, 256], sizes = [16, 128], strides = [1, 1]} : vector<16x384xf32> to vector<16x128xf32>
    %38 = vector.extract_strided_slice %20 {offsets = [0, 256], sizes = [16, 128], strides = [1, 1]} : vector<16x384xf32> to vector<16x128xf32>
    %39 = vector.broadcast %14 : vector<1x128xf32> to vector<16x128xf32>
    %40 = arith.addf %38, %39 : vector<16x128xf32>
    %41 = arith.mulf %28, %40 : vector<16x128xf32>
    %42 = arith.addf %37, %41 : vector<16x128xf32>
    %43 = math.tanh %42 : vector<16x128xf32>
    %44 = arith.subf %15, %43 : vector<16x128xf32>
    %45 = arith.mulf %36, %44 : vector<16x128xf32>
    %46 = arith.addf %43, %45 : vector<16x128xf32>
    %c0_22 = arith.constant 0 : index
    %c0_23 = arith.constant 0 : index
    %47 = vector.load %arg8[%c0_22, %c0_23] : memref<16x128xf32, #tpu.memory_space<vmem>>, vector<16x128xf32>
    tpu.vector_store %arg8[%c0_22, %c0_23], %46 {strides = array<i32>} : memref<16x128xf32, #tpu.memory_space<vmem>>, vector<16x128xf32>,
    %48 = arith.truncf %46 : vector<16x128xf32> to vector<16x128xbf16>
    %49 = arith.index_cast %c0_i32_14 : i32 to index
    %c0_24 = arith.constant 0 : index
    %c0_25 = arith.constant 0 : index
    %50 = vector.load %arg7[%49, %c0_24, %c0_25] : memref<8x16x128xbf16, #tpu.memory_space<vmem>>, vector<1x16x128xbf16>
    %51 = vector.shape_cast %50 : vector<1x16x128xbf16> to vector<16x128xbf16>
    %52 = vector.shape_cast %48 : vector<16x128xbf16> to vector<1x16x128xbf16>
    tpu.vector_store %arg7[%49, %c0_24, %c0_25], %52 {strides = array<i32>} : memref<8x16x128xbf16, #tpu.memory_space<vmem>>, vector<1x16x128xbf16>,
    %c1_i32 = arith.constant 1 : i32
    %c0_26 = arith.constant 0 : index
    %c0_27 = arith.constant 0 : index
    %53 = vector.load %arg8[%c0_26, %c0_27] : memref<16x128xf32, #tpu.memory_space<vmem>>, vector<16x128xf32>
    %54 = arith.index_cast %c1_i32 : i32 to index
    %c0_28 = arith.constant 0 : index
    %c0_29 = arith.constant 0 : index
    %55 = vector.load %arg9[%54, %c0_28, %c0_29] : memref<8x16x384xf32, #tpu.memory_space<vmem>>, vector<1x16x384xf32>
    %56 = vector.shape_cast %55 : vector<1x16x384xf32> to vector<16x384xf32>
    %57 = arith.truncf %53 : vector<16x128xf32> to vector<16x128xbf16>
    %cst_30 = arith.constant dense<0.000000e+00> : vector<16x384xf32>
    %58 = tpu.matmul %57, %13, %cst_30 {dimension_numbers = #tpu.dot_dimension_numbers<[1], [0], [0], [1], [0, 0, 1, 1], [], []>} : vector<16x128xbf16>, vector<128x384xbf16>, vector<16x384xf32> -> vector<16x384xf32>
    %59 = vector.extract_strided_slice %56 {offsets = [0, 0], sizes = [16, 128], strides = [1, 1]} : vector<16x384xf32> to vector<16x128xf32>
    %60 = vector.extract_strided_slice %58 {offsets = [0, 0], sizes = [16, 128], strides = [1, 1]} : vector<16x384xf32> to vector<16x128xf32>
    %61 = arith.addf %59, %60 : vector<16x128xf32>
    %62 = arith.negf %61 : vector<16x128xf32>
    %63 = math.exp %62 : vector<16x128xf32>
    %cst_31 = arith.constant 1.000000e+00 : f32
    %64 = vector.broadcast %cst_31 : f32 to vector<16x128xf32>
    %65 = arith.addf %64, %63 : vector<16x128xf32>
    %66 = arith.divf %64, %65 : vector<16x128xf32>
    %67 = vector.extract_strided_slice %56 {offsets = [0, 128], sizes = [16, 128], strides = [1, 1]} : vector<16x384xf32> to vector<16x128xf32>
    %68 = vector.extract_strided_slice %58 {offsets = [0, 128], sizes = [16, 128], strides = [1, 1]} : vector<16x384xf32> to vector<16x128xf32>
    %69 = arith.addf %67, %68 : vector<16x128xf32>
    %70 = arith.negf %69 : vector<16x128xf32>
    %71 = math.exp %70 : vector<16x128xf32>
    %cst_32 = arith.constant 1.000000e+00 : f32
    %72 = vector.broadcast %cst_32 : f32 to vector<16x128xf32>
    %73 = arith.addf %72, %71 : vector<16x128xf32>
    %74 = arith.divf %72, %73 : vector<16x128xf32>
    %75 = vector.extract_strided_slice %56 {offsets = [0, 256], sizes = [16, 128], strides = [1, 1]} : vector<16x384xf32> to vector<16x128xf32>
    %76 = vector.extract_strided_slice %58 {offsets = [0, 256], sizes = [16, 128], strides = [1, 1]} : vector<16x384xf32> to vector<16x128xf32>
    %77 = vector.broadcast %14 : vector<1x128xf32> to vector<16x128xf32>
    %78 = arith.addf %76, %77 : vector<16x128xf32>
    %79 = arith.mulf %66, %78 : vector<16x128xf32>
    %80 = arith.addf %75, %79 : vector<16x128xf32>
    %81 = math.tanh %80 : vector<16x128xf32>
    %82 = arith.subf %53, %81 : vector<16x128xf32>
    %83 = arith.mulf %74, %82 : vector<16x128xf32>
    %84 = arith.addf %81, %83 : vector<16x128xf32>
    %c0_33 = arith.constant 0 : index
    %c0_34 = arith.constant 0 : index
    %85 = vector.load %arg8[%c0_33, %c0_34] : memref<16x128xf32, #tpu.memory_space<vmem>>, vector<16x128xf32>
    tpu.vector_store %arg8[%c0_33, %c0_34], %84 {strides = array<i32>} : memref<16x128xf32, #tpu.memory_space<vmem>>, vector<16x128xf32>,
    %86 = arith.truncf %84 : vector<16x128xf32> to vector<16x128xbf16>
    %87 = arith.index_cast %c1_i32 : i32 to index
    %c0_35 = arith.constant 0 : index
    %c0_36 = arith.constant 0 : index
    %88 = vector.load %arg7[%87, %c0_35, %c0_36] : memref<8x16x128xbf16, #tpu.memory_space<vmem>>, vector<1x16x128xbf16>
    %89 = vector.shape_cast %88 : vector<1x16x128xbf16> to vector<16x128xbf16>
    %90 = vector.shape_cast %86 : vector<16x128xbf16> to vector<1x16x128xbf16>
    tpu.vector_store %arg7[%87, %c0_35, %c0_36], %90 {strides = array<i32>} : memref<8x16x128xbf16, #tpu.memory_space<vmem>>, vector<1x16x128xbf16>,
    %c2_i32 = arith.constant 2 : i32
    %c0_37 = arith.constant 0 : index
    %c0_38 = arith.constant 0 : index
    %91 = vector.load %arg8[%c0_37, %c0_38] : memref<16x128xf32, #tpu.memory_space<vmem>>, vector<16x128xf32>
    %92 = arith.index_cast %c2_i32 : i32 to index
    %c0_39 = arith.constant 0 : index
    %c0_40 = arith.constant 0 : index
    %93 = vector.load %arg9[%92, %c0_39, %c0_40] : memref<8x16x384xf32, #tpu.memory_space<vmem>>, vector<1x16x384xf32>
    %94 = vector.shape_cast %93 : vector<1x16x384xf32> to vector<16x384xf32>
    %95 = arith.truncf %91 : vector<16x128xf32> to vector<16x128xbf16>
    %cst_41 = arith.constant dense<0.000000e+00> : vector<16x384xf32>
    %96 = tpu.matmul %95, %13, %cst_41 {dimension_numbers = #tpu.dot_dimension_numbers<[1], [0], [0], [1], [0, 0, 1, 1], [], []>} : vector<16x128xbf16>, vector<128x384xbf16>, vector<16x384xf32> -> vector<16x384xf32>
    %97 = vector.extract_strided_slice %94 {offsets = [0, 0], sizes = [16, 128], strides = [1, 1]} : vector<16x384xf32> to vector<16x128xf32>
    %98 = vector.extract_strided_slice %96 {offsets = [0, 0], sizes = [16, 128], strides = [1, 1]} : vector<16x384xf32> to vector<16x128xf32>
    %99 = arith.addf %97, %98 : vector<16x128xf32>
    %100 = arith.negf %99 : vector<16x128xf32>
    %101 = math.exp %100 : vector<16x128xf32>
    %cst_42 = arith.constant 1.000000e+00 : f32
    %102 = vector.broadcast %cst_42 : f32 to vector<16x128xf32>
    %103 = arith.addf %102, %101 : vector<16x128xf32>
    %104 = arith.divf %102, %103 : vector<16x128xf32>
    %105 = vector.extract_strided_slice %94 {offsets = [0, 128], sizes = [16, 128], strides = [1, 1]} : vector<16x384xf32> to vector<16x128xf32>
    %106 = vector.extract_strided_slice %96 {offsets = [0, 128], sizes = [16, 128], strides = [1, 1]} : vector<16x384xf32> to vector<16x128xf32>
    %107 = arith.addf %105, %106 : vector<16x128xf32>
    %108 = arith.negf %107 : vector<16x128xf32>
    %109 = math.exp %108 : vector<16x128xf32>
    %cst_43 = arith.constant 1.000000e+00 : f32
    %110 = vector.broadcast %cst_43 : f32 to vector<16x128xf32>
    %111 = arith.addf %110, %109 : vector<16x128xf32>
    %112 = arith.divf %110, %111 : vector<16x128xf32>
    %113 = vector.extract_strided_slice %94 {offsets = [0, 256], sizes = [16, 128], strides = [1, 1]} : vector<16x384xf32> to vector<16x128xf32>
    %114 = vector.extract_strided_slice %96 {offsets = [0, 256], sizes = [16, 128], strides = [1, 1]} : vector<16x384xf32> to vector<16x128xf32>
    %115 = vector.broadcast %14 : vector<1x128xf32> to vector<16x128xf32>
    %116 = arith.addf %114, %115 : vector<16x128xf32>
    %117 = arith.mulf %104, %116 : vector<16x128xf32>
    %118 = arith.addf %113, %117 : vector<16x128xf32>
    %119 = math.tanh %118 : vector<16x128xf32>
    %120 = arith.subf %91, %119 : vector<16x128xf32>
    %121 = arith.mulf %112, %120 : vector<16x128xf32>
    %122 = arith.addf %119, %121 : vector<16x128xf32>
    %c0_44 = arith.constant 0 : index
    %c0_45 = arith.constant 0 : index
    %123 = vector.load %arg8[%c0_44, %c0_45] : memref<16x128xf32, #tpu.memory_space<vmem>>, vector<16x128xf32>
    tpu.vector_store %arg8[%c0_44, %c0_45], %122 {strides = array<i32>} : memref<16x128xf32, #tpu.memory_space<vmem>>, vector<16x128xf32>,
    %124 = arith.truncf %122 : vector<16x128xf32> to vector<16x128xbf16>
    %125 = arith.index_cast %c2_i32 : i32 to index
    %c0_46 = arith.constant 0 : index
    %c0_47 = arith.constant 0 : index
    %126 = vector.load %arg7[%125, %c0_46, %c0_47] : memref<8x16x128xbf16, #tpu.memory_space<vmem>>, vector<1x16x128xbf16>
    %127 = vector.shape_cast %126 : vector<1x16x128xbf16> to vector<16x128xbf16>
    %128 = vector.shape_cast %124 : vector<16x128xbf16> to vector<1x16x128xbf16>
    tpu.vector_store %arg7[%125, %c0_46, %c0_47], %128 {strides = array<i32>} : memref<8x16x128xbf16, #tpu.memory_space<vmem>>, vector<1x16x128xbf16>,
    %c3_i32 = arith.constant 3 : i32
    %c0_48 = arith.constant 0 : index
    %c0_49 = arith.constant 0 : index
    %129 = vector.load %arg8[%c0_48, %c0_49] : memref<16x128xf32, #tpu.memory_space<vmem>>, vector<16x128xf32>
    %130 = arith.index_cast %c3_i32 : i32 to index
    %c0_50 = arith.constant 0 : index
    %c0_51 = arith.constant 0 : index
    %131 = vector.load %arg9[%130, %c0_50, %c0_51] : memref<8x16x384xf32, #tpu.memory_space<vmem>>, vector<1x16x384xf32>
    %132 = vector.shape_cast %131 : vector<1x16x384xf32> to vector<16x384xf32>
    %133 = arith.truncf %129 : vector<16x128xf32> to vector<16x128xbf16>
    %cst_52 = arith.constant dense<0.000000e+00> : vector<16x384xf32>
    %134 = tpu.matmul %133, %13, %cst_52 {dimension_numbers = #tpu.dot_dimension_numbers<[1], [0], [0], [1], [0, 0, 1, 1], [], []>} : vector<16x128xbf16>, vector<128x384xbf16>, vector<16x384xf32> -> vector<16x384xf32>
    %135 = vector.extract_strided_slice %132 {offsets = [0, 0], sizes = [16, 128], strides = [1, 1]} : vector<16x384xf32> to vector<16x128xf32>
    %136 = vector.extract_strided_slice %134 {offsets = [0, 0], sizes = [16, 128], strides = [1, 1]} : vector<16x384xf32> to vector<16x128xf32>
    %137 = arith.addf %135, %136 : vector<16x128xf32>
    %138 = arith.negf %137 : vector<16x128xf32>
    %139 = math.exp %138 : vector<16x128xf32>
    %cst_53 = arith.constant 1.000000e+00 : f32
    %140 = vector.broadcast %cst_53 : f32 to vector<16x128xf32>
    %141 = arith.addf %140, %139 : vector<16x128xf32>
    %142 = arith.divf %140, %141 : vector<16x128xf32>
    %143 = vector.extract_strided_slice %132 {offsets = [0, 128], sizes = [16, 128], strides = [1, 1]} : vector<16x384xf32> to vector<16x128xf32>
    %144 = vector.extract_strided_slice %134 {offsets = [0, 128], sizes = [16, 128], strides = [1, 1]} : vector<16x384xf32> to vector<16x128xf32>
    %145 = arith.addf %143, %144 : vector<16x128xf32>
    %146 = arith.negf %145 : vector<16x128xf32>
    %147 = math.exp %146 : vector<16x128xf32>
    %cst_54 = arith.constant 1.000000e+00 : f32
    %148 = vector.broadcast %cst_54 : f32 to vector<16x128xf32>
    %149 = arith.addf %148, %147 : vector<16x128xf32>
    %150 = arith.divf %148, %149 : vector<16x128xf32>
    %151 = vector.extract_strided_slice %132 {offsets = [0, 256], sizes = [16, 128], strides = [1, 1]} : vector<16x384xf32> to vector<16x128xf32>
    %152 = vector.extract_strided_slice %134 {offsets = [0, 256], sizes = [16, 128], strides = [1, 1]} : vector<16x384xf32> to vector<16x128xf32>
    %153 = vector.broadcast %14 : vector<1x128xf32> to vector<16x128xf32>
    %154 = arith.addf %152, %153 : vector<16x128xf32>
    %155 = arith.mulf %142, %154 : vector<16x128xf32>
    %156 = arith.addf %151, %155 : vector<16x128xf32>
    %157 = math.tanh %156 : vector<16x128xf32>
    %158 = arith.subf %129, %157 : vector<16x128xf32>
    %159 = arith.mulf %150, %158 : vector<16x128xf32>
    %160 = arith.addf %157, %159 : vector<16x128xf32>
    %c0_55 = arith.constant 0 : index
    %c0_56 = arith.constant 0 : index
    %161 = vector.load %arg8[%c0_55, %c0_56] : memref<16x128xf32, #tpu.memory_space<vmem>>, vector<16x128xf32>
    tpu.vector_store %arg8[%c0_55, %c0_56], %160 {strides = array<i32>} : memref<16x128xf32, #tpu.memory_space<vmem>>, vector<16x128xf32>,
    %162 = arith.truncf %160 : vector<16x128xf32> to vector<16x128xbf16>
    %163 = arith.index_cast %c3_i32 : i32 to index
    %c0_57 = arith.constant 0 : index
    %c0_58 = arith.constant 0 : index
    %164 = vector.load %arg7[%163, %c0_57, %c0_58] : memref<8x16x128xbf16, #tpu.memory_space<vmem>>, vector<1x16x128xbf16>
    %165 = vector.shape_cast %164 : vector<1x16x128xbf16> to vector<16x128xbf16>
    %166 = vector.shape_cast %162 : vector<16x128xbf16> to vector<1x16x128xbf16>
    tpu.vector_store %arg7[%163, %c0_57, %c0_58], %166 {strides = array<i32>} : memref<8x16x128xbf16, #tpu.memory_space<vmem>>, vector<1x16x128xbf16>,
    %c4_i32 = arith.constant 4 : i32
    %c0_59 = arith.constant 0 : index
    %c0_60 = arith.constant 0 : index
    %167 = vector.load %arg8[%c0_59, %c0_60] : memref<16x128xf32, #tpu.memory_space<vmem>>, vector<16x128xf32>
    %168 = arith.index_cast %c4_i32 : i32 to index
    %c0_61 = arith.constant 0 : index
    %c0_62 = arith.constant 0 : index
    %169 = vector.load %arg9[%168, %c0_61, %c0_62] : memref<8x16x384xf32, #tpu.memory_space<vmem>>, vector<1x16x384xf32>
    %170 = vector.shape_cast %169 : vector<1x16x384xf32> to vector<16x384xf32>
    %171 = arith.truncf %167 : vector<16x128xf32> to vector<16x128xbf16>
    %cst_63 = arith.constant dense<0.000000e+00> : vector<16x384xf32>
    %172 = tpu.matmul %171, %13, %cst_63 {dimension_numbers = #tpu.dot_dimension_numbers<[1], [0], [0], [1], [0, 0, 1, 1], [], []>} : vector<16x128xbf16>, vector<128x384xbf16>, vector<16x384xf32> -> vector<16x384xf32>
    %173 = vector.extract_strided_slice %170 {offsets = [0, 0], sizes = [16, 128], strides = [1, 1]} : vector<16x384xf32> to vector<16x128xf32>
    %174 = vector.extract_strided_slice %172 {offsets = [0, 0], sizes = [16, 128], strides = [1, 1]} : vector<16x384xf32> to vector<16x128xf32>
    %175 = arith.addf %173, %174 : vector<16x128xf32>
    %176 = arith.negf %175 : vector<16x128xf32>
    %177 = math.exp %176 : vector<16x128xf32>
    %cst_64 = arith.constant 1.000000e+00 : f32
    %178 = vector.broadcast %cst_64 : f32 to vector<16x128xf32>
    %179 = arith.addf %178, %177 : vector<16x128xf32>
    %180 = arith.divf %178, %179 : vector<16x128xf32>
    %181 = vector.extract_strided_slice %170 {offsets = [0, 128], sizes = [16, 128], strides = [1, 1]} : vector<16x384xf32> to vector<16x128xf32>
    %182 = vector.extract_strided_slice %172 {offsets = [0, 128], sizes = [16, 128], strides = [1, 1]} : vector<16x384xf32> to vector<16x128xf32>
    %183 = arith.addf %181, %182 : vector<16x128xf32>
    %184 = arith.negf %183 : vector<16x128xf32>
    %185 = math.exp %184 : vector<16x128xf32>
    %cst_65 = arith.constant 1.000000e+00 : f32
    %186 = vector.broadcast %cst_65 : f32 to vector<16x128xf32>
    %187 = arith.addf %186, %185 : vector<16x128xf32>
    %188 = arith.divf %186, %187 : vector<16x128xf32>
    %189 = vector.extract_strided_slice %170 {offsets = [0, 256], sizes = [16, 128], strides = [1, 1]} : vector<16x384xf32> to vector<16x128xf32>
    %190 = vector.extract_strided_slice %172 {offsets = [0, 256], sizes = [16, 128], strides = [1, 1]} : vector<16x384xf32> to vector<16x128xf32>
    %191 = vector.broadcast %14 : vector<1x128xf32> to vector<16x128xf32>
    %192 = arith.addf %190, %191 : vector<16x128xf32>
    %193 = arith.mulf %180, %192 : vector<16x128xf32>
    %194 = arith.addf %189, %193 : vector<16x128xf32>
    %195 = math.tanh %194 : vector<16x128xf32>
    %196 = arith.subf %167, %195 : vector<16x128xf32>
    %197 = arith.mulf %188, %196 : vector<16x128xf32>
    %198 = arith.addf %195, %197 : vector<16x128xf32>
    %c0_66 = arith.constant 0 : index
    %c0_67 = arith.constant 0 : index
    %199 = vector.load %arg8[%c0_66, %c0_67] : memref<16x128xf32, #tpu.memory_space<vmem>>, vector<16x128xf32>
    tpu.vector_store %arg8[%c0_66, %c0_67], %198 {strides = array<i32>} : memref<16x128xf32, #tpu.memory_space<vmem>>, vector<16x128xf32>,
    %200 = arith.truncf %198 : vector<16x128xf32> to vector<16x128xbf16>
    %201 = arith.index_cast %c4_i32 : i32 to index
    %c0_68 = arith.constant 0 : index
    %c0_69 = arith.constant 0 : index
    %202 = vector.load %arg7[%201, %c0_68, %c0_69] : memref<8x16x128xbf16, #tpu.memory_space<vmem>>, vector<1x16x128xbf16>
    %203 = vector.shape_cast %202 : vector<1x16x128xbf16> to vector<16x128xbf16>
    %204 = vector.shape_cast %200 : vector<16x128xbf16> to vector<1x16x128xbf16>
    tpu.vector_store %arg7[%201, %c0_68, %c0_69], %204 {strides = array<i32>} : memref<8x16x128xbf16, #tpu.memory_space<vmem>>, vector<1x16x128xbf16>,
    %c5_i32 = arith.constant 5 : i32
    %c0_70 = arith.constant 0 : index
    %c0_71 = arith.constant 0 : index
    %205 = vector.load %arg8[%c0_70, %c0_71] : memref<16x128xf32, #tpu.memory_space<vmem>>, vector<16x128xf32>
    %206 = arith.index_cast %c5_i32 : i32 to index
    %c0_72 = arith.constant 0 : index
    %c0_73 = arith.constant 0 : index
    %207 = vector.load %arg9[%206, %c0_72, %c0_73] : memref<8x16x384xf32, #tpu.memory_space<vmem>>, vector<1x16x384xf32>
    %208 = vector.shape_cast %207 : vector<1x16x384xf32> to vector<16x384xf32>
    %209 = arith.truncf %205 : vector<16x128xf32> to vector<16x128xbf16>
    %cst_74 = arith.constant dense<0.000000e+00> : vector<16x384xf32>
    %210 = tpu.matmul %209, %13, %cst_74 {dimension_numbers = #tpu.dot_dimension_numbers<[1], [0], [0], [1], [0, 0, 1, 1], [], []>} : vector<16x128xbf16>, vector<128x384xbf16>, vector<16x384xf32> -> vector<16x384xf32>
    %211 = vector.extract_strided_slice %208 {offsets = [0, 0], sizes = [16, 128], strides = [1, 1]} : vector<16x384xf32> to vector<16x128xf32>
    %212 = vector.extract_strided_slice %210 {offsets = [0, 0], sizes = [16, 128], strides = [1, 1]} : vector<16x384xf32> to vector<16x128xf32>
    %213 = arith.addf %211, %212 : vector<16x128xf32>
    %214 = arith.negf %213 : vector<16x128xf32>
    %215 = math.exp %214 : vector<16x128xf32>
    %cst_75 = arith.constant 1.000000e+00 : f32
    %216 = vector.broadcast %cst_75 : f32 to vector<16x128xf32>
    %217 = arith.addf %216, %215 : vector<16x128xf32>
    %218 = arith.divf %216, %217 : vector<16x128xf32>
    %219 = vector.extract_strided_slice %208 {offsets = [0, 128], sizes = [16, 128], strides = [1, 1]} : vector<16x384xf32> to vector<16x128xf32>
    %220 = vector.extract_strided_slice %210 {offsets = [0, 128], sizes = [16, 128], strides = [1, 1]} : vector<16x384xf32> to vector<16x128xf32>
    %221 = arith.addf %219, %220 : vector<16x128xf32>
    %222 = arith.negf %221 : vector<16x128xf32>
    %223 = math.exp %222 : vector<16x128xf32>
    %cst_76 = arith.constant 1.000000e+00 : f32
    %224 = vector.broadcast %cst_76 : f32 to vector<16x128xf32>
    %225 = arith.addf %224, %223 : vector<16x128xf32>
    %226 = arith.divf %224, %225 : vector<16x128xf32>
    %227 = vector.extract_strided_slice %208 {offsets = [0, 256], sizes = [16, 128], strides = [1, 1]} : vector<16x384xf32> to vector<16x128xf32>
    %228 = vector.extract_strided_slice %210 {offsets = [0, 256], sizes = [16, 128], strides = [1, 1]} : vector<16x384xf32> to vector<16x128xf32>
    %229 = vector.broadcast %14 : vector<1x128xf32> to vector<16x128xf32>
    %230 = arith.addf %228, %229 : vector<16x128xf32>
    %231 = arith.mulf %218, %230 : vector<16x128xf32>
    %232 = arith.addf %227, %231 : vector<16x128xf32>
    %233 = math.tanh %232 : vector<16x128xf32>
    %234 = arith.subf %205, %233 : vector<16x128xf32>
    %235 = arith.mulf %226, %234 : vector<16x128xf32>
    %236 = arith.addf %233, %235 : vector<16x128xf32>
    %c0_77 = arith.constant 0 : index
    %c0_78 = arith.constant 0 : index
    %237 = vector.load %arg8[%c0_77, %c0_78] : memref<16x128xf32, #tpu.memory_space<vmem>>, vector<16x128xf32>
    tpu.vector_store %arg8[%c0_77, %c0_78], %236 {strides = array<i32>} : memref<16x128xf32, #tpu.memory_space<vmem>>, vector<16x128xf32>,
    %238 = arith.truncf %236 : vector<16x128xf32> to vector<16x128xbf16>
    %239 = arith.index_cast %c5_i32 : i32 to index
    %c0_79 = arith.constant 0 : index
    %c0_80 = arith.constant 0 : index
    %240 = vector.load %arg7[%239, %c0_79, %c0_80] : memref<8x16x128xbf16, #tpu.memory_space<vmem>>, vector<1x16x128xbf16>
    %241 = vector.shape_cast %240 : vector<1x16x128xbf16> to vector<16x128xbf16>
    %242 = vector.shape_cast %238 : vector<16x128xbf16> to vector<1x16x128xbf16>
    tpu.vector_store %arg7[%239, %c0_79, %c0_80], %242 {strides = array<i32>} : memref<8x16x128xbf16, #tpu.memory_space<vmem>>, vector<1x16x128xbf16>,
    %c6_i32 = arith.constant 6 : i32
    %c0_81 = arith.constant 0 : index
    %c0_82 = arith.constant 0 : index
    %243 = vector.load %arg8[%c0_81, %c0_82] : memref<16x128xf32, #tpu.memory_space<vmem>>, vector<16x128xf32>
    %244 = arith.index_cast %c6_i32 : i32 to index
    %c0_83 = arith.constant 0 : index
    %c0_84 = arith.constant 0 : index
    %245 = vector.load %arg9[%244, %c0_83, %c0_84] : memref<8x16x384xf32, #tpu.memory_space<vmem>>, vector<1x16x384xf32>
    %246 = vector.shape_cast %245 : vector<1x16x384xf32> to vector<16x384xf32>
    %247 = arith.truncf %243 : vector<16x128xf32> to vector<16x128xbf16>
    %cst_85 = arith.constant dense<0.000000e+00> : vector<16x384xf32>
    %248 = tpu.matmul %247, %13, %cst_85 {dimension_numbers = #tpu.dot_dimension_numbers<[1], [0], [0], [1], [0, 0, 1, 1], [], []>} : vector<16x128xbf16>, vector<128x384xbf16>, vector<16x384xf32> -> vector<16x384xf32>
    %249 = vector.extract_strided_slice %246 {offsets = [0, 0], sizes = [16, 128], strides = [1, 1]} : vector<16x384xf32> to vector<16x128xf32>
    %250 = vector.extract_strided_slice %248 {offsets = [0, 0], sizes = [16, 128], strides = [1, 1]} : vector<16x384xf32> to vector<16x128xf32>
    %251 = arith.addf %249, %250 : vector<16x128xf32>
    %252 = arith.negf %251 : vector<16x128xf32>
    %253 = math.exp %252 : vector<16x128xf32>
    %cst_86 = arith.constant 1.000000e+00 : f32
    %254 = vector.broadcast %cst_86 : f32 to vector<16x128xf32>
    %255 = arith.addf %254, %253 : vector<16x128xf32>
    %256 = arith.divf %254, %255 : vector<16x128xf32>
    %257 = vector.extract_strided_slice %246 {offsets = [0, 128], sizes = [16, 128], strides = [1, 1]} : vector<16x384xf32> to vector<16x128xf32>
    %258 = vector.extract_strided_slice %248 {offsets = [0, 128], sizes = [16, 128], strides = [1, 1]} : vector<16x384xf32> to vector<16x128xf32>
    %259 = arith.addf %257, %258 : vector<16x128xf32>
    %260 = arith.negf %259 : vector<16x128xf32>
    %261 = math.exp %260 : vector<16x128xf32>
    %cst_87 = arith.constant 1.000000e+00 : f32
    %262 = vector.broadcast %cst_87 : f32 to vector<16x128xf32>
    %263 = arith.addf %262, %261 : vector<16x128xf32>
    %264 = arith.divf %262, %263 : vector<16x128xf32>
    %265 = vector.extract_strided_slice %246 {offsets = [0, 256], sizes = [16, 128], strides = [1, 1]} : vector<16x384xf32> to vector<16x128xf32>
    %266 = vector.extract_strided_slice %248 {offsets = [0, 256], sizes = [16, 128], strides = [1, 1]} : vector<16x384xf32> to vector<16x128xf32>
    %267 = vector.broadcast %14 : vector<1x128xf32> to vector<16x128xf32>
    %268 = arith.addf %266, %267 : vector<16x128xf32>
    %269 = arith.mulf %256, %268 : vector<16x128xf32>
    %270 = arith.addf %265, %269 : vector<16x128xf32>
    %271 = math.tanh %270 : vector<16x128xf32>
    %272 = arith.subf %243, %271 : vector<16x128xf32>
    %273 = arith.mulf %264, %272 : vector<16x128xf32>
    %274 = arith.addf %271, %273 : vector<16x128xf32>
    %c0_88 = arith.constant 0 : index
    %c0_89 = arith.constant 0 : index
    %275 = vector.load %arg8[%c0_88, %c0_89] : memref<16x128xf32, #tpu.memory_space<vmem>>, vector<16x128xf32>
    tpu.vector_store %arg8[%c0_88, %c0_89], %274 {strides = array<i32>} : memref<16x128xf32, #tpu.memory_space<vmem>>, vector<16x128xf32>,
    %276 = arith.truncf %274 : vector<16x128xf32> to vector<16x128xbf16>
    %277 = arith.index_cast %c6_i32 : i32 to index
    %c0_90 = arith.constant 0 : index
    %c0_91 = arith.constant 0 : index
    %278 = vector.load %arg7[%277, %c0_90, %c0_91] : memref<8x16x128xbf16, #tpu.memory_space<vmem>>, vector<1x16x128xbf16>
    %279 = vector.shape_cast %278 : vector<1x16x128xbf16> to vector<16x128xbf16>
    %280 = vector.shape_cast %276 : vector<16x128xbf16> to vector<1x16x128xbf16>
    tpu.vector_store %arg7[%277, %c0_90, %c0_91], %280 {strides = array<i32>} : memref<8x16x128xbf16, #tpu.memory_space<vmem>>, vector<1x16x128xbf16>,
    %c7_i32 = arith.constant 7 : i32
    %c0_92 = arith.constant 0 : index
    %c0_93 = arith.constant 0 : index
    %281 = vector.load %arg8[%c0_92, %c0_93] : memref<16x128xf32, #tpu.memory_space<vmem>>, vector<16x128xf32>
    %282 = arith.index_cast %c7_i32 : i32 to index
    %c0_94 = arith.constant 0 : index
    %c0_95 = arith.constant 0 : index
    %283 = vector.load %arg9[%282, %c0_94, %c0_95] : memref<8x16x384xf32, #tpu.memory_space<vmem>>, vector<1x16x384xf32>
    %284 = vector.shape_cast %283 : vector<1x16x384xf32> to vector<16x384xf32>
    %285 = arith.truncf %281 : vector<16x128xf32> to vector<16x128xbf16>
    %cst_96 = arith.constant dense<0.000000e+00> : vector<16x384xf32>
    %286 = tpu.matmul %285, %13, %cst_96 {dimension_numbers = #tpu.dot_dimension_numbers<[1], [0], [0], [1], [0, 0, 1, 1], [], []>} : vector<16x128xbf16>, vector<128x384xbf16>, vector<16x384xf32> -> vector<16x384xf32>
    %287 = vector.extract_strided_slice %284 {offsets = [0, 0], sizes = [16, 128], strides = [1, 1]} : vector<16x384xf32> to vector<16x128xf32>
    %288 = vector.extract_strided_slice %286 {offsets = [0, 0], sizes = [16, 128], strides = [1, 1]} : vector<16x384xf32> to vector<16x128xf32>
    %289 = arith.addf %287, %288 : vector<16x128xf32>
    %290 = arith.negf %289 : vector<16x128xf32>
    %291 = math.exp %290 : vector<16x128xf32>
    %cst_97 = arith.constant 1.000000e+00 : f32
    %292 = vector.broadcast %cst_97 : f32 to vector<16x128xf32>
    %293 = arith.addf %292, %291 : vector<16x128xf32>
    %294 = arith.divf %292, %293 : vector<16x128xf32>
    %295 = vector.extract_strided_slice %284 {offsets = [0, 128], sizes = [16, 128], strides = [1, 1]} : vector<16x384xf32> to vector<16x128xf32>
    %296 = vector.extract_strided_slice %286 {offsets = [0, 128], sizes = [16, 128], strides = [1, 1]} : vector<16x384xf32> to vector<16x128xf32>
    %297 = arith.addf %295, %296 : vector<16x128xf32>
    %298 = arith.negf %297 : vector<16x128xf32>
    %299 = math.exp %298 : vector<16x128xf32>
    %cst_98 = arith.constant 1.000000e+00 : f32
    %300 = vector.broadcast %cst_98 : f32 to vector<16x128xf32>
    %301 = arith.addf %300, %299 : vector<16x128xf32>
    %302 = arith.divf %300, %301 : vector<16x128xf32>
    %303 = vector.extract_strided_slice %284 {offsets = [0, 256], sizes = [16, 128], strides = [1, 1]} : vector<16x384xf32> to vector<16x128xf32>
    %304 = vector.extract_strided_slice %286 {offsets = [0, 256], sizes = [16, 128], strides = [1, 1]} : vector<16x384xf32> to vector<16x128xf32>
    %305 = vector.broadcast %14 : vector<1x128xf32> to vector<16x128xf32>
    %306 = arith.addf %304, %305 : vector<16x128xf32>
    %307 = arith.mulf %294, %306 : vector<16x128xf32>
    %308 = arith.addf %303, %307 : vector<16x128xf32>
    %309 = math.tanh %308 : vector<16x128xf32>
    %310 = arith.subf %281, %309 : vector<16x128xf32>
    %311 = arith.mulf %302, %310 : vector<16x128xf32>
    %312 = arith.addf %309, %311 : vector<16x128xf32>
    %c0_99 = arith.constant 0 : index
    %c0_100 = arith.constant 0 : index
    %313 = vector.load %arg8[%c0_99, %c0_100] : memref<16x128xf32, #tpu.memory_space<vmem>>, vector<16x128xf32>
    tpu.vector_store %arg8[%c0_99, %c0_100], %312 {strides = array<i32>} : memref<16x128xf32, #tpu.memory_space<vmem>>, vector<16x128xf32>,
    %314 = arith.truncf %312 : vector<16x128xf32> to vector<16x128xbf16>
    %315 = arith.index_cast %c7_i32 : i32 to index
    %c0_101 = arith.constant 0 : index
    %c0_102 = arith.constant 0 : index
    %316 = vector.load %arg7[%315, %c0_101, %c0_102] : memref<8x16x128xbf16, #tpu.memory_space<vmem>>, vector<1x16x128xbf16>
    %317 = vector.shape_cast %316 : vector<1x16x128xbf16> to vector<16x128xbf16>
    %318 = vector.shape_cast %314 : vector<16x128xbf16> to vector<1x16x128xbf16>
    tpu.vector_store %arg7[%315, %c0_101, %c0_102], %318 {strides = array<i32>} : memref<8x16x128xbf16, #tpu.memory_space<vmem>>, vector<1x16x128xbf16>,
    %c8_i32 = arith.constant 8 : i32
    return
  }
  func.func @transform_0(%arg0: i32, %arg1: i32) -> (i32, i32, i32) {
    %c0_i32 = arith.constant 0 : i32
    %c0_i32_0 = arith.constant 0 : i32
    return %arg1, %arg0, %c0_i32 : i32, i32, i32
  }
  func.func @transform_1(%arg0: i32, %arg1: i32) -> (i32, i32) {
    %c0_i32 = arith.constant 0 : i32
    %c0_i32_0 = arith.constant 0 : i32
    %c0_i32_1 = arith.constant 0 : i32
    return %c0_i32, %c0_i32_0 : i32, i32
  }
  func.func @transform_2(%arg0: i32, %arg1: i32) -> (i32, i32) {
    %c0_i32 = arith.constant 0 : i32
    %c0_i32_0 = arith.constant 0 : i32
    %c0_i32_1 = arith.constant 0 : i32
    return %c0_i32, %c0_i32_0 : i32, i32
  }
  func.func @transform_3(%arg0: i32, %arg1: i32) -> (i32, i32) {
    %c0_i32 = arith.constant 0 : i32
    %c0_i32_0 = arith.constant 0 : i32
    %c0_i32_1 = arith.constant 0 : i32
    return %c0_i32, %c0_i32_0 : i32, i32
  }
  func.func @transform_4(%arg0: i32, %arg1: i32) -> (i32, i32) {
    %c0_i32 = arith.constant 0 : i32
    %c0_i32_0 = arith.constant 0 : i32
    %c0_i32_1 = arith.constant 0 : i32
    return %c0_i32, %c0_i32_0 : i32, i32
  }
  func.func @transform_5(%arg0: i32, %arg1: i32) -> (i32, i32, i32) {
    %c0_i32 = arith.constant 0 : i32
    %c0_i32_0 = arith.constant 0 : i32
    return %arg1, %arg0, %c0_i32 : i32, i32, i32
  }
}

module attributes {stable_mosaic.version = 11 : i64} {
  func.func @gru_layer_kernel(%arg0: i32, %arg1: i32, %arg2: memref<8x16x128xbf16, #tpu.memory_space<vmem>>, %arg3: memref<128x384xbf16, #tpu.memory_space<vmem>>, %arg4: memref<128x384xbf16, #tpu.memory_space<vmem>>, %arg5: memref<1x384xf32, #tpu.memory_space<vmem>>, %arg6: memref<1x128xf32, #tpu.memory_space<vmem>>, %arg7: memref<8x16x128xbf16, #tpu.memory_space<vmem>>, %arg8: memref<16x128xf32, #tpu.memory_space<vmem>>, %arg9: memref<8x16x384xf32, #tpu.memory_space<vmem>>) attributes {dimension_semantics = [#tpu.dimension_semantics<parallel>, #tpu.dimension_semantics<arbitrary>], iteration_bounds = array<i64: 1, 1>, scalar_prefetch = 0 : i64, scratch_operands = 2 : i64, tpu.core_type = #tpu.core_type<tc>, window_params = [{transform_indices = @transform_0, window_bounds = array<i64: 8, 16, 128>}, {pipeline_mode = #tpu.pipeline_mode<synchronous>, transform_indices = @transform_1, window_bounds = array<i64: 128, 384>}, {pipeline_mode = #tpu.pipeline_mode<synchronous>, transform_indices = @transform_2, window_bounds = array<i64: 128, 384>}, {pipeline_mode = #tpu.pipeline_mode<synchronous>, transform_indices = @transform_3, window_bounds = array<i64: 1, 384>}, {pipeline_mode = #tpu.pipeline_mode<synchronous>, transform_indices = @transform_4, window_bounds = array<i64: 1, 128>}, {transform_indices = @transform_5, window_bounds = array<i64: 8, 16, 128>}]} {
    %c0_i32 = arith.constant 0 : i32
    %0 = arith.cmpi eq, %arg1, %c0_i32 : i32
    %1 = arith.extui %0 : i1 to i32
    %c0_i32_0 = arith.constant 0 : i32
    %2 = arith.cmpi ne, %1, %c0_i32_0 : i32
    scf.if %2 {
      %cst_103 = arith.constant 0.000000e+00 : f32
      %318 = vector.broadcast %cst_103 : f32 to vector<16x128xf32>
      %c0_104 = arith.constant 0 : index
      %c0_105 = arith.constant 0 : index
      %319 = vector.load %arg8[%c0_104, %c0_105] : memref<16x128xf32, #tpu.memory_space<vmem>>, vector<16x128xf32>
      tpu.vector_store %arg8[%c0_104, %c0_105], %318 {strides = array<i32>} : memref<16x128xf32, #tpu.memory_space<vmem>>, vector<16x128xf32>,
    } else {
    }
    %c0 = arith.constant 0 : index
    %c0_1 = arith.constant 0 : index
    %c0_2 = arith.constant 0 : index
    %3 = vector.load %arg2[%c0, %c0_1, %c0_2] : memref<8x16x128xbf16, #tpu.memory_space<vmem>>, vector<8x16x128xbf16>
    %4 = vector.shape_cast %3 : vector<8x16x128xbf16> to vector<128x128xbf16>
    %c0_3 = arith.constant 0 : index
    %c0_4 = arith.constant 0 : index
    %5 = vector.load %arg3[%c0_3, %c0_4] : memref<128x384xbf16, #tpu.memory_space<vmem>>, vector<128x384xbf16>
    %cst = arith.constant dense<0.000000e+00> : vector<128x384xf32>
    %6 = tpu.matmul %4, %5, %cst {dimension_numbers = #tpu.dot_dimension_numbers<[1], [0], [0], [1], [0, 0, 1, 1], [], []>} : vector<128x128xbf16>, vector<128x384xbf16>, vector<128x384xf32> -> vector<128x384xf32>
    %c0_5 = arith.constant 0 : index
    %c0_6 = arith.constant 0 : index
    %7 = vector.load %arg5[%c0_5, %c0_6] : memref<1x384xf32, #tpu.memory_space<vmem>>, vector<1x384xf32>
    %8 = vector.broadcast %7 : vector<1x384xf32> to vector<128x384xf32>
    %9 = arith.addf %6, %8 : vector<128x384xf32>
    %10 = vector.shape_cast %9 : vector<128x384xf32> to vector<8x16x384xf32>
    %c0_7 = arith.constant 0 : index
    %c0_8 = arith.constant 0 : index
    %c0_9 = arith.constant 0 : index
    %11 = vector.load %arg9[%c0_7, %c0_8, %c0_9] : memref<8x16x384xf32, #tpu.memory_space<vmem>>, vector<8x16x384xf32>
    tpu.vector_store %arg9[%c0_7, %c0_8, %c0_9], %10 {strides = array<i32>} : memref<8x16x384xf32, #tpu.memory_space<vmem>>, vector<8x16x384xf32>,
    %c0_10 = arith.constant 0 : index
    %c0_11 = arith.constant 0 : index
    %12 = vector.load %arg4[%c0_10, %c0_11] : memref<128x384xbf16, #tpu.memory_space<vmem>>, vector<128x384xbf16>
    %c0_12 = arith.constant 0 : index
    %c0_13 = arith.constant 0 : index
    %13 = vector.load %arg6[%c0_12, %c0_13] : memref<1x128xf32, #tpu.memory_space<vmem>>, vector<1x128xf32>
    %c0_i32_14 = arith.constant 0 : i32
    %c0_15 = arith.constant 0 : index
    %c0_16 = arith.constant 0 : index
    %14 = vector.load %arg8[%c0_15, %c0_16] : memref<16x128xf32, #tpu.memory_space<vmem>>, vector<16x128xf32>
    %15 = arith.index_cast %c0_i32_14 : i32 to index
    %c0_17 = arith.constant 0 : index
    %c0_18 = arith.constant 0 : index
    %16 = vector.load %arg9[%15, %c0_17, %c0_18] : memref<8x16x384xf32, #tpu.memory_space<vmem>>, vector<1x16x384xf32>
    %17 = vector.shape_cast %16 : vector<1x16x384xf32> to vector<16x384xf32>
    %18 = arith.truncf %14 : vector<16x128xf32> to vector<16x128xbf16>
    %cst_19 = arith.constant dense<0.000000e+00> : vector<16x384xf32>
    %19 = tpu.matmul %18, %12, %cst_19 {dimension_numbers = #tpu.dot_dimension_numbers<[1], [0], [0], [1], [0, 0, 1, 1], [], []>} : vector<16x128xbf16>, vector<128x384xbf16>, vector<16x384xf32> -> vector<16x384xf32>
    %20 = vector.extract_strided_slice %17 {offsets = [0, 0], sizes = [16, 128], strides = [1, 1]} : vector<16x384xf32> to vector<16x128xf32>
    %21 = vector.extract_strided_slice %19 {offsets = [0, 0], sizes = [16, 128], strides = [1, 1]} : vector<16x384xf32> to vector<16x128xf32>
    %22 = arith.addf %20, %21 : vector<16x128xf32>
    %23 = arith.negf %22 : vector<16x128xf32>
    %24 = math.exp %23 : vector<16x128xf32>
    %cst_20 = arith.constant 1.000000e+00 : f32
    %25 = vector.broadcast %cst_20 : f32 to vector<16x128xf32>
    %26 = arith.addf %25, %24 : vector<16x128xf32>
    %27 = arith.divf %25, %26 : vector<16x128xf32>
    %28 = vector.extract_strided_slice %17 {offsets = [0, 128], sizes = [16, 128], strides = [1, 1]} : vector<16x384xf32> to vector<16x128xf32>
    %29 = vector.extract_strided_slice %19 {offsets = [0, 128], sizes = [16, 128], strides = [1, 1]} : vector<16x384xf32> to vector<16x128xf32>
    %30 = arith.addf %28, %29 : vector<16x128xf32>
    %31 = arith.negf %30 : vector<16x128xf32>
    %32 = math.exp %31 : vector<16x128xf32>
    %cst_21 = arith.constant 1.000000e+00 : f32
    %33 = vector.broadcast %cst_21 : f32 to vector<16x128xf32>
    %34 = arith.addf %33, %32 : vector<16x128xf32>
    %35 = arith.divf %33, %34 : vector<16x128xf32>
    %36 = vector.extract_strided_slice %17 {offsets = [0, 256], sizes = [16, 128], strides = [1, 1]} : vector<16x384xf32> to vector<16x128xf32>
    %37 = vector.extract_strided_slice %19 {offsets = [0, 256], sizes = [16, 128], strides = [1, 1]} : vector<16x384xf32> to vector<16x128xf32>
    %38 = vector.broadcast %13 : vector<1x128xf32> to vector<16x128xf32>
    %39 = arith.addf %37, %38 : vector<16x128xf32>
    %40 = arith.mulf %27, %39 : vector<16x128xf32>
    %41 = arith.addf %36, %40 : vector<16x128xf32>
    %42 = math.tanh %41 : vector<16x128xf32>
    %43 = arith.subf %14, %42 : vector<16x128xf32>
    %44 = arith.mulf %35, %43 : vector<16x128xf32>
    %45 = arith.addf %42, %44 : vector<16x128xf32>
    %c0_22 = arith.constant 0 : index
    %c0_23 = arith.constant 0 : index
    %46 = vector.load %arg8[%c0_22, %c0_23] : memref<16x128xf32, #tpu.memory_space<vmem>>, vector<16x128xf32>
    tpu.vector_store %arg8[%c0_22, %c0_23], %45 {strides = array<i32>} : memref<16x128xf32, #tpu.memory_space<vmem>>, vector<16x128xf32>,
    %47 = arith.truncf %45 : vector<16x128xf32> to vector<16x128xbf16>
    %48 = arith.index_cast %c0_i32_14 : i32 to index
    %c0_24 = arith.constant 0 : index
    %c0_25 = arith.constant 0 : index
    %49 = vector.load %arg7[%48, %c0_24, %c0_25] : memref<8x16x128xbf16, #tpu.memory_space<vmem>>, vector<1x16x128xbf16>
    %50 = vector.shape_cast %49 : vector<1x16x128xbf16> to vector<16x128xbf16>
    %51 = vector.shape_cast %47 : vector<16x128xbf16> to vector<1x16x128xbf16>
    tpu.vector_store %arg7[%48, %c0_24, %c0_25], %51 {strides = array<i32>} : memref<8x16x128xbf16, #tpu.memory_space<vmem>>, vector<1x16x128xbf16>,
    %c1_i32 = arith.constant 1 : i32
    %c0_26 = arith.constant 0 : index
    %c0_27 = arith.constant 0 : index
    %52 = vector.load %arg8[%c0_26, %c0_27] : memref<16x128xf32, #tpu.memory_space<vmem>>, vector<16x128xf32>
    %53 = arith.index_cast %c1_i32 : i32 to index
    %c0_28 = arith.constant 0 : index
    %c0_29 = arith.constant 0 : index
    %54 = vector.load %arg9[%53, %c0_28, %c0_29] : memref<8x16x384xf32, #tpu.memory_space<vmem>>, vector<1x16x384xf32>
    %55 = vector.shape_cast %54 : vector<1x16x384xf32> to vector<16x384xf32>
    %56 = arith.truncf %52 : vector<16x128xf32> to vector<16x128xbf16>
    %cst_30 = arith.constant dense<0.000000e+00> : vector<16x384xf32>
    %57 = tpu.matmul %56, %12, %cst_30 {dimension_numbers = #tpu.dot_dimension_numbers<[1], [0], [0], [1], [0, 0, 1, 1], [], []>} : vector<16x128xbf16>, vector<128x384xbf16>, vector<16x384xf32> -> vector<16x384xf32>
    %58 = vector.extract_strided_slice %55 {offsets = [0, 0], sizes = [16, 128], strides = [1, 1]} : vector<16x384xf32> to vector<16x128xf32>
    %59 = vector.extract_strided_slice %57 {offsets = [0, 0], sizes = [16, 128], strides = [1, 1]} : vector<16x384xf32> to vector<16x128xf32>
    %60 = arith.addf %58, %59 : vector<16x128xf32>
    %61 = arith.negf %60 : vector<16x128xf32>
    %62 = math.exp %61 : vector<16x128xf32>
    %cst_31 = arith.constant 1.000000e+00 : f32
    %63 = vector.broadcast %cst_31 : f32 to vector<16x128xf32>
    %64 = arith.addf %63, %62 : vector<16x128xf32>
    %65 = arith.divf %63, %64 : vector<16x128xf32>
    %66 = vector.extract_strided_slice %55 {offsets = [0, 128], sizes = [16, 128], strides = [1, 1]} : vector<16x384xf32> to vector<16x128xf32>
    %67 = vector.extract_strided_slice %57 {offsets = [0, 128], sizes = [16, 128], strides = [1, 1]} : vector<16x384xf32> to vector<16x128xf32>
    %68 = arith.addf %66, %67 : vector<16x128xf32>
    %69 = arith.negf %68 : vector<16x128xf32>
    %70 = math.exp %69 : vector<16x128xf32>
    %cst_32 = arith.constant 1.000000e+00 : f32
    %71 = vector.broadcast %cst_32 : f32 to vector<16x128xf32>
    %72 = arith.addf %71, %70 : vector<16x128xf32>
    %73 = arith.divf %71, %72 : vector<16x128xf32>
    %74 = vector.extract_strided_slice %55 {offsets = [0, 256], sizes = [16, 128], strides = [1, 1]} : vector<16x384xf32> to vector<16x128xf32>
    %75 = vector.extract_strided_slice %57 {offsets = [0, 256], sizes = [16, 128], strides = [1, 1]} : vector<16x384xf32> to vector<16x128xf32>
    %76 = vector.broadcast %13 : vector<1x128xf32> to vector<16x128xf32>
    %77 = arith.addf %75, %76 : vector<16x128xf32>
    %78 = arith.mulf %65, %77 : vector<16x128xf32>
    %79 = arith.addf %74, %78 : vector<16x128xf32>
    %80 = math.tanh %79 : vector<16x128xf32>
    %81 = arith.subf %52, %80 : vector<16x128xf32>
    %82 = arith.mulf %73, %81 : vector<16x128xf32>
    %83 = arith.addf %80, %82 : vector<16x128xf32>
    %c0_33 = arith.constant 0 : index
    %c0_34 = arith.constant 0 : index
    %84 = vector.load %arg8[%c0_33, %c0_34] : memref<16x128xf32, #tpu.memory_space<vmem>>, vector<16x128xf32>
    tpu.vector_store %arg8[%c0_33, %c0_34], %83 {strides = array<i32>} : memref<16x128xf32, #tpu.memory_space<vmem>>, vector<16x128xf32>,
    %85 = arith.truncf %83 : vector<16x128xf32> to vector<16x128xbf16>
    %86 = arith.index_cast %c1_i32 : i32 to index
    %c0_35 = arith.constant 0 : index
    %c0_36 = arith.constant 0 : index
    %87 = vector.load %arg7[%86, %c0_35, %c0_36] : memref<8x16x128xbf16, #tpu.memory_space<vmem>>, vector<1x16x128xbf16>
    %88 = vector.shape_cast %87 : vector<1x16x128xbf16> to vector<16x128xbf16>
    %89 = vector.shape_cast %85 : vector<16x128xbf16> to vector<1x16x128xbf16>
    tpu.vector_store %arg7[%86, %c0_35, %c0_36], %89 {strides = array<i32>} : memref<8x16x128xbf16, #tpu.memory_space<vmem>>, vector<1x16x128xbf16>,
    %c2_i32 = arith.constant 2 : i32
    %c0_37 = arith.constant 0 : index
    %c0_38 = arith.constant 0 : index
    %90 = vector.load %arg8[%c0_37, %c0_38] : memref<16x128xf32, #tpu.memory_space<vmem>>, vector<16x128xf32>
    %91 = arith.index_cast %c2_i32 : i32 to index
    %c0_39 = arith.constant 0 : index
    %c0_40 = arith.constant 0 : index
    %92 = vector.load %arg9[%91, %c0_39, %c0_40] : memref<8x16x384xf32, #tpu.memory_space<vmem>>, vector<1x16x384xf32>
    %93 = vector.shape_cast %92 : vector<1x16x384xf32> to vector<16x384xf32>
    %94 = arith.truncf %90 : vector<16x128xf32> to vector<16x128xbf16>
    %cst_41 = arith.constant dense<0.000000e+00> : vector<16x384xf32>
    %95 = tpu.matmul %94, %12, %cst_41 {dimension_numbers = #tpu.dot_dimension_numbers<[1], [0], [0], [1], [0, 0, 1, 1], [], []>} : vector<16x128xbf16>, vector<128x384xbf16>, vector<16x384xf32> -> vector<16x384xf32>
    %96 = vector.extract_strided_slice %93 {offsets = [0, 0], sizes = [16, 128], strides = [1, 1]} : vector<16x384xf32> to vector<16x128xf32>
    %97 = vector.extract_strided_slice %95 {offsets = [0, 0], sizes = [16, 128], strides = [1, 1]} : vector<16x384xf32> to vector<16x128xf32>
    %98 = arith.addf %96, %97 : vector<16x128xf32>
    %99 = arith.negf %98 : vector<16x128xf32>
    %100 = math.exp %99 : vector<16x128xf32>
    %cst_42 = arith.constant 1.000000e+00 : f32
    %101 = vector.broadcast %cst_42 : f32 to vector<16x128xf32>
    %102 = arith.addf %101, %100 : vector<16x128xf32>
    %103 = arith.divf %101, %102 : vector<16x128xf32>
    %104 = vector.extract_strided_slice %93 {offsets = [0, 128], sizes = [16, 128], strides = [1, 1]} : vector<16x384xf32> to vector<16x128xf32>
    %105 = vector.extract_strided_slice %95 {offsets = [0, 128], sizes = [16, 128], strides = [1, 1]} : vector<16x384xf32> to vector<16x128xf32>
    %106 = arith.addf %104, %105 : vector<16x128xf32>
    %107 = arith.negf %106 : vector<16x128xf32>
    %108 = math.exp %107 : vector<16x128xf32>
    %cst_43 = arith.constant 1.000000e+00 : f32
    %109 = vector.broadcast %cst_43 : f32 to vector<16x128xf32>
    %110 = arith.addf %109, %108 : vector<16x128xf32>
    %111 = arith.divf %109, %110 : vector<16x128xf32>
    %112 = vector.extract_strided_slice %93 {offsets = [0, 256], sizes = [16, 128], strides = [1, 1]} : vector<16x384xf32> to vector<16x128xf32>
    %113 = vector.extract_strided_slice %95 {offsets = [0, 256], sizes = [16, 128], strides = [1, 1]} : vector<16x384xf32> to vector<16x128xf32>
    %114 = vector.broadcast %13 : vector<1x128xf32> to vector<16x128xf32>
    %115 = arith.addf %113, %114 : vector<16x128xf32>
    %116 = arith.mulf %103, %115 : vector<16x128xf32>
    %117 = arith.addf %112, %116 : vector<16x128xf32>
    %118 = math.tanh %117 : vector<16x128xf32>
    %119 = arith.subf %90, %118 : vector<16x128xf32>
    %120 = arith.mulf %111, %119 : vector<16x128xf32>
    %121 = arith.addf %118, %120 : vector<16x128xf32>
    %c0_44 = arith.constant 0 : index
    %c0_45 = arith.constant 0 : index
    %122 = vector.load %arg8[%c0_44, %c0_45] : memref<16x128xf32, #tpu.memory_space<vmem>>, vector<16x128xf32>
    tpu.vector_store %arg8[%c0_44, %c0_45], %121 {strides = array<i32>} : memref<16x128xf32, #tpu.memory_space<vmem>>, vector<16x128xf32>,
    %123 = arith.truncf %121 : vector<16x128xf32> to vector<16x128xbf16>
    %124 = arith.index_cast %c2_i32 : i32 to index
    %c0_46 = arith.constant 0 : index
    %c0_47 = arith.constant 0 : index
    %125 = vector.load %arg7[%124, %c0_46, %c0_47] : memref<8x16x128xbf16, #tpu.memory_space<vmem>>, vector<1x16x128xbf16>
    %126 = vector.shape_cast %125 : vector<1x16x128xbf16> to vector<16x128xbf16>
    %127 = vector.shape_cast %123 : vector<16x128xbf16> to vector<1x16x128xbf16>
    tpu.vector_store %arg7[%124, %c0_46, %c0_47], %127 {strides = array<i32>} : memref<8x16x128xbf16, #tpu.memory_space<vmem>>, vector<1x16x128xbf16>,
    %c3_i32 = arith.constant 3 : i32
    %c0_48 = arith.constant 0 : index
    %c0_49 = arith.constant 0 : index
    %128 = vector.load %arg8[%c0_48, %c0_49] : memref<16x128xf32, #tpu.memory_space<vmem>>, vector<16x128xf32>
    %129 = arith.index_cast %c3_i32 : i32 to index
    %c0_50 = arith.constant 0 : index
    %c0_51 = arith.constant 0 : index
    %130 = vector.load %arg9[%129, %c0_50, %c0_51] : memref<8x16x384xf32, #tpu.memory_space<vmem>>, vector<1x16x384xf32>
    %131 = vector.shape_cast %130 : vector<1x16x384xf32> to vector<16x384xf32>
    %132 = arith.truncf %128 : vector<16x128xf32> to vector<16x128xbf16>
    %cst_52 = arith.constant dense<0.000000e+00> : vector<16x384xf32>
    %133 = tpu.matmul %132, %12, %cst_52 {dimension_numbers = #tpu.dot_dimension_numbers<[1], [0], [0], [1], [0, 0, 1, 1], [], []>} : vector<16x128xbf16>, vector<128x384xbf16>, vector<16x384xf32> -> vector<16x384xf32>
    %134 = vector.extract_strided_slice %131 {offsets = [0, 0], sizes = [16, 128], strides = [1, 1]} : vector<16x384xf32> to vector<16x128xf32>
    %135 = vector.extract_strided_slice %133 {offsets = [0, 0], sizes = [16, 128], strides = [1, 1]} : vector<16x384xf32> to vector<16x128xf32>
    %136 = arith.addf %134, %135 : vector<16x128xf32>
    %137 = arith.negf %136 : vector<16x128xf32>
    %138 = math.exp %137 : vector<16x128xf32>
    %cst_53 = arith.constant 1.000000e+00 : f32
    %139 = vector.broadcast %cst_53 : f32 to vector<16x128xf32>
    %140 = arith.addf %139, %138 : vector<16x128xf32>
    %141 = arith.divf %139, %140 : vector<16x128xf32>
    %142 = vector.extract_strided_slice %131 {offsets = [0, 128], sizes = [16, 128], strides = [1, 1]} : vector<16x384xf32> to vector<16x128xf32>
    %143 = vector.extract_strided_slice %133 {offsets = [0, 128], sizes = [16, 128], strides = [1, 1]} : vector<16x384xf32> to vector<16x128xf32>
    %144 = arith.addf %142, %143 : vector<16x128xf32>
    %145 = arith.negf %144 : vector<16x128xf32>
    %146 = math.exp %145 : vector<16x128xf32>
    %cst_54 = arith.constant 1.000000e+00 : f32
    %147 = vector.broadcast %cst_54 : f32 to vector<16x128xf32>
    %148 = arith.addf %147, %146 : vector<16x128xf32>
    %149 = arith.divf %147, %148 : vector<16x128xf32>
    %150 = vector.extract_strided_slice %131 {offsets = [0, 256], sizes = [16, 128], strides = [1, 1]} : vector<16x384xf32> to vector<16x128xf32>
    %151 = vector.extract_strided_slice %133 {offsets = [0, 256], sizes = [16, 128], strides = [1, 1]} : vector<16x384xf32> to vector<16x128xf32>
    %152 = vector.broadcast %13 : vector<1x128xf32> to vector<16x128xf32>
    %153 = arith.addf %151, %152 : vector<16x128xf32>
    %154 = arith.mulf %141, %153 : vector<16x128xf32>
    %155 = arith.addf %150, %154 : vector<16x128xf32>
    %156 = math.tanh %155 : vector<16x128xf32>
    %157 = arith.subf %128, %156 : vector<16x128xf32>
    %158 = arith.mulf %149, %157 : vector<16x128xf32>
    %159 = arith.addf %156, %158 : vector<16x128xf32>
    %c0_55 = arith.constant 0 : index
    %c0_56 = arith.constant 0 : index
    %160 = vector.load %arg8[%c0_55, %c0_56] : memref<16x128xf32, #tpu.memory_space<vmem>>, vector<16x128xf32>
    tpu.vector_store %arg8[%c0_55, %c0_56], %159 {strides = array<i32>} : memref<16x128xf32, #tpu.memory_space<vmem>>, vector<16x128xf32>,
    %161 = arith.truncf %159 : vector<16x128xf32> to vector<16x128xbf16>
    %162 = arith.index_cast %c3_i32 : i32 to index
    %c0_57 = arith.constant 0 : index
    %c0_58 = arith.constant 0 : index
    %163 = vector.load %arg7[%162, %c0_57, %c0_58] : memref<8x16x128xbf16, #tpu.memory_space<vmem>>, vector<1x16x128xbf16>
    %164 = vector.shape_cast %163 : vector<1x16x128xbf16> to vector<16x128xbf16>
    %165 = vector.shape_cast %161 : vector<16x128xbf16> to vector<1x16x128xbf16>
    tpu.vector_store %arg7[%162, %c0_57, %c0_58], %165 {strides = array<i32>} : memref<8x16x128xbf16, #tpu.memory_space<vmem>>, vector<1x16x128xbf16>,
    %c4_i32 = arith.constant 4 : i32
    %c0_59 = arith.constant 0 : index
    %c0_60 = arith.constant 0 : index
    %166 = vector.load %arg8[%c0_59, %c0_60] : memref<16x128xf32, #tpu.memory_space<vmem>>, vector<16x128xf32>
    %167 = arith.index_cast %c4_i32 : i32 to index
    %c0_61 = arith.constant 0 : index
    %c0_62 = arith.constant 0 : index
    %168 = vector.load %arg9[%167, %c0_61, %c0_62] : memref<8x16x384xf32, #tpu.memory_space<vmem>>, vector<1x16x384xf32>
    %169 = vector.shape_cast %168 : vector<1x16x384xf32> to vector<16x384xf32>
    %170 = arith.truncf %166 : vector<16x128xf32> to vector<16x128xbf16>
    %cst_63 = arith.constant dense<0.000000e+00> : vector<16x384xf32>
    %171 = tpu.matmul %170, %12, %cst_63 {dimension_numbers = #tpu.dot_dimension_numbers<[1], [0], [0], [1], [0, 0, 1, 1], [], []>} : vector<16x128xbf16>, vector<128x384xbf16>, vector<16x384xf32> -> vector<16x384xf32>
    %172 = vector.extract_strided_slice %169 {offsets = [0, 0], sizes = [16, 128], strides = [1, 1]} : vector<16x384xf32> to vector<16x128xf32>
    %173 = vector.extract_strided_slice %171 {offsets = [0, 0], sizes = [16, 128], strides = [1, 1]} : vector<16x384xf32> to vector<16x128xf32>
    %174 = arith.addf %172, %173 : vector<16x128xf32>
    %175 = arith.negf %174 : vector<16x128xf32>
    %176 = math.exp %175 : vector<16x128xf32>
    %cst_64 = arith.constant 1.000000e+00 : f32
    %177 = vector.broadcast %cst_64 : f32 to vector<16x128xf32>
    %178 = arith.addf %177, %176 : vector<16x128xf32>
    %179 = arith.divf %177, %178 : vector<16x128xf32>
    %180 = vector.extract_strided_slice %169 {offsets = [0, 128], sizes = [16, 128], strides = [1, 1]} : vector<16x384xf32> to vector<16x128xf32>
    %181 = vector.extract_strided_slice %171 {offsets = [0, 128], sizes = [16, 128], strides = [1, 1]} : vector<16x384xf32> to vector<16x128xf32>
    %182 = arith.addf %180, %181 : vector<16x128xf32>
    %183 = arith.negf %182 : vector<16x128xf32>
    %184 = math.exp %183 : vector<16x128xf32>
    %cst_65 = arith.constant 1.000000e+00 : f32
    %185 = vector.broadcast %cst_65 : f32 to vector<16x128xf32>
    %186 = arith.addf %185, %184 : vector<16x128xf32>
    %187 = arith.divf %185, %186 : vector<16x128xf32>
    %188 = vector.extract_strided_slice %169 {offsets = [0, 256], sizes = [16, 128], strides = [1, 1]} : vector<16x384xf32> to vector<16x128xf32>
    %189 = vector.extract_strided_slice %171 {offsets = [0, 256], sizes = [16, 128], strides = [1, 1]} : vector<16x384xf32> to vector<16x128xf32>
    %190 = vector.broadcast %13 : vector<1x128xf32> to vector<16x128xf32>
    %191 = arith.addf %189, %190 : vector<16x128xf32>
    %192 = arith.mulf %179, %191 : vector<16x128xf32>
    %193 = arith.addf %188, %192 : vector<16x128xf32>
    %194 = math.tanh %193 : vector<16x128xf32>
    %195 = arith.subf %166, %194 : vector<16x128xf32>
    %196 = arith.mulf %187, %195 : vector<16x128xf32>
    %197 = arith.addf %194, %196 : vector<16x128xf32>
    %c0_66 = arith.constant 0 : index
    %c0_67 = arith.constant 0 : index
    %198 = vector.load %arg8[%c0_66, %c0_67] : memref<16x128xf32, #tpu.memory_space<vmem>>, vector<16x128xf32>
    tpu.vector_store %arg8[%c0_66, %c0_67], %197 {strides = array<i32>} : memref<16x128xf32, #tpu.memory_space<vmem>>, vector<16x128xf32>,
    %199 = arith.truncf %197 : vector<16x128xf32> to vector<16x128xbf16>
    %200 = arith.index_cast %c4_i32 : i32 to index
    %c0_68 = arith.constant 0 : index
    %c0_69 = arith.constant 0 : index
    %201 = vector.load %arg7[%200, %c0_68, %c0_69] : memref<8x16x128xbf16, #tpu.memory_space<vmem>>, vector<1x16x128xbf16>
    %202 = vector.shape_cast %201 : vector<1x16x128xbf16> to vector<16x128xbf16>
    %203 = vector.shape_cast %199 : vector<16x128xbf16> to vector<1x16x128xbf16>
    tpu.vector_store %arg7[%200, %c0_68, %c0_69], %203 {strides = array<i32>} : memref<8x16x128xbf16, #tpu.memory_space<vmem>>, vector<1x16x128xbf16>,
    %c5_i32 = arith.constant 5 : i32
    %c0_70 = arith.constant 0 : index
    %c0_71 = arith.constant 0 : index
    %204 = vector.load %arg8[%c0_70, %c0_71] : memref<16x128xf32, #tpu.memory_space<vmem>>, vector<16x128xf32>
    %205 = arith.index_cast %c5_i32 : i32 to index
    %c0_72 = arith.constant 0 : index
    %c0_73 = arith.constant 0 : index
    %206 = vector.load %arg9[%205, %c0_72, %c0_73] : memref<8x16x384xf32, #tpu.memory_space<vmem>>, vector<1x16x384xf32>
    %207 = vector.shape_cast %206 : vector<1x16x384xf32> to vector<16x384xf32>
    %208 = arith.truncf %204 : vector<16x128xf32> to vector<16x128xbf16>
    %cst_74 = arith.constant dense<0.000000e+00> : vector<16x384xf32>
    %209 = tpu.matmul %208, %12, %cst_74 {dimension_numbers = #tpu.dot_dimension_numbers<[1], [0], [0], [1], [0, 0, 1, 1], [], []>} : vector<16x128xbf16>, vector<128x384xbf16>, vector<16x384xf32> -> vector<16x384xf32>
    %210 = vector.extract_strided_slice %207 {offsets = [0, 0], sizes = [16, 128], strides = [1, 1]} : vector<16x384xf32> to vector<16x128xf32>
    %211 = vector.extract_strided_slice %209 {offsets = [0, 0], sizes = [16, 128], strides = [1, 1]} : vector<16x384xf32> to vector<16x128xf32>
    %212 = arith.addf %210, %211 : vector<16x128xf32>
    %213 = arith.negf %212 : vector<16x128xf32>
    %214 = math.exp %213 : vector<16x128xf32>
    %cst_75 = arith.constant 1.000000e+00 : f32
    %215 = vector.broadcast %cst_75 : f32 to vector<16x128xf32>
    %216 = arith.addf %215, %214 : vector<16x128xf32>
    %217 = arith.divf %215, %216 : vector<16x128xf32>
    %218 = vector.extract_strided_slice %207 {offsets = [0, 128], sizes = [16, 128], strides = [1, 1]} : vector<16x384xf32> to vector<16x128xf32>
    %219 = vector.extract_strided_slice %209 {offsets = [0, 128], sizes = [16, 128], strides = [1, 1]} : vector<16x384xf32> to vector<16x128xf32>
    %220 = arith.addf %218, %219 : vector<16x128xf32>
    %221 = arith.negf %220 : vector<16x128xf32>
    %222 = math.exp %221 : vector<16x128xf32>
    %cst_76 = arith.constant 1.000000e+00 : f32
    %223 = vector.broadcast %cst_76 : f32 to vector<16x128xf32>
    %224 = arith.addf %223, %222 : vector<16x128xf32>
    %225 = arith.divf %223, %224 : vector<16x128xf32>
    %226 = vector.extract_strided_slice %207 {offsets = [0, 256], sizes = [16, 128], strides = [1, 1]} : vector<16x384xf32> to vector<16x128xf32>
    %227 = vector.extract_strided_slice %209 {offsets = [0, 256], sizes = [16, 128], strides = [1, 1]} : vector<16x384xf32> to vector<16x128xf32>
    %228 = vector.broadcast %13 : vector<1x128xf32> to vector<16x128xf32>
    %229 = arith.addf %227, %228 : vector<16x128xf32>
    %230 = arith.mulf %217, %229 : vector<16x128xf32>
    %231 = arith.addf %226, %230 : vector<16x128xf32>
    %232 = math.tanh %231 : vector<16x128xf32>
    %233 = arith.subf %204, %232 : vector<16x128xf32>
    %234 = arith.mulf %225, %233 : vector<16x128xf32>
    %235 = arith.addf %232, %234 : vector<16x128xf32>
    %c0_77 = arith.constant 0 : index
    %c0_78 = arith.constant 0 : index
    %236 = vector.load %arg8[%c0_77, %c0_78] : memref<16x128xf32, #tpu.memory_space<vmem>>, vector<16x128xf32>
    tpu.vector_store %arg8[%c0_77, %c0_78], %235 {strides = array<i32>} : memref<16x128xf32, #tpu.memory_space<vmem>>, vector<16x128xf32>,
    %237 = arith.truncf %235 : vector<16x128xf32> to vector<16x128xbf16>
    %238 = arith.index_cast %c5_i32 : i32 to index
    %c0_79 = arith.constant 0 : index
    %c0_80 = arith.constant 0 : index
    %239 = vector.load %arg7[%238, %c0_79, %c0_80] : memref<8x16x128xbf16, #tpu.memory_space<vmem>>, vector<1x16x128xbf16>
    %240 = vector.shape_cast %239 : vector<1x16x128xbf16> to vector<16x128xbf16>
    %241 = vector.shape_cast %237 : vector<16x128xbf16> to vector<1x16x128xbf16>
    tpu.vector_store %arg7[%238, %c0_79, %c0_80], %241 {strides = array<i32>} : memref<8x16x128xbf16, #tpu.memory_space<vmem>>, vector<1x16x128xbf16>,
    %c6_i32 = arith.constant 6 : i32
    %c0_81 = arith.constant 0 : index
    %c0_82 = arith.constant 0 : index
    %242 = vector.load %arg8[%c0_81, %c0_82] : memref<16x128xf32, #tpu.memory_space<vmem>>, vector<16x128xf32>
    %243 = arith.index_cast %c6_i32 : i32 to index
    %c0_83 = arith.constant 0 : index
    %c0_84 = arith.constant 0 : index
    %244 = vector.load %arg9[%243, %c0_83, %c0_84] : memref<8x16x384xf32, #tpu.memory_space<vmem>>, vector<1x16x384xf32>
    %245 = vector.shape_cast %244 : vector<1x16x384xf32> to vector<16x384xf32>
    %246 = arith.truncf %242 : vector<16x128xf32> to vector<16x128xbf16>
    %cst_85 = arith.constant dense<0.000000e+00> : vector<16x384xf32>
    %247 = tpu.matmul %246, %12, %cst_85 {dimension_numbers = #tpu.dot_dimension_numbers<[1], [0], [0], [1], [0, 0, 1, 1], [], []>} : vector<16x128xbf16>, vector<128x384xbf16>, vector<16x384xf32> -> vector<16x384xf32>
    %248 = vector.extract_strided_slice %245 {offsets = [0, 0], sizes = [16, 128], strides = [1, 1]} : vector<16x384xf32> to vector<16x128xf32>
    %249 = vector.extract_strided_slice %247 {offsets = [0, 0], sizes = [16, 128], strides = [1, 1]} : vector<16x384xf32> to vector<16x128xf32>
    %250 = arith.addf %248, %249 : vector<16x128xf32>
    %251 = arith.negf %250 : vector<16x128xf32>
    %252 = math.exp %251 : vector<16x128xf32>
    %cst_86 = arith.constant 1.000000e+00 : f32
    %253 = vector.broadcast %cst_86 : f32 to vector<16x128xf32>
    %254 = arith.addf %253, %252 : vector<16x128xf32>
    %255 = arith.divf %253, %254 : vector<16x128xf32>
    %256 = vector.extract_strided_slice %245 {offsets = [0, 128], sizes = [16, 128], strides = [1, 1]} : vector<16x384xf32> to vector<16x128xf32>
    %257 = vector.extract_strided_slice %247 {offsets = [0, 128], sizes = [16, 128], strides = [1, 1]} : vector<16x384xf32> to vector<16x128xf32>
    %258 = arith.addf %256, %257 : vector<16x128xf32>
    %259 = arith.negf %258 : vector<16x128xf32>
    %260 = math.exp %259 : vector<16x128xf32>
    %cst_87 = arith.constant 1.000000e+00 : f32
    %261 = vector.broadcast %cst_87 : f32 to vector<16x128xf32>
    %262 = arith.addf %261, %260 : vector<16x128xf32>
    %263 = arith.divf %261, %262 : vector<16x128xf32>
    %264 = vector.extract_strided_slice %245 {offsets = [0, 256], sizes = [16, 128], strides = [1, 1]} : vector<16x384xf32> to vector<16x128xf32>
    %265 = vector.extract_strided_slice %247 {offsets = [0, 256], sizes = [16, 128], strides = [1, 1]} : vector<16x384xf32> to vector<16x128xf32>
    %266 = vector.broadcast %13 : vector<1x128xf32> to vector<16x128xf32>
    %267 = arith.addf %265, %266 : vector<16x128xf32>
    %268 = arith.mulf %255, %267 : vector<16x128xf32>
    %269 = arith.addf %264, %268 : vector<16x128xf32>
    %270 = math.tanh %269 : vector<16x128xf32>
    %271 = arith.subf %242, %270 : vector<16x128xf32>
    %272 = arith.mulf %263, %271 : vector<16x128xf32>
    %273 = arith.addf %270, %272 : vector<16x128xf32>
    %c0_88 = arith.constant 0 : index
    %c0_89 = arith.constant 0 : index
    %274 = vector.load %arg8[%c0_88, %c0_89] : memref<16x128xf32, #tpu.memory_space<vmem>>, vector<16x128xf32>
    tpu.vector_store %arg8[%c0_88, %c0_89], %273 {strides = array<i32>} : memref<16x128xf32, #tpu.memory_space<vmem>>, vector<16x128xf32>,
    %275 = arith.truncf %273 : vector<16x128xf32> to vector<16x128xbf16>
    %276 = arith.index_cast %c6_i32 : i32 to index
    %c0_90 = arith.constant 0 : index
    %c0_91 = arith.constant 0 : index
    %277 = vector.load %arg7[%276, %c0_90, %c0_91] : memref<8x16x128xbf16, #tpu.memory_space<vmem>>, vector<1x16x128xbf16>
    %278 = vector.shape_cast %277 : vector<1x16x128xbf16> to vector<16x128xbf16>
    %279 = vector.shape_cast %275 : vector<16x128xbf16> to vector<1x16x128xbf16>
    tpu.vector_store %arg7[%276, %c0_90, %c0_91], %279 {strides = array<i32>} : memref<8x16x128xbf16, #tpu.memory_space<vmem>>, vector<1x16x128xbf16>,
    %c7_i32 = arith.constant 7 : i32
    %c0_92 = arith.constant 0 : index
    %c0_93 = arith.constant 0 : index
    %280 = vector.load %arg8[%c0_92, %c0_93] : memref<16x128xf32, #tpu.memory_space<vmem>>, vector<16x128xf32>
    %281 = arith.index_cast %c7_i32 : i32 to index
    %c0_94 = arith.constant 0 : index
    %c0_95 = arith.constant 0 : index
    %282 = vector.load %arg9[%281, %c0_94, %c0_95] : memref<8x16x384xf32, #tpu.memory_space<vmem>>, vector<1x16x384xf32>
    %283 = vector.shape_cast %282 : vector<1x16x384xf32> to vector<16x384xf32>
    %284 = arith.truncf %280 : vector<16x128xf32> to vector<16x128xbf16>
    %cst_96 = arith.constant dense<0.000000e+00> : vector<16x384xf32>
    %285 = tpu.matmul %284, %12, %cst_96 {dimension_numbers = #tpu.dot_dimension_numbers<[1], [0], [0], [1], [0, 0, 1, 1], [], []>} : vector<16x128xbf16>, vector<128x384xbf16>, vector<16x384xf32> -> vector<16x384xf32>
    %286 = vector.extract_strided_slice %283 {offsets = [0, 0], sizes = [16, 128], strides = [1, 1]} : vector<16x384xf32> to vector<16x128xf32>
    %287 = vector.extract_strided_slice %285 {offsets = [0, 0], sizes = [16, 128], strides = [1, 1]} : vector<16x384xf32> to vector<16x128xf32>
    %288 = arith.addf %286, %287 : vector<16x128xf32>
    %289 = arith.negf %288 : vector<16x128xf32>
    %290 = math.exp %289 : vector<16x128xf32>
    %cst_97 = arith.constant 1.000000e+00 : f32
    %291 = vector.broadcast %cst_97 : f32 to vector<16x128xf32>
    %292 = arith.addf %291, %290 : vector<16x128xf32>
    %293 = arith.divf %291, %292 : vector<16x128xf32>
    %294 = vector.extract_strided_slice %283 {offsets = [0, 128], sizes = [16, 128], strides = [1, 1]} : vector<16x384xf32> to vector<16x128xf32>
    %295 = vector.extract_strided_slice %285 {offsets = [0, 128], sizes = [16, 128], strides = [1, 1]} : vector<16x384xf32> to vector<16x128xf32>
    %296 = arith.addf %294, %295 : vector<16x128xf32>
    %297 = arith.negf %296 : vector<16x128xf32>
    %298 = math.exp %297 : vector<16x128xf32>
    %cst_98 = arith.constant 1.000000e+00 : f32
    %299 = vector.broadcast %cst_98 : f32 to vector<16x128xf32>
    %300 = arith.addf %299, %298 : vector<16x128xf32>
    %301 = arith.divf %299, %300 : vector<16x128xf32>
    %302 = vector.extract_strided_slice %283 {offsets = [0, 256], sizes = [16, 128], strides = [1, 1]} : vector<16x384xf32> to vector<16x128xf32>
    %303 = vector.extract_strided_slice %285 {offsets = [0, 256], sizes = [16, 128], strides = [1, 1]} : vector<16x384xf32> to vector<16x128xf32>
    %304 = vector.broadcast %13 : vector<1x128xf32> to vector<16x128xf32>
    %305 = arith.addf %303, %304 : vector<16x128xf32>
    %306 = arith.mulf %293, %305 : vector<16x128xf32>
    %307 = arith.addf %302, %306 : vector<16x128xf32>
    %308 = math.tanh %307 : vector<16x128xf32>
    %309 = arith.subf %280, %308 : vector<16x128xf32>
    %310 = arith.mulf %301, %309 : vector<16x128xf32>
    %311 = arith.addf %308, %310 : vector<16x128xf32>
    %c0_99 = arith.constant 0 : index
    %c0_100 = arith.constant 0 : index
    %312 = vector.load %arg8[%c0_99, %c0_100] : memref<16x128xf32, #tpu.memory_space<vmem>>, vector<16x128xf32>
    tpu.vector_store %arg8[%c0_99, %c0_100], %311 {strides = array<i32>} : memref<16x128xf32, #tpu.memory_space<vmem>>, vector<16x128xf32>,
    %313 = arith.truncf %311 : vector<16x128xf32> to vector<16x128xbf16>
    %314 = arith.index_cast %c7_i32 : i32 to index
    %c0_101 = arith.constant 0 : index
    %c0_102 = arith.constant 0 : index
    %315 = vector.load %arg7[%314, %c0_101, %c0_102] : memref<8x16x128xbf16, #tpu.memory_space<vmem>>, vector<1x16x128xbf16>
    %316 = vector.shape_cast %315 : vector<1x16x128xbf16> to vector<16x128xbf16>
    %317 = vector.shape_cast %313 : vector<16x128xbf16> to vector<1x16x128xbf16>
    tpu.vector_store %arg7[%314, %c0_101, %c0_102], %317 {strides = array<i32>} : memref<8x16x128xbf16, #tpu.memory_space<vmem>>, vector<1x16x128xbf16>,
    %c8_i32 = arith.constant 8 : i32
    return
  }
  func.func @transform_0(%arg0: i32, %arg1: i32) -> (i32, i32, i32) {
    %c0_i32 = arith.constant 0 : i32
    %c0_i32_0 = arith.constant 0 : i32
    return %arg1, %arg0, %c0_i32 : i32, i32, i32
  }
  func.func @transform_1(%arg0: i32, %arg1: i32) -> (i32, i32) {
    %c0_i32 = arith.constant 0 : i32
    %c0_i32_0 = arith.constant 0 : i32
    %c0_i32_1 = arith.constant 0 : i32
    return %c0_i32, %c0_i32_0 : i32, i32
  }
  func.func @transform_2(%arg0: i32, %arg1: i32) -> (i32, i32) {
    %c0_i32 = arith.constant 0 : i32
    %c0_i32_0 = arith.constant 0 : i32
    %c0_i32_1 = arith.constant 0 : i32
    return %c0_i32, %c0_i32_0 : i32, i32
  }
  func.func @transform_3(%arg0: i32, %arg1: i32) -> (i32, i32) {
    %c0_i32 = arith.constant 0 : i32
    %c0_i32_0 = arith.constant 0 : i32
    %c0_i32_1 = arith.constant 0 : i32
    return %c0_i32, %c0_i32_0 : i32, i32
  }
  func.func @transform_4(%arg0: i32, %arg1: i32) -> (i32, i32) {
    %c0_i32 = arith.constant 0 : i32
    %c0_i32_0 = arith.constant 0 : i32
    %c0_i32_1 = arith.constant 0 : i32
    return %c0_i32, %c0_i32_0 : i32, i32
  }
  func.func @transform_5(%arg0: i32, %arg1: i32) -> (i32, i32, i32) {
    %c0_i32 = arith.constant 0 : i32
    %c0_i32_0 = arith.constant 0 : i32
    return %arg1, %arg0, %c0_i32 : i32, i32, i32
  }
}

module attributes {stable_mosaic.version = 11 : i64} {
  func.func @fc_softmax_kernel(%arg0: memref<16x128xbf16, #tpu.memory_space<vmem>>, %arg1: memref<128x128xbf16, #tpu.memory_space<vmem>>, %arg2: memref<1x128xf32, #tpu.memory_space<vmem>>, %arg3: memref<16x128xf32, #tpu.memory_space<vmem>>) attributes {dimension_semantics = [], scalar_prefetch = 0 : i64, scratch_operands = 0 : i64, tpu.core_type = #tpu.core_type<tc>} {
    %c0 = arith.constant 0 : index
    %c0_0 = arith.constant 0 : index
    %0 = vector.load %arg0[%c0, %c0_0] : memref<16x128xbf16, #tpu.memory_space<vmem>>, vector<16x128xbf16>
    %c0_1 = arith.constant 0 : index
    %c0_2 = arith.constant 0 : index
    %1 = vector.load %arg1[%c0_1, %c0_2] : memref<128x128xbf16, #tpu.memory_space<vmem>>, vector<128x128xbf16>
    %cst = arith.constant dense<0.000000e+00> : vector<16x128xf32>
    %2 = tpu.matmul %0, %1, %cst {dimension_numbers = #tpu.dot_dimension_numbers<[1], [0], [0], [1], [0, 0, 1, 1], [], []>} : vector<16x128xbf16>, vector<128x128xbf16>, vector<16x128xf32> -> vector<16x128xf32>
    %c0_3 = arith.constant 0 : index
    %c0_4 = arith.constant 0 : index
    %3 = vector.load %arg2[%c0_3, %c0_4] : memref<1x128xf32, #tpu.memory_space<vmem>>, vector<1x128xf32>
    %4 = vector.broadcast %3 : vector<1x128xf32> to vector<16x128xf32>
    %5 = arith.addf %2, %4 : vector<16x128xf32>
    %6 = tpu.iota {dimensions = array<i32: 1>} : vector<16x128xi32>
    %c8_i32 = arith.constant 8 : i32
    %7 = vector.broadcast %c8_i32 : i32 to vector<16x128xi32>
    %8 = arith.cmpi slt, %6, %7 : vector<16x128xi32>
    %cst_5 = arith.constant -1.000000e+30 : f32
    %9 = vector.broadcast %cst_5 : f32 to vector<16x128xf32>
    %10 = arith.select %8, %5, %9 : vector<16x128xi1>, vector<16x128xf32>
    %cst_6 = arith.constant dense<0xFF800000> : vector<16xf32>
    %11 = vector.multi_reduction <maximumf>, %10, %cst_6 [1] : vector<16x128xf32> to vector<16xf32>
    %12 = vector.shape_cast %11 : vector<16xf32> to vector<16x1xf32>
    %13 = vector.broadcast %12 : vector<16x1xf32> to vector<16x128xf32>
    %14 = arith.subf %10, %13 : vector<16x128xf32>
    %15 = math.exp %14 : vector<16x128xf32>
    %cst_7 = arith.constant dense<0.000000e+00> : vector<16xf32>
    %16 = vector.multi_reduction <add>, %15, %cst_7 [1] : vector<16x128xf32> to vector<16xf32>
    %17 = vector.shape_cast %16 : vector<16xf32> to vector<16x1xf32>
    %18 = tpu.reciprocal %17 {approx = true} : vector<16x1xf32> -> vector<16x1xf32>
    %19 = arith.mulf %17, %18 : vector<16x1xf32>
    %cst_8 = arith.constant 2.000000e+00 : f32
    %20 = vector.broadcast %cst_8 : f32 to vector<16x1xf32>
    %21 = arith.subf %20, %19 : vector<16x1xf32>
    %22 = arith.mulf %18, %21 : vector<16x1xf32>
    %23 = arith.mulf %17, %22 : vector<16x1xf32>
    %cst_9 = arith.constant 2.000000e+00 : f32
    %24 = vector.broadcast %cst_9 : f32 to vector<16x1xf32>
    %25 = arith.subf %24, %23 : vector<16x1xf32>
    %26 = arith.mulf %22, %25 : vector<16x1xf32>
    %27 = vector.broadcast %26 : vector<16x1xf32> to vector<16x128xf32>
    %28 = arith.mulf %15, %27 : vector<16x128xf32>
    %c0_10 = arith.constant 0 : index
    %c0_11 = arith.constant 0 : index
    %29 = vector.load %arg3[%c0_10, %c0_11] : memref<16x128xf32, #tpu.memory_space<vmem>>, vector<16x128xf32>
    tpu.vector_store %arg3[%c0_10, %c0_11], %28 {strides = array<i32>} : memref<16x128xf32, #tpu.memory_space<vmem>>, vector<16x128xf32>,
    return
  }
}

module attributes {stable_mosaic.version = 11 : i64} {
  func.func @gru_layer_kernel(%arg0: i32, %arg1: i32, %arg2: memref<8x16x128xf32, #tpu.memory_space<vmem>>, %arg3: memref<128x384xbf16, #tpu.memory_space<vmem>>, %arg4: memref<128x384xbf16, #tpu.memory_space<vmem>>, %arg5: memref<1x384xf32, #tpu.memory_space<vmem>>, %arg6: memref<1x128xf32, #tpu.memory_space<vmem>>, %arg7: memref<8x16x128xbf16, #tpu.memory_space<vmem>>, %arg8: memref<16x128xf32, #tpu.memory_space<vmem>>, %arg9: memref<8x16x384xf32, #tpu.memory_space<vmem>>) attributes {dimension_semantics = [#tpu.dimension_semantics<parallel>, #tpu.dimension_semantics<arbitrary>], iteration_bounds = array<i64: 1, 1>, scalar_prefetch = 0 : i64, scratch_operands = 2 : i64, tpu.core_type = #tpu.core_type<tc>, window_params = [{transform_indices = @transform_0, window_bounds = array<i64: 8, 16, 128>}, {pipeline_mode = #tpu.pipeline_mode<synchronous>, transform_indices = @transform_1, window_bounds = array<i64: 128, 384>}, {pipeline_mode = #tpu.pipeline_mode<synchronous>, transform_indices = @transform_2, window_bounds = array<i64: 128, 384>}, {pipeline_mode = #tpu.pipeline_mode<synchronous>, transform_indices = @transform_3, window_bounds = array<i64: 1, 384>}, {pipeline_mode = #tpu.pipeline_mode<synchronous>, transform_indices = @transform_4, window_bounds = array<i64: 1, 128>}, {transform_indices = @transform_5, window_bounds = array<i64: 8, 16, 128>}]} {
    %c0_i32 = arith.constant 0 : i32
    %0 = arith.cmpi eq, %arg1, %c0_i32 : i32
    %1 = arith.extui %0 : i1 to i32
    %c0_i32_0 = arith.constant 0 : i32
    %2 = arith.cmpi ne, %1, %c0_i32_0 : i32
    scf.if %2 {
      %cst_103 = arith.constant 0.000000e+00 : f32
      %319 = vector.broadcast %cst_103 : f32 to vector<16x128xf32>
      %c0_104 = arith.constant 0 : index
      %c0_105 = arith.constant 0 : index
      %320 = vector.load %arg8[%c0_104, %c0_105] : memref<16x128xf32, #tpu.memory_space<vmem>>, vector<16x128xf32>
      tpu.vector_store %arg8[%c0_104, %c0_105], %319 {strides = array<i32>} : memref<16x128xf32, #tpu.memory_space<vmem>>, vector<16x128xf32>,
    } else {
    }
    %c0 = arith.constant 0 : index
    %c0_1 = arith.constant 0 : index
    %c0_2 = arith.constant 0 : index
    %3 = vector.load %arg2[%c0, %c0_1, %c0_2] : memref<8x16x128xf32, #tpu.memory_space<vmem>>, vector<8x16x128xf32>
    %4 = vector.shape_cast %3 : vector<8x16x128xf32> to vector<128x128xf32>
    %5 = arith.truncf %4 : vector<128x128xf32> to vector<128x128xbf16>
    %c0_3 = arith.constant 0 : index
    %c0_4 = arith.constant 0 : index
    %6 = vector.load %arg3[%c0_3, %c0_4] : memref<128x384xbf16, #tpu.memory_space<vmem>>, vector<128x384xbf16>
    %cst = arith.constant dense<0.000000e+00> : vector<128x384xf32>
    %7 = tpu.matmul %5, %6, %cst {dimension_numbers = #tpu.dot_dimension_numbers<[1], [0], [0], [1], [0, 0, 1, 1], [], []>} : vector<128x128xbf16>, vector<128x384xbf16>, vector<128x384xf32> -> vector<128x384xf32>
    %c0_5 = arith.constant 0 : index
    %c0_6 = arith.constant 0 : index
    %8 = vector.load %arg5[%c0_5, %c0_6] : memref<1x384xf32, #tpu.memory_space<vmem>>, vector<1x384xf32>
    %9 = vector.broadcast %8 : vector<1x384xf32> to vector<128x384xf32>
    %10 = arith.addf %7, %9 : vector<128x384xf32>
    %11 = vector.shape_cast %10 : vector<128x384xf32> to vector<8x16x384xf32>
    %c0_7 = arith.constant 0 : index
    %c0_8 = arith.constant 0 : index
    %c0_9 = arith.constant 0 : index
    %12 = vector.load %arg9[%c0_7, %c0_8, %c0_9] : memref<8x16x384xf32, #tpu.memory_space<vmem>>, vector<8x16x384xf32>
    tpu.vector_store %arg9[%c0_7, %c0_8, %c0_9], %11 {strides = array<i32>} : memref<8x16x384xf32, #tpu.memory_space<vmem>>, vector<8x16x384xf32>,
    %c0_10 = arith.constant 0 : index
    %c0_11 = arith.constant 0 : index
    %13 = vector.load %arg4[%c0_10, %c0_11] : memref<128x384xbf16, #tpu.memory_space<vmem>>, vector<128x384xbf16>
    %c0_12 = arith.constant 0 : index
    %c0_13 = arith.constant 0 : index
    %14 = vector.load %arg6[%c0_12, %c0_13] : memref<1x128xf32, #tpu.memory_space<vmem>>, vector<1x128xf32>
    %c0_i32_14 = arith.constant 0 : i32
    %c0_15 = arith.constant 0 : index
    %c0_16 = arith.constant 0 : index
    %15 = vector.load %arg8[%c0_15, %c0_16] : memref<16x128xf32, #tpu.memory_space<vmem>>, vector<16x128xf32>
    %16 = arith.index_cast %c0_i32_14 : i32 to index
    %c0_17 = arith.constant 0 : index
    %c0_18 = arith.constant 0 : index
    %17 = vector.load %arg9[%16, %c0_17, %c0_18] : memref<8x16x384xf32, #tpu.memory_space<vmem>>, vector<1x16x384xf32>
    %18 = vector.shape_cast %17 : vector<1x16x384xf32> to vector<16x384xf32>
    %19 = arith.truncf %15 : vector<16x128xf32> to vector<16x128xbf16>
    %cst_19 = arith.constant dense<0.000000e+00> : vector<16x384xf32>
    %20 = tpu.matmul %19, %13, %cst_19 {dimension_numbers = #tpu.dot_dimension_numbers<[1], [0], [0], [1], [0, 0, 1, 1], [], []>} : vector<16x128xbf16>, vector<128x384xbf16>, vector<16x384xf32> -> vector<16x384xf32>
    %21 = vector.extract_strided_slice %18 {offsets = [0, 0], sizes = [16, 128], strides = [1, 1]} : vector<16x384xf32> to vector<16x128xf32>
    %22 = vector.extract_strided_slice %20 {offsets = [0, 0], sizes = [16, 128], strides = [1, 1]} : vector<16x384xf32> to vector<16x128xf32>
    %23 = arith.addf %21, %22 : vector<16x128xf32>
    %24 = arith.negf %23 : vector<16x128xf32>
    %25 = math.exp %24 : vector<16x128xf32>
    %cst_20 = arith.constant 1.000000e+00 : f32
    %26 = vector.broadcast %cst_20 : f32 to vector<16x128xf32>
    %27 = arith.addf %26, %25 : vector<16x128xf32>
    %28 = arith.divf %26, %27 : vector<16x128xf32>
    %29 = vector.extract_strided_slice %18 {offsets = [0, 128], sizes = [16, 128], strides = [1, 1]} : vector<16x384xf32> to vector<16x128xf32>
    %30 = vector.extract_strided_slice %20 {offsets = [0, 128], sizes = [16, 128], strides = [1, 1]} : vector<16x384xf32> to vector<16x128xf32>
    %31 = arith.addf %29, %30 : vector<16x128xf32>
    %32 = arith.negf %31 : vector<16x128xf32>
    %33 = math.exp %32 : vector<16x128xf32>
    %cst_21 = arith.constant 1.000000e+00 : f32
    %34 = vector.broadcast %cst_21 : f32 to vector<16x128xf32>
    %35 = arith.addf %34, %33 : vector<16x128xf32>
    %36 = arith.divf %34, %35 : vector<16x128xf32>
    %37 = vector.extract_strided_slice %18 {offsets = [0, 256], sizes = [16, 128], strides = [1, 1]} : vector<16x384xf32> to vector<16x128xf32>
    %38 = vector.extract_strided_slice %20 {offsets = [0, 256], sizes = [16, 128], strides = [1, 1]} : vector<16x384xf32> to vector<16x128xf32>
    %39 = vector.broadcast %14 : vector<1x128xf32> to vector<16x128xf32>
    %40 = arith.addf %38, %39 : vector<16x128xf32>
    %41 = arith.mulf %28, %40 : vector<16x128xf32>
    %42 = arith.addf %37, %41 : vector<16x128xf32>
    %43 = math.tanh %42 : vector<16x128xf32>
    %44 = arith.subf %15, %43 : vector<16x128xf32>
    %45 = arith.mulf %36, %44 : vector<16x128xf32>
    %46 = arith.addf %43, %45 : vector<16x128xf32>
    %c0_22 = arith.constant 0 : index
    %c0_23 = arith.constant 0 : index
    %47 = vector.load %arg8[%c0_22, %c0_23] : memref<16x128xf32, #tpu.memory_space<vmem>>, vector<16x128xf32>
    tpu.vector_store %arg8[%c0_22, %c0_23], %46 {strides = array<i32>} : memref<16x128xf32, #tpu.memory_space<vmem>>, vector<16x128xf32>,
    %48 = arith.truncf %46 : vector<16x128xf32> to vector<16x128xbf16>
    %49 = arith.index_cast %c0_i32_14 : i32 to index
    %c0_24 = arith.constant 0 : index
    %c0_25 = arith.constant 0 : index
    %50 = vector.load %arg7[%49, %c0_24, %c0_25] : memref<8x16x128xbf16, #tpu.memory_space<vmem>>, vector<1x16x128xbf16>
    %51 = vector.shape_cast %50 : vector<1x16x128xbf16> to vector<16x128xbf16>
    %52 = vector.shape_cast %48 : vector<16x128xbf16> to vector<1x16x128xbf16>
    tpu.vector_store %arg7[%49, %c0_24, %c0_25], %52 {strides = array<i32>} : memref<8x16x128xbf16, #tpu.memory_space<vmem>>, vector<1x16x128xbf16>,
    %c1_i32 = arith.constant 1 : i32
    %c0_26 = arith.constant 0 : index
    %c0_27 = arith.constant 0 : index
    %53 = vector.load %arg8[%c0_26, %c0_27] : memref<16x128xf32, #tpu.memory_space<vmem>>, vector<16x128xf32>
    %54 = arith.index_cast %c1_i32 : i32 to index
    %c0_28 = arith.constant 0 : index
    %c0_29 = arith.constant 0 : index
    %55 = vector.load %arg9[%54, %c0_28, %c0_29] : memref<8x16x384xf32, #tpu.memory_space<vmem>>, vector<1x16x384xf32>
    %56 = vector.shape_cast %55 : vector<1x16x384xf32> to vector<16x384xf32>
    %57 = arith.truncf %53 : vector<16x128xf32> to vector<16x128xbf16>
    %cst_30 = arith.constant dense<0.000000e+00> : vector<16x384xf32>
    %58 = tpu.matmul %57, %13, %cst_30 {dimension_numbers = #tpu.dot_dimension_numbers<[1], [0], [0], [1], [0, 0, 1, 1], [], []>} : vector<16x128xbf16>, vector<128x384xbf16>, vector<16x384xf32> -> vector<16x384xf32>
    %59 = vector.extract_strided_slice %56 {offsets = [0, 0], sizes = [16, 128], strides = [1, 1]} : vector<16x384xf32> to vector<16x128xf32>
    %60 = vector.extract_strided_slice %58 {offsets = [0, 0], sizes = [16, 128], strides = [1, 1]} : vector<16x384xf32> to vector<16x128xf32>
    %61 = arith.addf %59, %60 : vector<16x128xf32>
    %62 = arith.negf %61 : vector<16x128xf32>
    %63 = math.exp %62 : vector<16x128xf32>
    %cst_31 = arith.constant 1.000000e+00 : f32
    %64 = vector.broadcast %cst_31 : f32 to vector<16x128xf32>
    %65 = arith.addf %64, %63 : vector<16x128xf32>
    %66 = arith.divf %64, %65 : vector<16x128xf32>
    %67 = vector.extract_strided_slice %56 {offsets = [0, 128], sizes = [16, 128], strides = [1, 1]} : vector<16x384xf32> to vector<16x128xf32>
    %68 = vector.extract_strided_slice %58 {offsets = [0, 128], sizes = [16, 128], strides = [1, 1]} : vector<16x384xf32> to vector<16x128xf32>
    %69 = arith.addf %67, %68 : vector<16x128xf32>
    %70 = arith.negf %69 : vector<16x128xf32>
    %71 = math.exp %70 : vector<16x128xf32>
    %cst_32 = arith.constant 1.000000e+00 : f32
    %72 = vector.broadcast %cst_32 : f32 to vector<16x128xf32>
    %73 = arith.addf %72, %71 : vector<16x128xf32>
    %74 = arith.divf %72, %73 : vector<16x128xf32>
    %75 = vector.extract_strided_slice %56 {offsets = [0, 256], sizes = [16, 128], strides = [1, 1]} : vector<16x384xf32> to vector<16x128xf32>
    %76 = vector.extract_strided_slice %58 {offsets = [0, 256], sizes = [16, 128], strides = [1, 1]} : vector<16x384xf32> to vector<16x128xf32>
    %77 = vector.broadcast %14 : vector<1x128xf32> to vector<16x128xf32>
    %78 = arith.addf %76, %77 : vector<16x128xf32>
    %79 = arith.mulf %66, %78 : vector<16x128xf32>
    %80 = arith.addf %75, %79 : vector<16x128xf32>
    %81 = math.tanh %80 : vector<16x128xf32>
    %82 = arith.subf %53, %81 : vector<16x128xf32>
    %83 = arith.mulf %74, %82 : vector<16x128xf32>
    %84 = arith.addf %81, %83 : vector<16x128xf32>
    %c0_33 = arith.constant 0 : index
    %c0_34 = arith.constant 0 : index
    %85 = vector.load %arg8[%c0_33, %c0_34] : memref<16x128xf32, #tpu.memory_space<vmem>>, vector<16x128xf32>
    tpu.vector_store %arg8[%c0_33, %c0_34], %84 {strides = array<i32>} : memref<16x128xf32, #tpu.memory_space<vmem>>, vector<16x128xf32>,
    %86 = arith.truncf %84 : vector<16x128xf32> to vector<16x128xbf16>
    %87 = arith.index_cast %c1_i32 : i32 to index
    %c0_35 = arith.constant 0 : index
    %c0_36 = arith.constant 0 : index
    %88 = vector.load %arg7[%87, %c0_35, %c0_36] : memref<8x16x128xbf16, #tpu.memory_space<vmem>>, vector<1x16x128xbf16>
    %89 = vector.shape_cast %88 : vector<1x16x128xbf16> to vector<16x128xbf16>
    %90 = vector.shape_cast %86 : vector<16x128xbf16> to vector<1x16x128xbf16>
    tpu.vector_store %arg7[%87, %c0_35, %c0_36], %90 {strides = array<i32>} : memref<8x16x128xbf16, #tpu.memory_space<vmem>>, vector<1x16x128xbf16>,
    %c2_i32 = arith.constant 2 : i32
    %c0_37 = arith.constant 0 : index
    %c0_38 = arith.constant 0 : index
    %91 = vector.load %arg8[%c0_37, %c0_38] : memref<16x128xf32, #tpu.memory_space<vmem>>, vector<16x128xf32>
    %92 = arith.index_cast %c2_i32 : i32 to index
    %c0_39 = arith.constant 0 : index
    %c0_40 = arith.constant 0 : index
    %93 = vector.load %arg9[%92, %c0_39, %c0_40] : memref<8x16x384xf32, #tpu.memory_space<vmem>>, vector<1x16x384xf32>
    %94 = vector.shape_cast %93 : vector<1x16x384xf32> to vector<16x384xf32>
    %95 = arith.truncf %91 : vector<16x128xf32> to vector<16x128xbf16>
    %cst_41 = arith.constant dense<0.000000e+00> : vector<16x384xf32>
    %96 = tpu.matmul %95, %13, %cst_41 {dimension_numbers = #tpu.dot_dimension_numbers<[1], [0], [0], [1], [0, 0, 1, 1], [], []>} : vector<16x128xbf16>, vector<128x384xbf16>, vector<16x384xf32> -> vector<16x384xf32>
    %97 = vector.extract_strided_slice %94 {offsets = [0, 0], sizes = [16, 128], strides = [1, 1]} : vector<16x384xf32> to vector<16x128xf32>
    %98 = vector.extract_strided_slice %96 {offsets = [0, 0], sizes = [16, 128], strides = [1, 1]} : vector<16x384xf32> to vector<16x128xf32>
    %99 = arith.addf %97, %98 : vector<16x128xf32>
    %100 = arith.negf %99 : vector<16x128xf32>
    %101 = math.exp %100 : vector<16x128xf32>
    %cst_42 = arith.constant 1.000000e+00 : f32
    %102 = vector.broadcast %cst_42 : f32 to vector<16x128xf32>
    %103 = arith.addf %102, %101 : vector<16x128xf32>
    %104 = arith.divf %102, %103 : vector<16x128xf32>
    %105 = vector.extract_strided_slice %94 {offsets = [0, 128], sizes = [16, 128], strides = [1, 1]} : vector<16x384xf32> to vector<16x128xf32>
    %106 = vector.extract_strided_slice %96 {offsets = [0, 128], sizes = [16, 128], strides = [1, 1]} : vector<16x384xf32> to vector<16x128xf32>
    %107 = arith.addf %105, %106 : vector<16x128xf32>
    %108 = arith.negf %107 : vector<16x128xf32>
    %109 = math.exp %108 : vector<16x128xf32>
    %cst_43 = arith.constant 1.000000e+00 : f32
    %110 = vector.broadcast %cst_43 : f32 to vector<16x128xf32>
    %111 = arith.addf %110, %109 : vector<16x128xf32>
    %112 = arith.divf %110, %111 : vector<16x128xf32>
    %113 = vector.extract_strided_slice %94 {offsets = [0, 256], sizes = [16, 128], strides = [1, 1]} : vector<16x384xf32> to vector<16x128xf32>
    %114 = vector.extract_strided_slice %96 {offsets = [0, 256], sizes = [16, 128], strides = [1, 1]} : vector<16x384xf32> to vector<16x128xf32>
    %115 = vector.broadcast %14 : vector<1x128xf32> to vector<16x128xf32>
    %116 = arith.addf %114, %115 : vector<16x128xf32>
    %117 = arith.mulf %104, %116 : vector<16x128xf32>
    %118 = arith.addf %113, %117 : vector<16x128xf32>
    %119 = math.tanh %118 : vector<16x128xf32>
    %120 = arith.subf %91, %119 : vector<16x128xf32>
    %121 = arith.mulf %112, %120 : vector<16x128xf32>
    %122 = arith.addf %119, %121 : vector<16x128xf32>
    %c0_44 = arith.constant 0 : index
    %c0_45 = arith.constant 0 : index
    %123 = vector.load %arg8[%c0_44, %c0_45] : memref<16x128xf32, #tpu.memory_space<vmem>>, vector<16x128xf32>
    tpu.vector_store %arg8[%c0_44, %c0_45], %122 {strides = array<i32>} : memref<16x128xf32, #tpu.memory_space<vmem>>, vector<16x128xf32>,
    %124 = arith.truncf %122 : vector<16x128xf32> to vector<16x128xbf16>
    %125 = arith.index_cast %c2_i32 : i32 to index
    %c0_46 = arith.constant 0 : index
    %c0_47 = arith.constant 0 : index
    %126 = vector.load %arg7[%125, %c0_46, %c0_47] : memref<8x16x128xbf16, #tpu.memory_space<vmem>>, vector<1x16x128xbf16>
    %127 = vector.shape_cast %126 : vector<1x16x128xbf16> to vector<16x128xbf16>
    %128 = vector.shape_cast %124 : vector<16x128xbf16> to vector<1x16x128xbf16>
    tpu.vector_store %arg7[%125, %c0_46, %c0_47], %128 {strides = array<i32>} : memref<8x16x128xbf16, #tpu.memory_space<vmem>>, vector<1x16x128xbf16>,
    %c3_i32 = arith.constant 3 : i32
    %c0_48 = arith.constant 0 : index
    %c0_49 = arith.constant 0 : index
    %129 = vector.load %arg8[%c0_48, %c0_49] : memref<16x128xf32, #tpu.memory_space<vmem>>, vector<16x128xf32>
    %130 = arith.index_cast %c3_i32 : i32 to index
    %c0_50 = arith.constant 0 : index
    %c0_51 = arith.constant 0 : index
    %131 = vector.load %arg9[%130, %c0_50, %c0_51] : memref<8x16x384xf32, #tpu.memory_space<vmem>>, vector<1x16x384xf32>
    %132 = vector.shape_cast %131 : vector<1x16x384xf32> to vector<16x384xf32>
    %133 = arith.truncf %129 : vector<16x128xf32> to vector<16x128xbf16>
    %cst_52 = arith.constant dense<0.000000e+00> : vector<16x384xf32>
    %134 = tpu.matmul %133, %13, %cst_52 {dimension_numbers = #tpu.dot_dimension_numbers<[1], [0], [0], [1], [0, 0, 1, 1], [], []>} : vector<16x128xbf16>, vector<128x384xbf16>, vector<16x384xf32> -> vector<16x384xf32>
    %135 = vector.extract_strided_slice %132 {offsets = [0, 0], sizes = [16, 128], strides = [1, 1]} : vector<16x384xf32> to vector<16x128xf32>
    %136 = vector.extract_strided_slice %134 {offsets = [0, 0], sizes = [16, 128], strides = [1, 1]} : vector<16x384xf32> to vector<16x128xf32>
    %137 = arith.addf %135, %136 : vector<16x128xf32>
    %138 = arith.negf %137 : vector<16x128xf32>
    %139 = math.exp %138 : vector<16x128xf32>
    %cst_53 = arith.constant 1.000000e+00 : f32
    %140 = vector.broadcast %cst_53 : f32 to vector<16x128xf32>
    %141 = arith.addf %140, %139 : vector<16x128xf32>
    %142 = arith.divf %140, %141 : vector<16x128xf32>
    %143 = vector.extract_strided_slice %132 {offsets = [0, 128], sizes = [16, 128], strides = [1, 1]} : vector<16x384xf32> to vector<16x128xf32>
    %144 = vector.extract_strided_slice %134 {offsets = [0, 128], sizes = [16, 128], strides = [1, 1]} : vector<16x384xf32> to vector<16x128xf32>
    %145 = arith.addf %143, %144 : vector<16x128xf32>
    %146 = arith.negf %145 : vector<16x128xf32>
    %147 = math.exp %146 : vector<16x128xf32>
    %cst_54 = arith.constant 1.000000e+00 : f32
    %148 = vector.broadcast %cst_54 : f32 to vector<16x128xf32>
    %149 = arith.addf %148, %147 : vector<16x128xf32>
    %150 = arith.divf %148, %149 : vector<16x128xf32>
    %151 = vector.extract_strided_slice %132 {offsets = [0, 256], sizes = [16, 128], strides = [1, 1]} : vector<16x384xf32> to vector<16x128xf32>
    %152 = vector.extract_strided_slice %134 {offsets = [0, 256], sizes = [16, 128], strides = [1, 1]} : vector<16x384xf32> to vector<16x128xf32>
    %153 = vector.broadcast %14 : vector<1x128xf32> to vector<16x128xf32>
    %154 = arith.addf %152, %153 : vector<16x128xf32>
    %155 = arith.mulf %142, %154 : vector<16x128xf32>
    %156 = arith.addf %151, %155 : vector<16x128xf32>
    %157 = math.tanh %156 : vector<16x128xf32>
    %158 = arith.subf %129, %157 : vector<16x128xf32>
    %159 = arith.mulf %150, %158 : vector<16x128xf32>
    %160 = arith.addf %157, %159 : vector<16x128xf32>
    %c0_55 = arith.constant 0 : index
    %c0_56 = arith.constant 0 : index
    %161 = vector.load %arg8[%c0_55, %c0_56] : memref<16x128xf32, #tpu.memory_space<vmem>>, vector<16x128xf32>
    tpu.vector_store %arg8[%c0_55, %c0_56], %160 {strides = array<i32>} : memref<16x128xf32, #tpu.memory_space<vmem>>, vector<16x128xf32>,
    %162 = arith.truncf %160 : vector<16x128xf32> to vector<16x128xbf16>
    %163 = arith.index_cast %c3_i32 : i32 to index
    %c0_57 = arith.constant 0 : index
    %c0_58 = arith.constant 0 : index
    %164 = vector.load %arg7[%163, %c0_57, %c0_58] : memref<8x16x128xbf16, #tpu.memory_space<vmem>>, vector<1x16x128xbf16>
    %165 = vector.shape_cast %164 : vector<1x16x128xbf16> to vector<16x128xbf16>
    %166 = vector.shape_cast %162 : vector<16x128xbf16> to vector<1x16x128xbf16>
    tpu.vector_store %arg7[%163, %c0_57, %c0_58], %166 {strides = array<i32>} : memref<8x16x128xbf16, #tpu.memory_space<vmem>>, vector<1x16x128xbf16>,
    %c4_i32 = arith.constant 4 : i32
    %c0_59 = arith.constant 0 : index
    %c0_60 = arith.constant 0 : index
    %167 = vector.load %arg8[%c0_59, %c0_60] : memref<16x128xf32, #tpu.memory_space<vmem>>, vector<16x128xf32>
    %168 = arith.index_cast %c4_i32 : i32 to index
    %c0_61 = arith.constant 0 : index
    %c0_62 = arith.constant 0 : index
    %169 = vector.load %arg9[%168, %c0_61, %c0_62] : memref<8x16x384xf32, #tpu.memory_space<vmem>>, vector<1x16x384xf32>
    %170 = vector.shape_cast %169 : vector<1x16x384xf32> to vector<16x384xf32>
    %171 = arith.truncf %167 : vector<16x128xf32> to vector<16x128xbf16>
    %cst_63 = arith.constant dense<0.000000e+00> : vector<16x384xf32>
    %172 = tpu.matmul %171, %13, %cst_63 {dimension_numbers = #tpu.dot_dimension_numbers<[1], [0], [0], [1], [0, 0, 1, 1], [], []>} : vector<16x128xbf16>, vector<128x384xbf16>, vector<16x384xf32> -> vector<16x384xf32>
    %173 = vector.extract_strided_slice %170 {offsets = [0, 0], sizes = [16, 128], strides = [1, 1]} : vector<16x384xf32> to vector<16x128xf32>
    %174 = vector.extract_strided_slice %172 {offsets = [0, 0], sizes = [16, 128], strides = [1, 1]} : vector<16x384xf32> to vector<16x128xf32>
    %175 = arith.addf %173, %174 : vector<16x128xf32>
    %176 = arith.negf %175 : vector<16x128xf32>
    %177 = math.exp %176 : vector<16x128xf32>
    %cst_64 = arith.constant 1.000000e+00 : f32
    %178 = vector.broadcast %cst_64 : f32 to vector<16x128xf32>
    %179 = arith.addf %178, %177 : vector<16x128xf32>
    %180 = arith.divf %178, %179 : vector<16x128xf32>
    %181 = vector.extract_strided_slice %170 {offsets = [0, 128], sizes = [16, 128], strides = [1, 1]} : vector<16x384xf32> to vector<16x128xf32>
    %182 = vector.extract_strided_slice %172 {offsets = [0, 128], sizes = [16, 128], strides = [1, 1]} : vector<16x384xf32> to vector<16x128xf32>
    %183 = arith.addf %181, %182 : vector<16x128xf32>
    %184 = arith.negf %183 : vector<16x128xf32>
    %185 = math.exp %184 : vector<16x128xf32>
    %cst_65 = arith.constant 1.000000e+00 : f32
    %186 = vector.broadcast %cst_65 : f32 to vector<16x128xf32>
    %187 = arith.addf %186, %185 : vector<16x128xf32>
    %188 = arith.divf %186, %187 : vector<16x128xf32>
    %189 = vector.extract_strided_slice %170 {offsets = [0, 256], sizes = [16, 128], strides = [1, 1]} : vector<16x384xf32> to vector<16x128xf32>
    %190 = vector.extract_strided_slice %172 {offsets = [0, 256], sizes = [16, 128], strides = [1, 1]} : vector<16x384xf32> to vector<16x128xf32>
    %191 = vector.broadcast %14 : vector<1x128xf32> to vector<16x128xf32>
    %192 = arith.addf %190, %191 : vector<16x128xf32>
    %193 = arith.mulf %180, %192 : vector<16x128xf32>
    %194 = arith.addf %189, %193 : vector<16x128xf32>
    %195 = math.tanh %194 : vector<16x128xf32>
    %196 = arith.subf %167, %195 : vector<16x128xf32>
    %197 = arith.mulf %188, %196 : vector<16x128xf32>
    %198 = arith.addf %195, %197 : vector<16x128xf32>
    %c0_66 = arith.constant 0 : index
    %c0_67 = arith.constant 0 : index
    %199 = vector.load %arg8[%c0_66, %c0_67] : memref<16x128xf32, #tpu.memory_space<vmem>>, vector<16x128xf32>
    tpu.vector_store %arg8[%c0_66, %c0_67], %198 {strides = array<i32>} : memref<16x128xf32, #tpu.memory_space<vmem>>, vector<16x128xf32>,
    %200 = arith.truncf %198 : vector<16x128xf32> to vector<16x128xbf16>
    %201 = arith.index_cast %c4_i32 : i32 to index
    %c0_68 = arith.constant 0 : index
    %c0_69 = arith.constant 0 : index
    %202 = vector.load %arg7[%201, %c0_68, %c0_69] : memref<8x16x128xbf16, #tpu.memory_space<vmem>>, vector<1x16x128xbf16>
    %203 = vector.shape_cast %202 : vector<1x16x128xbf16> to vector<16x128xbf16>
    %204 = vector.shape_cast %200 : vector<16x128xbf16> to vector<1x16x128xbf16>
    tpu.vector_store %arg7[%201, %c0_68, %c0_69], %204 {strides = array<i32>} : memref<8x16x128xbf16, #tpu.memory_space<vmem>>, vector<1x16x128xbf16>,
    %c5_i32 = arith.constant 5 : i32
    %c0_70 = arith.constant 0 : index
    %c0_71 = arith.constant 0 : index
    %205 = vector.load %arg8[%c0_70, %c0_71] : memref<16x128xf32, #tpu.memory_space<vmem>>, vector<16x128xf32>
    %206 = arith.index_cast %c5_i32 : i32 to index
    %c0_72 = arith.constant 0 : index
    %c0_73 = arith.constant 0 : index
    %207 = vector.load %arg9[%206, %c0_72, %c0_73] : memref<8x16x384xf32, #tpu.memory_space<vmem>>, vector<1x16x384xf32>
    %208 = vector.shape_cast %207 : vector<1x16x384xf32> to vector<16x384xf32>
    %209 = arith.truncf %205 : vector<16x128xf32> to vector<16x128xbf16>
    %cst_74 = arith.constant dense<0.000000e+00> : vector<16x384xf32>
    %210 = tpu.matmul %209, %13, %cst_74 {dimension_numbers = #tpu.dot_dimension_numbers<[1], [0], [0], [1], [0, 0, 1, 1], [], []>} : vector<16x128xbf16>, vector<128x384xbf16>, vector<16x384xf32> -> vector<16x384xf32>
    %211 = vector.extract_strided_slice %208 {offsets = [0, 0], sizes = [16, 128], strides = [1, 1]} : vector<16x384xf32> to vector<16x128xf32>
    %212 = vector.extract_strided_slice %210 {offsets = [0, 0], sizes = [16, 128], strides = [1, 1]} : vector<16x384xf32> to vector<16x128xf32>
    %213 = arith.addf %211, %212 : vector<16x128xf32>
    %214 = arith.negf %213 : vector<16x128xf32>
    %215 = math.exp %214 : vector<16x128xf32>
    %cst_75 = arith.constant 1.000000e+00 : f32
    %216 = vector.broadcast %cst_75 : f32 to vector<16x128xf32>
    %217 = arith.addf %216, %215 : vector<16x128xf32>
    %218 = arith.divf %216, %217 : vector<16x128xf32>
    %219 = vector.extract_strided_slice %208 {offsets = [0, 128], sizes = [16, 128], strides = [1, 1]} : vector<16x384xf32> to vector<16x128xf32>
    %220 = vector.extract_strided_slice %210 {offsets = [0, 128], sizes = [16, 128], strides = [1, 1]} : vector<16x384xf32> to vector<16x128xf32>
    %221 = arith.addf %219, %220 : vector<16x128xf32>
    %222 = arith.negf %221 : vector<16x128xf32>
    %223 = math.exp %222 : vector<16x128xf32>
    %cst_76 = arith.constant 1.000000e+00 : f32
    %224 = vector.broadcast %cst_76 : f32 to vector<16x128xf32>
    %225 = arith.addf %224, %223 : vector<16x128xf32>
    %226 = arith.divf %224, %225 : vector<16x128xf32>
    %227 = vector.extract_strided_slice %208 {offsets = [0, 256], sizes = [16, 128], strides = [1, 1]} : vector<16x384xf32> to vector<16x128xf32>
    %228 = vector.extract_strided_slice %210 {offsets = [0, 256], sizes = [16, 128], strides = [1, 1]} : vector<16x384xf32> to vector<16x128xf32>
    %229 = vector.broadcast %14 : vector<1x128xf32> to vector<16x128xf32>
    %230 = arith.addf %228, %229 : vector<16x128xf32>
    %231 = arith.mulf %218, %230 : vector<16x128xf32>
    %232 = arith.addf %227, %231 : vector<16x128xf32>
    %233 = math.tanh %232 : vector<16x128xf32>
    %234 = arith.subf %205, %233 : vector<16x128xf32>
    %235 = arith.mulf %226, %234 : vector<16x128xf32>
    %236 = arith.addf %233, %235 : vector<16x128xf32>
    %c0_77 = arith.constant 0 : index
    %c0_78 = arith.constant 0 : index
    %237 = vector.load %arg8[%c0_77, %c0_78] : memref<16x128xf32, #tpu.memory_space<vmem>>, vector<16x128xf32>
    tpu.vector_store %arg8[%c0_77, %c0_78], %236 {strides = array<i32>} : memref<16x128xf32, #tpu.memory_space<vmem>>, vector<16x128xf32>,
    %238 = arith.truncf %236 : vector<16x128xf32> to vector<16x128xbf16>
    %239 = arith.index_cast %c5_i32 : i32 to index
    %c0_79 = arith.constant 0 : index
    %c0_80 = arith.constant 0 : index
    %240 = vector.load %arg7[%239, %c0_79, %c0_80] : memref<8x16x128xbf16, #tpu.memory_space<vmem>>, vector<1x16x128xbf16>
    %241 = vector.shape_cast %240 : vector<1x16x128xbf16> to vector<16x128xbf16>
    %242 = vector.shape_cast %238 : vector<16x128xbf16> to vector<1x16x128xbf16>
    tpu.vector_store %arg7[%239, %c0_79, %c0_80], %242 {strides = array<i32>} : memref<8x16x128xbf16, #tpu.memory_space<vmem>>, vector<1x16x128xbf16>,
    %c6_i32 = arith.constant 6 : i32
    %c0_81 = arith.constant 0 : index
    %c0_82 = arith.constant 0 : index
    %243 = vector.load %arg8[%c0_81, %c0_82] : memref<16x128xf32, #tpu.memory_space<vmem>>, vector<16x128xf32>
    %244 = arith.index_cast %c6_i32 : i32 to index
    %c0_83 = arith.constant 0 : index
    %c0_84 = arith.constant 0 : index
    %245 = vector.load %arg9[%244, %c0_83, %c0_84] : memref<8x16x384xf32, #tpu.memory_space<vmem>>, vector<1x16x384xf32>
    %246 = vector.shape_cast %245 : vector<1x16x384xf32> to vector<16x384xf32>
    %247 = arith.truncf %243 : vector<16x128xf32> to vector<16x128xbf16>
    %cst_85 = arith.constant dense<0.000000e+00> : vector<16x384xf32>
    %248 = tpu.matmul %247, %13, %cst_85 {dimension_numbers = #tpu.dot_dimension_numbers<[1], [0], [0], [1], [0, 0, 1, 1], [], []>} : vector<16x128xbf16>, vector<128x384xbf16>, vector<16x384xf32> -> vector<16x384xf32>
    %249 = vector.extract_strided_slice %246 {offsets = [0, 0], sizes = [16, 128], strides = [1, 1]} : vector<16x384xf32> to vector<16x128xf32>
    %250 = vector.extract_strided_slice %248 {offsets = [0, 0], sizes = [16, 128], strides = [1, 1]} : vector<16x384xf32> to vector<16x128xf32>
    %251 = arith.addf %249, %250 : vector<16x128xf32>
    %252 = arith.negf %251 : vector<16x128xf32>
    %253 = math.exp %252 : vector<16x128xf32>
    %cst_86 = arith.constant 1.000000e+00 : f32
    %254 = vector.broadcast %cst_86 : f32 to vector<16x128xf32>
    %255 = arith.addf %254, %253 : vector<16x128xf32>
    %256 = arith.divf %254, %255 : vector<16x128xf32>
    %257 = vector.extract_strided_slice %246 {offsets = [0, 128], sizes = [16, 128], strides = [1, 1]} : vector<16x384xf32> to vector<16x128xf32>
    %258 = vector.extract_strided_slice %248 {offsets = [0, 128], sizes = [16, 128], strides = [1, 1]} : vector<16x384xf32> to vector<16x128xf32>
    %259 = arith.addf %257, %258 : vector<16x128xf32>
    %260 = arith.negf %259 : vector<16x128xf32>
    %261 = math.exp %260 : vector<16x128xf32>
    %cst_87 = arith.constant 1.000000e+00 : f32
    %262 = vector.broadcast %cst_87 : f32 to vector<16x128xf32>
    %263 = arith.addf %262, %261 : vector<16x128xf32>
    %264 = arith.divf %262, %263 : vector<16x128xf32>
    %265 = vector.extract_strided_slice %246 {offsets = [0, 256], sizes = [16, 128], strides = [1, 1]} : vector<16x384xf32> to vector<16x128xf32>
    %266 = vector.extract_strided_slice %248 {offsets = [0, 256], sizes = [16, 128], strides = [1, 1]} : vector<16x384xf32> to vector<16x128xf32>
    %267 = vector.broadcast %14 : vector<1x128xf32> to vector<16x128xf32>
    %268 = arith.addf %266, %267 : vector<16x128xf32>
    %269 = arith.mulf %256, %268 : vector<16x128xf32>
    %270 = arith.addf %265, %269 : vector<16x128xf32>
    %271 = math.tanh %270 : vector<16x128xf32>
    %272 = arith.subf %243, %271 : vector<16x128xf32>
    %273 = arith.mulf %264, %272 : vector<16x128xf32>
    %274 = arith.addf %271, %273 : vector<16x128xf32>
    %c0_88 = arith.constant 0 : index
    %c0_89 = arith.constant 0 : index
    %275 = vector.load %arg8[%c0_88, %c0_89] : memref<16x128xf32, #tpu.memory_space<vmem>>, vector<16x128xf32>
    tpu.vector_store %arg8[%c0_88, %c0_89], %274 {strides = array<i32>} : memref<16x128xf32, #tpu.memory_space<vmem>>, vector<16x128xf32>,
    %276 = arith.truncf %274 : vector<16x128xf32> to vector<16x128xbf16>
    %277 = arith.index_cast %c6_i32 : i32 to index
    %c0_90 = arith.constant 0 : index
    %c0_91 = arith.constant 0 : index
    %278 = vector.load %arg7[%277, %c0_90, %c0_91] : memref<8x16x128xbf16, #tpu.memory_space<vmem>>, vector<1x16x128xbf16>
    %279 = vector.shape_cast %278 : vector<1x16x128xbf16> to vector<16x128xbf16>
    %280 = vector.shape_cast %276 : vector<16x128xbf16> to vector<1x16x128xbf16>
    tpu.vector_store %arg7[%277, %c0_90, %c0_91], %280 {strides = array<i32>} : memref<8x16x128xbf16, #tpu.memory_space<vmem>>, vector<1x16x128xbf16>,
    %c7_i32 = arith.constant 7 : i32
    %c0_92 = arith.constant 0 : index
    %c0_93 = arith.constant 0 : index
    %281 = vector.load %arg8[%c0_92, %c0_93] : memref<16x128xf32, #tpu.memory_space<vmem>>, vector<16x128xf32>
    %282 = arith.index_cast %c7_i32 : i32 to index
    %c0_94 = arith.constant 0 : index
    %c0_95 = arith.constant 0 : index
    %283 = vector.load %arg9[%282, %c0_94, %c0_95] : memref<8x16x384xf32, #tpu.memory_space<vmem>>, vector<1x16x384xf32>
    %284 = vector.shape_cast %283 : vector<1x16x384xf32> to vector<16x384xf32>
    %285 = arith.truncf %281 : vector<16x128xf32> to vector<16x128xbf16>
    %cst_96 = arith.constant dense<0.000000e+00> : vector<16x384xf32>
    %286 = tpu.matmul %285, %13, %cst_96 {dimension_numbers = #tpu.dot_dimension_numbers<[1], [0], [0], [1], [0, 0, 1, 1], [], []>} : vector<16x128xbf16>, vector<128x384xbf16>, vector<16x384xf32> -> vector<16x384xf32>
    %287 = vector.extract_strided_slice %284 {offsets = [0, 0], sizes = [16, 128], strides = [1, 1]} : vector<16x384xf32> to vector<16x128xf32>
    %288 = vector.extract_strided_slice %286 {offsets = [0, 0], sizes = [16, 128], strides = [1, 1]} : vector<16x384xf32> to vector<16x128xf32>
    %289 = arith.addf %287, %288 : vector<16x128xf32>
    %290 = arith.negf %289 : vector<16x128xf32>
    %291 = math.exp %290 : vector<16x128xf32>
    %cst_97 = arith.constant 1.000000e+00 : f32
    %292 = vector.broadcast %cst_97 : f32 to vector<16x128xf32>
    %293 = arith.addf %292, %291 : vector<16x128xf32>
    %294 = arith.divf %292, %293 : vector<16x128xf32>
    %295 = vector.extract_strided_slice %284 {offsets = [0, 128], sizes = [16, 128], strides = [1, 1]} : vector<16x384xf32> to vector<16x128xf32>
    %296 = vector.extract_strided_slice %286 {offsets = [0, 128], sizes = [16, 128], strides = [1, 1]} : vector<16x384xf32> to vector<16x128xf32>
    %297 = arith.addf %295, %296 : vector<16x128xf32>
    %298 = arith.negf %297 : vector<16x128xf32>
    %299 = math.exp %298 : vector<16x128xf32>
    %cst_98 = arith.constant 1.000000e+00 : f32
    %300 = vector.broadcast %cst_98 : f32 to vector<16x128xf32>
    %301 = arith.addf %300, %299 : vector<16x128xf32>
    %302 = arith.divf %300, %301 : vector<16x128xf32>
    %303 = vector.extract_strided_slice %284 {offsets = [0, 256], sizes = [16, 128], strides = [1, 1]} : vector<16x384xf32> to vector<16x128xf32>
    %304 = vector.extract_strided_slice %286 {offsets = [0, 256], sizes = [16, 128], strides = [1, 1]} : vector<16x384xf32> to vector<16x128xf32>
    %305 = vector.broadcast %14 : vector<1x128xf32> to vector<16x128xf32>
    %306 = arith.addf %304, %305 : vector<16x128xf32>
    %307 = arith.mulf %294, %306 : vector<16x128xf32>
    %308 = arith.addf %303, %307 : vector<16x128xf32>
    %309 = math.tanh %308 : vector<16x128xf32>
    %310 = arith.subf %281, %309 : vector<16x128xf32>
    %311 = arith.mulf %302, %310 : vector<16x128xf32>
    %312 = arith.addf %309, %311 : vector<16x128xf32>
    %c0_99 = arith.constant 0 : index
    %c0_100 = arith.constant 0 : index
    %313 = vector.load %arg8[%c0_99, %c0_100] : memref<16x128xf32, #tpu.memory_space<vmem>>, vector<16x128xf32>
    tpu.vector_store %arg8[%c0_99, %c0_100], %312 {strides = array<i32>} : memref<16x128xf32, #tpu.memory_space<vmem>>, vector<16x128xf32>,
    %314 = arith.truncf %312 : vector<16x128xf32> to vector<16x128xbf16>
    %315 = arith.index_cast %c7_i32 : i32 to index
    %c0_101 = arith.constant 0 : index
    %c0_102 = arith.constant 0 : index
    %316 = vector.load %arg7[%315, %c0_101, %c0_102] : memref<8x16x128xbf16, #tpu.memory_space<vmem>>, vector<1x16x128xbf16>
    %317 = vector.shape_cast %316 : vector<1x16x128xbf16> to vector<16x128xbf16>
    %318 = vector.shape_cast %314 : vector<16x128xbf16> to vector<1x16x128xbf16>
    tpu.vector_store %arg7[%315, %c0_101, %c0_102], %318 {strides = array<i32>} : memref<8x16x128xbf16, #tpu.memory_space<vmem>>, vector<1x16x128xbf16>,
    %c8_i32 = arith.constant 8 : i32
    return
  }
  func.func @transform_0(%arg0: i32, %arg1: i32) -> (i32, i32, i32) {
    %c0_i32 = arith.constant 0 : i32
    %c0_i32_0 = arith.constant 0 : i32
    return %arg1, %arg0, %c0_i32 : i32, i32, i32
  }
  func.func @transform_1(%arg0: i32, %arg1: i32) -> (i32, i32) {
    %c0_i32 = arith.constant 0 : i32
    %c0_i32_0 = arith.constant 0 : i32
    %c0_i32_1 = arith.constant 0 : i32
    return %c0_i32, %c0_i32_0 : i32, i32
  }
  func.func @transform_2(%arg0: i32, %arg1: i32) -> (i32, i32) {
    %c0_i32 = arith.constant 0 : i32
    %c0_i32_0 = arith.constant 0 : i32
    %c0_i32_1 = arith.constant 0 : i32
    return %c0_i32, %c0_i32_0 : i32, i32
  }
  func.func @transform_3(%arg0: i32, %arg1: i32) -> (i32, i32) {
    %c0_i32 = arith.constant 0 : i32
    %c0_i32_0 = arith.constant 0 : i32
    %c0_i32_1 = arith.constant 0 : i32
    return %c0_i32, %c0_i32_0 : i32, i32
  }
  func.func @transform_4(%arg0: i32, %arg1: i32) -> (i32, i32) {
    %c0_i32 = arith.constant 0 : i32
    %c0_i32_0 = arith.constant 0 : i32
    %c0_i32_1 = arith.constant 0 : i32
    return %c0_i32, %c0_i32_0 : i32, i32
  }
  func.func @transform_5(%arg0: i32, %arg1: i32) -> (i32, i32, i32) {
    %c0_i32 = arith.constant 0 : i32
    %c0_i32_0 = arith.constant 0 : i32
    return %arg1, %arg0, %c0_i32 : i32, i32, i32
  }
}

module attributes {stable_mosaic.version = 11 : i64} {
  func.func @fc_softmax_kernel(%arg0: memref<16x128xbf16, #tpu.memory_space<vmem>>, %arg1: memref<128x128xbf16, #tpu.memory_space<vmem>>, %arg2: memref<1x128xf32, #tpu.memory_space<vmem>>, %arg3: memref<16x128xf32, #tpu.memory_space<vmem>>) attributes {dimension_semantics = [], scalar_prefetch = 0 : i64, scratch_operands = 0 : i64, tpu.core_type = #tpu.core_type<tc>} {
    %c0 = arith.constant 0 : index
    %c0_0 = arith.constant 0 : index
    %0 = vector.load %arg0[%c0, %c0_0] : memref<16x128xbf16, #tpu.memory_space<vmem>>, vector<16x128xbf16>
    %c0_1 = arith.constant 0 : index
    %c0_2 = arith.constant 0 : index
    %1 = vector.load %arg1[%c0_1, %c0_2] : memref<128x128xbf16, #tpu.memory_space<vmem>>, vector<128x128xbf16>
    %cst = arith.constant dense<0.000000e+00> : vector<16x128xf32>
    %2 = tpu.matmul %0, %1, %cst {dimension_numbers = #tpu.dot_dimension_numbers<[1], [0], [0], [1], [0, 0, 1, 1], [], []>} : vector<16x128xbf16>, vector<128x128xbf16>, vector<16x128xf32> -> vector<16x128xf32>
    %c0_3 = arith.constant 0 : index
    %c0_4 = arith.constant 0 : index
    %3 = vector.load %arg2[%c0_3, %c0_4] : memref<1x128xf32, #tpu.memory_space<vmem>>, vector<1x128xf32>
    %4 = vector.broadcast %3 : vector<1x128xf32> to vector<16x128xf32>
    %5 = arith.addf %2, %4 : vector<16x128xf32>
    %6 = tpu.iota {dimensions = array<i32: 1>} : vector<16x128xi32>
    %c8_i32 = arith.constant 8 : i32
    %7 = vector.broadcast %c8_i32 : i32 to vector<16x128xi32>
    %8 = arith.cmpi slt, %6, %7 : vector<16x128xi32>
    %cst_5 = arith.constant -1.000000e+30 : f32
    %9 = vector.broadcast %cst_5 : f32 to vector<16x128xf32>
    %10 = arith.select %8, %5, %9 : vector<16x128xi1>, vector<16x128xf32>
    %cst_6 = arith.constant dense<0xFF800000> : vector<16xf32>
    %11 = vector.multi_reduction <maximumf>, %10, %cst_6 [1] : vector<16x128xf32> to vector<16xf32>
    %12 = vector.shape_cast %11 : vector<16xf32> to vector<16x1xf32>
    %13 = vector.broadcast %12 : vector<16x1xf32> to vector<16x128xf32>
    %14 = arith.subf %10, %13 : vector<16x128xf32>
    %15 = math.exp %14 : vector<16x128xf32>
    %cst_7 = arith.constant dense<0.000000e+00> : vector<16xf32>
    %16 = vector.multi_reduction <add>, %15, %cst_7 [1] : vector<16x128xf32> to vector<16xf32>
    %17 = vector.shape_cast %16 : vector<16xf32> to vector<16x1xf32>
    %18 = tpu.reciprocal %17 {approx = true} : vector<16x1xf32> -> vector<16x1xf32>
    %19 = arith.mulf %17, %18 : vector<16x1xf32>
    %cst_8 = arith.constant 2.000000e+00 : f32
    %20 = vector.broadcast %cst_8 : f32 to vector<16x1xf32>
    %21 = arith.subf %20, %19 : vector<16x1xf32>
    %22 = arith.mulf %18, %21 : vector<16x1xf32>
    %23 = arith.mulf %17, %22 : vector<16x1xf32>
    %cst_9 = arith.constant 2.000000e+00 : f32
    %24 = vector.broadcast %cst_9 : f32 to vector<16x1xf32>
    %25 = arith.subf %24, %23 : vector<16x1xf32>
    %26 = arith.mulf %22, %25 : vector<16x1xf32>
    %27 = vector.broadcast %26 : vector<16x1xf32> to vector<16x128xf32>
    %28 = arith.mulf %15, %27 : vector<16x128xf32>
    %c0_10 = arith.constant 0 : index
    %c0_11 = arith.constant 0 : index
    %29 = vector.load %arg3[%c0_10, %c0_11] : memref<16x128xf32, #tpu.memory_space<vmem>>, vector<16x128xf32>
    tpu.vector_store %arg3[%c0_10, %c0_11], %28 {strides = array<i32>} : memref<16x128xf32, #tpu.memory_space<vmem>>, vector<16x128xf32>,
    return
  }
}

module attributes {stable_mosaic.version = 11 : i64} {
  func.func @gru_layer_kernel(%arg0: i32, %arg1: i32, %arg2: memref<8x16x128xbf16, #tpu.memory_space<vmem>>, %arg3: memref<128x384xbf16, #tpu.memory_space<vmem>>, %arg4: memref<128x384xbf16, #tpu.memory_space<vmem>>, %arg5: memref<1x384xf32, #tpu.memory_space<vmem>>, %arg6: memref<1x128xf32, #tpu.memory_space<vmem>>, %arg7: memref<8x16x128xbf16, #tpu.memory_space<vmem>>, %arg8: memref<16x128xf32, #tpu.memory_space<vmem>>, %arg9: memref<8x16x384xf32, #tpu.memory_space<vmem>>) attributes {dimension_semantics = [#tpu.dimension_semantics<parallel>, #tpu.dimension_semantics<arbitrary>], iteration_bounds = array<i64: 1, 1>, scalar_prefetch = 0 : i64, scratch_operands = 2 : i64, tpu.core_type = #tpu.core_type<tc>, window_params = [{transform_indices = @transform_0, window_bounds = array<i64: 8, 16, 128>}, {pipeline_mode = #tpu.pipeline_mode<synchronous>, transform_indices = @transform_1, window_bounds = array<i64: 128, 384>}, {pipeline_mode = #tpu.pipeline_mode<synchronous>, transform_indices = @transform_2, window_bounds = array<i64: 128, 384>}, {pipeline_mode = #tpu.pipeline_mode<synchronous>, transform_indices = @transform_3, window_bounds = array<i64: 1, 384>}, {pipeline_mode = #tpu.pipeline_mode<synchronous>, transform_indices = @transform_4, window_bounds = array<i64: 1, 128>}, {transform_indices = @transform_5, window_bounds = array<i64: 8, 16, 128>}]} {
    %c0_i32 = arith.constant 0 : i32
    %0 = arith.cmpi eq, %arg1, %c0_i32 : i32
    %1 = arith.extui %0 : i1 to i32
    %c0_i32_0 = arith.constant 0 : i32
    %2 = arith.cmpi ne, %1, %c0_i32_0 : i32
    scf.if %2 {
      %cst_103 = arith.constant 0.000000e+00 : f32
      %318 = vector.broadcast %cst_103 : f32 to vector<16x128xf32>
      %c0_104 = arith.constant 0 : index
      %c0_105 = arith.constant 0 : index
      %319 = vector.load %arg8[%c0_104, %c0_105] : memref<16x128xf32, #tpu.memory_space<vmem>>, vector<16x128xf32>
      tpu.vector_store %arg8[%c0_104, %c0_105], %318 {strides = array<i32>} : memref<16x128xf32, #tpu.memory_space<vmem>>, vector<16x128xf32>,
    } else {
    }
    %c0 = arith.constant 0 : index
    %c0_1 = arith.constant 0 : index
    %c0_2 = arith.constant 0 : index
    %3 = vector.load %arg2[%c0, %c0_1, %c0_2] : memref<8x16x128xbf16, #tpu.memory_space<vmem>>, vector<8x16x128xbf16>
    %4 = vector.shape_cast %3 : vector<8x16x128xbf16> to vector<128x128xbf16>
    %c0_3 = arith.constant 0 : index
    %c0_4 = arith.constant 0 : index
    %5 = vector.load %arg3[%c0_3, %c0_4] : memref<128x384xbf16, #tpu.memory_space<vmem>>, vector<128x384xbf16>
    %cst = arith.constant dense<0.000000e+00> : vector<128x384xf32>
    %6 = tpu.matmul %4, %5, %cst {dimension_numbers = #tpu.dot_dimension_numbers<[1], [0], [0], [1], [0, 0, 1, 1], [], []>} : vector<128x128xbf16>, vector<128x384xbf16>, vector<128x384xf32> -> vector<128x384xf32>
    %c0_5 = arith.constant 0 : index
    %c0_6 = arith.constant 0 : index
    %7 = vector.load %arg5[%c0_5, %c0_6] : memref<1x384xf32, #tpu.memory_space<vmem>>, vector<1x384xf32>
    %8 = vector.broadcast %7 : vector<1x384xf32> to vector<128x384xf32>
    %9 = arith.addf %6, %8 : vector<128x384xf32>
    %10 = vector.shape_cast %9 : vector<128x384xf32> to vector<8x16x384xf32>
    %c0_7 = arith.constant 0 : index
    %c0_8 = arith.constant 0 : index
    %c0_9 = arith.constant 0 : index
    %11 = vector.load %arg9[%c0_7, %c0_8, %c0_9] : memref<8x16x384xf32, #tpu.memory_space<vmem>>, vector<8x16x384xf32>
    tpu.vector_store %arg9[%c0_7, %c0_8, %c0_9], %10 {strides = array<i32>} : memref<8x16x384xf32, #tpu.memory_space<vmem>>, vector<8x16x384xf32>,
    %c0_10 = arith.constant 0 : index
    %c0_11 = arith.constant 0 : index
    %12 = vector.load %arg4[%c0_10, %c0_11] : memref<128x384xbf16, #tpu.memory_space<vmem>>, vector<128x384xbf16>
    %c0_12 = arith.constant 0 : index
    %c0_13 = arith.constant 0 : index
    %13 = vector.load %arg6[%c0_12, %c0_13] : memref<1x128xf32, #tpu.memory_space<vmem>>, vector<1x128xf32>
    %c0_i32_14 = arith.constant 0 : i32
    %c0_15 = arith.constant 0 : index
    %c0_16 = arith.constant 0 : index
    %14 = vector.load %arg8[%c0_15, %c0_16] : memref<16x128xf32, #tpu.memory_space<vmem>>, vector<16x128xf32>
    %15 = arith.index_cast %c0_i32_14 : i32 to index
    %c0_17 = arith.constant 0 : index
    %c0_18 = arith.constant 0 : index
    %16 = vector.load %arg9[%15, %c0_17, %c0_18] : memref<8x16x384xf32, #tpu.memory_space<vmem>>, vector<1x16x384xf32>
    %17 = vector.shape_cast %16 : vector<1x16x384xf32> to vector<16x384xf32>
    %18 = arith.truncf %14 : vector<16x128xf32> to vector<16x128xbf16>
    %cst_19 = arith.constant dense<0.000000e+00> : vector<16x384xf32>
    %19 = tpu.matmul %18, %12, %cst_19 {dimension_numbers = #tpu.dot_dimension_numbers<[1], [0], [0], [1], [0, 0, 1, 1], [], []>} : vector<16x128xbf16>, vector<128x384xbf16>, vector<16x384xf32> -> vector<16x384xf32>
    %20 = vector.extract_strided_slice %17 {offsets = [0, 0], sizes = [16, 128], strides = [1, 1]} : vector<16x384xf32> to vector<16x128xf32>
    %21 = vector.extract_strided_slice %19 {offsets = [0, 0], sizes = [16, 128], strides = [1, 1]} : vector<16x384xf32> to vector<16x128xf32>
    %22 = arith.addf %20, %21 : vector<16x128xf32>
    %23 = arith.negf %22 : vector<16x128xf32>
    %24 = math.exp %23 : vector<16x128xf32>
    %cst_20 = arith.constant 1.000000e+00 : f32
    %25 = vector.broadcast %cst_20 : f32 to vector<16x128xf32>
    %26 = arith.addf %25, %24 : vector<16x128xf32>
    %27 = arith.divf %25, %26 : vector<16x128xf32>
    %28 = vector.extract_strided_slice %17 {offsets = [0, 128], sizes = [16, 128], strides = [1, 1]} : vector<16x384xf32> to vector<16x128xf32>
    %29 = vector.extract_strided_slice %19 {offsets = [0, 128], sizes = [16, 128], strides = [1, 1]} : vector<16x384xf32> to vector<16x128xf32>
    %30 = arith.addf %28, %29 : vector<16x128xf32>
    %31 = arith.negf %30 : vector<16x128xf32>
    %32 = math.exp %31 : vector<16x128xf32>
    %cst_21 = arith.constant 1.000000e+00 : f32
    %33 = vector.broadcast %cst_21 : f32 to vector<16x128xf32>
    %34 = arith.addf %33, %32 : vector<16x128xf32>
    %35 = arith.divf %33, %34 : vector<16x128xf32>
    %36 = vector.extract_strided_slice %17 {offsets = [0, 256], sizes = [16, 128], strides = [1, 1]} : vector<16x384xf32> to vector<16x128xf32>
    %37 = vector.extract_strided_slice %19 {offsets = [0, 256], sizes = [16, 128], strides = [1, 1]} : vector<16x384xf32> to vector<16x128xf32>
    %38 = vector.broadcast %13 : vector<1x128xf32> to vector<16x128xf32>
    %39 = arith.addf %37, %38 : vector<16x128xf32>
    %40 = arith.mulf %27, %39 : vector<16x128xf32>
    %41 = arith.addf %36, %40 : vector<16x128xf32>
    %42 = math.tanh %41 : vector<16x128xf32>
    %43 = arith.subf %14, %42 : vector<16x128xf32>
    %44 = arith.mulf %35, %43 : vector<16x128xf32>
    %45 = arith.addf %42, %44 : vector<16x128xf32>
    %c0_22 = arith.constant 0 : index
    %c0_23 = arith.constant 0 : index
    %46 = vector.load %arg8[%c0_22, %c0_23] : memref<16x128xf32, #tpu.memory_space<vmem>>, vector<16x128xf32>
    tpu.vector_store %arg8[%c0_22, %c0_23], %45 {strides = array<i32>} : memref<16x128xf32, #tpu.memory_space<vmem>>, vector<16x128xf32>,
    %47 = arith.truncf %45 : vector<16x128xf32> to vector<16x128xbf16>
    %48 = arith.index_cast %c0_i32_14 : i32 to index
    %c0_24 = arith.constant 0 : index
    %c0_25 = arith.constant 0 : index
    %49 = vector.load %arg7[%48, %c0_24, %c0_25] : memref<8x16x128xbf16, #tpu.memory_space<vmem>>, vector<1x16x128xbf16>
    %50 = vector.shape_cast %49 : vector<1x16x128xbf16> to vector<16x128xbf16>
    %51 = vector.shape_cast %47 : vector<16x128xbf16> to vector<1x16x128xbf16>
    tpu.vector_store %arg7[%48, %c0_24, %c0_25], %51 {strides = array<i32>} : memref<8x16x128xbf16, #tpu.memory_space<vmem>>, vector<1x16x128xbf16>,
    %c1_i32 = arith.constant 1 : i32
    %c0_26 = arith.constant 0 : index
    %c0_27 = arith.constant 0 : index
    %52 = vector.load %arg8[%c0_26, %c0_27] : memref<16x128xf32, #tpu.memory_space<vmem>>, vector<16x128xf32>
    %53 = arith.index_cast %c1_i32 : i32 to index
    %c0_28 = arith.constant 0 : index
    %c0_29 = arith.constant 0 : index
    %54 = vector.load %arg9[%53, %c0_28, %c0_29] : memref<8x16x384xf32, #tpu.memory_space<vmem>>, vector<1x16x384xf32>
    %55 = vector.shape_cast %54 : vector<1x16x384xf32> to vector<16x384xf32>
    %56 = arith.truncf %52 : vector<16x128xf32> to vector<16x128xbf16>
    %cst_30 = arith.constant dense<0.000000e+00> : vector<16x384xf32>
    %57 = tpu.matmul %56, %12, %cst_30 {dimension_numbers = #tpu.dot_dimension_numbers<[1], [0], [0], [1], [0, 0, 1, 1], [], []>} : vector<16x128xbf16>, vector<128x384xbf16>, vector<16x384xf32> -> vector<16x384xf32>
    %58 = vector.extract_strided_slice %55 {offsets = [0, 0], sizes = [16, 128], strides = [1, 1]} : vector<16x384xf32> to vector<16x128xf32>
    %59 = vector.extract_strided_slice %57 {offsets = [0, 0], sizes = [16, 128], strides = [1, 1]} : vector<16x384xf32> to vector<16x128xf32>
    %60 = arith.addf %58, %59 : vector<16x128xf32>
    %61 = arith.negf %60 : vector<16x128xf32>
    %62 = math.exp %61 : vector<16x128xf32>
    %cst_31 = arith.constant 1.000000e+00 : f32
    %63 = vector.broadcast %cst_31 : f32 to vector<16x128xf32>
    %64 = arith.addf %63, %62 : vector<16x128xf32>
    %65 = arith.divf %63, %64 : vector<16x128xf32>
    %66 = vector.extract_strided_slice %55 {offsets = [0, 128], sizes = [16, 128], strides = [1, 1]} : vector<16x384xf32> to vector<16x128xf32>
    %67 = vector.extract_strided_slice %57 {offsets = [0, 128], sizes = [16, 128], strides = [1, 1]} : vector<16x384xf32> to vector<16x128xf32>
    %68 = arith.addf %66, %67 : vector<16x128xf32>
    %69 = arith.negf %68 : vector<16x128xf32>
    %70 = math.exp %69 : vector<16x128xf32>
    %cst_32 = arith.constant 1.000000e+00 : f32
    %71 = vector.broadcast %cst_32 : f32 to vector<16x128xf32>
    %72 = arith.addf %71, %70 : vector<16x128xf32>
    %73 = arith.divf %71, %72 : vector<16x128xf32>
    %74 = vector.extract_strided_slice %55 {offsets = [0, 256], sizes = [16, 128], strides = [1, 1]} : vector<16x384xf32> to vector<16x128xf32>
    %75 = vector.extract_strided_slice %57 {offsets = [0, 256], sizes = [16, 128], strides = [1, 1]} : vector<16x384xf32> to vector<16x128xf32>
    %76 = vector.broadcast %13 : vector<1x128xf32> to vector<16x128xf32>
    %77 = arith.addf %75, %76 : vector<16x128xf32>
    %78 = arith.mulf %65, %77 : vector<16x128xf32>
    %79 = arith.addf %74, %78 : vector<16x128xf32>
    %80 = math.tanh %79 : vector<16x128xf32>
    %81 = arith.subf %52, %80 : vector<16x128xf32>
    %82 = arith.mulf %73, %81 : vector<16x128xf32>
    %83 = arith.addf %80, %82 : vector<16x128xf32>
    %c0_33 = arith.constant 0 : index
    %c0_34 = arith.constant 0 : index
    %84 = vector.load %arg8[%c0_33, %c0_34] : memref<16x128xf32, #tpu.memory_space<vmem>>, vector<16x128xf32>
    tpu.vector_store %arg8[%c0_33, %c0_34], %83 {strides = array<i32>} : memref<16x128xf32, #tpu.memory_space<vmem>>, vector<16x128xf32>,
    %85 = arith.truncf %83 : vector<16x128xf32> to vector<16x128xbf16>
    %86 = arith.index_cast %c1_i32 : i32 to index
    %c0_35 = arith.constant 0 : index
    %c0_36 = arith.constant 0 : index
    %87 = vector.load %arg7[%86, %c0_35, %c0_36] : memref<8x16x128xbf16, #tpu.memory_space<vmem>>, vector<1x16x128xbf16>
    %88 = vector.shape_cast %87 : vector<1x16x128xbf16> to vector<16x128xbf16>
    %89 = vector.shape_cast %85 : vector<16x128xbf16> to vector<1x16x128xbf16>
    tpu.vector_store %arg7[%86, %c0_35, %c0_36], %89 {strides = array<i32>} : memref<8x16x128xbf16, #tpu.memory_space<vmem>>, vector<1x16x128xbf16>,
    %c2_i32 = arith.constant 2 : i32
    %c0_37 = arith.constant 0 : index
    %c0_38 = arith.constant 0 : index
    %90 = vector.load %arg8[%c0_37, %c0_38] : memref<16x128xf32, #tpu.memory_space<vmem>>, vector<16x128xf32>
    %91 = arith.index_cast %c2_i32 : i32 to index
    %c0_39 = arith.constant 0 : index
    %c0_40 = arith.constant 0 : index
    %92 = vector.load %arg9[%91, %c0_39, %c0_40] : memref<8x16x384xf32, #tpu.memory_space<vmem>>, vector<1x16x384xf32>
    %93 = vector.shape_cast %92 : vector<1x16x384xf32> to vector<16x384xf32>
    %94 = arith.truncf %90 : vector<16x128xf32> to vector<16x128xbf16>
    %cst_41 = arith.constant dense<0.000000e+00> : vector<16x384xf32>
    %95 = tpu.matmul %94, %12, %cst_41 {dimension_numbers = #tpu.dot_dimension_numbers<[1], [0], [0], [1], [0, 0, 1, 1], [], []>} : vector<16x128xbf16>, vector<128x384xbf16>, vector<16x384xf32> -> vector<16x384xf32>
    %96 = vector.extract_strided_slice %93 {offsets = [0, 0], sizes = [16, 128], strides = [1, 1]} : vector<16x384xf32> to vector<16x128xf32>
    %97 = vector.extract_strided_slice %95 {offsets = [0, 0], sizes = [16, 128], strides = [1, 1]} : vector<16x384xf32> to vector<16x128xf32>
    %98 = arith.addf %96, %97 : vector<16x128xf32>
    %99 = arith.negf %98 : vector<16x128xf32>
    %100 = math.exp %99 : vector<16x128xf32>
    %cst_42 = arith.constant 1.000000e+00 : f32
    %101 = vector.broadcast %cst_42 : f32 to vector<16x128xf32>
    %102 = arith.addf %101, %100 : vector<16x128xf32>
    %103 = arith.divf %101, %102 : vector<16x128xf32>
    %104 = vector.extract_strided_slice %93 {offsets = [0, 128], sizes = [16, 128], strides = [1, 1]} : vector<16x384xf32> to vector<16x128xf32>
    %105 = vector.extract_strided_slice %95 {offsets = [0, 128], sizes = [16, 128], strides = [1, 1]} : vector<16x384xf32> to vector<16x128xf32>
    %106 = arith.addf %104, %105 : vector<16x128xf32>
    %107 = arith.negf %106 : vector<16x128xf32>
    %108 = math.exp %107 : vector<16x128xf32>
    %cst_43 = arith.constant 1.000000e+00 : f32
    %109 = vector.broadcast %cst_43 : f32 to vector<16x128xf32>
    %110 = arith.addf %109, %108 : vector<16x128xf32>
    %111 = arith.divf %109, %110 : vector<16x128xf32>
    %112 = vector.extract_strided_slice %93 {offsets = [0, 256], sizes = [16, 128], strides = [1, 1]} : vector<16x384xf32> to vector<16x128xf32>
    %113 = vector.extract_strided_slice %95 {offsets = [0, 256], sizes = [16, 128], strides = [1, 1]} : vector<16x384xf32> to vector<16x128xf32>
    %114 = vector.broadcast %13 : vector<1x128xf32> to vector<16x128xf32>
    %115 = arith.addf %113, %114 : vector<16x128xf32>
    %116 = arith.mulf %103, %115 : vector<16x128xf32>
    %117 = arith.addf %112, %116 : vector<16x128xf32>
    %118 = math.tanh %117 : vector<16x128xf32>
    %119 = arith.subf %90, %118 : vector<16x128xf32>
    %120 = arith.mulf %111, %119 : vector<16x128xf32>
    %121 = arith.addf %118, %120 : vector<16x128xf32>
    %c0_44 = arith.constant 0 : index
    %c0_45 = arith.constant 0 : index
    %122 = vector.load %arg8[%c0_44, %c0_45] : memref<16x128xf32, #tpu.memory_space<vmem>>, vector<16x128xf32>
    tpu.vector_store %arg8[%c0_44, %c0_45], %121 {strides = array<i32>} : memref<16x128xf32, #tpu.memory_space<vmem>>, vector<16x128xf32>,
    %123 = arith.truncf %121 : vector<16x128xf32> to vector<16x128xbf16>
    %124 = arith.index_cast %c2_i32 : i32 to index
    %c0_46 = arith.constant 0 : index
    %c0_47 = arith.constant 0 : index
    %125 = vector.load %arg7[%124, %c0_46, %c0_47] : memref<8x16x128xbf16, #tpu.memory_space<vmem>>, vector<1x16x128xbf16>
    %126 = vector.shape_cast %125 : vector<1x16x128xbf16> to vector<16x128xbf16>
    %127 = vector.shape_cast %123 : vector<16x128xbf16> to vector<1x16x128xbf16>
    tpu.vector_store %arg7[%124, %c0_46, %c0_47], %127 {strides = array<i32>} : memref<8x16x128xbf16, #tpu.memory_space<vmem>>, vector<1x16x128xbf16>,
    %c3_i32 = arith.constant 3 : i32
    %c0_48 = arith.constant 0 : index
    %c0_49 = arith.constant 0 : index
    %128 = vector.load %arg8[%c0_48, %c0_49] : memref<16x128xf32, #tpu.memory_space<vmem>>, vector<16x128xf32>
    %129 = arith.index_cast %c3_i32 : i32 to index
    %c0_50 = arith.constant 0 : index
    %c0_51 = arith.constant 0 : index
    %130 = vector.load %arg9[%129, %c0_50, %c0_51] : memref<8x16x384xf32, #tpu.memory_space<vmem>>, vector<1x16x384xf32>
    %131 = vector.shape_cast %130 : vector<1x16x384xf32> to vector<16x384xf32>
    %132 = arith.truncf %128 : vector<16x128xf32> to vector<16x128xbf16>
    %cst_52 = arith.constant dense<0.000000e+00> : vector<16x384xf32>
    %133 = tpu.matmul %132, %12, %cst_52 {dimension_numbers = #tpu.dot_dimension_numbers<[1], [0], [0], [1], [0, 0, 1, 1], [], []>} : vector<16x128xbf16>, vector<128x384xbf16>, vector<16x384xf32> -> vector<16x384xf32>
    %134 = vector.extract_strided_slice %131 {offsets = [0, 0], sizes = [16, 128], strides = [1, 1]} : vector<16x384xf32> to vector<16x128xf32>
    %135 = vector.extract_strided_slice %133 {offsets = [0, 0], sizes = [16, 128], strides = [1, 1]} : vector<16x384xf32> to vector<16x128xf32>
    %136 = arith.addf %134, %135 : vector<16x128xf32>
    %137 = arith.negf %136 : vector<16x128xf32>
    %138 = math.exp %137 : vector<16x128xf32>
    %cst_53 = arith.constant 1.000000e+00 : f32
    %139 = vector.broadcast %cst_53 : f32 to vector<16x128xf32>
    %140 = arith.addf %139, %138 : vector<16x128xf32>
    %141 = arith.divf %139, %140 : vector<16x128xf32>
    %142 = vector.extract_strided_slice %131 {offsets = [0, 128], sizes = [16, 128], strides = [1, 1]} : vector<16x384xf32> to vector<16x128xf32>
    %143 = vector.extract_strided_slice %133 {offsets = [0, 128], sizes = [16, 128], strides = [1, 1]} : vector<16x384xf32> to vector<16x128xf32>
    %144 = arith.addf %142, %143 : vector<16x128xf32>
    %145 = arith.negf %144 : vector<16x128xf32>
    %146 = math.exp %145 : vector<16x128xf32>
    %cst_54 = arith.constant 1.000000e+00 : f32
    %147 = vector.broadcast %cst_54 : f32 to vector<16x128xf32>
    %148 = arith.addf %147, %146 : vector<16x128xf32>
    %149 = arith.divf %147, %148 : vector<16x128xf32>
    %150 = vector.extract_strided_slice %131 {offsets = [0, 256], sizes = [16, 128], strides = [1, 1]} : vector<16x384xf32> to vector<16x128xf32>
    %151 = vector.extract_strided_slice %133 {offsets = [0, 256], sizes = [16, 128], strides = [1, 1]} : vector<16x384xf32> to vector<16x128xf32>
    %152 = vector.broadcast %13 : vector<1x128xf32> to vector<16x128xf32>
    %153 = arith.addf %151, %152 : vector<16x128xf32>
    %154 = arith.mulf %141, %153 : vector<16x128xf32>
    %155 = arith.addf %150, %154 : vector<16x128xf32>
    %156 = math.tanh %155 : vector<16x128xf32>
    %157 = arith.subf %128, %156 : vector<16x128xf32>
    %158 = arith.mulf %149, %157 : vector<16x128xf32>
    %159 = arith.addf %156, %158 : vector<16x128xf32>
    %c0_55 = arith.constant 0 : index
    %c0_56 = arith.constant 0 : index
    %160 = vector.load %arg8[%c0_55, %c0_56] : memref<16x128xf32, #tpu.memory_space<vmem>>, vector<16x128xf32>
    tpu.vector_store %arg8[%c0_55, %c0_56], %159 {strides = array<i32>} : memref<16x128xf32, #tpu.memory_space<vmem>>, vector<16x128xf32>,
    %161 = arith.truncf %159 : vector<16x128xf32> to vector<16x128xbf16>
    %162 = arith.index_cast %c3_i32 : i32 to index
    %c0_57 = arith.constant 0 : index
    %c0_58 = arith.constant 0 : index
    %163 = vector.load %arg7[%162, %c0_57, %c0_58] : memref<8x16x128xbf16, #tpu.memory_space<vmem>>, vector<1x16x128xbf16>
    %164 = vector.shape_cast %163 : vector<1x16x128xbf16> to vector<16x128xbf16>
    %165 = vector.shape_cast %161 : vector<16x128xbf16> to vector<1x16x128xbf16>
    tpu.vector_store %arg7[%162, %c0_57, %c0_58], %165 {strides = array<i32>} : memref<8x16x128xbf16, #tpu.memory_space<vmem>>, vector<1x16x128xbf16>,
    %c4_i32 = arith.constant 4 : i32
    %c0_59 = arith.constant 0 : index
    %c0_60 = arith.constant 0 : index
    %166 = vector.load %arg8[%c0_59, %c0_60] : memref<16x128xf32, #tpu.memory_space<vmem>>, vector<16x128xf32>
    %167 = arith.index_cast %c4_i32 : i32 to index
    %c0_61 = arith.constant 0 : index
    %c0_62 = arith.constant 0 : index
    %168 = vector.load %arg9[%167, %c0_61, %c0_62] : memref<8x16x384xf32, #tpu.memory_space<vmem>>, vector<1x16x384xf32>
    %169 = vector.shape_cast %168 : vector<1x16x384xf32> to vector<16x384xf32>
    %170 = arith.truncf %166 : vector<16x128xf32> to vector<16x128xbf16>
    %cst_63 = arith.constant dense<0.000000e+00> : vector<16x384xf32>
    %171 = tpu.matmul %170, %12, %cst_63 {dimension_numbers = #tpu.dot_dimension_numbers<[1], [0], [0], [1], [0, 0, 1, 1], [], []>} : vector<16x128xbf16>, vector<128x384xbf16>, vector<16x384xf32> -> vector<16x384xf32>
    %172 = vector.extract_strided_slice %169 {offsets = [0, 0], sizes = [16, 128], strides = [1, 1]} : vector<16x384xf32> to vector<16x128xf32>
    %173 = vector.extract_strided_slice %171 {offsets = [0, 0], sizes = [16, 128], strides = [1, 1]} : vector<16x384xf32> to vector<16x128xf32>
    %174 = arith.addf %172, %173 : vector<16x128xf32>
    %175 = arith.negf %174 : vector<16x128xf32>
    %176 = math.exp %175 : vector<16x128xf32>
    %cst_64 = arith.constant 1.000000e+00 : f32
    %177 = vector.broadcast %cst_64 : f32 to vector<16x128xf32>
    %178 = arith.addf %177, %176 : vector<16x128xf32>
    %179 = arith.divf %177, %178 : vector<16x128xf32>
    %180 = vector.extract_strided_slice %169 {offsets = [0, 128], sizes = [16, 128], strides = [1, 1]} : vector<16x384xf32> to vector<16x128xf32>
    %181 = vector.extract_strided_slice %171 {offsets = [0, 128], sizes = [16, 128], strides = [1, 1]} : vector<16x384xf32> to vector<16x128xf32>
    %182 = arith.addf %180, %181 : vector<16x128xf32>
    %183 = arith.negf %182 : vector<16x128xf32>
    %184 = math.exp %183 : vector<16x128xf32>
    %cst_65 = arith.constant 1.000000e+00 : f32
    %185 = vector.broadcast %cst_65 : f32 to vector<16x128xf32>
    %186 = arith.addf %185, %184 : vector<16x128xf32>
    %187 = arith.divf %185, %186 : vector<16x128xf32>
    %188 = vector.extract_strided_slice %169 {offsets = [0, 256], sizes = [16, 128], strides = [1, 1]} : vector<16x384xf32> to vector<16x128xf32>
    %189 = vector.extract_strided_slice %171 {offsets = [0, 256], sizes = [16, 128], strides = [1, 1]} : vector<16x384xf32> to vector<16x128xf32>
    %190 = vector.broadcast %13 : vector<1x128xf32> to vector<16x128xf32>
    %191 = arith.addf %189, %190 : vector<16x128xf32>
    %192 = arith.mulf %179, %191 : vector<16x128xf32>
    %193 = arith.addf %188, %192 : vector<16x128xf32>
    %194 = math.tanh %193 : vector<16x128xf32>
    %195 = arith.subf %166, %194 : vector<16x128xf32>
    %196 = arith.mulf %187, %195 : vector<16x128xf32>
    %197 = arith.addf %194, %196 : vector<16x128xf32>
    %c0_66 = arith.constant 0 : index
    %c0_67 = arith.constant 0 : index
    %198 = vector.load %arg8[%c0_66, %c0_67] : memref<16x128xf32, #tpu.memory_space<vmem>>, vector<16x128xf32>
    tpu.vector_store %arg8[%c0_66, %c0_67], %197 {strides = array<i32>} : memref<16x128xf32, #tpu.memory_space<vmem>>, vector<16x128xf32>,
    %199 = arith.truncf %197 : vector<16x128xf32> to vector<16x128xbf16>
    %200 = arith.index_cast %c4_i32 : i32 to index
    %c0_68 = arith.constant 0 : index
    %c0_69 = arith.constant 0 : index
    %201 = vector.load %arg7[%200, %c0_68, %c0_69] : memref<8x16x128xbf16, #tpu.memory_space<vmem>>, vector<1x16x128xbf16>
    %202 = vector.shape_cast %201 : vector<1x16x128xbf16> to vector<16x128xbf16>
    %203 = vector.shape_cast %199 : vector<16x128xbf16> to vector<1x16x128xbf16>
    tpu.vector_store %arg7[%200, %c0_68, %c0_69], %203 {strides = array<i32>} : memref<8x16x128xbf16, #tpu.memory_space<vmem>>, vector<1x16x128xbf16>,
    %c5_i32 = arith.constant 5 : i32
    %c0_70 = arith.constant 0 : index
    %c0_71 = arith.constant 0 : index
    %204 = vector.load %arg8[%c0_70, %c0_71] : memref<16x128xf32, #tpu.memory_space<vmem>>, vector<16x128xf32>
    %205 = arith.index_cast %c5_i32 : i32 to index
    %c0_72 = arith.constant 0 : index
    %c0_73 = arith.constant 0 : index
    %206 = vector.load %arg9[%205, %c0_72, %c0_73] : memref<8x16x384xf32, #tpu.memory_space<vmem>>, vector<1x16x384xf32>
    %207 = vector.shape_cast %206 : vector<1x16x384xf32> to vector<16x384xf32>
    %208 = arith.truncf %204 : vector<16x128xf32> to vector<16x128xbf16>
    %cst_74 = arith.constant dense<0.000000e+00> : vector<16x384xf32>
    %209 = tpu.matmul %208, %12, %cst_74 {dimension_numbers = #tpu.dot_dimension_numbers<[1], [0], [0], [1], [0, 0, 1, 1], [], []>} : vector<16x128xbf16>, vector<128x384xbf16>, vector<16x384xf32> -> vector<16x384xf32>
    %210 = vector.extract_strided_slice %207 {offsets = [0, 0], sizes = [16, 128], strides = [1, 1]} : vector<16x384xf32> to vector<16x128xf32>
    %211 = vector.extract_strided_slice %209 {offsets = [0, 0], sizes = [16, 128], strides = [1, 1]} : vector<16x384xf32> to vector<16x128xf32>
    %212 = arith.addf %210, %211 : vector<16x128xf32>
    %213 = arith.negf %212 : vector<16x128xf32>
    %214 = math.exp %213 : vector<16x128xf32>
    %cst_75 = arith.constant 1.000000e+00 : f32
    %215 = vector.broadcast %cst_75 : f32 to vector<16x128xf32>
    %216 = arith.addf %215, %214 : vector<16x128xf32>
    %217 = arith.divf %215, %216 : vector<16x128xf32>
    %218 = vector.extract_strided_slice %207 {offsets = [0, 128], sizes = [16, 128], strides = [1, 1]} : vector<16x384xf32> to vector<16x128xf32>
    %219 = vector.extract_strided_slice %209 {offsets = [0, 128], sizes = [16, 128], strides = [1, 1]} : vector<16x384xf32> to vector<16x128xf32>
    %220 = arith.addf %218, %219 : vector<16x128xf32>
    %221 = arith.negf %220 : vector<16x128xf32>
    %222 = math.exp %221 : vector<16x128xf32>
    %cst_76 = arith.constant 1.000000e+00 : f32
    %223 = vector.broadcast %cst_76 : f32 to vector<16x128xf32>
    %224 = arith.addf %223, %222 : vector<16x128xf32>
    %225 = arith.divf %223, %224 : vector<16x128xf32>
    %226 = vector.extract_strided_slice %207 {offsets = [0, 256], sizes = [16, 128], strides = [1, 1]} : vector<16x384xf32> to vector<16x128xf32>
    %227 = vector.extract_strided_slice %209 {offsets = [0, 256], sizes = [16, 128], strides = [1, 1]} : vector<16x384xf32> to vector<16x128xf32>
    %228 = vector.broadcast %13 : vector<1x128xf32> to vector<16x128xf32>
    %229 = arith.addf %227, %228 : vector<16x128xf32>
    %230 = arith.mulf %217, %229 : vector<16x128xf32>
    %231 = arith.addf %226, %230 : vector<16x128xf32>
    %232 = math.tanh %231 : vector<16x128xf32>
    %233 = arith.subf %204, %232 : vector<16x128xf32>
    %234 = arith.mulf %225, %233 : vector<16x128xf32>
    %235 = arith.addf %232, %234 : vector<16x128xf32>
    %c0_77 = arith.constant 0 : index
    %c0_78 = arith.constant 0 : index
    %236 = vector.load %arg8[%c0_77, %c0_78] : memref<16x128xf32, #tpu.memory_space<vmem>>, vector<16x128xf32>
    tpu.vector_store %arg8[%c0_77, %c0_78], %235 {strides = array<i32>} : memref<16x128xf32, #tpu.memory_space<vmem>>, vector<16x128xf32>,
    %237 = arith.truncf %235 : vector<16x128xf32> to vector<16x128xbf16>
    %238 = arith.index_cast %c5_i32 : i32 to index
    %c0_79 = arith.constant 0 : index
    %c0_80 = arith.constant 0 : index
    %239 = vector.load %arg7[%238, %c0_79, %c0_80] : memref<8x16x128xbf16, #tpu.memory_space<vmem>>, vector<1x16x128xbf16>
    %240 = vector.shape_cast %239 : vector<1x16x128xbf16> to vector<16x128xbf16>
    %241 = vector.shape_cast %237 : vector<16x128xbf16> to vector<1x16x128xbf16>
    tpu.vector_store %arg7[%238, %c0_79, %c0_80], %241 {strides = array<i32>} : memref<8x16x128xbf16, #tpu.memory_space<vmem>>, vector<1x16x128xbf16>,
    %c6_i32 = arith.constant 6 : i32
    %c0_81 = arith.constant 0 : index
    %c0_82 = arith.constant 0 : index
    %242 = vector.load %arg8[%c0_81, %c0_82] : memref<16x128xf32, #tpu.memory_space<vmem>>, vector<16x128xf32>
    %243 = arith.index_cast %c6_i32 : i32 to index
    %c0_83 = arith.constant 0 : index
    %c0_84 = arith.constant 0 : index
    %244 = vector.load %arg9[%243, %c0_83, %c0_84] : memref<8x16x384xf32, #tpu.memory_space<vmem>>, vector<1x16x384xf32>
    %245 = vector.shape_cast %244 : vector<1x16x384xf32> to vector<16x384xf32>
    %246 = arith.truncf %242 : vector<16x128xf32> to vector<16x128xbf16>
    %cst_85 = arith.constant dense<0.000000e+00> : vector<16x384xf32>
    %247 = tpu.matmul %246, %12, %cst_85 {dimension_numbers = #tpu.dot_dimension_numbers<[1], [0], [0], [1], [0, 0, 1, 1], [], []>} : vector<16x128xbf16>, vector<128x384xbf16>, vector<16x384xf32> -> vector<16x384xf32>
    %248 = vector.extract_strided_slice %245 {offsets = [0, 0], sizes = [16, 128], strides = [1, 1]} : vector<16x384xf32> to vector<16x128xf32>
    %249 = vector.extract_strided_slice %247 {offsets = [0, 0], sizes = [16, 128], strides = [1, 1]} : vector<16x384xf32> to vector<16x128xf32>
    %250 = arith.addf %248, %249 : vector<16x128xf32>
    %251 = arith.negf %250 : vector<16x128xf32>
    %252 = math.exp %251 : vector<16x128xf32>
    %cst_86 = arith.constant 1.000000e+00 : f32
    %253 = vector.broadcast %cst_86 : f32 to vector<16x128xf32>
    %254 = arith.addf %253, %252 : vector<16x128xf32>
    %255 = arith.divf %253, %254 : vector<16x128xf32>
    %256 = vector.extract_strided_slice %245 {offsets = [0, 128], sizes = [16, 128], strides = [1, 1]} : vector<16x384xf32> to vector<16x128xf32>
    %257 = vector.extract_strided_slice %247 {offsets = [0, 128], sizes = [16, 128], strides = [1, 1]} : vector<16x384xf32> to vector<16x128xf32>
    %258 = arith.addf %256, %257 : vector<16x128xf32>
    %259 = arith.negf %258 : vector<16x128xf32>
    %260 = math.exp %259 : vector<16x128xf32>
    %cst_87 = arith.constant 1.000000e+00 : f32
    %261 = vector.broadcast %cst_87 : f32 to vector<16x128xf32>
    %262 = arith.addf %261, %260 : vector<16x128xf32>
    %263 = arith.divf %261, %262 : vector<16x128xf32>
    %264 = vector.extract_strided_slice %245 {offsets = [0, 256], sizes = [16, 128], strides = [1, 1]} : vector<16x384xf32> to vector<16x128xf32>
    %265 = vector.extract_strided_slice %247 {offsets = [0, 256], sizes = [16, 128], strides = [1, 1]} : vector<16x384xf32> to vector<16x128xf32>
    %266 = vector.broadcast %13 : vector<1x128xf32> to vector<16x128xf32>
    %267 = arith.addf %265, %266 : vector<16x128xf32>
    %268 = arith.mulf %255, %267 : vector<16x128xf32>
    %269 = arith.addf %264, %268 : vector<16x128xf32>
    %270 = math.tanh %269 : vector<16x128xf32>
    %271 = arith.subf %242, %270 : vector<16x128xf32>
    %272 = arith.mulf %263, %271 : vector<16x128xf32>
    %273 = arith.addf %270, %272 : vector<16x128xf32>
    %c0_88 = arith.constant 0 : index
    %c0_89 = arith.constant 0 : index
    %274 = vector.load %arg8[%c0_88, %c0_89] : memref<16x128xf32, #tpu.memory_space<vmem>>, vector<16x128xf32>
    tpu.vector_store %arg8[%c0_88, %c0_89], %273 {strides = array<i32>} : memref<16x128xf32, #tpu.memory_space<vmem>>, vector<16x128xf32>,
    %275 = arith.truncf %273 : vector<16x128xf32> to vector<16x128xbf16>
    %276 = arith.index_cast %c6_i32 : i32 to index
    %c0_90 = arith.constant 0 : index
    %c0_91 = arith.constant 0 : index
    %277 = vector.load %arg7[%276, %c0_90, %c0_91] : memref<8x16x128xbf16, #tpu.memory_space<vmem>>, vector<1x16x128xbf16>
    %278 = vector.shape_cast %277 : vector<1x16x128xbf16> to vector<16x128xbf16>
    %279 = vector.shape_cast %275 : vector<16x128xbf16> to vector<1x16x128xbf16>
    tpu.vector_store %arg7[%276, %c0_90, %c0_91], %279 {strides = array<i32>} : memref<8x16x128xbf16, #tpu.memory_space<vmem>>, vector<1x16x128xbf16>,
    %c7_i32 = arith.constant 7 : i32
    %c0_92 = arith.constant 0 : index
    %c0_93 = arith.constant 0 : index
    %280 = vector.load %arg8[%c0_92, %c0_93] : memref<16x128xf32, #tpu.memory_space<vmem>>, vector<16x128xf32>
    %281 = arith.index_cast %c7_i32 : i32 to index
    %c0_94 = arith.constant 0 : index
    %c0_95 = arith.constant 0 : index
    %282 = vector.load %arg9[%281, %c0_94, %c0_95] : memref<8x16x384xf32, #tpu.memory_space<vmem>>, vector<1x16x384xf32>
    %283 = vector.shape_cast %282 : vector<1x16x384xf32> to vector<16x384xf32>
    %284 = arith.truncf %280 : vector<16x128xf32> to vector<16x128xbf16>
    %cst_96 = arith.constant dense<0.000000e+00> : vector<16x384xf32>
    %285 = tpu.matmul %284, %12, %cst_96 {dimension_numbers = #tpu.dot_dimension_numbers<[1], [0], [0], [1], [0, 0, 1, 1], [], []>} : vector<16x128xbf16>, vector<128x384xbf16>, vector<16x384xf32> -> vector<16x384xf32>
    %286 = vector.extract_strided_slice %283 {offsets = [0, 0], sizes = [16, 128], strides = [1, 1]} : vector<16x384xf32> to vector<16x128xf32>
    %287 = vector.extract_strided_slice %285 {offsets = [0, 0], sizes = [16, 128], strides = [1, 1]} : vector<16x384xf32> to vector<16x128xf32>
    %288 = arith.addf %286, %287 : vector<16x128xf32>
    %289 = arith.negf %288 : vector<16x128xf32>
    %290 = math.exp %289 : vector<16x128xf32>
    %cst_97 = arith.constant 1.000000e+00 : f32
    %291 = vector.broadcast %cst_97 : f32 to vector<16x128xf32>
    %292 = arith.addf %291, %290 : vector<16x128xf32>
    %293 = arith.divf %291, %292 : vector<16x128xf32>
    %294 = vector.extract_strided_slice %283 {offsets = [0, 128], sizes = [16, 128], strides = [1, 1]} : vector<16x384xf32> to vector<16x128xf32>
    %295 = vector.extract_strided_slice %285 {offsets = [0, 128], sizes = [16, 128], strides = [1, 1]} : vector<16x384xf32> to vector<16x128xf32>
    %296 = arith.addf %294, %295 : vector<16x128xf32>
    %297 = arith.negf %296 : vector<16x128xf32>
    %298 = math.exp %297 : vector<16x128xf32>
    %cst_98 = arith.constant 1.000000e+00 : f32
    %299 = vector.broadcast %cst_98 : f32 to vector<16x128xf32>
    %300 = arith.addf %299, %298 : vector<16x128xf32>
    %301 = arith.divf %299, %300 : vector<16x128xf32>
    %302 = vector.extract_strided_slice %283 {offsets = [0, 256], sizes = [16, 128], strides = [1, 1]} : vector<16x384xf32> to vector<16x128xf32>
    %303 = vector.extract_strided_slice %285 {offsets = [0, 256], sizes = [16, 128], strides = [1, 1]} : vector<16x384xf32> to vector<16x128xf32>
    %304 = vector.broadcast %13 : vector<1x128xf32> to vector<16x128xf32>
    %305 = arith.addf %303, %304 : vector<16x128xf32>
    %306 = arith.mulf %293, %305 : vector<16x128xf32>
    %307 = arith.addf %302, %306 : vector<16x128xf32>
    %308 = math.tanh %307 : vector<16x128xf32>
    %309 = arith.subf %280, %308 : vector<16x128xf32>
    %310 = arith.mulf %301, %309 : vector<16x128xf32>
    %311 = arith.addf %308, %310 : vector<16x128xf32>
    %c0_99 = arith.constant 0 : index
    %c0_100 = arith.constant 0 : index
    %312 = vector.load %arg8[%c0_99, %c0_100] : memref<16x128xf32, #tpu.memory_space<vmem>>, vector<16x128xf32>
    tpu.vector_store %arg8[%c0_99, %c0_100], %311 {strides = array<i32>} : memref<16x128xf32, #tpu.memory_space<vmem>>, vector<16x128xf32>,
    %313 = arith.truncf %311 : vector<16x128xf32> to vector<16x128xbf16>
    %314 = arith.index_cast %c7_i32 : i32 to index
    %c0_101 = arith.constant 0 : index
    %c0_102 = arith.constant 0 : index
    %315 = vector.load %arg7[%314, %c0_101, %c0_102] : memref<8x16x128xbf16, #tpu.memory_space<vmem>>, vector<1x16x128xbf16>
    %316 = vector.shape_cast %315 : vector<1x16x128xbf16> to vector<16x128xbf16>
    %317 = vector.shape_cast %313 : vector<16x128xbf16> to vector<1x16x128xbf16>
    tpu.vector_store %arg7[%314, %c0_101, %c0_102], %317 {strides = array<i32>} : memref<8x16x128xbf16, #tpu.memory_space<vmem>>, vector<1x16x128xbf16>,
    %c8_i32 = arith.constant 8 : i32
    return
  }
  func.func @transform_0(%arg0: i32, %arg1: i32) -> (i32, i32, i32) {
    %c0_i32 = arith.constant 0 : i32
    %c0_i32_0 = arith.constant 0 : i32
    return %arg1, %arg0, %c0_i32 : i32, i32, i32
  }
  func.func @transform_1(%arg0: i32, %arg1: i32) -> (i32, i32) {
    %c0_i32 = arith.constant 0 : i32
    %c0_i32_0 = arith.constant 0 : i32
    %c0_i32_1 = arith.constant 0 : i32
    return %c0_i32, %c0_i32_0 : i32, i32
  }
  func.func @transform_2(%arg0: i32, %arg1: i32) -> (i32, i32) {
    %c0_i32 = arith.constant 0 : i32
    %c0_i32_0 = arith.constant 0 : i32
    %c0_i32_1 = arith.constant 0 : i32
    return %c0_i32, %c0_i32_0 : i32, i32
  }
  func.func @transform_3(%arg0: i32, %arg1: i32) -> (i32, i32) {
    %c0_i32 = arith.constant 0 : i32
    %c0_i32_0 = arith.constant 0 : i32
    %c0_i32_1 = arith.constant 0 : i32
    return %c0_i32, %c0_i32_0 : i32, i32
  }
  func.func @transform_4(%arg0: i32, %arg1: i32) -> (i32, i32) {
    %c0_i32 = arith.constant 0 : i32
    %c0_i32_0 = arith.constant 0 : i32
    %c0_i32_1 = arith.constant 0 : i32
    return %c0_i32, %c0_i32_0 : i32, i32
  }
  func.func @transform_5(%arg0: i32, %arg1: i32) -> (i32, i32, i32) {
    %c0_i32 = arith.constant 0 : i32
    %c0_i32_0 = arith.constant 0 : i32
    return %arg1, %arg0, %c0_i32 : i32, i32, i32
  }
}

</mosaic_0001>

<llo_original>
// kernel: gru_model_forward.5
$region0: #{gru_model_forward.5}
  #allocation0 [shape = 'u32[]', space=smem, size = 0x4, offset = 0x4, fixed_abs, tag = 'smem constant byte address 0x4 - core index']
  #allocation1 [shape = 'u32[144,128]{1,0:T(1,128)}', space=vmem, size = 0x12000, scoped, tag = 'internal scratch']
  %s0 = inlined_call_operand.vmem [shape: bf16[16,128], index: 0, kind: input, shape index: {}]
  %s1 = inlined_call_operand.hbm [shape: bf16[128,128], index: 1, kind: input, shape index: {}]
  %s2 = inlined_call_operand.vmem [shape: f32[1,128], index: 2, kind: input, shape index: {}]
  %s3 = inlined_call_operand.vmem [shape: f32[16,128], index: 3, kind: output, shape index: {}]
  %s4 = sld [smem:[#allocation0]]
  $region26: #{gru_model_forward.5} parent=0
    _
  %s6 = ssub.s32 1, %s4
  %s7 = scalar_select 0, %s6, %s4
  $region1: #{gru_model_forward.5} parent=0
    #allocation2 [shape = 'u8[32768]{0}', space=vmem, size = 0x8000, scoped, tag = 'input window, operand 1, single buffered']
    #allocation3 [shape = 's32[1]{0}', space=sflag, size = 0x4, scoped, tag = 'scoped memory for gru_model_forward.5']
    %8 = vsyncpa [#allocation3], 0
    // Predicated region
    $region2: #{gru_model_forward.5} parent=1 // pred_check
      _
    $region3: #{gru_model_forward.5} parent=1 // pred_check_branch
      %10 = sbr.rel (0) target = $region5
    $region4: #{gru_model_forward.5} parent=1 // pred_region
      _
    $region5: #{gru_model_forward.5} parent=1 // pred_fallthru
      _
    // Predicated region
    $region6: #{gru_model_forward.5} parent=1 // pred_check
      _
    $region7: #{gru_model_forward.5} parent=1 // pred_check_branch
      %12 = sbr.rel (0) target = $region9
    $region8: #{gru_model_forward.5} parent=1 // pred_region
      %s14 = ssub.s32 1024, 1024
      %15 = vsyncadd [#allocation3], %s14
      %s16 = sshll.u32 [#allocation2], 4
      %s17 = int_to_ptr.vmem [resolvable:$true] %s16
      %22 = dma.hbm_to_vmem [thread:$0]  %s1, 1024, %s17, [#allocation3], 64, 64, 4
    $region9: #{gru_model_forward.5} parent=1 // pred_fallthru
      _
    // Predicated region
    $region10: #{gru_model_forward.5} parent=1 // pred_check
      _
    $region11: #{gru_model_forward.5} parent=1 // pred_check_branch
      %24 = sbr.rel (0) target = $region13
    $region12: #{gru_model_forward.5} parent=1 // pred_region
      _
    $region13: #{gru_model_forward.5} parent=1 // pred_fallthru
      _
    // Predicated region
    $region14: #{gru_model_forward.5} parent=1 // pred_check
      _
    $region15: #{gru_model_forward.5} parent=1 // pred_check_branch
      %26 = sbr.rel (0) target = $region17
    $region16: #{gru_model_forward.5} parent=1 // pred_region
      %27 = dma.done [#allocation3], 1024
    $region17: #{gru_model_forward.5} parent=1 // pred_fallthru
      _
    %v29 = vld [vmem:[%s0] sm:$0xf]
    %v30 = vld [vmem:[%s0 + $0x4] sm:$0xf]
    %v31 = vld [vmem:[#allocation2] sm:$0xf]
    %v32 = vld [vmem:[#allocation2 + $0x4] sm:$0xf]
    %v33 = vld [vmem:[#allocation2 + $0x8] sm:$0xf]
    %v34 = vld [vmem:[#allocation2 + $0xc] sm:$0xf]
    %v35 = vld [vmem:[#allocation2 + $0x10] sm:$0xf]
    %v36 = vld [vmem:[#allocation2 + $0x14] sm:$0xf]
    %v37 = vld [vmem:[#allocation2 + $0x18] sm:$0xf]
    %v38 = vld [vmem:[#allocation2 + $0x1c] sm:$0xf]
    %v39 = vld [vmem:[#allocation2 + $0x20] sm:$0xf]
    %v40 = vld [vmem:[#allocation2 + $0x24] sm:$0xf]
    %v41 = vld [vmem:[#allocation2 + $0x28] sm:$0xf]
    %v42 = vld [vmem:[#allocation2 + $0x2c] sm:$0xf]
    %v43 = vld [vmem:[#allocation2 + $0x30] sm:$0xf]
    %v44 = vld [vmem:[#allocation2 + $0x34] sm:$0xf]
    %v45 = vld [vmem:[#allocation2 + $0x38] sm:$0xf]
    %v46 = vld [vmem:[#allocation2 + $0x3c] sm:$0xf]
    %v47 = vld [vmem:[%s2] sm:$0x1]
    %v49 = vlaneseq
    %v50 = vshrl.u32 %v49, 7
    %v51 = vsub.s32 0, %v50
    %v52 = vrot.slane %v47, %v51
    %v56 = vunpack.c.l.b16 %v29
    %v57 = vunpack.c.l.b16 %v30
    %v58 = vpack.c.b16 %v57, %v56
    %v76 = vunpack.c.l.b16 %v31
    %v77 = vunpack.c.l.b16 %v32
    %v78 = vunpack.c.l.b16 %v33
    %v79 = vunpack.c.l.b16 %v34
    %v80 = vunpack.c.l.b16 %v35
    %v81 = vunpack.c.l.b16 %v36
    %v82 = vunpack.c.l.b16 %v37
    %v83 = vunpack.c.l.b16 %v38
    %v84 = vunpack.c.l.b16 %v39
    %v85 = vunpack.c.l.b16 %v40
    %v86 = vunpack.c.l.b16 %v41
    %v87 = vunpack.c.l.b16 %v42
    %v88 = vunpack.c.l.b16 %v43
    %v89 = vunpack.c.l.b16 %v44
    %v90 = vunpack.c.l.b16 %v45
    %v91 = vunpack.c.l.b16 %v46
    %v92 = vpack.c.b16 %v77, %v76
    %v93 = vpack.c.b16 %v79, %v78
    %v94 = vpack.c.b16 %v81, %v80
    %v95 = vpack.c.b16 %v83, %v82
    %v96 = vpack.c.b16 %v85, %v84
    %v97 = vpack.c.b16 %v87, %v86
    %v98 = vpack.c.b16 %v89, %v88
    %v99 = vpack.c.b16 %v91, %v90
    %108 = vmatprep.subr.bf16.mxu0 0
    %109 = vmatpush1.bf16.msra.mxu0 %v92
    %110 = vmatprep.subr.bf16.mxu0 0
    %111 = vmatpush1.bf16.msra.mxu0 %v93
    %112 = vmatprep.subr.bf16.mxu0 0
    %113 = vmatpush1.bf16.msra.mxu0 %v94
    %114 = vmatprep.subr.bf16.mxu0 0
    %115 = vmatpush1.bf16.msra.mxu0 %v95
    %116 = vmatprep.subr.bf16.mxu0 0
    %117 = vmatpush1.bf16.msra.mxu0 %v96
    %118 = vmatprep.subr.bf16.mxu0 0
    %119 = vmatpush1.bf16.msra.mxu0 %v97
    %120 = vmatprep.subr.bf16.mxu0 0
    %121 = vmatpush1.bf16.msra.mxu0 %v98
    %122 = vmatprep.subr.bf16.mxu0 0
    %123 = vmatpush1.bf16.msra.mxu0 %v99
    %124 = vmatprep.subr.bf16.mxu0 0
    %125 = vmatpush1.bf16.msra.mxu0 0
    %126 = vmatprep.subr.bf16.mxu0 0
    %127 = vmatpush1.bf16.msra.mxu0 0
    %128 = vmatprep.subr.bf16.mxu0 0
    %129 = vmatpush1.bf16.msra.mxu0 0
    %130 = vmatprep.subr.bf16.mxu0 0
    %131 = vmatpush1.bf16.msra.mxu0 0
    %132 = vmatprep.subr.bf16.mxu0 0
    %133 = vmatpush1.bf16.msra.mxu0 0
    %134 = vmatprep.subr.bf16.mxu0 0
    %135 = vmatpush1.bf16.msra.mxu0 0
    %136 = vmatprep.subr.bf16.mxu0 0
    %137 = vmatpush1.bf16.msra.mxu0 0
    %138 = vmatprep.subr.bf16.mxu0 0
    %139 = vmatpush1.bf16.msra.mxu0 0
    %140 = vmatprep.mubr.bf16.mxu0 0
    %141 = vmatmul.mubr.bf16.gmra.mrb[0].mxu0 %v58
    %v142 = vpop.f32.mrb[0].mxu0
    %v143 = vadd.f32 %v52, %v142
    %v144 = vpop.f32.mrb[0].mxu0
    %v145 = vpop.f32.mrb[0].mxu0
    %v146 = vadd.f32 %v52, %v145
    %v147 = vpop.f32.mrb[0].mxu0
    %148 = vdwg.mxu0
    %v149 = vlaneseq
    %v150 = vand.u32 %v149, 127
    %vm151 = vcmp.lt.s32.totalorder %v150, 8
    %v152 = vsel %vm151, %v143, -1e+30
    %v153 = vsel %vm151, %v146, -1e+30
    %154 = vmax.xlane.f32.xlu0 %v152
    %v155 = vpop.xlane.xlu0 %154
    %156 = vmax.xlane.f32.xlu0 %v153
    %v157 = vpop.xlane.xlu0 %156
    %v158 = vsub.f32 %v152, %v155
    %v159 = vsub.f32 %v153, %v157
    %v160 = vmul.f32 %v158, 1.442695
    %v161 = vpow.pop %v160
    %v162 = vmul.f32 %v159, 1.442695
    %v163 = vpow.pop %v162
    %164 = vadd.xlane.f32.xlu0 %v161
    %v165 = vpop.xlane.xlu0 %164
    %166 = vadd.xlane.f32.xlu0 %v163
    %v167 = vpop.xlane.xlu0 %166
    %v168 = vrcp.pop %v165
    %v169 = vrcp.pop %v167
    %v170 = vmul.f32 %v165, %v168
    %v171 = vmul.f32 %v167, %v169
    %v172 = vsub.f32 2.0, %v170
    %v173 = vsub.f32 2.0, %v171
    %v174 = vmul.f32 %v168, %v172
    %v175 = vmul.f32 %v169, %v173
    %v176 = vmul.f32 %v165, %v174
    %v177 = vmul.f32 %v167, %v175
    %v178 = vsub.f32 2.0, %v176
    %v179 = vsub.f32 2.0, %v177
    %v180 = vmul.f32 %v174, %v178
    %v181 = vmul.f32 %v175, %v179
    %v182 = vmul.f32 %v161, %v180
    %v183 = vmul.f32 %v163, %v181
    %184 = vst [vmem:[%s3] sm:$0xff] %v182
    %185 = vst [vmem:[%s3 + $0x8] sm:$0xff] %v183
    // Predicated region
    $region18: #{gru_model_forward.5} parent=1 // pred_check
      _
    $region19: #{gru_model_forward.5} parent=1 // pred_check_branch
      %187 = sbr.rel (0) target = $region21
    $region20: #{gru_model_forward.5} parent=1 // pred_region
      _
    $region21: #{gru_model_forward.5} parent=1 // pred_fallthru
      _
    // Predicated region
    $region22: #{gru_model_forward.5} parent=1 // pred_check
      _
    $region23: #{gru_model_forward.5} parent=1 // pred_check_branch
      %189 = sbr.rel (0) target = $region25
    $region24: #{gru_model_forward.5} parent=1 // pred_region
      _
    $region25: #{gru_model_forward.5} parent=1 // pred_fallthru
      _
    %190 = vsyncpa [#allocation3], 1

// kernel: gru_model_forward.3
$region0: #{gru_model_forward.3}
  #allocation0 [shape = 'u32[]', space=smem, size = 0x4, offset = 0x4, fixed_abs, tag = 'smem constant byte address 0x4 - core index']
  #allocation1 [shape = 'u32[144,128]{1,0:T(1,128)}', space=vmem, size = 0x12000, scoped, tag = 'internal scratch']
  #allocation2 [shape = 'f32[16,128]{1,0:T(8,128)}', space=vmem, size = 0x2000, scoped, tag = 'scratch operand']
  #allocation3 [shape = 'f32[8,16,384]{2,1,0:T(8,128)}', space=vmem, size = 0x30000, scoped, tag = 'scratch operand']
  %s0 = inlined_call_operand.hbm [shape: f32[8,16,128], index: 0, kind: input, shape index: {}]
  %s1 = inlined_call_operand.hbm [shape: bf16[128,384], index: 1, kind: input, shape index: {}]
  %s2 = inlined_call_operand.hbm [shape: bf16[128,384], index: 2, kind: input, shape index: {}]
  %s3 = inlined_call_operand.hbm [shape: f32[1,384], index: 3, kind: input, shape index: {}]
  %s4 = inlined_call_operand.hbm [shape: f32[1,128], index: 4, kind: input, shape index: {}]
  %s5 = inlined_call_operand.hbm [shape: bf16[8,16,128], index: 5, kind: output, shape index: {}]
  %s6 = sld [smem:[#allocation0]]
  $region54: #{gru_model_forward.3} parent=0
    _
  %s8 = ssub.s32 1, %s6
  %s9 = scalar_select 0, %s8, %s6
  $region1: #{gru_model_forward.3} parent=0
    #allocation4 [shape = 'u8[65536]{0}', space=vmem, size = 0x10000, scoped, tag = 'input window, operand 0, single buffered']
    #allocation5 [shape = 's32[1]{0}', space=sflag, size = 0x4, scoped, tag = 'scoped memory for gru_model_forward.3']
    #allocation6 [shape = 's32[1]{0}', space=sflag, size = 0x4, scoped, tag = 'scoped memory for gru_model_forward.3']
    #allocation7 [shape = 'u8[98304]{0}', space=vmem, size = 0x18000, scoped, tag = 'input window, operand 1, single buffered']
    #allocation8 [shape = 's32[1]{0}', space=sflag, size = 0x4, scoped, tag = 'scoped memory for gru_model_forward.3']
    #allocation9 [shape = 'u8[98304]{0}', space=vmem, size = 0x18000, scoped, tag = 'input window, operand 2, single buffered']
    #allocation10 [shape = 'u8[1536]{0}', space=vmem, size = 0x800, scoped, tag = 'input window, operand 3, single buffered']
    #allocation11 [shape = 's32[1]{0}', space=sflag, size = 0x4, scoped, tag = 'scoped memory for gru_model_forward.3']
    #allocation12 [shape = 'u8[512]{0}', space=vmem, size = 0x400, scoped, tag = 'input window, operand 4, single buffered']
    #allocation13 [shape = 'u8[32768]{0}', space=vmem, size = 0x8000, scoped, tag = 'output window, operand 0, single buffered']
    %10 = vsyncpa [#allocation5], 0
    %11 = vsyncpa [#allocation8], 0
    %12 = vsyncpa [#allocation11], 0
    %13 = vsyncpa [#allocation6], 0
    // Predicated region
    $region2: #{gru_model_forward.3} parent=1 // pred_check
      _
    $region3: #{gru_model_forward.3} parent=1 // pred_check_branch
      %15 = sbr.rel (0) target = $region5
    $region4: #{gru_model_forward.3} parent=1 // pred_region
      %s17 = ssub.s32 2048, 2048
      %18 = vsyncadd [#allocation5], %s17
      %s19 = sshll.u32 [#allocation4], 4
      %s20 = int_to_ptr.vmem [resolvable:$true] %s19
      %25 = dma.hbm_to_vmem [thread:$0]  %s0, 2048, %s20, [#allocation5], 128, 128, 8
    $region5: #{gru_model_forward.3} parent=1 // pred_fallthru
      _
    // Predicated region
    $region6: #{gru_model_forward.3} parent=1 // pred_check
      _
    $region7: #{gru_model_forward.3} parent=1 // pred_check_branch
      %27 = sbr.rel (0) target = $region9
    $region8: #{gru_model_forward.3} parent=1 // pred_region
      %s29 = ssub.s32 3072, 3072
      %30 = vsyncadd [#allocation8], %s29
      %s31 = sshll.u32 [#allocation7], 4
      %s32 = int_to_ptr.vmem [resolvable:$true] %s31
      %37 = dma.hbm_to_vmem [thread:$0]  %s1, 3072, %s32, [#allocation8], 192, 192, 12
    $region9: #{gru_model_forward.3} parent=1 // pred_fallthru
      _
    // Predicated region
    $region10: #{gru_model_forward.3} parent=1 // pred_check
      _
    $region11: #{gru_model_forward.3} parent=1 // pred_check_branch
      %39 = sbr.rel (0) target = $region13
    $region12: #{gru_model_forward.3} parent=1 // pred_region
      %s41 = ssub.s32 3072, 3072
      %42 = vsyncadd [#allocation8], %s41
      %s43 = sshll.u32 [#allocation9], 4
      %s44 = int_to_ptr.vmem [resolvable:$true] %s43
      %49 = dma.hbm_to_vmem [thread:$0]  %s2, 3072, %s44, [#allocation8], 192, 192, 12
    $region13: #{gru_model_forward.3} parent=1 // pred_fallthru
      _
    // Predicated region
    $region14: #{gru_model_forward.3} parent=1 // pred_check
      _
    $region15: #{gru_model_forward.3} parent=1 // pred_check_branch
      %51 = sbr.rel (0) target = $region17
    $region16: #{gru_model_forward.3} parent=1 // pred_region
      %s53 = ssub.s32 48, 48
      %54 = vsyncadd [#allocation11], %s53
      %s56 = sshll.u32 [#allocation10], 4
      %s57 = int_to_ptr.vmem [resolvable:$true] %s56
      %59 = dma.hbm_to_vmem [thread:$0]  %s3, 48, %s57, [#allocation11]
    $region17: #{gru_model_forward.3} parent=1 // pred_fallthru
      _
    // Predicated region
    $region18: #{gru_model_forward.3} parent=1 // pred_check
      _
    $region19: #{gru_model_forward.3} parent=1 // pred_check_branch
      %61 = sbr.rel (0) target = $region21
    $region20: #{gru_model_forward.3} parent=1 // pred_region
      %s63 = ssub.s32 16, 16
      %64 = vsyncadd [#allocation11], %s63
      %s66 = sshll.u32 [#allocation12], 4
      %s67 = int_to_ptr.vmem [resolvable:$true] %s66
      %69 = dma.hbm_to_vmem [thread:$0]  %s4, 16, %s67, [#allocation11]
    $region21: #{gru_model_forward.3} parent=1 // pred_fallthru
      _
    // Predicated region
    $region22: #{gru_model_forward.3} parent=1 // pred_check
      _
    $region23: #{gru_model_forward.3} parent=1 // pred_check_branch
      %71 = sbr.rel (0) target = $region25
    $region24: #{gru_model_forward.3} parent=1 // pred_region
      %72 = dma.done [#allocation5], 2048
    $region25: #{gru_model_forward.3} parent=1 // pred_fallthru
      _
    // Predicated region
    $region26: #{gru_model_forward.3} parent=1 // pred_check
      _
    $region27: #{gru_model_forward.3} parent=1 // pred_check_branch
      %74 = sbr.rel (0) target = $region29
    $region28: #{gru_model_forward.3} parent=1 // pred_region
      %75 = dma.done [#allocation8], 3072
    $region29: #{gru_model_forward.3} parent=1 // pred_fallthru
      _
    // Predicated region
    $region30: #{gru_model_forward.3} parent=1 // pred_check
      _
    $region31: #{gru_model_forward.3} parent=1 // pred_check_branch
      %77 = sbr.rel (0) target = $region33
    $region32: #{gru_model_forward.3} parent=1 // pred_region
      %78 = dma.done [#allocation8], 3072
    $region33: #{gru_model_forward.3} parent=1 // pred_fallthru
      _
    // Predicated region
    $region34: #{gru_model_forward.3} parent=1 // pred_check
      _
    $region35: #{gru_model_forward.3} parent=1 // pred_check_branch
      %80 = sbr.rel (0) target = $region37
    $region36: #{gru_model_forward.3} parent=1 // pred_region
      %81 = dma.done [#allocation11], 48
    $region37: #{gru_model_forward.3} parent=1 // pred_fallthru
      _
    // Predicated region
    $region38: #{gru_model_forward.3} parent=1 // pred_check
      _
    $region39: #{gru_model_forward.3} parent=1 // pred_check_branch
      %83 = sbr.rel (0) target = $region41
    $region40: #{gru_model_forward.3} parent=1 // pred_region
      %84 = dma.done [#allocation11], 16
    $region41: #{gru_model_forward.3} parent=1 // pred_fallthru
      _
    %p86 = scmp.eq.s32.totalorder 0, 0
    // Predicated region
    $region42: #{gru_model_forward.3} parent=1 // pred_check
      %p87 = pneg %p86
    $region43: #{gru_model_forward.3} parent=1 // pred_check_branch
      %89 = sbr.rel (%p87) target = $region45
    $region44: #{gru_model_forward.3} parent=1 // pred_region
      %90 = vst [vmem:[#allocation2] sm:$0xff] 0.0
      %91 = vst [vmem:[#allocation2 + $0x8] sm:$0xff] 0.0
    $region45: #{gru_model_forward.3} parent=1 // pred_fallthru
      _
    %v92 = vld [vmem:[#allocation4] sm:$0xff]
    %v93 = vld [vmem:[#allocation4 + $0x8] sm:$0xff]
    %v94 = vld [vmem:[#allocation4 + $0x10] sm:$0xff]
    %v95 = vld [vmem:[#allocation4 + $0x18] sm:$0xff]
    %v96 = vld [vmem:[#allocation4 + $0x20] sm:$0xff]
    %v97 = vld [vmem:[#allocation4 + $0x28] sm:$0xff]
    %v98 = vld [vmem:[#allocation4 + $0x30] sm:$0xff]
    %v99 = vld [vmem:[#allocation4 + $0x38] sm:$0xff]
    %v100 = vld [vmem:[#allocation4 + $0x40] sm:$0xff]
    %v101 = vld [vmem:[#allocation4 + $0x48] sm:$0xff]
    %v102 = vld [vmem:[#allocation4 + $0x50] sm:$0xff]
    %v103 = vld [vmem:[#allocation4 + $0x58] sm:$0xff]
    %v104 = vld [vmem:[#allocation4 + $0x60] sm:$0xff]
    %v105 = vld [vmem:[#allocation4 + $0x68] sm:$0xff]
    %v106 = vld [vmem:[#allocation4 + $0x70] sm:$0xff]
    %v107 = vld [vmem:[#allocation4 + $0x78] sm:$0xff]
    %v108 = vpack.c.bf16 %v93, %v92
    %v109 = vpack.c.bf16 %v95, %v94
    %v110 = vpack.c.bf16 %v97, %v96
    %v111 = vpack.c.bf16 %v99, %v98
    %v112 = vpack.c.bf16 %v101, %v100
    %v113 = vpack.c.bf16 %v103, %v102
    %v114 = vpack.c.bf16 %v105, %v104
    %v115 = vpack.c.bf16 %v107, %v106
    %v116 = vld [vmem:[#allocation7] sm:$0xff]
    %v117 = vld [vmem:[#allocation7 + $0x8] sm:$0xf]
    %v118 = vld [vmem:[#allocation7 + $0xc] sm:$0xff]
    %v119 = vld [vmem:[#allocation7 + $0x14] sm:$0xf]
    %v120 = vld [vmem:[#allocation7 + $0x18] sm:$0xff]
    %v121 = vld [vmem:[#allocation7 + $0x20] sm:$0xf]
    %v122 = vld [vmem:[#allocation7 + $0x24] sm:$0xff]
    %v123 = vld [vmem:[#allocation7 + $0x2c] sm:$0xf]
    %v124 = vld [vmem:[#allocation7 + $0x30] sm:$0xff]
    %v125 = vld [vmem:[#allocation7 + $0x38] sm:$0xf]
    %v126 = vld [vmem:[#allocation7 + $0x3c] sm:$0xff]
    %v127 = vld [vmem:[#allocation7 + $0x44] sm:$0xf]
    %v128 = vld [vmem:[#allocation7 + $0x48] sm:$0xff]
    %v129 = vld [vmem:[#allocation7 + $0x50] sm:$0xf]
    %v130 = vld [vmem:[#allocation7 + $0x54] sm:$0xff]
    %v131 = vld [vmem:[#allocation7 + $0x5c] sm:$0xf]
    %v132 = vld [vmem:[#allocation7 + $0x60] sm:$0xff]
    %v133 = vld [vmem:[#allocation7 + $0x68] sm:$0xf]
    %v134 = vld [vmem:[#allocation7 + $0x6c] sm:$0xff]
    %v135 = vld [vmem:[#allocation7 + $0x74] sm:$0xf]
    %v136 = vld [vmem:[#allocation7 + $0x78] sm:$0xff]
    %v137 = vld [vmem:[#allocation7 + $0x80] sm:$0xf]
    %v138 = vld [vmem:[#allocation7 + $0x84] sm:$0xff]
    %v139 = vld [vmem:[#allocation7 + $0x8c] sm:$0xf]
    %v140 = vld [vmem:[#allocation7 + $0x90] sm:$0xff]
    %v141 = vld [vmem:[#allocation7 + $0x98] sm:$0xf]
    %v142 = vld [vmem:[#allocation7 + $0x9c] sm:$0xff]
    %v143 = vld [vmem:[#allocation7 + $0xa4] sm:$0xf]
    %v144 = vld [vmem:[#allocation7 + $0xa8] sm:$0xff]
    %v145 = vld [vmem:[#allocation7 + $0xb0] sm:$0xf]
    %v146 = vld [vmem:[#allocation7 + $0xb4] sm:$0xff]
    %v147 = vld [vmem:[#allocation7 + $0xbc] sm:$0xf]
    %v148 = vld [vmem:[#allocation10] sm:$0x7]
    %v150 = vlaneseq
    %v151 = vshrl.u32 %v150, 7
    %v152 = vsub.s32 0, %v151
    %v153 = vrot.slane %v148, %v152
    %v154 = vlaneseq
    %v155 = vshrl.u32 %v154, 7
    %v156 = vsub.s32 1, %v155
    %v157 = vrot.slane %v148, %v156
    %v158 = vlaneseq
    %v159 = vshrl.u32 %v158, 7
    %v160 = vsub.s32 2, %v159
    %v161 = vrot.slane %v148, %v160
    %v197 = vunpack.c.l.b16 %v116
    %v198 = vunpack.c.h.b16 %v116
    %v199 = vunpack.c.l.b16 %v117
    %v200 = vunpack.c.l.b16 %v118
    %v201 = vunpack.c.h.b16 %v118
    %v202 = vunpack.c.l.b16 %v119
    %v203 = vunpack.c.l.b16 %v120
    %v204 = vunpack.c.h.b16 %v120
    %v205 = vunpack.c.l.b16 %v121
    %v206 = vunpack.c.l.b16 %v122
    %v207 = vunpack.c.h.b16 %v122
    %v208 = vunpack.c.l.b16 %v123
    %v209 = vunpack.c.l.b16 %v124
    %v210 = vunpack.c.h.b16 %v124
    %v211 = vunpack.c.l.b16 %v125
    %v212 = vunpack.c.l.b16 %v126
    %v213 = vunpack.c.h.b16 %v126
    %v214 = vunpack.c.l.b16 %v127
    %v215 = vunpack.c.l.b16 %v128
    %v216 = vunpack.c.h.b16 %v128
    %v217 = vunpack.c.l.b16 %v129
    %v218 = vunpack.c.l.b16 %v130
    %v219 = vunpack.c.h.b16 %v130
    %v220 = vunpack.c.l.b16 %v131
    %v221 = vunpack.c.l.b16 %v132
    %v222 = vunpack.c.h.b16 %v132
    %v223 = vunpack.c.l.b16 %v133
    %v224 = vunpack.c.l.b16 %v134
    %v225 = vunpack.c.h.b16 %v134
    %v226 = vunpack.c.l.b16 %v135
    %v227 = vunpack.c.l.b16 %v136
    %v228 = vunpack.c.h.b16 %v136
    %v229 = vunpack.c.l.b16 %v137
    %v230 = vunpack.c.l.b16 %v138
    %v231 = vunpack.c.h.b16 %v138
    %v232 = vunpack.c.l.b16 %v139
    %v233 = vunpack.c.l.b16 %v140
    %v234 = vunpack.c.h.b16 %v140
    %v235 = vunpack.c.l.b16 %v141
    %v236 = vunpack.c.l.b16 %v142
    %v237 = vunpack.c.h.b16 %v142
    %v238 = vunpack.c.l.b16 %v143
    %v239 = vunpack.c.l.b16 %v144
    %v240 = vunpack.c.h.b16 %v144
    %v241 = vunpack.c.l.b16 %v145
    %v242 = vunpack.c.l.b16 %v146
    %v243 = vunpack.c.h.b16 %v146
    %v244 = vunpack.c.l.b16 %v147
    %v245 = vpack.c.b16 %v200, %v197
    %v246 = vpack.c.b16 %v201, %v198
    %v247 = vpack.c.b16 %v202, %v199
    %v248 = vpack.c.b16 %v206, %v203
    %v249 = vpack.c.b16 %v207, %v204
    %v250 = vpack.c.b16 %v208, %v205
    %v251 = vpack.c.b16 %v212, %v209
    %v252 = vpack.c.b16 %v213, %v210
    %v253 = vpack.c.b16 %v214, %v211
    %v254 = vpack.c.b16 %v218, %v215
    %v255 = vpack.c.b16 %v219, %v216
    %v256 = vpack.c.b16 %v220, %v217
    %v257 = vpack.c.b16 %v224, %v221
    %v258 = vpack.c.b16 %v225, %v222
    %v259 = vpack.c.b16 %v226, %v223
    %v260 = vpack.c.b16 %v230, %v227
    %v261 = vpack.c.b16 %v231, %v228
    %v262 = vpack.c.b16 %v232, %v229
    %v263 = vpack.c.b16 %v236, %v233
    %v264 = vpack.c.b16 %v237, %v234
    %v265 = vpack.c.b16 %v238, %v235
    %v266 = vpack.c.b16 %v242, %v239
    %v267 = vpack.c.b16 %v243, %v240
    %v268 = vpack.c.b16 %v244, %v241
    %293 = vmatprep.subr.bf16.mxu0 %v246
    %294 = vmatpush1.bf16.msra.mxu0 %v245
    %295 = vmatprep.subr.bf16.mxu0 %v249
    %296 = vmatpush1.bf16.msra.mxu0 %v248
    %297 = vmatprep.subr.bf16.mxu0 %v252
    %298 = vmatpush1.bf16.msra.mxu0 %v251
    %299 = vmatprep.subr.bf16.mxu0 %v255
    %300 = vmatpush1.bf16.msra.mxu0 %v254
    %301 = vmatprep.subr.bf16.mxu0 %v258
    %302 = vmatpush1.bf16.msra.mxu0 %v257
    %303 = vmatprep.subr.bf16.mxu0 %v261
    %304 = vmatpush1.bf16.msra.mxu0 %v260
    %305 = vmatprep.subr.bf16.mxu0 %v264
    %306 = vmatpush1.bf16.msra.mxu0 %v263
    %307 = vmatprep.subr.bf16.mxu0 %v267
    %308 = vmatpush1.bf16.msra.mxu0 %v266
    %309 = vmatprep.subr.bf16.mxu0 0
    %310 = vmatpush1.bf16.msra.mxu0 0
    %311 = vmatprep.subr.bf16.mxu0 0
    %312 = vmatpush1.bf16.msra.mxu0 0
    %313 = vmatprep.subr.bf16.mxu0 0
    %314 = vmatpush1.bf16.msra.mxu0 0
    %315 = vmatprep.subr.bf16.mxu0 0
    %316 = vmatpush1.bf16.msra.mxu0 0
    %317 = vmatprep.subr.bf16.mxu0 0
    %318 = vmatpush1.bf16.msra.mxu0 0
    %319 = vmatprep.subr.bf16.mxu0 0
    %320 = vmatpush1.bf16.msra.mxu0 0
    %321 = vmatprep.subr.bf16.mxu0 0
    %322 = vmatpush1.bf16.msra.mxu0 0
    %323 = vmatprep.subr.bf16.mxu0 0
    %324 = vmatpush1.bf16.msra.mxu0 0
    %325 = vmatprep.mubr.bf16.mxu0 0
    %326 = vmatmul.mubr.bf16.gmra.mrb[0].mxu0 %v108
    %v327 = vpop.f32.mrb[0].mxu0
    %v328 = vadd.f32 %v153, %v327
    %v329 = vpop.f32.mrb[0].mxu0
    %v330 = vadd.f32 %v157, %v329
    %v331 = vpop.f32.mrb[0].mxu0
    %v332 = vadd.f32 %v153, %v331
    %v333 = vpop.f32.mrb[0].mxu0
    %v334 = vadd.f32 %v157, %v333
    %335 = vmatprep.mubr.bf16.mxu0 0
    %336 = vmatmul.mubr.bf16.gmra.mrb[0].mxu0 %v109
    %v337 = vpop.f32.mrb[0].mxu0
    %v338 = vadd.f32 %v153, %v337
    %v339 = vpop.f32.mrb[0].mxu0
    %v340 = vadd.f32 %v157, %v339
    %v341 = vpop.f32.mrb[0].mxu0
    %v342 = vadd.f32 %v153, %v341
    %v343 = vpop.f32.mrb[0].mxu0
    %v344 = vadd.f32 %v157, %v343
    %345 = vmatprep.mubr.bf16.mxu0 0
    %346 = vmatmul.mubr.bf16.gmra.mrb[0].mxu0 %v110
    %v347 = vpop.f32.mrb[0].mxu0
    %v348 = vadd.f32 %v153, %v347
    %v349 = vpop.f32.mrb[0].mxu0
    %v350 = vadd.f32 %v157, %v349
    %v351 = vpop.f32.mrb[0].mxu0
    %v352 = vadd.f32 %v153, %v351
    %v353 = vpop.f32.mrb[0].mxu0
    %v354 = vadd.f32 %v157, %v353
    %355 = vmatprep.mubr.bf16.mxu0 0
    %356 = vmatmul.mubr.bf16.gmra.mrb[0].mxu0 %v111
    %v357 = vpop.f32.mrb[0].mxu0
    %v358 = vadd.f32 %v153, %v357
    %v359 = vpop.f32.mrb[0].mxu0
    %v360 = vadd.f32 %v157, %v359
    %v361 = vpop.f32.mrb[0].mxu0
    %v362 = vadd.f32 %v153, %v361
    %v363 = vpop.f32.mrb[0].mxu0
    %v364 = vadd.f32 %v157, %v363
    %365 = vmatprep.mubr.bf16.mxu0 0
    %366 = vmatmul.mubr.bf16.gmra.mrb[0].mxu0 %v112
    %v367 = vpop.f32.mrb[0].mxu0
    %v368 = vadd.f32 %v153, %v367
    %v369 = vpop.f32.mrb[0].mxu0
    %v370 = vadd.f32 %v157, %v369
    %v371 = vpop.f32.mrb[0].mxu0
    %v372 = vadd.f32 %v153, %v371
    %v373 = vpop.f32.mrb[0].mxu0
    %v374 = vadd.f32 %v157, %v373
    %375 = vmatprep.mubr.bf16.mxu0 0
    %376 = vmatmul.mubr.bf16.gmra.mrb[0].mxu0 %v113
    %v377 = vpop.f32.mrb[0].mxu0
    %v378 = vadd.f32 %v153, %v377
    %v379 = vpop.f32.mrb[0].mxu0
    %v380 = vadd.f32 %v157, %v379
    %v381 = vpop.f32.mrb[0].mxu0
    %v382 = vadd.f32 %v153, %v381
    %v383 = vpop.f32.mrb[0].mxu0
    %v384 = vadd.f32 %v157, %v383
    %385 = vmatprep.mubr.bf16.mxu0 0
    %386 = vmatmul.mubr.bf16.gmra.mrb[0].mxu0 %v114
    %v387 = vpop.f32.mrb[0].mxu0
    %v388 = vadd.f32 %v153, %v387
    %v389 = vpop.f32.mrb[0].mxu0
    %v390 = vadd.f32 %v157, %v389
    %v391 = vpop.f32.mrb[0].mxu0
    %v392 = vadd.f32 %v153, %v391
    %v393 = vpop.f32.mrb[0].mxu0
    %v394 = vadd.f32 %v157, %v393
    %395 = vmatprep.mubr.bf16.mxu0 0
    %396 = vmatmul.mubr.bf16.gmra.mrb[0].mxu0 %v115
    %v397 = vpop.f32.mrb[0].mxu0
    %v398 = vadd.f32 %v153, %v397
    %v399 = vpop.f32.mrb[0].mxu0
    %v400 = vadd.f32 %v157, %v399
    %v401 = vpop.f32.mrb[0].mxu0
    %v402 = vadd.f32 %v153, %v401
    %v403 = vpop.f32.mrb[0].mxu0
    %v404 = vadd.f32 %v157, %v403
    %405 = vdwg.mxu0
    %406 = vmatprep.subr.bf16.mxu0 0
    %407 = vmatpush1.bf16.msra.mxu0 %v247
    %408 = vmatprep.subr.bf16.mxu0 0
    %409 = vmatpush1.bf16.msra.mxu0 %v250
    %410 = vmatprep.subr.bf16.mxu0 0
    %411 = vmatpush1.bf16.msra.mxu0 %v253
    %412 = vmatprep.subr.bf16.mxu0 0
    %413 = vmatpush1.bf16.msra.mxu0 %v256
    %414 = vmatprep.subr.bf16.mxu0 0
    %415 = vmatpush1.bf16.msra.mxu0 %v259
    %416 = vmatprep.subr.bf16.mxu0 0
    %417 = vmatpush1.bf16.msra.mxu0 %v262
    %418 = vmatprep.subr.bf16.mxu0 0
    %419 = vmatpush1.bf16.msra.mxu0 %v265
    %420 = vmatprep.subr.bf16.mxu0 0
    %421 = vmatpush1.bf16.msra.mxu0 %v268
    %422 = vmatprep.subr.bf16.mxu0 0
    %423 = vmatpush1.bf16.msra.mxu0 0
    %424 = vmatprep.subr.bf16.mxu0 0
    %425 = vmatpush1.bf16.msra.mxu0 0
    %426 = vmatprep.subr.bf16.mxu0 0
    %427 = vmatpush1.bf16.msra.mxu0 0
    %428 = vmatprep.subr.bf16.mxu0 0
    %429 = vmatpush1.bf16.msra.mxu0 0
    %430 = vmatprep.subr.bf16.mxu0 0
    %431 = vmatpush1.bf16.msra.mxu0 0
    %432 = vmatprep.subr.bf16.mxu0 0
    %433 = vmatpush1.bf16.msra.mxu0 0
    %434 = vmatprep.subr.bf16.mxu0 0
    %435 = vmatpush1.bf16.msra.mxu0 0
    %436 = vmatprep.subr.bf16.mxu0 0
    %437 = vmatpush1.bf16.msra.mxu0 0
    %438 = vmatprep.mubr.bf16.mxu0 0
    %439 = vmatmul.mubr.bf16.gmra.mrb[0].mxu0 %v108
    %v440 = vpop.f32.mrb[0].mxu0
    %v441 = vadd.f32 %v161, %v440
    %v442 = vpop.f32.mrb[0].mxu0
    %v443 = vpop.f32.mrb[0].mxu0
    %v444 = vadd.f32 %v161, %v443
    %v445 = vpop.f32.mrb[0].mxu0
    %446 = vmatprep.mubr.bf16.mxu0 0
    %447 = vmatmul.mubr.bf16.gmra.mrb[0].mxu0 %v109
    %v448 = vpop.f32.mrb[0].mxu0
    %v449 = vadd.f32 %v161, %v448
    %v450 = vpop.f32.mrb[0].mxu0
    %v451 = vpop.f32.mrb[0].mxu0
    %v452 = vadd.f32 %v161, %v451
    %v453 = vpop.f32.mrb[0].mxu0
    %454 = vmatprep.mubr.bf16.mxu0 0
    %455 = vmatmul.mubr.bf16.gmra.mrb[0].mxu0 %v110
    %v456 = vpop.f32.mrb[0].mxu0
    %v457 = vadd.f32 %v161, %v456
    %v458 = vpop.f32.mrb[0].mxu0
    %v459 = vpop.f32.mrb[0].mxu0
    %v460 = vadd.f32 %v161, %v459
    %v461 = vpop.f32.mrb[0].mxu0
    %462 = vmatprep.mubr.bf16.mxu0 0
    %463 = vmatmul.mubr.bf16.gmra.mrb[0].mxu0 %v111
    %v464 = vpop.f32.mrb[0].mxu0
    %v465 = vadd.f32 %v161, %v464
    %v466 = vpop.f32.mrb[0].mxu0
    %v467 = vpop.f32.mrb[0].mxu0
    %v468 = vadd.f32 %v161, %v467
    %v469 = vpop.f32.mrb[0].mxu0
    %470 = vmatprep.mubr.bf16.mxu0 0
    %471 = vmatmul.mubr.bf16.gmra.mrb[0].mxu0 %v112
    %v472 = vpop.f32.mrb[0].mxu0
    %v473 = vadd.f32 %v161, %v472
    %v474 = vpop.f32.mrb[0].mxu0
    %v475 = vpop.f32.mrb[0].mxu0
    %v476 = vadd.f32 %v161, %v475
    %v477 = vpop.f32.mrb[0].mxu0
    %478 = vmatprep.mubr.bf16.mxu0 0
    %479 = vmatmul.mubr.bf16.gmra.mrb[0].mxu0 %v113
    %v480 = vpop.f32.mrb[0].mxu0
    %v481 = vadd.f32 %v161, %v480
    %v482 = vpop.f32.mrb[0].mxu0
    %v483 = vpop.f32.mrb[0].mxu0
    %v484 = vadd.f32 %v161, %v483
    %v485 = vpop.f32.mrb[0].mxu0
    %486 = vmatprep.mubr.bf16.mxu0 0
    %487 = vmatmul.mubr.bf16.gmra.mrb[0].mxu0 %v114
    %v488 = vpop.f32.mrb[0].mxu0
    %v489 = vadd.f32 %v161, %v488
    %v490 = vpop.f32.mrb[0].mxu0
    %v491 = vpop.f32.mrb[0].mxu0
    %v492 = vadd.f32 %v161, %v491
    %v493 = vpop.f32.mrb[0].mxu0
    %494 = vmatprep.mubr.bf16.mxu0 0
    %495 = vmatmul.mubr.bf16.gmra.mrb[0].mxu0 %v115
    %v496 = vpop.f32.mrb[0].mxu0
    %v497 = vadd.f32 %v161, %v496
    %v498 = vpop.f32.mrb[0].mxu0
    %v499 = vpop.f32.mrb[0].mxu0
    %v500 = vadd.f32 %v161, %v499
    %v501 = vpop.f32.mrb[0].mxu0
    %502 = vdwg.mxu0
    %503 = vst [vmem:[#allocation3] sm:$0xff] %v328
    %504 = vst [vmem:[#allocation3 + $0x8] sm:$0xff] %v330
    %505 = vst [vmem:[#allocation3 + $0x10] sm:$0xff] %v441
    %506 = vst [vmem:[#allocation3 + $0x18] sm:$0xff] %v332
    %507 = vst [vmem:[#allocation3 + $0x20] sm:$0xff] %v334
    %508 = vst [vmem:[#allocation3 + $0x28] sm:$0xff] %v444
    %509 = vst [vmem:[#allocation3 + $0x30] sm:$0xff] %v338
    %510 = vst [vmem:[#allocation3 + $0x38] sm:$0xff] %v340
    %511 = vst [vmem:[#allocation3 + $0x40] sm:$0xff] %v449
    %512 = vst [vmem:[#allocation3 + $0x48] sm:$0xff] %v342
    %513 = vst [vmem:[#allocation3 + $0x50] sm:$0xff] %v344
    %514 = vst [vmem:[#allocation3 + $0x58] sm:$0xff] %v452
    %515 = vst [vmem:[#allocation3 + $0x60] sm:$0xff] %v348
    %516 = vst [vmem:[#allocation3 + $0x68] sm:$0xff] %v350
    %517 = vst [vmem:[#allocation3 + $0x70] sm:$0xff] %v457
    %518 = vst [vmem:[#allocation3 + $0x78] sm:$0xff] %v352
    %519 = vst [vmem:[#allocation3 + $0x80] sm:$0xff] %v354
    %520 = vst [vmem:[#allocation3 + $0x88] sm:$0xff] %v460
    %521 = vst [vmem:[#allocation3 + $0x90] sm:$0xff] %v358
    %522 = vst [vmem:[#allocation3 + $0x98] sm:$0xff] %v360
    %523 = vst [vmem:[#allocation3 + $0xa0] sm:$0xff] %v465
    %524 = vst [vmem:[#allocation3 + $0xa8] sm:$0xff] %v362
    %525 = vst [vmem:[#allocation3 + $0xb0] sm:$0xff] %v364
    %526 = vst [vmem:[#allocation3 + $0xb8] sm:$0xff] %v468
    %527 = vst [vmem:[#allocation3 + $0xc0] sm:$0xff] %v368
    %528 = vst [vmem:[#allocation3 + $0xc8] sm:$0xff] %v370
    %529 = vst [vmem:[#allocation3 + $0xd0] sm:$0xff] %v473
    %530 = vst [vmem:[#allocation3 + $0xd8] sm:$0xff] %v372
    %531 = vst [vmem:[#allocation3 + $0xe0] sm:$0xff] %v374
    %532 = vst [vmem:[#allocation3 + $0xe8] sm:$0xff] %v476
    %533 = vst [vmem:[#allocation3 + $0xf0] sm:$0xff] %v378
    %534 = vst [vmem:[#allocation3 + $0xf8] sm:$0xff] %v380
    %535 = vst [vmem:[#allocation3 + $0x100] sm:$0xff] %v481
    %536 = vst [vmem:[#allocation3 + $0x108] sm:$0xff] %v382
    %537 = vst [vmem:[#allocation3 + $0x110] sm:$0xff] %v384
    %538 = vst [vmem:[#allocation3 + $0x118] sm:$0xff] %v484
    %539 = vst [vmem:[#allocation3 + $0x120] sm:$0xff] %v388
    %540 = vst [vmem:[#allocation3 + $0x128] sm:$0xff] %v390
    %541 = vst [vmem:[#allocation3 + $0x130] sm:$0xff] %v489
    %542 = vst [vmem:[#allocation3 + $0x138] sm:$0xff] %v392
    %543 = vst [vmem:[#allocation3 + $0x140] sm:$0xff] %v394
    %544 = vst [vmem:[#allocation3 + $0x148] sm:$0xff] %v492
    %545 = vst [vmem:[#allocation3 + $0x150] sm:$0xff] %v398
    %546 = vst [vmem:[#allocation3 + $0x158] sm:$0xff] %v400
    %547 = vst [vmem:[#allocation3 + $0x160] sm:$0xff] %v497
    %548 = vst [vmem:[#allocation3 + $0x168] sm:$0xff] %v402
    %549 = vst [vmem:[#allocation3 + $0x170] sm:$0xff] %v404
    %550 = vst [vmem:[#allocation3 + $0x178] sm:$0xff] %v500
    %v551 = vld [vmem:[#allocation9] sm:$0xff]
    %v552 = vld [vmem:[#allocation9 + $0x8] sm:$0xf]
    %v553 = vld [vmem:[#allocation9 + $0xc] sm:$0xff]
    %v554 = vld [vmem:[#allocation9 + $0x14] sm:$0xf]
    %v555 = vld [vmem:[#allocation9 + $0x18] sm:$0xff]
    %v556 = vld [vmem:[#allocation9 + $0x20] sm:$0xf]
    %v557 = vld [vmem:[#allocation9 + $0x24] sm:$0xff]
    %v558 = vld [vmem:[#allocation9 + $0x2c] sm:$0xf]
    %v559 = vld [vmem:[#allocation9 + $0x30] sm:$0xff]
    %v560 = vld [vmem:[#allocation9 + $0x38] sm:$0xf]
    %v561 = vld [vmem:[#allocation9 + $0x3c] sm:$0xff]
    %v562 = vld [vmem:[#allocation9 + $0x44] sm:$0xf]
    %v563 = vld [vmem:[#allocation9 + $0x48] sm:$0xff]
    %v564 = vld [vmem:[#allocation9 + $0x50] sm:$0xf]
    %v565 = vld [vmem:[#allocation9 + $0x54] sm:$0xff]
    %v566 = vld [vmem:[#allocation9 + $0x5c] sm:$0xf]
    %v567 = vld [vmem:[#allocation9 + $0x60] sm:$0xff]
    %v568 = vld [vmem:[#allocation9 + $0x68] sm:$0xf]
    %v569 = vld [vmem:[#allocation9 + $0x6c] sm:$0xff]
    %v570 = vld [vmem:[#allocation9 + $0x74] sm:$0xf]
    %v571 = vld [vmem:[#allocation9 + $0x78] sm:$0xff]
    %v572 = vld [vmem:[#allocation9 + $0x80] sm:$0xf]
    %v573 = vld [vmem:[#allocation9 + $0x84] sm:$0xff]
    %v574 = vld [vmem:[#allocation9 + $0x8c] sm:$0xf]
    %v575 = vld [vmem:[#allocation9 + $0x90] sm:$0xff]
    %v576 = vld [vmem:[#allocation9 + $0x98] sm:$0xf]
    %v577 = vld [vmem:[#allocation9 + $0x9c] sm:$0xff]
    %v578 = vld [vmem:[#allocation9 + $0xa4] sm:$0xf]
    %v579 = vld [vmem:[#allocation9 + $0xa8] sm:$0xff]
    %v580 = vld [vmem:[#allocation9 + $0xb0] sm:$0xf]
    %v581 = vld [vmem:[#allocation9 + $0xb4] sm:$0xff]
    %v582 = vld [vmem:[#allocation9 + $0xbc] sm:$0xf]
    %v583 = vld [vmem:[#allocation12] sm:$0x1]
    %v584 = vld [vmem:[#allocation2] sm:$0xff]
    %v585 = vld [vmem:[#allocation2 + $0x8] sm:$0xff]
    %v586 = vld [vmem:[#allocation3] sm:$0xff]
    %v587 = vld [vmem:[#allocation3 + $0x8] sm:$0xff]
    %v588 = vld [vmem:[#allocation3 + $0x10] sm:$0xff]
    %v589 = vld [vmem:[#allocation3 + $0x18] sm:$0xff]
    %v590 = vld [vmem:[#allocation3 + $0x20] sm:$0xff]
    %v591 = vld [vmem:[#allocation3 + $0x28] sm:$0xff]
    %v592 = vpack.c.bf16 %v585, %v584
    %v625 = vunpack.c.l.b16 %v551
    %v626 = vunpack.c.h.b16 %v551
    %v627 = vunpack.c.l.b16 %v552
    %v628 = vunpack.c.l.b16 %v553
    %v629 = vunpack.c.h.b16 %v553
    %v630 = vunpack.c.l.b16 %v554
    %v631 = vunpack.c.l.b16 %v555
    %v632 = vunpack.c.h.b16 %v555
    %v633 = vunpack.c.l.b16 %v556
    %v634 = vunpack.c.l.b16 %v557
    %v635 = vunpack.c.h.b16 %v557
    %v636 = vunpack.c.l.b16 %v558
    %v637 = vunpack.c.l.b16 %v559
    %v638 = vunpack.c.h.b16 %v559
    %v639 = vunpack.c.l.b16 %v560
    %v640 = vunpack.c.l.b16 %v561
    %v641 = vunpack.c.h.b16 %v561
    %v642 = vunpack.c.l.b16 %v562
    %v643 = vunpack.c.l.b16 %v563
    %v644 = vunpack.c.h.b16 %v563
    %v645 = vunpack.c.l.b16 %v564
    %v646 = vunpack.c.l.b16 %v565
    %v647 = vunpack.c.h.b16 %v565
    %v648 = vunpack.c.l.b16 %v566
    %v649 = vunpack.c.l.b16 %v567
    %v650 = vunpack.c.h.b16 %v567
    %v651 = vunpack.c.l.b16 %v568
    %v652 = vunpack.c.l.b16 %v569
    %v653 = vunpack.c.h.b16 %v569
    %v654 = vunpack.c.l.b16 %v570
    %v655 = vunpack.c.l.b16 %v571
    %v656 = vunpack.c.h.b16 %v571
    %v657 = vunpack.c.l.b16 %v572
    %v658 = vunpack.c.l.b16 %v573
    %v659 = vunpack.c.h.b16 %v573
    %v660 = vunpack.c.l.b16 %v574
    %v661 = vunpack.c.l.b16 %v575
    %v662 = vunpack.c.h.b16 %v575
    %v663 = vunpack.c.l.b16 %v576
    %v664 = vunpack.c.l.b16 %v577
    %v665 = vunpack.c.h.b16 %v577
    %v666 = vunpack.c.l.b16 %v578
    %v667 = vunpack.c.l.b16 %v579
    %v668 = vunpack.c.h.b16 %v579
    %v669 = vunpack.c.l.b16 %v580
    %v670 = vunpack.c.l.b16 %v581
    %v671 = vunpack.c.h.b16 %v581
    %v672 = vunpack.c.l.b16 %v582
    %v673 = vpack.c.b16 %v628, %v625
    %v674 = vpack.c.b16 %v629, %v626
    %v675 = vpack.c.b16 %v630, %v627
    %v676 = vpack.c.b16 %v634, %v631
    %v677 = vpack.c.b16 %v635, %v632
    %v678 = vpack.c.b16 %v636, %v633
    %v679 = vpack.c.b16 %v640, %v637
    %v680 = vpack.c.b16 %v641, %v638
    %v681 = vpack.c.b16 %v642, %v639
    %v682 = vpack.c.b16 %v646, %v643
    %v683 = vpack.c.b16 %v647, %v644
    %v684 = vpack.c.b16 %v648, %v645
    %v685 = vpack.c.b16 %v652, %v649
    %v686 = vpack.c.b16 %v653, %v650
    %v687 = vpack.c.b16 %v654, %v651
    %v688 = vpack.c.b16 %v658, %v655
    %v689 = vpack.c.b16 %v659, %v656
    %v690 = vpack.c.b16 %v660, %v657
    %v691 = vpack.c.b16 %v664, %v661
    %v692 = vpack.c.b16 %v665, %v662
    %v693 = vpack.c.b16 %v666, %v663
    %v694 = vpack.c.b16 %v670, %v667
    %v695 = vpack.c.b16 %v671, %v668
    %v696 = vpack.c.b16 %v672, %v669
    %721 = vmatprep.subr.bf16.mxu0 %v674
    %722 = vmatpush1.bf16.msra.mxu0 %v673
    %723 = vmatprep.subr.bf16.mxu0 %v677
    %724 = vmatpush1.bf16.msra.mxu0 %v676
    %725 = vmatprep.subr.bf16.mxu0 %v680
    %726 = vmatpush1.bf16.msra.mxu0 %v679
    %727 = vmatprep.subr.bf16.mxu0 %v683
    %728 = vmatpush1.bf16.msra.mxu0 %v682
    %729 = vmatprep.subr.bf16.mxu0 %v686
    %730 = vmatpush1.bf16.msra.mxu0 %v685
    %731 = vmatprep.subr.bf16.mxu0 %v689
    %732 = vmatpush1.bf16.msra.mxu0 %v688
    %733 = vmatprep.subr.bf16.mxu0 %v692
    %734 = vmatpush1.bf16.msra.mxu0 %v691
    %735 = vmatprep.subr.bf16.mxu0 %v695
    %736 = vmatpush1.bf16.msra.mxu0 %v694
    %737 = vmatprep.subr.bf16.mxu0 0
    %738 = vmatpush1.bf16.msra.mxu0 0
    %739 = vmatprep.subr.bf16.mxu0 0
    %740 = vmatpush1.bf16.msra.mxu0 0
    %741 = vmatprep.subr.bf16.mxu0 0
    %742 = vmatpush1.bf16.msra.mxu0 0
    %743 = vmatprep.subr.bf16.mxu0 0
    %744 = vmatpush1.bf16.msra.mxu0 0
    %745 = vmatprep.subr.bf16.mxu0 0
    %746 = vmatpush1.bf16.msra.mxu0 0
    %747 = vmatprep.subr.bf16.mxu0 0
    %748 = vmatpush1.bf16.msra.mxu0 0
    %749 = vmatprep.subr.bf16.mxu0 0
    %750 = vmatpush1.bf16.msra.mxu0 0
    %751 = vmatprep.subr.bf16.mxu0 0
    %752 = vmatpush1.bf16.msra.mxu0 0
    %753 = vmatprep.mubr.bf16.mxu0 0
    %754 = vmatmul.mubr.bf16.gmra.mrb[0].mxu0 %v592
    %v755 = vpop.f32.mrb[0].mxu0
    %v756 = vadd.f32 0.0, %v755
    %v757 = vpop.f32.mrb[0].mxu0
    %v758 = vadd.f32 0.0, %v757
    %v759 = vpop.f32.mrb[0].mxu0
    %v760 = vadd.f32 0.0, %v759
    %v761 = vpop.f32.mrb[0].mxu0
    %v762 = vadd.f32 0.0, %v761
    %763 = vdwg.mxu0
    %764 = vmatprep.subr.bf16.mxu0 0
    %765 = vmatpush1.bf16.msra.mxu0 %v675
    %766 = vmatprep.subr.bf16.mxu0 0
    %767 = vmatpush1.bf16.msra.mxu0 %v678
    %768 = vmatprep.subr.bf16.mxu0 0
    %769 = vmatpush1.bf16.msra.mxu0 %v681
    %770 = vmatprep.subr.bf16.mxu0 0
    %771 = vmatpush1.bf16.msra.mxu0 %v684
    %772 = vmatprep.subr.bf16.mxu0 0
    %773 = vmatpush1.bf16.msra.mxu0 %v687
    %774 = vmatprep.subr.bf16.mxu0 0
    %775 = vmatpush1.bf16.msra.mxu0 %v690
    %776 = vmatprep.subr.bf16.mxu0 0
    %777 = vmatpush1.bf16.msra.mxu0 %v693
    %778 = vmatprep.subr.bf16.mxu0 0
    %779 = vmatpush1.bf16.msra.mxu0 %v696
    %780 = vmatprep.subr.bf16.mxu0 0
    %781 = vmatpush1.bf16.msra.mxu0 0
    %782 = vmatprep.subr.bf16.mxu0 0
    %783 = vmatpush1.bf16.msra.mxu0 0
    %784 = vmatprep.subr.bf16.mxu0 0
    %785 = vmatpush1.bf16.msra.mxu0 0
    %786 = vmatprep.subr.bf16.mxu0 0
    %787 = vmatpush1.bf16.msra.mxu0 0
    %788 = vmatprep.subr.bf16.mxu0 0
    %789 = vmatpush1.bf16.msra.mxu0 0
    %790 = vmatprep.subr.bf16.mxu0 0
    %791 = vmatpush1.bf16.msra.mxu0 0
    %792 = vmatprep.subr.bf16.mxu0 0
    %793 = vmatpush1.bf16.msra.mxu0 0
    %794 = vmatprep.subr.bf16.mxu0 0
    %795 = vmatpush1.bf16.msra.mxu0 0
    %796 = vmatprep.mubr.bf16.mxu0 0
    %797 = vmatmul.mubr.bf16.gmra.mrb[0].mxu0 %v592
    %v798 = vpop.f32.mrb[0].mxu0
    %v799 = vadd.f32 0.0, %v798
    %v800 = vpop.f32.mrb[0].mxu0
    %v801 = vpop.f32.mrb[0].mxu0
    %v802 = vadd.f32 0.0, %v801
    %v803 = vpop.f32.mrb[0].mxu0
    %804 = vdwg.mxu0
    %v805 = vadd.f32 %v586, %v756
    %v806 = vadd.f32 %v589, %v760
    %v807 = vxor.u32 %v805, 2147483648
    %v808 = vxor.u32 %v806, 2147483648
    %v809 = vmul.f32 %v807, 1.442695
    %v810 = vpow.pop %v809
    %v811 = vmul.f32 %v808, 1.442695
    %v812 = vpow.pop %v811
    %v813 = vadd.f32 %v810, 1.0
    %v814 = vadd.f32 %v812, 1.0
    %v815 = vrcp.pop %v813
    %v816 = vmul.f32 1.0, %v815
    %v817 = vrcp.pop %v814
    %v818 = vmul.f32 1.0, %v817
    %v819 = vadd.f32 %v587, %v758
    %v820 = vadd.f32 %v590, %v762
    %v821 = vxor.u32 %v819, 2147483648
    %v822 = vxor.u32 %v820, 2147483648
    %v823 = vmul.f32 %v821, 1.442695
    %v824 = vpow.pop %v823
    %v825 = vmul.f32 %v822, 1.442695
    %v826 = vpow.pop %v825
    %v827 = vadd.f32 %v824, 1.0
    %v828 = vadd.f32 %v826, 1.0
    %v829 = vrcp.pop %v827
    %v830 = vmul.f32 1.0, %v829
    %v831 = vrcp.pop %v828
    %v832 = vmul.f32 1.0, %v831
    %v834 = vlaneseq
    %v835 = vshrl.u32 %v834, 7
    %v836 = vsub.s32 0, %v835
    %v837 = vrot.slane %v583, %v836
    %v839 = vadd.f32 %v799, %v837
    %v840 = vadd.f32 %v802, %v837
    %v841 = vmul.f32 %v816, %v839
    %v842 = vmul.f32 %v818, %v840
    %v843 = vadd.f32 %v588, %v841
    %v844 = vadd.f32 %v591, %v842
    %v845 = vtanh.pop %v843
    %v846 = vtanh.pop %v844
    %v847 = vsub.f32 %v584, %v845
    %v848 = vsub.f32 %v585, %v846
    %v849 = vmul.f32 %v830, %v847
    %v850 = vmul.f32 %v832, %v848
    %v851 = vadd.f32 %v845, %v849
    %v852 = vadd.f32 %v846, %v850
    %853 = vst [vmem:[#allocation2] sm:$0xff] %v851
    %854 = vst [vmem:[#allocation2 + $0x8] sm:$0xff] %v852
    %v855 = vpack.c.bf16 %v852, %v851
    %v857 = vunpack.c.l.b16 %v855
    %v858 = vunpack.c.h.b16 %v855
    %v859 = vpack.c.b16 %v857, %v857
    %v860 = vpack.c.b16 %v858, %v858
    %863 = vst [vmem:[#allocation13] sm:$0xf] %v859
    %864 = vst [vmem:[#allocation13 + $0x4] sm:$0xf] %v860
    %v865 = vld [vmem:[#allocation2] sm:$0xff]
    %v866 = vld [vmem:[#allocation2 + $0x8] sm:$0xff]
    %s867 = scalar_lea.vmem [#allocation3], 48
    %v868 = vld [vmem:[%s867] sm:$0xff]
    %v869 = vld [vmem:[%s867 + $0x8] sm:$0xff]
    %v870 = vld [vmem:[%s867 + $0x10] sm:$0xff]
    %v871 = vld [vmem:[%s867 + $0x18] sm:$0xff]
    %v872 = vld [vmem:[%s867 + $0x20] sm:$0xff]
    %v873 = vld [vmem:[%s867 + $0x28] sm:$0xff]
    %v874 = vpack.c.bf16 %v866, %v865
    %875 = vmatprep.subr.bf16.mxu0 %v674
    %876 = vmatpush1.bf16.msra.mxu0 %v673
    %877 = vmatprep.subr.bf16.mxu0 %v677
    %878 = vmatpush1.bf16.msra.mxu0 %v676
    %879 = vmatprep.subr.bf16.mxu0 %v680
    %880 = vmatpush1.bf16.msra.mxu0 %v679
    %881 = vmatprep.subr.bf16.mxu0 %v683
    %882 = vmatpush1.bf16.msra.mxu0 %v682
    %883 = vmatprep.subr.bf16.mxu0 %v686
    %884 = vmatpush1.bf16.msra.mxu0 %v685
    %885 = vmatprep.subr.bf16.mxu0 %v689
    %886 = vmatpush1.bf16.msra.mxu0 %v688
    %887 = vmatprep.subr.bf16.mxu0 %v692
    %888 = vmatpush1.bf16.msra.mxu0 %v691
    %889 = vmatprep.subr.bf16.mxu0 %v695
    %890 = vmatpush1.bf16.msra.mxu0 %v694
    %891 = vmatprep.subr.bf16.mxu0 0
    %892 = vmatpush1.bf16.msra.mxu0 0
    %893 = vmatprep.subr.bf16.mxu0 0
    %894 = vmatpush1.bf16.msra.mxu0 0
    %895 = vmatprep.subr.bf16.mxu0 0
    %896 = vmatpush1.bf16.msra.mxu0 0
    %897 = vmatprep.subr.bf16.mxu0 0
    %898 = vmatpush1.bf16.msra.mxu0 0
    %899 = vmatprep.subr.bf16.mxu0 0
    %900 = vmatpush1.bf16.msra.mxu0 0
    %901 = vmatprep.subr.bf16.mxu0 0
    %902 = vmatpush1.bf16.msra.mxu0 0
    %903 = vmatprep.subr.bf16.mxu0 0
    %904 = vmatpush1.bf16.msra.mxu0 0
    %905 = vmatprep.subr.bf16.mxu0 0
    %906 = vmatpush1.bf16.msra.mxu0 0
    %907 = vmatprep.mubr.bf16.mxu0 0
    %908 = vmatmul.mubr.bf16.gmra.mrb[0].mxu0 %v874
    %v909 = vpop.f32.mrb[0].mxu0
    %v910 = vadd.f32 0.0, %v909
    %v911 = vpop.f32.mrb[0].mxu0
    %v912 = vadd.f32 0.0, %v911
    %v913 = vpop.f32.mrb[0].mxu0
    %v914 = vadd.f32 0.0, %v913
    %v915 = vpop.f32.mrb[0].mxu0
    %v916 = vadd.f32 0.0, %v915
    %917 = vdwg.mxu0
    %918 = vmatprep.subr.bf16.mxu0 0
    %919 = vmatpush1.bf16.msra.mxu0 %v675
    %920 = vmatprep.subr.bf16.mxu0 0
    %921 = vmatpush1.bf16.msra.mxu0 %v678
    %922 = vmatprep.subr.bf16.mxu0 0
    %923 = vmatpush1.bf16.msra.mxu0 %v681
    %924 = vmatprep.subr.bf16.mxu0 0
    %925 = vmatpush1.bf16.msra.mxu0 %v684
    %926 = vmatprep.subr.bf16.mxu0 0
    %927 = vmatpush1.bf16.msra.mxu0 %v687
    %928 = vmatprep.subr.bf16.mxu0 0
    %929 = vmatpush1.bf16.msra.mxu0 %v690
    %930 = vmatprep.subr.bf16.mxu0 0
    %931 = vmatpush1.bf16.msra.mxu0 %v693
    %932 = vmatprep.subr.bf16.mxu0 0
    %933 = vmatpush1.bf16.msra.mxu0 %v696
    %934 = vmatprep.subr.bf16.mxu0 0
    %935 = vmatpush1.bf16.msra.mxu0 0
    %936 = vmatprep.subr.bf16.mxu0 0
    %937 = vmatpush1.bf16.msra.mxu0 0
    %938 = vmatprep.subr.bf16.mxu0 0
    %939 = vmatpush1.bf16.msra.mxu0 0
    %940 = vmatprep.subr.bf16.mxu0 0
    %941 = vmatpush1.bf16.msra.mxu0 0
    %942 = vmatprep.subr.bf16.mxu0 0
    %943 = vmatpush1.bf16.msra.mxu0 0
    %944 = vmatprep.subr.bf16.mxu0 0
    %945 = vmatpush1.bf16.msra.mxu0 0
    %946 = vmatprep.subr.bf16.mxu0 0
    %947 = vmatpush1.bf16.msra.mxu0 0
    %948 = vmatprep.subr.bf16.mxu0 0
    %949 = vmatpush1.bf16.msra.mxu0 0
    %950 = vmatprep.mubr.bf16.mxu0 0
    %951 = vmatmul.mubr.bf16.gmra.mrb[0].mxu0 %v874
    %v952 = vpop.f32.mrb[0].mxu0
    %v953 = vadd.f32 0.0, %v952
    %v954 = vpop.f32.mrb[0].mxu0
    %v955 = vpop.f32.mrb[0].mxu0
    %v956 = vadd.f32 0.0, %v955
    %v957 = vpop.f32.mrb[0].mxu0
    %958 = vdwg.mxu0
    %v959 = vadd.f32 %v868, %v910
    %v960 = vadd.f32 %v871, %v914
    %v961 = vxor.u32 %v959, 2147483648
    %v962 = vxor.u32 %v960, 2147483648
    %v963 = vmul.f32 %v961, 1.442695
    %v964 = vpow.pop %v963
    %v965 = vmul.f32 %v962, 1.442695
    %v966 = vpow.pop %v965
    %v967 = vadd.f32 %v964, 1.0
    %v968 = vadd.f32 %v966, 1.0
    %v969 = vrcp.pop %v967
    %v970 = vmul.f32 1.0, %v969
    %v971 = vrcp.pop %v968
    %v972 = vmul.f32 1.0, %v971
    %v973 = vadd.f32 %v869, %v912
    %v974 = vadd.f32 %v872, %v916
    %v975 = vxor.u32 %v973, 2147483648
    %v976 = vxor.u32 %v974, 2147483648
    %v977 = vmul.f32 %v975, 1.442695
    %v978 = vpow.pop %v977
    %v979 = vmul.f32 %v976, 1.442695
    %v980 = vpow.pop %v979
    %v981 = vadd.f32 %v978, 1.0
    %v982 = vadd.f32 %v980, 1.0
    %v983 = vrcp.pop %v981
    %v984 = vmul.f32 1.0, %v983
    %v985 = vrcp.pop %v982
    %v986 = vmul.f32 1.0, %v985
    %v987 = vadd.f32 %v953, %v837
    %v988 = vadd.f32 %v956, %v837
    %v989 = vmul.f32 %v970, %v987
    %v990 = vmul.f32 %v972, %v988
    %v991 = vadd.f32 %v870, %v989
    %v992 = vadd.f32 %v873, %v990
    %v993 = vtanh.pop %v991
    %v994 = vtanh.pop %v992
    %v995 = vsub.f32 %v865, %v993
    %v996 = vsub.f32 %v866, %v994
    %v997 = vmul.f32 %v984, %v995
    %v998 = vmul.f32 %v986, %v996
    %v999 = vadd.f32 %v993, %v997
    %v1000 = vadd.f32 %v994, %v998
    %1001 = vst [vmem:[#allocation2] sm:$0xff] %v999
    %1002 = vst [vmem:[#allocation2 + $0x8] sm:$0xff] %v1000
    %v1003 = vpack.c.bf16 %v1000, %v999
    %v1005 = vunpack.c.l.b16 %v1003
    %v1006 = vunpack.c.h.b16 %v1003
    %v1007 = vpack.c.b16 %v1005, %v1005
    %v1008 = vpack.c.b16 %v1006, %v1006
    %s1011 = scalar_lea.vmem [#allocation13], 8
    %1012 = vst [vmem:[%s1011] sm:$0xf] %v1007
    %1013 = vst [vmem:[%s1011 + $0x4] sm:$0xf] %v1008
    %v1014 = vld [vmem:[#allocation2] sm:$0xff]
    %v1015 = vld [vmem:[#allocation2 + $0x8] sm:$0xff]
    %s1016 = scalar_lea.vmem [#allocation3], 96
    %v1017 = vld [vmem:[%s1016] sm:$0xff]
    %v1018 = vld [vmem:[%s1016 + $0x8] sm:$0xff]
    %v1019 = vld [vmem:[%s1016 + $0x10] sm:$0xff]
    %v1020 = vld [vmem:[%s1016 + $0x18] sm:$0xff]
    %v1021 = vld [vmem:[%s1016 + $0x20] sm:$0xff]
    %v1022 = vld [vmem:[%s1016 + $0x28] sm:$0xff]
    %v1023 = vpack.c.bf16 %v1015, %v1014
    %1024 = vmatprep.subr.bf16.mxu0 %v674
    %1025 = vmatpush1.bf16.msra.mxu0 %v673
    %1026 = vmatprep.subr.bf16.mxu0 %v677
    %1027 = vmatpush1.bf16.msra.mxu0 %v676
    %1028 = vmatprep.subr.bf16.mxu0 %v680
    %1029 = vmatpush1.bf16.msra.mxu0 %v679
    %1030 = vmatprep.subr.bf16.mxu0 %v683
    %1031 = vmatpush1.bf16.msra.mxu0 %v682
    %1032 = vmatprep.subr.bf16.mxu0 %v686
    %1033 = vmatpush1.bf16.msra.mxu0 %v685
    %1034 = vmatprep.subr.bf16.mxu0 %v689
    %1035 = vmatpush1.bf16.msra.mxu0 %v688
    %1036 = vmatprep.subr.bf16.mxu0 %v692
    %1037 = vmatpush1.bf16.msra.mxu0 %v691
    %1038 = vmatprep.subr.bf16.mxu0 %v695
    %1039 = vmatpush1.bf16.msra.mxu0 %v694
    %1040 = vmatprep.subr.bf16.mxu0 0
    %1041 = vmatpush1.bf16.msra.mxu0 0
    %1042 = vmatprep.subr.bf16.mxu0 0
    %1043 = vmatpush1.bf16.msra.mxu0 0
    %1044 = vmatprep.subr.bf16.mxu0 0
    %1045 = vmatpush1.bf16.msra.mxu0 0
    %1046 = vmatprep.subr.bf16.mxu0 0
    %1047 = vmatpush1.bf16.msra.mxu0 0
    %1048 = vmatprep.subr.bf16.mxu0 0
    %1049 = vmatpush1.bf16.msra.mxu0 0
    %1050 = vmatprep.subr.bf16.mxu0 0
    %1051 = vmatpush1.bf16.msra.mxu0 0
    %1052 = vmatprep.subr.bf16.mxu0 0
    %1053 = vmatpush1.bf16.msra.mxu0 0
    %1054 = vmatprep.subr.bf16.mxu0 0
    %1055 = vmatpush1.bf16.msra.mxu0 0
    %1056 = vmatprep.mubr.bf16.mxu0 0
    %1057 = vmatmul.mubr.bf16.gmra.mrb[0].mxu0 %v1023
    %v1058 = vpop.f32.mrb[0].mxu0
    %v1059 = vadd.f32 0.0, %v1058
    %v1060 = vpop.f32.mrb[0].mxu0
    %v1061 = vadd.f32 0.0, %v1060
    %v1062 = vpop.f32.mrb[0].mxu0
    %v1063 = vadd.f32 0.0, %v1062
    %v1064 = vpop.f32.mrb[0].mxu0
    %v1065 = vadd.f32 0.0, %v1064
    %1066 = vdwg.mxu0
    %1067 = vmatprep.subr.bf16.mxu0 0
    %1068 = vmatpush1.bf16.msra.mxu0 %v675
    %1069 = vmatprep.subr.bf16.mxu0 0
    %1070 = vmatpush1.bf16.msra.mxu0 %v678
    %1071 = vmatprep.subr.bf16.mxu0 0
    %1072 = vmatpush1.bf16.msra.mxu0 %v681
    %1073 = vmatprep.subr.bf16.mxu0 0
    %1074 = vmatpush1.bf16.msra.mxu0 %v684
    %1075 = vmatprep.subr.bf16.mxu0 0
    %1076 = vmatpush1.bf16.msra.mxu0 %v687
    %1077 = vmatprep.subr.bf16.mxu0 0
    %1078 = vmatpush1.bf16.msra.mxu0 %v690
    %1079 = vmatprep.subr.bf16.mxu0 0
    %1080 = vmatpush1.bf16.msra.mxu0 %v693
    %1081 = vmatprep.subr.bf16.mxu0 0
    %1082 = vmatpush1.bf16.msra.mxu0 %v696
    %1083 = vmatprep.subr.bf16.mxu0 0
    %1084 = vmatpush1.bf16.msra.mxu0 0
    %1085 = vmatprep.subr.bf16.mxu0 0
    %1086 = vmatpush1.bf16.msra.mxu0 0
    %1087 = vmatprep.subr.bf16.mxu0 0
    %1088 = vmatpush1.bf16.msra.mxu0 0
    %1089 = vmatprep.subr.bf16.mxu0 0
    %1090 = vmatpush1.bf16.msra.mxu0 0
    %1091 = vmatprep.subr.bf16.mxu0 0
    %1092 = vmatpush1.bf16.msra.mxu0 0
    %1093 = vmatprep.subr.bf16.mxu0 0
    %1094 = vmatpush1.bf16.msra.mxu0 0
    %1095 = vmatprep.subr.bf16.mxu0 0
    %1096 = vmatpush1.bf16.msra.mxu0 0
    %1097 = vmatprep.subr.bf16.mxu0 0
    %1098 = vmatpush1.bf16.msra.mxu0 0
    %1099 = vmatprep.mubr.bf16.mxu0 0
    %1100 = vmatmul.mubr.bf16.gmra.mrb[0].mxu0 %v1023
    %v1101 = vpop.f32.mrb[0].mxu0
    %v1102 = vadd.f32 0.0, %v1101
    %v1103 = vpop.f32.mrb[0].mxu0
    %v1104 = vpop.f32.mrb[0].mxu0
    %v1105 = vadd.f32 0.0, %v1104
    %v1106 = vpop.f32.mrb[0].mxu0
    %1107 = vdwg.mxu0
    %v1108 = vadd.f32 %v1017, %v1059
    %v1109 = vadd.f32 %v1020, %v1063
    %v1110 = vxor.u32 %v1108, 2147483648
    %v1111 = vxor.u32 %v1109, 2147483648
    %v1112 = vmul.f32 %v1110, 1.442695
    %v1113 = vpow.pop %v1112
    %v1114 = vmul.f32 %v1111, 1.442695
    %v1115 = vpow.pop %v1114
    %v1116 = vadd.f32 %v1113, 1.0
    %v1117 = vadd.f32 %v1115, 1.0
    %v1118 = vrcp.pop %v1116
    %v1119 = vmul.f32 1.0, %v1118
    %v1120 = vrcp.pop %v1117
    %v1121 = vmul.f32 1.0, %v1120
    %v1122 = vadd.f32 %v1018, %v1061
    %v1123 = vadd.f32 %v1021, %v1065
    %v1124 = vxor.u32 %v1122, 2147483648
    %v1125 = vxor.u32 %v1123, 2147483648
    %v1126 = vmul.f32 %v1124, 1.442695
    %v1127 = vpow.pop %v1126
    %v1128 = vmul.f32 %v1125, 1.442695
    %v1129 = vpow.pop %v1128
    %v1130 = vadd.f32 %v1127, 1.0
    %v1131 = vadd.f32 %v1129, 1.0
    %v1132 = vrcp.pop %v1130
    %v1133 = vmul.f32 1.0, %v1132
    %v1134 = vrcp.pop %v1131
    %v1135 = vmul.f32 1.0, %v1134
    %v1136 = vadd.f32 %v1102, %v837
    %v1137 = vadd.f32 %v1105, %v837
    %v1138 = vmul.f32 %v1119, %v1136
    %v1139 = vmul.f32 %v1121, %v1137
    %v1140 = vadd.f32 %v1019, %v1138
    %v1141 = vadd.f32 %v1022, %v1139
    %v1142 = vtanh.pop %v1140
    %v1143 = vtanh.pop %v1141
    %v1144 = vsub.f32 %v1014, %v1142
    %v1145 = vsub.f32 %v1015, %v1143
    %v1146 = vmul.f32 %v1133, %v1144
    %v1147 = vmul.f32 %v1135, %v1145
    %v1148 = vadd.f32 %v1142, %v1146
    %v1149 = vadd.f32 %v1143, %v1147
    %1150 = vst [vmem:[#allocation2] sm:$0xff] %v1148
    %1151 = vst [vmem:[#allocation2 + $0x8] sm:$0xff] %v1149
    %v1152 = vpack.c.bf16 %v1149, %v1148
    %v1154 = vunpack.c.l.b16 %v1152
    %v1155 = vunpack.c.h.b16 %v1152
    %v1156 = vpack.c.b16 %v1154, %v1154
    %v1157 = vpack.c.b16 %v1155, %v1155
    %s1160 = scalar_lea.vmem [#allocation13], 16
    %1161 = vst [vmem:[%s1160] sm:$0xf] %v1156
    %1162 = vst [vmem:[%s1160 + $0x4] sm:$0xf] %v1157
    %v1163 = vld [vmem:[#allocation2] sm:$0xff]
    %v1164 = vld [vmem:[#allocation2 + $0x8] sm:$0xff]
    %s1165 = scalar_lea.vmem [#allocation3], 144
    %v1166 = vld [vmem:[%s1165] sm:$0xff]
    %v1167 = vld [vmem:[%s1165 + $0x8] sm:$0xff]
    %v1168 = vld [vmem:[%s1165 + $0x10] sm:$0xff]
    %v1169 = vld [vmem:[%s1165 + $0x18] sm:$0xff]
    %v1170 = vld [vmem:[%s1165 + $0x20] sm:$0xff]
    %v1171 = vld [vmem:[%s1165 + $0x28] sm:$0xff]
    %v1172 = vpack.c.bf16 %v1164, %v1163
    %1173 = vmatprep.subr.bf16.mxu0 %v674
    %1174 = vmatpush1.bf16.msra.mxu0 %v673
    %1175 = vmatprep.subr.bf16.mxu0 %v677
    %1176 = vmatpush1.bf16.msra.mxu0 %v676
    %1177 = vmatprep.subr.bf16.mxu0 %v680
    %1178 = vmatpush1.bf16.msra.mxu0 %v679
    %1179 = vmatprep.subr.bf16.mxu0 %v683
    %1180 = vmatpush1.bf16.msra.mxu0 %v682
    %1181 = vmatprep.subr.bf16.mxu0 %v686
    %1182 = vmatpush1.bf16.msra.mxu0 %v685
    %1183 = vmatprep.subr.bf16.mxu0 %v689
    %1184 = vmatpush1.bf16.msra.mxu0 %v688
    %1185 = vmatprep.subr.bf16.mxu0 %v692
    %1186 = vmatpush1.bf16.msra.mxu0 %v691
    %1187 = vmatprep.subr.bf16.mxu0 %v695
    %1188 = vmatpush1.bf16.msra.mxu0 %v694
    %1189 = vmatprep.subr.bf16.mxu0 0
    %1190 = vmatpush1.bf16.msra.mxu0 0
    %1191 = vmatprep.subr.bf16.mxu0 0
    %1192 = vmatpush1.bf16.msra.mxu0 0
    %1193 = vmatprep.subr.bf16.mxu0 0
    %1194 = vmatpush1.bf16.msra.mxu0 0
    %1195 = vmatprep.subr.bf16.mxu0 0
    %1196 = vmatpush1.bf16.msra.mxu0 0
    %1197 = vmatprep.subr.bf16.mxu0 0
    %1198 = vmatpush1.bf16.msra.mxu0 0
    %1199 = vmatprep.subr.bf16.mxu0 0
    %1200 = vmatpush1.bf16.msra.mxu0 0
    %1201 = vmatprep.subr.bf16.mxu0 0
    %1202 = vmatpush1.bf16.msra.mxu0 0
    %1203 = vmatprep.subr.bf16.mxu0 0
    %1204 = vmatpush1.bf16.msra.mxu0 0
    %1205 = vmatprep.mubr.bf16.mxu0 0
    %1206 = vmatmul.mubr.bf16.gmra.mrb[0].mxu0 %v1172
    %v1207 = vpop.f32.mrb[0].mxu0
    %v1208 = vadd.f32 0.0, %v1207
    %v1209 = vpop.f32.mrb[0].mxu0
    %v1210 = vadd.f32 0.0, %v1209
    %v1211 = vpop.f32.mrb[0].mxu0
    %v1212 = vadd.f32 0.0, %v1211
    %v1213 = vpop.f32.mrb[0].mxu0
    %v1214 = vadd.f32 0.0, %v1213
    %1215 = vdwg.mxu0
    %1216 = vmatprep.subr.bf16.mxu0 0
    %1217 = vmatpush1.bf16.msra.mxu0 %v675
    %1218 = vmatprep.subr.bf16.mxu0 0
    %1219 = vmatpush1.bf16.msra.mxu0 %v678
    %1220 = vmatprep.subr.bf16.mxu0 0
    %1221 = vmatpush1.bf16.msra.mxu0 %v681
    %1222 = vmatprep.subr.bf16.mxu0 0
    %1223 = vmatpush1.bf16.msra.mxu0 %v684
    %1224 = vmatprep.subr.bf16.mxu0 0
    %1225 = vmatpush1.bf16.msra.mxu0 %v687
    %1226 = vmatprep.subr.bf16.mxu0 0
    %1227 = vmatpush1.bf16.msra.mxu0 %v690
    %1228 = vmatprep.subr.bf16.mxu0 0
    %1229 = vmatpush1.bf16.msra.mxu0 %v693
    %1230 = vmatprep.subr.bf16.mxu0 0
    %1231 = vmatpush1.bf16.msra.mxu0 %v696
    %1232 = vmatprep.subr.bf16.mxu0 0
    %1233 = vmatpush1.bf16.msra.mxu0 0
    %1234 = vmatprep.subr.bf16.mxu0 0
    %1235 = vmatpush1.bf16.msra.mxu0 0
    %1236 = vmatprep.subr.bf16.mxu0 0
    %1237 = vmatpush1.bf16.msra.mxu0 0
    %1238 = vmatprep.subr.bf16.mxu0 0
    %1239 = vmatpush1.bf16.msra.mxu0 0
    %1240 = vmatprep.subr.bf16.mxu0 0
    %1241 = vmatpush1.bf16.msra.mxu0 0
    %1242 = vmatprep.subr.bf16.mxu0 0
    %1243 = vmatpush1.bf16.msra.mxu0 0
    %1244 = vmatprep.subr.bf16.mxu0 0
    %1245 = vmatpush1.bf16.msra.mxu0 0
    %1246 = vmatprep.subr.bf16.mxu0 0
    %1247 = vmatpush1.bf16.msra.mxu0 0
    %1248 = vmatprep.mubr.bf16.mxu0 0
    %1249 = vmatmul.mubr.bf16.gmra.mrb[0].mxu0 %v1172
    %v1250 = vpop.f32.mrb[0].mxu0
    %v1251 = vadd.f32 0.0, %v1250
    %v1252 = vpop.f32.mrb[0].mxu0
    %v1253 = vpop.f32.mrb[0].mxu0
    %v1254 = vadd.f32 0.0, %v1253
    %v1255 = vpop.f32.mrb[0].mxu0
    %1256 = vdwg.mxu0
    %v1257 = vadd.f32 %v1166, %v1208
    %v1258 = vadd.f32 %v1169, %v1212
    %v1259 = vxor.u32 %v1257, 2147483648
    %v1260 = vxor.u32 %v1258, 2147483648
    %v1261 = vmul.f32 %v1259, 1.442695
    %v1262 = vpow.pop %v1261
    %v1263 = vmul.f32 %v1260, 1.442695
    %v1264 = vpow.pop %v1263
    %v1265 = vadd.f32 %v1262, 1.0
    %v1266 = vadd.f32 %v1264, 1.0
    %v1267 = vrcp.pop %v1265
    %v1268 = vmul.f32 1.0, %v1267
    %v1269 = vrcp.pop %v1266
    %v1270 = vmul.f32 1.0, %v1269
    %v1271 = vadd.f32 %v1167, %v1210
    %v1272 = vadd.f32 %v1170, %v1214
    %v1273 = vxor.u32 %v1271, 2147483648
    %v1274 = vxor.u32 %v1272, 2147483648
    %v1275 = vmul.f32 %v1273, 1.442695
    %v1276 = vpow.pop %v1275
    %v1277 = vmul.f32 %v1274, 1.442695
    %v1278 = vpow.pop %v1277
    %v1279 = vadd.f32 %v1276, 1.0
    %v1280 = vadd.f32 %v1278, 1.0
    %v1281 = vrcp.pop %v1279
    %v1282 = vmul.f32 1.0, %v1281
    %v1283 = vrcp.pop %v1280
    %v1284 = vmul.f32 1.0, %v1283
    %v1285 = vadd.f32 %v1251, %v837
    %v1286 = vadd.f32 %v1254, %v837
    %v1287 = vmul.f32 %v1268, %v1285
    %v1288 = vmul.f32 %v1270, %v1286
    %v1289 = vadd.f32 %v1168, %v1287
    %v1290 = vadd.f32 %v1171, %v1288
    %v1291 = vtanh.pop %v1289
    %v1292 = vtanh.pop %v1290
    %v1293 = vsub.f32 %v1163, %v1291
    %v1294 = vsub.f32 %v1164, %v1292
    %v1295 = vmul.f32 %v1282, %v1293
    %v1296 = vmul.f32 %v1284, %v1294
    %v1297 = vadd.f32 %v1291, %v1295
    %v1298 = vadd.f32 %v1292, %v1296
    %1299 = vst [vmem:[#allocation2] sm:$0xff] %v1297
    %1300 = vst [vmem:[#allocation2 + $0x8] sm:$0xff] %v1298
    %v1301 = vpack.c.bf16 %v1298, %v1297
    %v1303 = vunpack.c.l.b16 %v1301
    %v1304 = vunpack.c.h.b16 %v1301
    %v1305 = vpack.c.b16 %v1303, %v1303
    %v1306 = vpack.c.b16 %v1304, %v1304
    %s1309 = scalar_lea.vmem [#allocation13], 24
    %1310 = vst [vmem:[%s1309] sm:$0xf] %v1305
    %1311 = vst [vmem:[%s1309 + $0x4] sm:$0xf] %v1306
    %v1312 = vld [vmem:[#allocation2] sm:$0xff]
    %v1313 = vld [vmem:[#allocation2 + $0x8] sm:$0xff]
    %s1314 = scalar_lea.vmem [#allocation3], 192
    %v1315 = vld [vmem:[%s1314] sm:$0xff]
    %v1316 = vld [vmem:[%s1314 + $0x8] sm:$0xff]
    %v1317 = vld [vmem:[%s1314 + $0x10] sm:$0xff]
    %v1318 = vld [vmem:[%s1314 + $0x18] sm:$0xff]
    %v1319 = vld [vmem:[%s1314 + $0x20] sm:$0xff]
    %v1320 = vld [vmem:[%s1314 + $0x28] sm:$0xff]
    %v1321 = vpack.c.bf16 %v1313, %v1312
    %1322 = vmatprep.subr.bf16.mxu0 %v674
    %1323 = vmatpush1.bf16.msra.mxu0 %v673
    %1324 = vmatprep.subr.bf16.mxu0 %v677
    %1325 = vmatpush1.bf16.msra.mxu0 %v676
    %1326 = vmatprep.subr.bf16.mxu0 %v680
    %1327 = vmatpush1.bf16.msra.mxu0 %v679
    %1328 = vmatprep.subr.bf16.mxu0 %v683
    %1329 = vmatpush1.bf16.msra.mxu0 %v682
    %1330 = vmatprep.subr.bf16.mxu0 %v686
    %1331 = vmatpush1.bf16.msra.mxu0 %v685
    %1332 = vmatprep.subr.bf16.mxu0 %v689
    %1333 = vmatpush1.bf16.msra.mxu0 %v688
    %1334 = vmatprep.subr.bf16.mxu0 %v692
    %1335 = vmatpush1.bf16.msra.mxu0 %v691
    %1336 = vmatprep.subr.bf16.mxu0 %v695
    %1337 = vmatpush1.bf16.msra.mxu0 %v694
    %1338 = vmatprep.subr.bf16.mxu0 0
    %1339 = vmatpush1.bf16.msra.mxu0 0
    %1340 = vmatprep.subr.bf16.mxu0 0
    %1341 = vmatpush1.bf16.msra.mxu0 0
    %1342 = vmatprep.subr.bf16.mxu0 0
    %1343 = vmatpush1.bf16.msra.mxu0 0
    %1344 = vmatprep.subr.bf16.mxu0 0
    %1345 = vmatpush1.bf16.msra.mxu0 0
    %1346 = vmatprep.subr.bf16.mxu0 0
    %1347 = vmatpush1.bf16.msra.mxu0 0
    %1348 = vmatprep.subr.bf16.mxu0 0
    %1349 = vmatpush1.bf16.msra.mxu0 0
    %1350 = vmatprep.subr.bf16.mxu0 0
    %1351 = vmatpush1.bf16.msra.mxu0 0
    %1352 = vmatprep.subr.bf16.mxu0 0
    %1353 = vmatpush1.bf16.msra.mxu0 0
    %1354 = vmatprep.mubr.bf16.mxu0 0
    %1355 = vmatmul.mubr.bf16.gmra.mrb[0].mxu0 %v1321
    %v1356 = vpop.f32.mrb[0].mxu0
    %v1357 = vadd.f32 0.0, %v1356
    %v1358 = vpop.f32.mrb[0].mxu0
    %v1359 = vadd.f32 0.0, %v1358
    %v1360 = vpop.f32.mrb[0].mxu0
    %v1361 = vadd.f32 0.0, %v1360
    %v1362 = vpop.f32.mrb[0].mxu0
    %v1363 = vadd.f32 0.0, %v1362
    %1364 = vdwg.mxu0
    %1365 = vmatprep.subr.bf16.mxu0 0
    %1366 = vmatpush1.bf16.msra.mxu0 %v675
    %1367 = vmatprep.subr.bf16.mxu0 0
    %1368 = vmatpush1.bf16.msra.mxu0 %v678
    %1369 = vmatprep.subr.bf16.mxu0 0
    %1370 = vmatpush1.bf16.msra.mxu0 %v681
    %1371 = vmatprep.subr.bf16.mxu0 0
    %1372 = vmatpush1.bf16.msra.mxu0 %v684
    %1373 = vmatprep.subr.bf16.mxu0 0
    %1374 = vmatpush1.bf16.msra.mxu0 %v687
    %1375 = vmatprep.subr.bf16.mxu0 0
    %1376 = vmatpush1.bf16.msra.mxu0 %v690
    %1377 = vmatprep.subr.bf16.mxu0 0
    %1378 = vmatpush1.bf16.msra.mxu0 %v693
    %1379 = vmatprep.subr.bf16.mxu0 0
    %1380 = vmatpush1.bf16.msra.mxu0 %v696
    %1381 = vmatprep.subr.bf16.mxu0 0
    %1382 = vmatpush1.bf16.msra.mxu0 0
    %1383 = vmatprep.subr.bf16.mxu0 0
    %1384 = vmatpush1.bf16.msra.mxu0 0
    %1385 = vmatprep.subr.bf16.mxu0 0
    %1386 = vmatpush1.bf16.msra.mxu0 0
    %1387 = vmatprep.subr.bf16.mxu0 0
    %1388 = vmatpush1.bf16.msra.mxu0 0
    %1389 = vmatprep.subr.bf16.mxu0 0
    %1390 = vmatpush1.bf16.msra.mxu0 0
    %1391 = vmatprep.subr.bf16.mxu0 0
    %1392 = vmatpush1.bf16.msra.mxu0 0
    %1393 = vmatprep.subr.bf16.mxu0 0
    %1394 = vmatpush1.bf16.msra.mxu0 0
    %1395 = vmatprep.subr.bf16.mxu0 0
    %1396 = vmatpush1.bf16.msra.mxu0 0
    %1397 = vmatprep.mubr.bf16.mxu0 0
    %1398 = vmatmul.mubr.bf16.gmra.mrb[0].mxu0 %v1321
    %v1399 = vpop.f32.mrb[0].mxu0
    %v1400 = vadd.f32 0.0, %v1399
    %v1401 = vpop.f32.mrb[0].mxu0
    %v1402 = vpop.f32.mrb[0].mxu0
    %v1403 = vadd.f32 0.0, %v1402
    %v1404 = vpop.f32.mrb[0].mxu0
    %1405 = vdwg.mxu0
    %v1406 = vadd.f32 %v1315, %v1357
    %v1407 = vadd.f32 %v1318, %v1361
    %v1408 = vxor.u32 %v1406, 2147483648
    %v1409 = vxor.u32 %v1407, 2147483648
    %v1410 = vmul.f32 %v1408, 1.442695
    %v1411 = vpow.pop %v1410
    %v1412 = vmul.f32 %v1409, 1.442695
    %v1413 = vpow.pop %v1412
    %v1414 = vadd.f32 %v1411, 1.0
    %v1415 = vadd.f32 %v1413, 1.0
    %v1416 = vrcp.pop %v1414
    %v1417 = vmul.f32 1.0, %v1416
    %v1418 = vrcp.pop %v1415
    %v1419 = vmul.f32 1.0, %v1418
    %v1420 = vadd.f32 %v1316, %v1359
    %v1421 = vadd.f32 %v1319, %v1363
    %v1422 = vxor.u32 %v1420, 2147483648
    %v1423 = vxor.u32 %v1421, 2147483648
    %v1424 = vmul.f32 %v1422, 1.442695
    %v1425 = vpow.pop %v1424
    %v1426 = vmul.f32 %v1423, 1.442695
    %v1427 = vpow.pop %v1426
    %v1428 = vadd.f32 %v1425, 1.0
    %v1429 = vadd.f32 %v1427, 1.0
    %v1430 = vrcp.pop %v1428
    %v1431 = vmul.f32 1.0, %v1430
    %v1432 = vrcp.pop %v1429
    %v1433 = vmul.f32 1.0, %v1432
    %v1434 = vadd.f32 %v1400, %v837
    %v1435 = vadd.f32 %v1403, %v837
    %v1436 = vmul.f32 %v1417, %v1434
    %v1437 = vmul.f32 %v1419, %v1435
    %v1438 = vadd.f32 %v1317, %v1436
    %v1439 = vadd.f32 %v1320, %v1437
    %v1440 = vtanh.pop %v1438
    %v1441 = vtanh.pop %v1439
    %v1442 = vsub.f32 %v1312, %v1440
    %v1443 = vsub.f32 %v1313, %v1441
    %v1444 = vmul.f32 %v1431, %v1442
    %v1445 = vmul.f32 %v1433, %v1443
    %v1446 = vadd.f32 %v1440, %v1444
    %v1447 = vadd.f32 %v1441, %v1445
    %1448 = vst [vmem:[#allocation2] sm:$0xff] %v1446
    %1449 = vst [vmem:[#allocation2 + $0x8] sm:$0xff] %v1447
    %v1450 = vpack.c.bf16 %v1447, %v1446
    %v1452 = vunpack.c.l.b16 %v1450
    %v1453 = vunpack.c.h.b16 %v1450
    %v1454 = vpack.c.b16 %v1452, %v1452
    %v1455 = vpack.c.b16 %v1453, %v1453
    %s1458 = scalar_lea.vmem [#allocation13], 32
    %1459 = vst [vmem:[%s1458] sm:$0xf] %v1454
    %1460 = vst [vmem:[%s1458 + $0x4] sm:$0xf] %v1455
    %v1461 = vld [vmem:[#allocation2] sm:$0xff]
    %v1462 = vld [vmem:[#allocation2 + $0x8] sm:$0xff]
    %s1463 = scalar_lea.vmem [#allocation3], 240
    %v1464 = vld [vmem:[%s1463] sm:$0xff]
    %v1465 = vld [vmem:[%s1463 + $0x8] sm:$0xff]
    %v1466 = vld [vmem:[%s1463 + $0x10] sm:$0xff]
    %v1467 = vld [vmem:[%s1463 + $0x18] sm:$0xff]
    %v1468 = vld [vmem:[%s1463 + $0x20] sm:$0xff]
    %v1469 = vld [vmem:[%s1463 + $0x28] sm:$0xff]
    %v1470 = vpack.c.bf16 %v1462, %v1461
    %1471 = vmatprep.subr.bf16.mxu0 %v674
    %1472 = vmatpush1.bf16.msra.mxu0 %v673
    %1473 = vmatprep.subr.bf16.mxu0 %v677
    %1474 = vmatpush1.bf16.msra.mxu0 %v676
    %1475 = vmatprep.subr.bf16.mxu0 %v680
    %1476 = vmatpush1.bf16.msra.mxu0 %v679
    %1477 = vmatprep.subr.bf16.mxu0 %v683
    %1478 = vmatpush1.bf16.msra.mxu0 %v682
    %1479 = vmatprep.subr.bf16.mxu0 %v686
    %1480 = vmatpush1.bf16.msra.mxu0 %v685
    %1481 = vmatprep.subr.bf16.mxu0 %v689
    %1482 = vmatpush1.bf16.msra.mxu0 %v688
    %1483 = vmatprep.subr.bf16.mxu0 %v692
    %1484 = vmatpush1.bf16.msra.mxu0 %v691
    %1485 = vmatprep.subr.bf16.mxu0 %v695
    %1486 = vmatpush1.bf16.msra.mxu0 %v694
    %1487 = vmatprep.subr.bf16.mxu0 0
    %1488 = vmatpush1.bf16.msra.mxu0 0
    %1489 = vmatprep.subr.bf16.mxu0 0
    %1490 = vmatpush1.bf16.msra.mxu0 0
    %1491 = vmatprep.subr.bf16.mxu0 0
    %1492 = vmatpush1.bf16.msra.mxu0 0
    %1493 = vmatprep.subr.bf16.mxu0 0
    %1494 = vmatpush1.bf16.msra.mxu0 0
    %1495 = vmatprep.subr.bf16.mxu0 0
    %1496 = vmatpush1.bf16.msra.mxu0 0
    %1497 = vmatprep.subr.bf16.mxu0 0
    %1498 = vmatpush1.bf16.msra.mxu0 0
    %1499 = vmatprep.subr.bf16.mxu0 0
    %1500 = vmatpush1.bf16.msra.mxu0 0
    %1501 = vmatprep.subr.bf16.mxu0 0
    %1502 = vmatpush1.bf16.msra.mxu0 0
    %1503 = vmatprep.mubr.bf16.mxu0 0
    %1504 = vmatmul.mubr.bf16.gmra.mrb[0].mxu0 %v1470
    %v1505 = vpop.f32.mrb[0].mxu0
    %v1506 = vadd.f32 0.0, %v1505
    %v1507 = vpop.f32.mrb[0].mxu0
    %v1508 = vadd.f32 0.0, %v1507
    %v1509 = vpop.f32.mrb[0].mxu0
    %v1510 = vadd.f32 0.0, %v1509
    %v1511 = vpop.f32.mrb[0].mxu0
    %v1512 = vadd.f32 0.0, %v1511
    %1513 = vdwg.mxu0
    %1514 = vmatprep.subr.bf16.mxu0 0
    %1515 = vmatpush1.bf16.msra.mxu0 %v675
    %1516 = vmatprep.subr.bf16.mxu0 0
    %1517 = vmatpush1.bf16.msra.mxu0 %v678
    %1518 = vmatprep.subr.bf16.mxu0 0
    %1519 = vmatpush1.bf16.msra.mxu0 %v681
    %1520 = vmatprep.subr.bf16.mxu0 0
    %1521 = vmatpush1.bf16.msra.mxu0 %v684
    %1522 = vmatprep.subr.bf16.mxu0 0
    %1523 = vmatpush1.bf16.msra.mxu0 %v687
    %1524 = vmatprep.subr.bf16.mxu0 0
    %1525 = vmatpush1.bf16.msra.mxu0 %v690
    %1526 = vmatprep.subr.bf16.mxu0 0
    %1527 = vmatpush1.bf16.msra.mxu0 %v693
    %1528 = vmatprep.subr.bf16.mxu0 0
    %1529 = vmatpush1.bf16.msra.mxu0 %v696
    %1530 = vmatprep.subr.bf16.mxu0 0
    %1531 = vmatpush1.bf16.msra.mxu0 0
    %1532 = vmatprep.subr.bf16.mxu0 0
    %1533 = vmatpush1.bf16.msra.mxu0 0
    %1534 = vmatprep.subr.bf16.mxu0 0
    %1535 = vmatpush1.bf16.msra.mxu0 0
    %1536 = vmatprep.subr.bf16.mxu0 0
    %1537 = vmatpush1.bf16.msra.mxu0 0
    %1538 = vmatprep.subr.bf16.mxu0 0
    %1539 = vmatpush1.bf16.msra.mxu0 0
    %1540 = vmatprep.subr.bf16.mxu0 0
    %1541 = vmatpush1.bf16.msra.mxu0 0
    %1542 = vmatprep.subr.bf16.mxu0 0
    %1543 = vmatpush1.bf16.msra.mxu0 0
    %1544 = vmatprep.subr.bf16.mxu0 0
    %1545 = vmatpush1.bf16.msra.mxu0 0
    %1546 = vmatprep.mubr.bf16.mxu0 0
    %1547 = vmatmul.mubr.bf16.gmra.mrb[0].mxu0 %v1470
    %v1548 = vpop.f32.mrb[0].mxu0
    %v1549 = vadd.f32 0.0, %v1548
    %v1550 = vpop.f32.mrb[0].mxu0
    %v1551 = vpop.f32.mrb[0].mxu0
    %v1552 = vadd.f32 0.0, %v1551
    %v1553 = vpop.f32.mrb[0].mxu0
    %1554 = vdwg.mxu0
    %v1555 = vadd.f32 %v1464, %v1506
    %v1556 = vadd.f32 %v1467, %v1510
    %v1557 = vxor.u32 %v1555, 2147483648
    %v1558 = vxor.u32 %v1556, 2147483648
    %v1559 = vmul.f32 %v1557, 1.442695
    %v1560 = vpow.pop %v1559
    %v1561 = vmul.f32 %v1558, 1.442695
    %v1562 = vpow.pop %v1561
    %v1563 = vadd.f32 %v1560, 1.0
    %v1564 = vadd.f32 %v1562, 1.0
    %v1565 = vrcp.pop %v1563
    %v1566 = vmul.f32 1.0, %v1565
    %v1567 = vrcp.pop %v1564
    %v1568 = vmul.f32 1.0, %v1567
    %v1569 = vadd.f32 %v1465, %v1508
    %v1570 = vadd.f32 %v1468, %v1512
    %v1571 = vxor.u32 %v1569, 2147483648
    %v1572 = vxor.u32 %v1570, 2147483648
    %v1573 = vmul.f32 %v1571, 1.442695
    %v1574 = vpow.pop %v1573
    %v1575 = vmul.f32 %v1572, 1.442695
    %v1576 = vpow.pop %v1575
    %v1577 = vadd.f32 %v1574, 1.0
    %v1578 = vadd.f32 %v1576, 1.0
    %v1579 = vrcp.pop %v1577
    %v1580 = vmul.f32 1.0, %v1579
    %v1581 = vrcp.pop %v1578
    %v1582 = vmul.f32 1.0, %v1581
    %v1583 = vadd.f32 %v1549, %v837
    %v1584 = vadd.f32 %v1552, %v837
    %v1585 = vmul.f32 %v1566, %v1583
    %v1586 = vmul.f32 %v1568, %v1584
    %v1587 = vadd.f32 %v1466, %v1585
    %v1588 = vadd.f32 %v1469, %v1586
    %v1589 = vtanh.pop %v1587
    %v1590 = vtanh.pop %v1588
    %v1591 = vsub.f32 %v1461, %v1589
    %v1592 = vsub.f32 %v1462, %v1590
    %v1593 = vmul.f32 %v1580, %v1591
    %v1594 = vmul.f32 %v1582, %v1592
    %v1595 = vadd.f32 %v1589, %v1593
    %v1596 = vadd.f32 %v1590, %v1594
    %1597 = vst [vmem:[#allocation2] sm:$0xff] %v1595
    %1598 = vst [vmem:[#allocation2 + $0x8] sm:$0xff] %v1596
    %v1599 = vpack.c.bf16 %v1596, %v1595
    %v1601 = vunpack.c.l.b16 %v1599
    %v1602 = vunpack.c.h.b16 %v1599
    %v1603 = vpack.c.b16 %v1601, %v1601
    %v1604 = vpack.c.b16 %v1602, %v1602
    %s1607 = scalar_lea.vmem [#allocation13], 40
    %1608 = vst [vmem:[%s1607] sm:$0xf] %v1603
    %1609 = vst [vmem:[%s1607 + $0x4] sm:$0xf] %v1604
    %v1610 = vld [vmem:[#allocation2] sm:$0xff]
    %v1611 = vld [vmem:[#allocation2 + $0x8] sm:$0xff]
    %s1612 = scalar_lea.vmem [#allocation3], 288
    %v1613 = vld [vmem:[%s1612] sm:$0xff]
    %v1614 = vld [vmem:[%s1612 + $0x8] sm:$0xff]
    %v1615 = vld [vmem:[%s1612 + $0x10] sm:$0xff]
    %v1616 = vld [vmem:[%s1612 + $0x18] sm:$0xff]
    %v1617 = vld [vmem:[%s1612 + $0x20] sm:$0xff]
    %v1618 = vld [vmem:[%s1612 + $0x28] sm:$0xff]
    %v1619 = vpack.c.bf16 %v1611, %v1610
    %1620 = vmatprep.subr.bf16.mxu0 %v674
    %1621 = vmatpush1.bf16.msra.mxu0 %v673
    %1622 = vmatprep.subr.bf16.mxu0 %v677
    %1623 = vmatpush1.bf16.msra.mxu0 %v676
    %1624 = vmatprep.subr.bf16.mxu0 %v680
    %1625 = vmatpush1.bf16.msra.mxu0 %v679
    %1626 = vmatprep.subr.bf16.mxu0 %v683
    %1627 = vmatpush1.bf16.msra.mxu0 %v682
    %1628 = vmatprep.subr.bf16.mxu0 %v686
    %1629 = vmatpush1.bf16.msra.mxu0 %v685
    %1630 = vmatprep.subr.bf16.mxu0 %v689
    %1631 = vmatpush1.bf16.msra.mxu0 %v688
    %1632 = vmatprep.subr.bf16.mxu0 %v692
    %1633 = vmatpush1.bf16.msra.mxu0 %v691
    %1634 = vmatprep.subr.bf16.mxu0 %v695
    %1635 = vmatpush1.bf16.msra.mxu0 %v694
    %1636 = vmatprep.subr.bf16.mxu0 0
    %1637 = vmatpush1.bf16.msra.mxu0 0
    %1638 = vmatprep.subr.bf16.mxu0 0
    %1639 = vmatpush1.bf16.msra.mxu0 0
    %1640 = vmatprep.subr.bf16.mxu0 0
    %1641 = vmatpush1.bf16.msra.mxu0 0
    %1642 = vmatprep.subr.bf16.mxu0 0
    %1643 = vmatpush1.bf16.msra.mxu0 0
    %1644 = vmatprep.subr.bf16.mxu0 0
    %1645 = vmatpush1.bf16.msra.mxu0 0
    %1646 = vmatprep.subr.bf16.mxu0 0
    %1647 = vmatpush1.bf16.msra.mxu0 0
    %1648 = vmatprep.subr.bf16.mxu0 0
    %1649 = vmatpush1.bf16.msra.mxu0 0
    %1650 = vmatprep.subr.bf16.mxu0 0
    %1651 = vmatpush1.bf16.msra.mxu0 0
    %1652 = vmatprep.mubr.bf16.mxu0 0
    %1653 = vmatmul.mubr.bf16.gmra.mrb[0].mxu0 %v1619
    %v1654 = vpop.f32.mrb[0].mxu0
    %v1655 = vadd.f32 0.0, %v1654
    %v1656 = vpop.f32.mrb[0].mxu0
    %v1657 = vadd.f32 0.0, %v1656
    %v1658 = vpop.f32.mrb[0].mxu0
    %v1659 = vadd.f32 0.0, %v1658
    %v1660 = vpop.f32.mrb[0].mxu0
    %v1661 = vadd.f32 0.0, %v1660
    %1662 = vdwg.mxu0
    %1663 = vmatprep.subr.bf16.mxu0 0
    %1664 = vmatpush1.bf16.msra.mxu0 %v675
    %1665 = vmatprep.subr.bf16.mxu0 0
    %1666 = vmatpush1.bf16.msra.mxu0 %v678
    %1667 = vmatprep.subr.bf16.mxu0 0
    %1668 = vmatpush1.bf16.msra.mxu0 %v681
    %1669 = vmatprep.subr.bf16.mxu0 0
    %1670 = vmatpush1.bf16.msra.mxu0 %v684
    %1671 = vmatprep.subr.bf16.mxu0 0
    %1672 = vmatpush1.bf16.msra.mxu0 %v687
    %1673 = vmatprep.subr.bf16.mxu0 0
    %1674 = vmatpush1.bf16.msra.mxu0 %v690
    %1675 = vmatprep.subr.bf16.mxu0 0
    %1676 = vmatpush1.bf16.msra.mxu0 %v693
    %1677 = vmatprep.subr.bf16.mxu0 0
    %1678 = vmatpush1.bf16.msra.mxu0 %v696
    %1679 = vmatprep.subr.bf16.mxu0 0
    %1680 = vmatpush1.bf16.msra.mxu0 0
    %1681 = vmatprep.subr.bf16.mxu0 0
    %1682 = vmatpush1.bf16.msra.mxu0 0
    %1683 = vmatprep.subr.bf16.mxu0 0
    %1684 = vmatpush1.bf16.msra.mxu0 0
    %1685 = vmatprep.subr.bf16.mxu0 0
    %1686 = vmatpush1.bf16.msra.mxu0 0
    %1687 = vmatprep.subr.bf16.mxu0 0
    %1688 = vmatpush1.bf16.msra.mxu0 0
    %1689 = vmatprep.subr.bf16.mxu0 0
    %1690 = vmatpush1.bf16.msra.mxu0 0
    %1691 = vmatprep.subr.bf16.mxu0 0
    %1692 = vmatpush1.bf16.msra.mxu0 0
    %1693 = vmatprep.subr.bf16.mxu0 0
    %1694 = vmatpush1.bf16.msra.mxu0 0
    %1695 = vmatprep.mubr.bf16.mxu0 0
    %1696 = vmatmul.mubr.bf16.gmra.mrb[0].mxu0 %v1619
    %v1697 = vpop.f32.mrb[0].mxu0
    %v1698 = vadd.f32 0.0, %v1697
    %v1699 = vpop.f32.mrb[0].mxu0
    %v1700 = vpop.f32.mrb[0].mxu0
    %v1701 = vadd.f32 0.0, %v1700
    %v1702 = vpop.f32.mrb[0].mxu0
    %1703 = vdwg.mxu0
    %v1704 = vadd.f32 %v1613, %v1655
    %v1705 = vadd.f32 %v1616, %v1659
    %v1706 = vxor.u32 %v1704, 2147483648
    %v1707 = vxor.u32 %v1705, 2147483648
    %v1708 = vmul.f32 %v1706, 1.442695
    %v1709 = vpow.pop %v1708
    %v1710 = vmul.f32 %v1707, 1.442695
    %v1711 = vpow.pop %v1710
    %v1712 = vadd.f32 %v1709, 1.0
    %v1713 = vadd.f32 %v1711, 1.0
    %v1714 = vrcp.pop %v1712
    %v1715 = vmul.f32 1.0, %v1714
    %v1716 = vrcp.pop %v1713
    %v1717 = vmul.f32 1.0, %v1716
    %v1718 = vadd.f32 %v1614, %v1657
    %v1719 = vadd.f32 %v1617, %v1661
    %v1720 = vxor.u32 %v1718, 2147483648
    %v1721 = vxor.u32 %v1719, 2147483648
    %v1722 = vmul.f32 %v1720, 1.442695
    %v1723 = vpow.pop %v1722
    %v1724 = vmul.f32 %v1721, 1.442695
    %v1725 = vpow.pop %v1724
    %v1726 = vadd.f32 %v1723, 1.0
    %v1727 = vadd.f32 %v1725, 1.0
    %v1728 = vrcp.pop %v1726
    %v1729 = vmul.f32 1.0, %v1728
    %v1730 = vrcp.pop %v1727
    %v1731 = vmul.f32 1.0, %v1730
    %v1732 = vadd.f32 %v1698, %v837
    %v1733 = vadd.f32 %v1701, %v837
    %v1734 = vmul.f32 %v1715, %v1732
    %v1735 = vmul.f32 %v1717, %v1733
    %v1736 = vadd.f32 %v1615, %v1734
    %v1737 = vadd.f32 %v1618, %v1735
    %v1738 = vtanh.pop %v1736
    %v1739 = vtanh.pop %v1737
    %v1740 = vsub.f32 %v1610, %v1738
    %v1741 = vsub.f32 %v1611, %v1739
    %v1742 = vmul.f32 %v1729, %v1740
    %v1743 = vmul.f32 %v1731, %v1741
    %v1744 = vadd.f32 %v1738, %v1742
    %v1745 = vadd.f32 %v1739, %v1743
    %1746 = vst [vmem:[#allocation2] sm:$0xff] %v1744
    %1747 = vst [vmem:[#allocation2 + $0x8] sm:$0xff] %v1745
    %v1748 = vpack.c.bf16 %v1745, %v1744
    %v1750 = vunpack.c.l.b16 %v1748
    %v1751 = vunpack.c.h.b16 %v1748
    %v1752 = vpack.c.b16 %v1750, %v1750
    %v1753 = vpack.c.b16 %v1751, %v1751
    %s1756 = scalar_lea.vmem [#allocation13], 48
    %1757 = vst [vmem:[%s1756] sm:$0xf] %v1752
    %1758 = vst [vmem:[%s1756 + $0x4] sm:$0xf] %v1753
    %v1759 = vld [vmem:[#allocation2] sm:$0xff]
    %v1760 = vld [vmem:[#allocation2 + $0x8] sm:$0xff]
    %s1761 = scalar_lea.vmem [#allocation3], 336
    %v1762 = vld [vmem:[%s1761] sm:$0xff]
    %v1763 = vld [vmem:[%s1761 + $0x8] sm:$0xff]
    %v1764 = vld [vmem:[%s1761 + $0x10] sm:$0xff]
    %v1765 = vld [vmem:[%s1761 + $0x18] sm:$0xff]
    %v1766 = vld [vmem:[%s1761 + $0x20] sm:$0xff]
    %v1767 = vld [vmem:[%s1761 + $0x28] sm:$0xff]
    %v1768 = vpack.c.bf16 %v1760, %v1759
    %1769 = vmatprep.subr.bf16.mxu0 %v674
    %1770 = vmatpush1.bf16.msra.mxu0 %v673
    %1771 = vmatprep.subr.bf16.mxu0 %v677
    %1772 = vmatpush1.bf16.msra.mxu0 %v676
    %1773 = vmatprep.subr.bf16.mxu0 %v680
    %1774 = vmatpush1.bf16.msra.mxu0 %v679
    %1775 = vmatprep.subr.bf16.mxu0 %v683
    %1776 = vmatpush1.bf16.msra.mxu0 %v682
    %1777 = vmatprep.subr.bf16.mxu0 %v686
    %1778 = vmatpush1.bf16.msra.mxu0 %v685
    %1779 = vmatprep.subr.bf16.mxu0 %v689
    %1780 = vmatpush1.bf16.msra.mxu0 %v688
    %1781 = vmatprep.subr.bf16.mxu0 %v692
    %1782 = vmatpush1.bf16.msra.mxu0 %v691
    %1783 = vmatprep.subr.bf16.mxu0 %v695
    %1784 = vmatpush1.bf16.msra.mxu0 %v694
    %1785 = vmatprep.subr.bf16.mxu0 0
    %1786 = vmatpush1.bf16.msra.mxu0 0
    %1787 = vmatprep.subr.bf16.mxu0 0
    %1788 = vmatpush1.bf16.msra.mxu0 0
    %1789 = vmatprep.subr.bf16.mxu0 0
    %1790 = vmatpush1.bf16.msra.mxu0 0
    %1791 = vmatprep.subr.bf16.mxu0 0
    %1792 = vmatpush1.bf16.msra.mxu0 0
    %1793 = vmatprep.subr.bf16.mxu0 0
    %1794 = vmatpush1.bf16.msra.mxu0 0
    %1795 = vmatprep.subr.bf16.mxu0 0
    %1796 = vmatpush1.bf16.msra.mxu0 0
    %1797 = vmatprep.subr.bf16.mxu0 0
    %1798 = vmatpush1.bf16.msra.mxu0 0
    %1799 = vmatprep.subr.bf16.mxu0 0
    %1800 = vmatpush1.bf16.msra.mxu0 0
    %1801 = vmatprep.mubr.bf16.mxu0 0
    %1802 = vmatmul.mubr.bf16.gmra.mrb[0].mxu0 %v1768
    %v1803 = vpop.f32.mrb[0].mxu0
    %v1804 = vadd.f32 0.0, %v1803
    %v1805 = vpop.f32.mrb[0].mxu0
    %v1806 = vadd.f32 0.0, %v1805
    %v1807 = vpop.f32.mrb[0].mxu0
    %v1808 = vadd.f32 0.0, %v1807
    %v1809 = vpop.f32.mrb[0].mxu0
    %v1810 = vadd.f32 0.0, %v1809
    %1811 = vdwg.mxu0
    %1812 = vmatprep.subr.bf16.mxu0 0
    %1813 = vmatpush1.bf16.msra.mxu0 %v675
    %1814 = vmatprep.subr.bf16.mxu0 0
    %1815 = vmatpush1.bf16.msra.mxu0 %v678
    %1816 = vmatprep.subr.bf16.mxu0 0
    %1817 = vmatpush1.bf16.msra.mxu0 %v681
    %1818 = vmatprep.subr.bf16.mxu0 0
    %1819 = vmatpush1.bf16.msra.mxu0 %v684
    %1820 = vmatprep.subr.bf16.mxu0 0
    %1821 = vmatpush1.bf16.msra.mxu0 %v687
    %1822 = vmatprep.subr.bf16.mxu0 0
    %1823 = vmatpush1.bf16.msra.mxu0 %v690
    %1824 = vmatprep.subr.bf16.mxu0 0
    %1825 = vmatpush1.bf16.msra.mxu0 %v693
    %1826 = vmatprep.subr.bf16.mxu0 0
    %1827 = vmatpush1.bf16.msra.mxu0 %v696
    %1828 = vmatprep.subr.bf16.mxu0 0
    %1829 = vmatpush1.bf16.msra.mxu0 0
    %1830 = vmatprep.subr.bf16.mxu0 0
    %1831 = vmatpush1.bf16.msra.mxu0 0
    %1832 = vmatprep.subr.bf16.mxu0 0
    %1833 = vmatpush1.bf16.msra.mxu0 0
    %1834 = vmatprep.subr.bf16.mxu0 0
    %1835 = vmatpush1.bf16.msra.mxu0 0
    %1836 = vmatprep.subr.bf16.mxu0 0
    %1837 = vmatpush1.bf16.msra.mxu0 0
    %1838 = vmatprep.subr.bf16.mxu0 0
    %1839 = vmatpush1.bf16.msra.mxu0 0
    %1840 = vmatprep.subr.bf16.mxu0 0
    %1841 = vmatpush1.bf16.msra.mxu0 0
    %1842 = vmatprep.subr.bf16.mxu0 0
    %1843 = vmatpush1.bf16.msra.mxu0 0
    %1844 = vmatprep.mubr.bf16.mxu0 0
    %1845 = vmatmul.mubr.bf16.gmra.mrb[0].mxu0 %v1768
    %v1846 = vpop.f32.mrb[0].mxu0
    %v1847 = vadd.f32 0.0, %v1846
    %v1848 = vpop.f32.mrb[0].mxu0
    %v1849 = vpop.f32.mrb[0].mxu0
    %v1850 = vadd.f32 0.0, %v1849
    %v1851 = vpop.f32.mrb[0].mxu0
    %1852 = vdwg.mxu0
    %v1853 = vadd.f32 %v1762, %v1804
    %v1854 = vadd.f32 %v1765, %v1808
    %v1855 = vxor.u32 %v1853, 2147483648
    %v1856 = vxor.u32 %v1854, 2147483648
    %v1857 = vmul.f32 %v1855, 1.442695
    %v1858 = vpow.pop %v1857
    %v1859 = vmul.f32 %v1856, 1.442695
    %v1860 = vpow.pop %v1859
    %v1861 = vadd.f32 %v1858, 1.0
    %v1862 = vadd.f32 %v1860, 1.0
    %v1863 = vrcp.pop %v1861
    %v1864 = vmul.f32 1.0, %v1863
    %v1865 = vrcp.pop %v1862
    %v1866 = vmul.f32 1.0, %v1865
    %v1867 = vadd.f32 %v1763, %v1806
    %v1868 = vadd.f32 %v1766, %v1810
    %v1869 = vxor.u32 %v1867, 2147483648
    %v1870 = vxor.u32 %v1868, 2147483648
    %v1871 = vmul.f32 %v1869, 1.442695
    %v1872 = vpow.pop %v1871
    %v1873 = vmul.f32 %v1870, 1.442695
    %v1874 = vpow.pop %v1873
    %v1875 = vadd.f32 %v1872, 1.0
    %v1876 = vadd.f32 %v1874, 1.0
    %v1877 = vrcp.pop %v1875
    %v1878 = vmul.f32 1.0, %v1877
    %v1879 = vrcp.pop %v1876
    %v1880 = vmul.f32 1.0, %v1879
    %v1881 = vadd.f32 %v1847, %v837
    %v1882 = vadd.f32 %v1850, %v837
    %v1883 = vmul.f32 %v1864, %v1881
    %v1884 = vmul.f32 %v1866, %v1882
    %v1885 = vadd.f32 %v1764, %v1883
    %v1886 = vadd.f32 %v1767, %v1884
    %v1887 = vtanh.pop %v1885
    %v1888 = vtanh.pop %v1886
    %v1889 = vsub.f32 %v1759, %v1887
    %v1890 = vsub.f32 %v1760, %v1888
    %v1891 = vmul.f32 %v1878, %v1889
    %v1892 = vmul.f32 %v1880, %v1890
    %v1893 = vadd.f32 %v1887, %v1891
    %v1894 = vadd.f32 %v1888, %v1892
    %1895 = vst [vmem:[#allocation2] sm:$0xff] %v1893
    %1896 = vst [vmem:[#allocation2 + $0x8] sm:$0xff] %v1894
    %v1897 = vpack.c.bf16 %v1894, %v1893
    %v1899 = vunpack.c.l.b16 %v1897
    %v1900 = vunpack.c.h.b16 %v1897
    %v1901 = vpack.c.b16 %v1899, %v1899
    %v1902 = vpack.c.b16 %v1900, %v1900
    %s1905 = scalar_lea.vmem [#allocation13], 56
    %1906 = vst [vmem:[%s1905] sm:$0xf] %v1901
    %1907 = vst [vmem:[%s1905 + $0x4] sm:$0xf] %v1902
    // Predicated region
    $region46: #{gru_model_forward.3} parent=1 // pred_check
      _
    $region47: #{gru_model_forward.3} parent=1 // pred_check_branch
      %1909 = sbr.rel (0) target = $region49
    $region48: #{gru_model_forward.3} parent=1 // pred_region
      %s1911 = ssub.s32 1024, 1024
      %1912 = vsyncadd [#allocation6], %s1911
      %s1913 = sshll.u32 [#allocation13], 4
      %s1914 = int_to_ptr.vmem [resolvable:$true] %s1913
      %1919 = dma.vmem_to_hbm [thread:$0]  %s1914, 1024, %s5, [#allocation6], 64, 64, 4
    $region49: #{gru_model_forward.3} parent=1 // pred_fallthru
      _
    // Predicated region
    $region50: #{gru_model_forward.3} parent=1 // pred_check
      _
    $region51: #{gru_model_forward.3} parent=1 // pred_check_branch
      %1921 = sbr.rel (0) target = $region53
    $region52: #{gru_model_forward.3} parent=1 // pred_region
      %1922 = dma.done [#allocation6], 1024
    $region53: #{gru_model_forward.3} parent=1 // pred_fallthru
      _
    %1923 = vsyncpa [#allocation5], 1
    %1924 = vsyncpa [#allocation8], 1
    %1925 = vsyncpa [#allocation11], 1
    %1926 = vsyncpa [#allocation6], 1

// kernel: gru_model_forward.4
$region0: #{gru_model_forward.4}
  #allocation0 [shape = 'u32[]', space=smem, size = 0x4, offset = 0x4, fixed_abs, tag = 'smem constant byte address 0x4 - core index']
  #allocation1 [shape = 'u32[144,128]{1,0:T(1,128)}', space=vmem, size = 0x12000, scoped, tag = 'internal scratch']
  #allocation2 [shape = 'f32[16,128]{1,0:T(8,128)}', space=vmem, size = 0x2000, scoped, tag = 'scratch operand']
  #allocation3 [shape = 'f32[8,16,384]{2,1,0:T(8,128)}', space=vmem, size = 0x30000, scoped, tag = 'scratch operand']
  %s0 = inlined_call_operand.hbm [shape: bf16[8,16,128], index: 0, kind: input, shape index: {}]
  %s1 = inlined_call_operand.hbm [shape: bf16[128,384], index: 1, kind: input, shape index: {}]
  %s2 = inlined_call_operand.hbm [shape: bf16[128,384], index: 2, kind: input, shape index: {}]
  %s3 = inlined_call_operand.hbm [shape: f32[1,384], index: 3, kind: input, shape index: {}]
  %s4 = inlined_call_operand.hbm [shape: f32[1,128], index: 4, kind: input, shape index: {}]
  %s5 = inlined_call_operand.hbm [shape: bf16[8,16,128], index: 5, kind: output, shape index: {}]
  %s6 = sld [smem:[#allocation0]]
  $region54: #{gru_model_forward.4} parent=0
    _
  %s8 = ssub.s32 1, %s6
  %s9 = scalar_select 0, %s8, %s6
  $region1: #{gru_model_forward.4} parent=0
    #allocation4 [shape = 'u8[32768]{0}', space=vmem, size = 0x8000, scoped, tag = 'input window, operand 0, single buffered']
    #allocation5 [shape = 's32[1]{0}', space=sflag, size = 0x4, scoped, tag = 'scoped memory for gru_model_forward.4']
    #allocation6 [shape = 's32[1]{0}', space=sflag, size = 0x4, scoped, tag = 'scoped memory for gru_model_forward.4']
    #allocation7 [shape = 'u8[98304]{0}', space=vmem, size = 0x18000, scoped, tag = 'input window, operand 1, single buffered']
    #allocation8 [shape = 's32[1]{0}', space=sflag, size = 0x4, scoped, tag = 'scoped memory for gru_model_forward.4']
    #allocation9 [shape = 'u8[98304]{0}', space=vmem, size = 0x18000, scoped, tag = 'input window, operand 2, single buffered']
    #allocation10 [shape = 'u8[1536]{0}', space=vmem, size = 0x800, scoped, tag = 'input window, operand 3, single buffered']
    #allocation11 [shape = 's32[1]{0}', space=sflag, size = 0x4, scoped, tag = 'scoped memory for gru_model_forward.4']
    #allocation12 [shape = 'u8[512]{0}', space=vmem, size = 0x400, scoped, tag = 'input window, operand 4, single buffered']
    #allocation13 [shape = 'u8[32768]{0}', space=vmem, size = 0x8000, scoped, tag = 'output window, operand 0, single buffered']
    %10 = vsyncpa [#allocation5], 0
    %11 = vsyncpa [#allocation8], 0
    %12 = vsyncpa [#allocation11], 0
    %13 = vsyncpa [#allocation6], 0
    // Predicated region
    $region2: #{gru_model_forward.4} parent=1 // pred_check
      _
    $region3: #{gru_model_forward.4} parent=1 // pred_check_branch
      %15 = sbr.rel (0) target = $region5
    $region4: #{gru_model_forward.4} parent=1 // pred_region
      %s17 = ssub.s32 1024, 1024
      %18 = vsyncadd [#allocation5], %s17
      %s19 = sshll.u32 [#allocation4], 4
      %s20 = int_to_ptr.vmem [resolvable:$true] %s19
      %25 = dma.hbm_to_vmem [thread:$0]  %s0, 1024, %s20, [#allocation5], 64, 64, 4
    $region5: #{gru_model_forward.4} parent=1 // pred_fallthru
      _
    // Predicated region
    $region6: #{gru_model_forward.4} parent=1 // pred_check
      _
    $region7: #{gru_model_forward.4} parent=1 // pred_check_branch
      %27 = sbr.rel (0) target = $region9
    $region8: #{gru_model_forward.4} parent=1 // pred_region
      %s29 = ssub.s32 3072, 3072
      %30 = vsyncadd [#allocation8], %s29
      %s31 = sshll.u32 [#allocation7], 4
      %s32 = int_to_ptr.vmem [resolvable:$true] %s31
      %37 = dma.hbm_to_vmem [thread:$0]  %s1, 3072, %s32, [#allocation8], 192, 192, 12
    $region9: #{gru_model_forward.4} parent=1 // pred_fallthru
      _
    // Predicated region
    $region10: #{gru_model_forward.4} parent=1 // pred_check
      _
    $region11: #{gru_model_forward.4} parent=1 // pred_check_branch
      %39 = sbr.rel (0) target = $region13
    $region12: #{gru_model_forward.4} parent=1 // pred_region
      %s41 = ssub.s32 3072, 3072
      %42 = vsyncadd [#allocation8], %s41
      %s43 = sshll.u32 [#allocation9], 4
      %s44 = int_to_ptr.vmem [resolvable:$true] %s43
      %49 = dma.hbm_to_vmem [thread:$0]  %s2, 3072, %s44, [#allocation8], 192, 192, 12
    $region13: #{gru_model_forward.4} parent=1 // pred_fallthru
      _
    // Predicated region
    $region14: #{gru_model_forward.4} parent=1 // pred_check
      _
    $region15: #{gru_model_forward.4} parent=1 // pred_check_branch
      %51 = sbr.rel (0) target = $region17
    $region16: #{gru_model_forward.4} parent=1 // pred_region
      %s53 = ssub.s32 48, 48
      %54 = vsyncadd [#allocation11], %s53
      %s56 = sshll.u32 [#allocation10], 4
      %s57 = int_to_ptr.vmem [resolvable:$true] %s56
      %59 = dma.hbm_to_vmem [thread:$0]  %s3, 48, %s57, [#allocation11]
    $region17: #{gru_model_forward.4} parent=1 // pred_fallthru
      _
    // Predicated region
    $region18: #{gru_model_forward.4} parent=1 // pred_check
      _
    $region19: #{gru_model_forward.4} parent=1 // pred_check_branch
      %61 = sbr.rel (0) target = $region21
    $region20: #{gru_model_forward.4} parent=1 // pred_region
      %s63 = ssub.s32 16, 16
      %64 = vsyncadd [#allocation11], %s63
      %s66 = sshll.u32 [#allocation12], 4
      %s67 = int_to_ptr.vmem [resolvable:$true] %s66
      %69 = dma.hbm_to_vmem [thread:$0]  %s4, 16, %s67, [#allocation11]
    $region21: #{gru_model_forward.4} parent=1 // pred_fallthru
      _
    // Predicated region
    $region22: #{gru_model_forward.4} parent=1 // pred_check
      _
    $region23: #{gru_model_forward.4} parent=1 // pred_check_branch
      %71 = sbr.rel (0) target = $region25
    $region24: #{gru_model_forward.4} parent=1 // pred_region
      %72 = dma.done [#allocation5], 1024
    $region25: #{gru_model_forward.4} parent=1 // pred_fallthru
      _
    // Predicated region
    $region26: #{gru_model_forward.4} parent=1 // pred_check
      _
    $region27: #{gru_model_forward.4} parent=1 // pred_check_branch
      %74 = sbr.rel (0) target = $region29
    $region28: #{gru_model_forward.4} parent=1 // pred_region
      %75 = dma.done [#allocation8], 3072
    $region29: #{gru_model_forward.4} parent=1 // pred_fallthru
      _
    // Predicated region
    $region30: #{gru_model_forward.4} parent=1 // pred_check
      _
    $region31: #{gru_model_forward.4} parent=1 // pred_check_branch
      %77 = sbr.rel (0) target = $region33
    $region32: #{gru_model_forward.4} parent=1 // pred_region
      %78 = dma.done [#allocation8], 3072
    $region33: #{gru_model_forward.4} parent=1 // pred_fallthru
      _
    // Predicated region
    $region34: #{gru_model_forward.4} parent=1 // pred_check
      _
    $region35: #{gru_model_forward.4} parent=1 // pred_check_branch
      %80 = sbr.rel (0) target = $region37
    $region36: #{gru_model_forward.4} parent=1 // pred_region
      %81 = dma.done [#allocation11], 48
    $region37: #{gru_model_forward.4} parent=1 // pred_fallthru
      _
    // Predicated region
    $region38: #{gru_model_forward.4} parent=1 // pred_check
      _
    $region39: #{gru_model_forward.4} parent=1 // pred_check_branch
      %83 = sbr.rel (0) target = $region41
    $region40: #{gru_model_forward.4} parent=1 // pred_region
      %84 = dma.done [#allocation11], 16
    $region41: #{gru_model_forward.4} parent=1 // pred_fallthru
      _
    %p86 = scmp.eq.s32.totalorder 0, 0
    // Predicated region
    $region42: #{gru_model_forward.4} parent=1 // pred_check
      %p87 = pneg %p86
    $region43: #{gru_model_forward.4} parent=1 // pred_check_branch
      %89 = sbr.rel (%p87) target = $region45
    $region44: #{gru_model_forward.4} parent=1 // pred_region
      %90 = vst [vmem:[#allocation2] sm:$0xff] 0.0
      %91 = vst [vmem:[#allocation2 + $0x8] sm:$0xff] 0.0
    $region45: #{gru_model_forward.4} parent=1 // pred_fallthru
      _
    %v92 = vld [vmem:[#allocation4] sm:$0xf]
    %v93 = vld [vmem:[#allocation4 + $0x4] sm:$0xf]
    %v94 = vld [vmem:[#allocation4 + $0x8] sm:$0xf]
    %v95 = vld [vmem:[#allocation4 + $0xc] sm:$0xf]
    %v96 = vld [vmem:[#allocation4 + $0x10] sm:$0xf]
    %v97 = vld [vmem:[#allocation4 + $0x14] sm:$0xf]
    %v98 = vld [vmem:[#allocation4 + $0x18] sm:$0xf]
    %v99 = vld [vmem:[#allocation4 + $0x1c] sm:$0xf]
    %v100 = vld [vmem:[#allocation4 + $0x20] sm:$0xf]
    %v101 = vld [vmem:[#allocation4 + $0x24] sm:$0xf]
    %v102 = vld [vmem:[#allocation4 + $0x28] sm:$0xf]
    %v103 = vld [vmem:[#allocation4 + $0x2c] sm:$0xf]
    %v104 = vld [vmem:[#allocation4 + $0x30] sm:$0xf]
    %v105 = vld [vmem:[#allocation4 + $0x34] sm:$0xf]
    %v106 = vld [vmem:[#allocation4 + $0x38] sm:$0xf]
    %v107 = vld [vmem:[#allocation4 + $0x3c] sm:$0xf]
    %v108 = vld [vmem:[#allocation7] sm:$0xff]
    %v109 = vld [vmem:[#allocation7 + $0x8] sm:$0xf]
    %v110 = vld [vmem:[#allocation7 + $0xc] sm:$0xff]
    %v111 = vld [vmem:[#allocation7 + $0x14] sm:$0xf]
    %v112 = vld [vmem:[#allocation7 + $0x18] sm:$0xff]
    %v113 = vld [vmem:[#allocation7 + $0x20] sm:$0xf]
    %v114 = vld [vmem:[#allocation7 + $0x24] sm:$0xff]
    %v115 = vld [vmem:[#allocation7 + $0x2c] sm:$0xf]
    %v116 = vld [vmem:[#allocation7 + $0x30] sm:$0xff]
    %v117 = vld [vmem:[#allocation7 + $0x38] sm:$0xf]
    %v118 = vld [vmem:[#allocation7 + $0x3c] sm:$0xff]
    %v119 = vld [vmem:[#allocation7 + $0x44] sm:$0xf]
    %v120 = vld [vmem:[#allocation7 + $0x48] sm:$0xff]
    %v121 = vld [vmem:[#allocation7 + $0x50] sm:$0xf]
    %v122 = vld [vmem:[#allocation7 + $0x54] sm:$0xff]
    %v123 = vld [vmem:[#allocation7 + $0x5c] sm:$0xf]
    %v124 = vld [vmem:[#allocation7 + $0x60] sm:$0xff]
    %v125 = vld [vmem:[#allocation7 + $0x68] sm:$0xf]
    %v126 = vld [vmem:[#allocation7 + $0x6c] sm:$0xff]
    %v127 = vld [vmem:[#allocation7 + $0x74] sm:$0xf]
    %v128 = vld [vmem:[#allocation7 + $0x78] sm:$0xff]
    %v129 = vld [vmem:[#allocation7 + $0x80] sm:$0xf]
    %v130 = vld [vmem:[#allocation7 + $0x84] sm:$0xff]
    %v131 = vld [vmem:[#allocation7 + $0x8c] sm:$0xf]
    %v132 = vld [vmem:[#allocation7 + $0x90] sm:$0xff]
    %v133 = vld [vmem:[#allocation7 + $0x98] sm:$0xf]
    %v134 = vld [vmem:[#allocation7 + $0x9c] sm:$0xff]
    %v135 = vld [vmem:[#allocation7 + $0xa4] sm:$0xf]
    %v136 = vld [vmem:[#allocation7 + $0xa8] sm:$0xff]
    %v137 = vld [vmem:[#allocation7 + $0xb0] sm:$0xf]
    %v138 = vld [vmem:[#allocation7 + $0xb4] sm:$0xff]
    %v139 = vld [vmem:[#allocation7 + $0xbc] sm:$0xf]
    %v140 = vld [vmem:[#allocation10] sm:$0x7]
    %v142 = vlaneseq
    %v143 = vshrl.u32 %v142, 7
    %v144 = vsub.s32 0, %v143
    %v145 = vrot.slane %v140, %v144
    %v146 = vlaneseq
    %v147 = vshrl.u32 %v146, 7
    %v148 = vsub.s32 1, %v147
    %v149 = vrot.slane %v140, %v148
    %v150 = vlaneseq
    %v151 = vshrl.u32 %v150, 7
    %v152 = vsub.s32 2, %v151
    %v153 = vrot.slane %v140, %v152
    %v173 = vunpack.c.l.b16 %v92
    %v174 = vunpack.c.l.b16 %v93
    %v175 = vunpack.c.l.b16 %v94
    %v176 = vunpack.c.l.b16 %v95
    %v177 = vunpack.c.l.b16 %v96
    %v178 = vunpack.c.l.b16 %v97
    %v179 = vunpack.c.l.b16 %v98
    %v180 = vunpack.c.l.b16 %v99
    %v181 = vunpack.c.l.b16 %v100
    %v182 = vunpack.c.l.b16 %v101
    %v183 = vunpack.c.l.b16 %v102
    %v184 = vunpack.c.l.b16 %v103
    %v185 = vunpack.c.l.b16 %v104
    %v186 = vunpack.c.l.b16 %v105
    %v187 = vunpack.c.l.b16 %v106
    %v188 = vunpack.c.l.b16 %v107
    %v189 = vpack.c.b16 %v174, %v173
    %v190 = vpack.c.b16 %v176, %v175
    %v191 = vpack.c.b16 %v178, %v177
    %v192 = vpack.c.b16 %v180, %v179
    %v193 = vpack.c.b16 %v182, %v181
    %v194 = vpack.c.b16 %v184, %v183
    %v195 = vpack.c.b16 %v186, %v185
    %v196 = vpack.c.b16 %v188, %v187
    %v237 = vunpack.c.l.b16 %v108
    %v238 = vunpack.c.h.b16 %v108
    %v239 = vunpack.c.l.b16 %v109
    %v240 = vunpack.c.l.b16 %v110
    %v241 = vunpack.c.h.b16 %v110
    %v242 = vunpack.c.l.b16 %v111
    %v243 = vunpack.c.l.b16 %v112
    %v244 = vunpack.c.h.b16 %v112
    %v245 = vunpack.c.l.b16 %v113
    %v246 = vunpack.c.l.b16 %v114
    %v247 = vunpack.c.h.b16 %v114
    %v248 = vunpack.c.l.b16 %v115
    %v249 = vunpack.c.l.b16 %v116
    %v250 = vunpack.c.h.b16 %v116
    %v251 = vunpack.c.l.b16 %v117
    %v252 = vunpack.c.l.b16 %v118
    %v253 = vunpack.c.h.b16 %v118
    %v254 = vunpack.c.l.b16 %v119
    %v255 = vunpack.c.l.b16 %v120
    %v256 = vunpack.c.h.b16 %v120
    %v257 = vunpack.c.l.b16 %v121
    %v258 = vunpack.c.l.b16 %v122
    %v259 = vunpack.c.h.b16 %v122
    %v260 = vunpack.c.l.b16 %v123
    %v261 = vunpack.c.l.b16 %v124
    %v262 = vunpack.c.h.b16 %v124
    %v263 = vunpack.c.l.b16 %v125
    %v264 = vunpack.c.l.b16 %v126
    %v265 = vunpack.c.h.b16 %v126
    %v266 = vunpack.c.l.b16 %v127
    %v267 = vunpack.c.l.b16 %v128
    %v268 = vunpack.c.h.b16 %v128
    %v269 = vunpack.c.l.b16 %v129
    %v270 = vunpack.c.l.b16 %v130
    %v271 = vunpack.c.h.b16 %v130
    %v272 = vunpack.c.l.b16 %v131
    %v273 = vunpack.c.l.b16 %v132
    %v274 = vunpack.c.h.b16 %v132
    %v275 = vunpack.c.l.b16 %v133
    %v276 = vunpack.c.l.b16 %v134
    %v277 = vunpack.c.h.b16 %v134
    %v278 = vunpack.c.l.b16 %v135
    %v279 = vunpack.c.l.b16 %v136
    %v280 = vunpack.c.h.b16 %v136
    %v281 = vunpack.c.l.b16 %v137
    %v282 = vunpack.c.l.b16 %v138
    %v283 = vunpack.c.h.b16 %v138
    %v284 = vunpack.c.l.b16 %v139
    %v285 = vpack.c.b16 %v240, %v237
    %v286 = vpack.c.b16 %v241, %v238
    %v287 = vpack.c.b16 %v242, %v239
    %v288 = vpack.c.b16 %v246, %v243
    %v289 = vpack.c.b16 %v247, %v244
    %v290 = vpack.c.b16 %v248, %v245
    %v291 = vpack.c.b16 %v252, %v249
    %v292 = vpack.c.b16 %v253, %v250
    %v293 = vpack.c.b16 %v254, %v251
    %v294 = vpack.c.b16 %v258, %v255
    %v295 = vpack.c.b16 %v259, %v256
    %v296 = vpack.c.b16 %v260, %v257
    %v297 = vpack.c.b16 %v264, %v261
    %v298 = vpack.c.b16 %v265, %v262
    %v299 = vpack.c.b16 %v266, %v263
    %v300 = vpack.c.b16 %v270, %v267
    %v301 = vpack.c.b16 %v271, %v268
    %v302 = vpack.c.b16 %v272, %v269
    %v303 = vpack.c.b16 %v276, %v273
    %v304 = vpack.c.b16 %v277, %v274
    %v305 = vpack.c.b16 %v278, %v275
    %v306 = vpack.c.b16 %v282, %v279
    %v307 = vpack.c.b16 %v283, %v280
    %v308 = vpack.c.b16 %v284, %v281
    %333 = vmatprep.subr.bf16.mxu0 %v286
    %334 = vmatpush1.bf16.msra.mxu0 %v285
    %335 = vmatprep.subr.bf16.mxu0 %v289
    %336 = vmatpush1.bf16.msra.mxu0 %v288
    %337 = vmatprep.subr.bf16.mxu0 %v292
    %338 = vmatpush1.bf16.msra.mxu0 %v291
    %339 = vmatprep.subr.bf16.mxu0 %v295
    %340 = vmatpush1.bf16.msra.mxu0 %v294
    %341 = vmatprep.subr.bf16.mxu0 %v298
    %342 = vmatpush1.bf16.msra.mxu0 %v297
    %343 = vmatprep.subr.bf16.mxu0 %v301
    %344 = vmatpush1.bf16.msra.mxu0 %v300
    %345 = vmatprep.subr.bf16.mxu0 %v304
    %346 = vmatpush1.bf16.msra.mxu0 %v303
    %347 = vmatprep.subr.bf16.mxu0 %v307
    %348 = vmatpush1.bf16.msra.mxu0 %v306
    %349 = vmatprep.subr.bf16.mxu0 0
    %350 = vmatpush1.bf16.msra.mxu0 0
    %351 = vmatprep.subr.bf16.mxu0 0
    %352 = vmatpush1.bf16.msra.mxu0 0
    %353 = vmatprep.subr.bf16.mxu0 0
    %354 = vmatpush1.bf16.msra.mxu0 0
    %355 = vmatprep.subr.bf16.mxu0 0
    %356 = vmatpush1.bf16.msra.mxu0 0
    %357 = vmatprep.subr.bf16.mxu0 0
    %358 = vmatpush1.bf16.msra.mxu0 0
    %359 = vmatprep.subr.bf16.mxu0 0
    %360 = vmatpush1.bf16.msra.mxu0 0
    %361 = vmatprep.subr.bf16.mxu0 0
    %362 = vmatpush1.bf16.msra.mxu0 0
    %363 = vmatprep.subr.bf16.mxu0 0
    %364 = vmatpush1.bf16.msra.mxu0 0
    %365 = vmatprep.mubr.bf16.mxu0 0
    %366 = vmatmul.mubr.bf16.gmra.mrb[0].mxu0 %v189
    %v367 = vpop.f32.mrb[0].mxu0
    %v368 = vadd.f32 %v145, %v367
    %v369 = vpop.f32.mrb[0].mxu0
    %v370 = vadd.f32 %v149, %v369
    %v371 = vpop.f32.mrb[0].mxu0
    %v372 = vadd.f32 %v145, %v371
    %v373 = vpop.f32.mrb[0].mxu0
    %v374 = vadd.f32 %v149, %v373
    %375 = vmatprep.mubr.bf16.mxu0 0
    %376 = vmatmul.mubr.bf16.gmra.mrb[0].mxu0 %v190
    %v377 = vpop.f32.mrb[0].mxu0
    %v378 = vadd.f32 %v145, %v377
    %v379 = vpop.f32.mrb[0].mxu0
    %v380 = vadd.f32 %v149, %v379
    %v381 = vpop.f32.mrb[0].mxu0
    %v382 = vadd.f32 %v145, %v381
    %v383 = vpop.f32.mrb[0].mxu0
    %v384 = vadd.f32 %v149, %v383
    %385 = vmatprep.mubr.bf16.mxu0 0
    %386 = vmatmul.mubr.bf16.gmra.mrb[0].mxu0 %v191
    %v387 = vpop.f32.mrb[0].mxu0
    %v388 = vadd.f32 %v145, %v387
    %v389 = vpop.f32.mrb[0].mxu0
    %v390 = vadd.f32 %v149, %v389
    %v391 = vpop.f32.mrb[0].mxu0
    %v392 = vadd.f32 %v145, %v391
    %v393 = vpop.f32.mrb[0].mxu0
    %v394 = vadd.f32 %v149, %v393
    %395 = vmatprep.mubr.bf16.mxu0 0
    %396 = vmatmul.mubr.bf16.gmra.mrb[0].mxu0 %v192
    %v397 = vpop.f32.mrb[0].mxu0
    %v398 = vadd.f32 %v145, %v397
    %v399 = vpop.f32.mrb[0].mxu0
    %v400 = vadd.f32 %v149, %v399
    %v401 = vpop.f32.mrb[0].mxu0
    %v402 = vadd.f32 %v145, %v401
    %v403 = vpop.f32.mrb[0].mxu0
    %v404 = vadd.f32 %v149, %v403
    %405 = vmatprep.mubr.bf16.mxu0 0
    %406 = vmatmul.mubr.bf16.gmra.mrb[0].mxu0 %v193
    %v407 = vpop.f32.mrb[0].mxu0
    %v408 = vadd.f32 %v145, %v407
    %v409 = vpop.f32.mrb[0].mxu0
    %v410 = vadd.f32 %v149, %v409
    %v411 = vpop.f32.mrb[0].mxu0
    %v412 = vadd.f32 %v145, %v411
    %v413 = vpop.f32.mrb[0].mxu0
    %v414 = vadd.f32 %v149, %v413
    %415 = vmatprep.mubr.bf16.mxu0 0
    %416 = vmatmul.mubr.bf16.gmra.mrb[0].mxu0 %v194
    %v417 = vpop.f32.mrb[0].mxu0
    %v418 = vadd.f32 %v145, %v417
    %v419 = vpop.f32.mrb[0].mxu0
    %v420 = vadd.f32 %v149, %v419
    %v421 = vpop.f32.mrb[0].mxu0
    %v422 = vadd.f32 %v145, %v421
    %v423 = vpop.f32.mrb[0].mxu0
    %v424 = vadd.f32 %v149, %v423
    %425 = vmatprep.mubr.bf16.mxu0 0
    %426 = vmatmul.mubr.bf16.gmra.mrb[0].mxu0 %v195
    %v427 = vpop.f32.mrb[0].mxu0
    %v428 = vadd.f32 %v145, %v427
    %v429 = vpop.f32.mrb[0].mxu0
    %v430 = vadd.f32 %v149, %v429
    %v431 = vpop.f32.mrb[0].mxu0
    %v432 = vadd.f32 %v145, %v431
    %v433 = vpop.f32.mrb[0].mxu0
    %v434 = vadd.f32 %v149, %v433
    %435 = vmatprep.mubr.bf16.mxu0 0
    %436 = vmatmul.mubr.bf16.gmra.mrb[0].mxu0 %v196
    %v437 = vpop.f32.mrb[0].mxu0
    %v438 = vadd.f32 %v145, %v437
    %v439 = vpop.f32.mrb[0].mxu0
    %v440 = vadd.f32 %v149, %v439
    %v441 = vpop.f32.mrb[0].mxu0
    %v442 = vadd.f32 %v145, %v441
    %v443 = vpop.f32.mrb[0].mxu0
    %v444 = vadd.f32 %v149, %v443
    %445 = vdwg.mxu0
    %446 = vmatprep.subr.bf16.mxu0 0
    %447 = vmatpush1.bf16.msra.mxu0 %v287
    %448 = vmatprep.subr.bf16.mxu0 0
    %449 = vmatpush1.bf16.msra.mxu0 %v290
    %450 = vmatprep.subr.bf16.mxu0 0
    %451 = vmatpush1.bf16.msra.mxu0 %v293
    %452 = vmatprep.subr.bf16.mxu0 0
    %453 = vmatpush1.bf16.msra.mxu0 %v296
    %454 = vmatprep.subr.bf16.mxu0 0
    %455 = vmatpush1.bf16.msra.mxu0 %v299
    %456 = vmatprep.subr.bf16.mxu0 0
    %457 = vmatpush1.bf16.msra.mxu0 %v302
    %458 = vmatprep.subr.bf16.mxu0 0
    %459 = vmatpush1.bf16.msra.mxu0 %v305
    %460 = vmatprep.subr.bf16.mxu0 0
    %461 = vmatpush1.bf16.msra.mxu0 %v308
    %462 = vmatprep.subr.bf16.mxu0 0
    %463 = vmatpush1.bf16.msra.mxu0 0
    %464 = vmatprep.subr.bf16.mxu0 0
    %465 = vmatpush1.bf16.msra.mxu0 0
    %466 = vmatprep.subr.bf16.mxu0 0
    %467 = vmatpush1.bf16.msra.mxu0 0
    %468 = vmatprep.subr.bf16.mxu0 0
    %469 = vmatpush1.bf16.msra.mxu0 0
    %470 = vmatprep.subr.bf16.mxu0 0
    %471 = vmatpush1.bf16.msra.mxu0 0
    %472 = vmatprep.subr.bf16.mxu0 0
    %473 = vmatpush1.bf16.msra.mxu0 0
    %474 = vmatprep.subr.bf16.mxu0 0
    %475 = vmatpush1.bf16.msra.mxu0 0
    %476 = vmatprep.subr.bf16.mxu0 0
    %477 = vmatpush1.bf16.msra.mxu0 0
    %478 = vmatprep.mubr.bf16.mxu0 0
    %479 = vmatmul.mubr.bf16.gmra.mrb[0].mxu0 %v189
    %v480 = vpop.f32.mrb[0].mxu0
    %v481 = vadd.f32 %v153, %v480
    %v482 = vpop.f32.mrb[0].mxu0
    %v483 = vpop.f32.mrb[0].mxu0
    %v484 = vadd.f32 %v153, %v483
    %v485 = vpop.f32.mrb[0].mxu0
    %486 = vmatprep.mubr.bf16.mxu0 0
    %487 = vmatmul.mubr.bf16.gmra.mrb[0].mxu0 %v190
    %v488 = vpop.f32.mrb[0].mxu0
    %v489 = vadd.f32 %v153, %v488
    %v490 = vpop.f32.mrb[0].mxu0
    %v491 = vpop.f32.mrb[0].mxu0
    %v492 = vadd.f32 %v153, %v491
    %v493 = vpop.f32.mrb[0].mxu0
    %494 = vmatprep.mubr.bf16.mxu0 0
    %495 = vmatmul.mubr.bf16.gmra.mrb[0].mxu0 %v191
    %v496 = vpop.f32.mrb[0].mxu0
    %v497 = vadd.f32 %v153, %v496
    %v498 = vpop.f32.mrb[0].mxu0
    %v499 = vpop.f32.mrb[0].mxu0
    %v500 = vadd.f32 %v153, %v499
    %v501 = vpop.f32.mrb[0].mxu0
    %502 = vmatprep.mubr.bf16.mxu0 0
    %503 = vmatmul.mubr.bf16.gmra.mrb[0].mxu0 %v192
    %v504 = vpop.f32.mrb[0].mxu0
    %v505 = vadd.f32 %v153, %v504
    %v506 = vpop.f32.mrb[0].mxu0
    %v507 = vpop.f32.mrb[0].mxu0
    %v508 = vadd.f32 %v153, %v507
    %v509 = vpop.f32.mrb[0].mxu0
    %510 = vmatprep.mubr.bf16.mxu0 0
    %511 = vmatmul.mubr.bf16.gmra.mrb[0].mxu0 %v193
    %v512 = vpop.f32.mrb[0].mxu0
    %v513 = vadd.f32 %v153, %v512
    %v514 = vpop.f32.mrb[0].mxu0
    %v515 = vpop.f32.mrb[0].mxu0
    %v516 = vadd.f32 %v153, %v515
    %v517 = vpop.f32.mrb[0].mxu0
    %518 = vmatprep.mubr.bf16.mxu0 0
    %519 = vmatmul.mubr.bf16.gmra.mrb[0].mxu0 %v194
    %v520 = vpop.f32.mrb[0].mxu0
    %v521 = vadd.f32 %v153, %v520
    %v522 = vpop.f32.mrb[0].mxu0
    %v523 = vpop.f32.mrb[0].mxu0
    %v524 = vadd.f32 %v153, %v523
    %v525 = vpop.f32.mrb[0].mxu0
    %526 = vmatprep.mubr.bf16.mxu0 0
    %527 = vmatmul.mubr.bf16.gmra.mrb[0].mxu0 %v195
    %v528 = vpop.f32.mrb[0].mxu0
    %v529 = vadd.f32 %v153, %v528
    %v530 = vpop.f32.mrb[0].mxu0
    %v531 = vpop.f32.mrb[0].mxu0
    %v532 = vadd.f32 %v153, %v531
    %v533 = vpop.f32.mrb[0].mxu0
    %534 = vmatprep.mubr.bf16.mxu0 0
    %535 = vmatmul.mubr.bf16.gmra.mrb[0].mxu0 %v196
    %v536 = vpop.f32.mrb[0].mxu0
    %v537 = vadd.f32 %v153, %v536
    %v538 = vpop.f32.mrb[0].mxu0
    %v539 = vpop.f32.mrb[0].mxu0
    %v540 = vadd.f32 %v153, %v539
    %v541 = vpop.f32.mrb[0].mxu0
    %542 = vdwg.mxu0
    %543 = vst [vmem:[#allocation3] sm:$0xff] %v368
    %544 = vst [vmem:[#allocation3 + $0x8] sm:$0xff] %v370
    %545 = vst [vmem:[#allocation3 + $0x10] sm:$0xff] %v481
    %546 = vst [vmem:[#allocation3 + $0x18] sm:$0xff] %v372
    %547 = vst [vmem:[#allocation3 + $0x20] sm:$0xff] %v374
    %548 = vst [vmem:[#allocation3 + $0x28] sm:$0xff] %v484
    %549 = vst [vmem:[#allocation3 + $0x30] sm:$0xff] %v378
    %550 = vst [vmem:[#allocation3 + $0x38] sm:$0xff] %v380
    %551 = vst [vmem:[#allocation3 + $0x40] sm:$0xff] %v489
    %552 = vst [vmem:[#allocation3 + $0x48] sm:$0xff] %v382
    %553 = vst [vmem:[#allocation3 + $0x50] sm:$0xff] %v384
    %554 = vst [vmem:[#allocation3 + $0x58] sm:$0xff] %v492
    %555 = vst [vmem:[#allocation3 + $0x60] sm:$0xff] %v388
    %556 = vst [vmem:[#allocation3 + $0x68] sm:$0xff] %v390
    %557 = vst [vmem:[#allocation3 + $0x70] sm:$0xff] %v497
    %558 = vst [vmem:[#allocation3 + $0x78] sm:$0xff] %v392
    %559 = vst [vmem:[#allocation3 + $0x80] sm:$0xff] %v394
    %560 = vst [vmem:[#allocation3 + $0x88] sm:$0xff] %v500
    %561 = vst [vmem:[#allocation3 + $0x90] sm:$0xff] %v398
    %562 = vst [vmem:[#allocation3 + $0x98] sm:$0xff] %v400
    %563 = vst [vmem:[#allocation3 + $0xa0] sm:$0xff] %v505
    %564 = vst [vmem:[#allocation3 + $0xa8] sm:$0xff] %v402
    %565 = vst [vmem:[#allocation3 + $0xb0] sm:$0xff] %v404
    %566 = vst [vmem:[#allocation3 + $0xb8] sm:$0xff] %v508
    %567 = vst [vmem:[#allocation3 + $0xc0] sm:$0xff] %v408
    %568 = vst [vmem:[#allocation3 + $0xc8] sm:$0xff] %v410
    %569 = vst [vmem:[#allocation3 + $0xd0] sm:$0xff] %v513
    %570 = vst [vmem:[#allocation3 + $0xd8] sm:$0xff] %v412
    %571 = vst [vmem:[#allocation3 + $0xe0] sm:$0xff] %v414
    %572 = vst [vmem:[#allocation3 + $0xe8] sm:$0xff] %v516
    %573 = vst [vmem:[#allocation3 + $0xf0] sm:$0xff] %v418
    %574 = vst [vmem:[#allocation3 + $0xf8] sm:$0xff] %v420
    %575 = vst [vmem:[#allocation3 + $0x100] sm:$0xff] %v521
    %576 = vst [vmem:[#allocation3 + $0x108] sm:$0xff] %v422
    %577 = vst [vmem:[#allocation3 + $0x110] sm:$0xff] %v424
    %578 = vst [vmem:[#allocation3 + $0x118] sm:$0xff] %v524
    %579 = vst [vmem:[#allocation3 + $0x120] sm:$0xff] %v428
    %580 = vst [vmem:[#allocation3 + $0x128] sm:$0xff] %v430
    %581 = vst [vmem:[#allocation3 + $0x130] sm:$0xff] %v529
    %582 = vst [vmem:[#allocation3 + $0x138] sm:$0xff] %v432
    %583 = vst [vmem:[#allocation3 + $0x140] sm:$0xff] %v434
    %584 = vst [vmem:[#allocation3 + $0x148] sm:$0xff] %v532
    %585 = vst [vmem:[#allocation3 + $0x150] sm:$0xff] %v438
    %586 = vst [vmem:[#allocation3 + $0x158] sm:$0xff] %v440
    %587 = vst [vmem:[#allocation3 + $0x160] sm:$0xff] %v537
    %588 = vst [vmem:[#allocation3 + $0x168] sm:$0xff] %v442
    %589 = vst [vmem:[#allocation3 + $0x170] sm:$0xff] %v444
    %590 = vst [vmem:[#allocation3 + $0x178] sm:$0xff] %v540
    %v591 = vld [vmem:[#allocation9] sm:$0xff]
    %v592 = vld [vmem:[#allocation9 + $0x8] sm:$0xf]
    %v593 = vld [vmem:[#allocation9 + $0xc] sm:$0xff]
    %v594 = vld [vmem:[#allocation9 + $0x14] sm:$0xf]
    %v595 = vld [vmem:[#allocation9 + $0x18] sm:$0xff]
    %v596 = vld [vmem:[#allocation9 + $0x20] sm:$0xf]
    %v597 = vld [vmem:[#allocation9 + $0x24] sm:$0xff]
    %v598 = vld [vmem:[#allocation9 + $0x2c] sm:$0xf]
    %v599 = vld [vmem:[#allocation9 + $0x30] sm:$0xff]
    %v600 = vld [vmem:[#allocation9 + $0x38] sm:$0xf]
    %v601 = vld [vmem:[#allocation9 + $0x3c] sm:$0xff]
    %v602 = vld [vmem:[#allocation9 + $0x44] sm:$0xf]
    %v603 = vld [vmem:[#allocation9 + $0x48] sm:$0xff]
    %v604 = vld [vmem:[#allocation9 + $0x50] sm:$0xf]
    %v605 = vld [vmem:[#allocation9 + $0x54] sm:$0xff]
    %v606 = vld [vmem:[#allocation9 + $0x5c] sm:$0xf]
    %v607 = vld [vmem:[#allocation9 + $0x60] sm:$0xff]
    %v608 = vld [vmem:[#allocation9 + $0x68] sm:$0xf]
    %v609 = vld [vmem:[#allocation9 + $0x6c] sm:$0xff]
    %v610 = vld [vmem:[#allocation9 + $0x74] sm:$0xf]
    %v611 = vld [vmem:[#allocation9 + $0x78] sm:$0xff]
    %v612 = vld [vmem:[#allocation9 + $0x80] sm:$0xf]
    %v613 = vld [vmem:[#allocation9 + $0x84] sm:$0xff]
    %v614 = vld [vmem:[#allocation9 + $0x8c] sm:$0xf]
    %v615 = vld [vmem:[#allocation9 + $0x90] sm:$0xff]
    %v616 = vld [vmem:[#allocation9 + $0x98] sm:$0xf]
    %v617 = vld [vmem:[#allocation9 + $0x9c] sm:$0xff]
    %v618 = vld [vmem:[#allocation9 + $0xa4] sm:$0xf]
    %v619 = vld [vmem:[#allocation9 + $0xa8] sm:$0xff]
    %v620 = vld [vmem:[#allocation9 + $0xb0] sm:$0xf]
    %v621 = vld [vmem:[#allocation9 + $0xb4] sm:$0xff]
    %v622 = vld [vmem:[#allocation9 + $0xbc] sm:$0xf]
    %v623 = vld [vmem:[#allocation12] sm:$0x1]
    %v624 = vld [vmem:[#allocation2] sm:$0xff]
    %v625 = vld [vmem:[#allocation2 + $0x8] sm:$0xff]
    %v626 = vld [vmem:[#allocation3] sm:$0xff]
    %v627 = vld [vmem:[#allocation3 + $0x8] sm:$0xff]
    %v628 = vld [vmem:[#allocation3 + $0x10] sm:$0xff]
    %v629 = vld [vmem:[#allocation3 + $0x18] sm:$0xff]
    %v630 = vld [vmem:[#allocation3 + $0x20] sm:$0xff]
    %v631 = vld [vmem:[#allocation3 + $0x28] sm:$0xff]
    %v632 = vpack.c.bf16 %v625, %v624
    %v665 = vunpack.c.l.b16 %v591
    %v666 = vunpack.c.h.b16 %v591
    %v667 = vunpack.c.l.b16 %v592
    %v668 = vunpack.c.l.b16 %v593
    %v669 = vunpack.c.h.b16 %v593
    %v670 = vunpack.c.l.b16 %v594
    %v671 = vunpack.c.l.b16 %v595
    %v672 = vunpack.c.h.b16 %v595
    %v673 = vunpack.c.l.b16 %v596
    %v674 = vunpack.c.l.b16 %v597
    %v675 = vunpack.c.h.b16 %v597
    %v676 = vunpack.c.l.b16 %v598
    %v677 = vunpack.c.l.b16 %v599
    %v678 = vunpack.c.h.b16 %v599
    %v679 = vunpack.c.l.b16 %v600
    %v680 = vunpack.c.l.b16 %v601
    %v681 = vunpack.c.h.b16 %v601
    %v682 = vunpack.c.l.b16 %v602
    %v683 = vunpack.c.l.b16 %v603
    %v684 = vunpack.c.h.b16 %v603
    %v685 = vunpack.c.l.b16 %v604
    %v686 = vunpack.c.l.b16 %v605
    %v687 = vunpack.c.h.b16 %v605
    %v688 = vunpack.c.l.b16 %v606
    %v689 = vunpack.c.l.b16 %v607
    %v690 = vunpack.c.h.b16 %v607
    %v691 = vunpack.c.l.b16 %v608
    %v692 = vunpack.c.l.b16 %v609
    %v693 = vunpack.c.h.b16 %v609
    %v694 = vunpack.c.l.b16 %v610
    %v695 = vunpack.c.l.b16 %v611
    %v696 = vunpack.c.h.b16 %v611
    %v697 = vunpack.c.l.b16 %v612
    %v698 = vunpack.c.l.b16 %v613
    %v699 = vunpack.c.h.b16 %v613
    %v700 = vunpack.c.l.b16 %v614
    %v701 = vunpack.c.l.b16 %v615
    %v702 = vunpack.c.h.b16 %v615
    %v703 = vunpack.c.l.b16 %v616
    %v704 = vunpack.c.l.b16 %v617
    %v705 = vunpack.c.h.b16 %v617
    %v706 = vunpack.c.l.b16 %v618
    %v707 = vunpack.c.l.b16 %v619
    %v708 = vunpack.c.h.b16 %v619
    %v709 = vunpack.c.l.b16 %v620
    %v710 = vunpack.c.l.b16 %v621
    %v711 = vunpack.c.h.b16 %v621
    %v712 = vunpack.c.l.b16 %v622
    %v713 = vpack.c.b16 %v668, %v665
    %v714 = vpack.c.b16 %v669, %v666
    %v715 = vpack.c.b16 %v670, %v667
    %v716 = vpack.c.b16 %v674, %v671
    %v717 = vpack.c.b16 %v675, %v672
    %v718 = vpack.c.b16 %v676, %v673
    %v719 = vpack.c.b16 %v680, %v677
    %v720 = vpack.c.b16 %v681, %v678
    %v721 = vpack.c.b16 %v682, %v679
    %v722 = vpack.c.b16 %v686, %v683
    %v723 = vpack.c.b16 %v687, %v684
    %v724 = vpack.c.b16 %v688, %v685
    %v725 = vpack.c.b16 %v692, %v689
    %v726 = vpack.c.b16 %v693, %v690
    %v727 = vpack.c.b16 %v694, %v691
    %v728 = vpack.c.b16 %v698, %v695
    %v729 = vpack.c.b16 %v699, %v696
    %v730 = vpack.c.b16 %v700, %v697
    %v731 = vpack.c.b16 %v704, %v701
    %v732 = vpack.c.b16 %v705, %v702
    %v733 = vpack.c.b16 %v706, %v703
    %v734 = vpack.c.b16 %v710, %v707
    %v735 = vpack.c.b16 %v711, %v708
    %v736 = vpack.c.b16 %v712, %v709
    %761 = vmatprep.subr.bf16.mxu0 %v714
    %762 = vmatpush1.bf16.msra.mxu0 %v713
    %763 = vmatprep.subr.bf16.mxu0 %v717
    %764 = vmatpush1.bf16.msra.mxu0 %v716
    %765 = vmatprep.subr.bf16.mxu0 %v720
    %766 = vmatpush1.bf16.msra.mxu0 %v719
    %767 = vmatprep.subr.bf16.mxu0 %v723
    %768 = vmatpush1.bf16.msra.mxu0 %v722
    %769 = vmatprep.subr.bf16.mxu0 %v726
    %770 = vmatpush1.bf16.msra.mxu0 %v725
    %771 = vmatprep.subr.bf16.mxu0 %v729
    %772 = vmatpush1.bf16.msra.mxu0 %v728
    %773 = vmatprep.subr.bf16.mxu0 %v732
    %774 = vmatpush1.bf16.msra.mxu0 %v731
    %775 = vmatprep.subr.bf16.mxu0 %v735
    %776 = vmatpush1.bf16.msra.mxu0 %v734
    %777 = vmatprep.subr.bf16.mxu0 0
    %778 = vmatpush1.bf16.msra.mxu0 0
    %779 = vmatprep.subr.bf16.mxu0 0
    %780 = vmatpush1.bf16.msra.mxu0 0
    %781 = vmatprep.subr.bf16.mxu0 0
    %782 = vmatpush1.bf16.msra.mxu0 0
    %783 = vmatprep.subr.bf16.mxu0 0
    %784 = vmatpush1.bf16.msra.mxu0 0
    %785 = vmatprep.subr.bf16.mxu0 0
    %786 = vmatpush1.bf16.msra.mxu0 0
    %787 = vmatprep.subr.bf16.mxu0 0
    %788 = vmatpush1.bf16.msra.mxu0 0
    %789 = vmatprep.subr.bf16.mxu0 0
    %790 = vmatpush1.bf16.msra.mxu0 0
    %791 = vmatprep.subr.bf16.mxu0 0
    %792 = vmatpush1.bf16.msra.mxu0 0
    %793 = vmatprep.mubr.bf16.mxu0 0
    %794 = vmatmul.mubr.bf16.gmra.mrb[0].mxu0 %v632
    %v795 = vpop.f32.mrb[0].mxu0
    %v796 = vadd.f32 0.0, %v795
    %v797 = vpop.f32.mrb[0].mxu0
    %v798 = vadd.f32 0.0, %v797
    %v799 = vpop.f32.mrb[0].mxu0
    %v800 = vadd.f32 0.0, %v799
    %v801 = vpop.f32.mrb[0].mxu0
    %v802 = vadd.f32 0.0, %v801
    %803 = vdwg.mxu0
    %804 = vmatprep.subr.bf16.mxu0 0
    %805 = vmatpush1.bf16.msra.mxu0 %v715
    %806 = vmatprep.subr.bf16.mxu0 0
    %807 = vmatpush1.bf16.msra.mxu0 %v718
    %808 = vmatprep.subr.bf16.mxu0 0
    %809 = vmatpush1.bf16.msra.mxu0 %v721
    %810 = vmatprep.subr.bf16.mxu0 0
    %811 = vmatpush1.bf16.msra.mxu0 %v724
    %812 = vmatprep.subr.bf16.mxu0 0
    %813 = vmatpush1.bf16.msra.mxu0 %v727
    %814 = vmatprep.subr.bf16.mxu0 0
    %815 = vmatpush1.bf16.msra.mxu0 %v730
    %816 = vmatprep.subr.bf16.mxu0 0
    %817 = vmatpush1.bf16.msra.mxu0 %v733
    %818 = vmatprep.subr.bf16.mxu0 0
    %819 = vmatpush1.bf16.msra.mxu0 %v736
    %820 = vmatprep.subr.bf16.mxu0 0
    %821 = vmatpush1.bf16.msra.mxu0 0
    %822 = vmatprep.subr.bf16.mxu0 0
    %823 = vmatpush1.bf16.msra.mxu0 0
    %824 = vmatprep.subr.bf16.mxu0 0
    %825 = vmatpush1.bf16.msra.mxu0 0
    %826 = vmatprep.subr.bf16.mxu0 0
    %827 = vmatpush1.bf16.msra.mxu0 0
    %828 = vmatprep.subr.bf16.mxu0 0
    %829 = vmatpush1.bf16.msra.mxu0 0
    %830 = vmatprep.subr.bf16.mxu0 0
    %831 = vmatpush1.bf16.msra.mxu0 0
    %832 = vmatprep.subr.bf16.mxu0 0
    %833 = vmatpush1.bf16.msra.mxu0 0
    %834 = vmatprep.subr.bf16.mxu0 0
    %835 = vmatpush1.bf16.msra.mxu0 0
    %836 = vmatprep.mubr.bf16.mxu0 0
    %837 = vmatmul.mubr.bf16.gmra.mrb[0].mxu0 %v632
    %v838 = vpop.f32.mrb[0].mxu0
    %v839 = vadd.f32 0.0, %v838
    %v840 = vpop.f32.mrb[0].mxu0
    %v841 = vpop.f32.mrb[0].mxu0
    %v842 = vadd.f32 0.0, %v841
    %v843 = vpop.f32.mrb[0].mxu0
    %844 = vdwg.mxu0
    %v845 = vadd.f32 %v626, %v796
    %v846 = vadd.f32 %v629, %v800
    %v847 = vxor.u32 %v845, 2147483648
    %v848 = vxor.u32 %v846, 2147483648
    %v849 = vmul.f32 %v847, 1.442695
    %v850 = vpow.pop %v849
    %v851 = vmul.f32 %v848, 1.442695
    %v852 = vpow.pop %v851
    %v853 = vadd.f32 %v850, 1.0
    %v854 = vadd.f32 %v852, 1.0
    %v855 = vrcp.pop %v853
    %v856 = vmul.f32 1.0, %v855
    %v857 = vrcp.pop %v854
    %v858 = vmul.f32 1.0, %v857
    %v859 = vadd.f32 %v627, %v798
    %v860 = vadd.f32 %v630, %v802
    %v861 = vxor.u32 %v859, 2147483648
    %v862 = vxor.u32 %v860, 2147483648
    %v863 = vmul.f32 %v861, 1.442695
    %v864 = vpow.pop %v863
    %v865 = vmul.f32 %v862, 1.442695
    %v866 = vpow.pop %v865
    %v867 = vadd.f32 %v864, 1.0
    %v868 = vadd.f32 %v866, 1.0
    %v869 = vrcp.pop %v867
    %v870 = vmul.f32 1.0, %v869
    %v871 = vrcp.pop %v868
    %v872 = vmul.f32 1.0, %v871
    %v874 = vlaneseq
    %v875 = vshrl.u32 %v874, 7
    %v876 = vsub.s32 0, %v875
    %v877 = vrot.slane %v623, %v876
    %v879 = vadd.f32 %v839, %v877
    %v880 = vadd.f32 %v842, %v877
    %v881 = vmul.f32 %v856, %v879
    %v882 = vmul.f32 %v858, %v880
    %v883 = vadd.f32 %v628, %v881
    %v884 = vadd.f32 %v631, %v882
    %v885 = vtanh.pop %v883
    %v886 = vtanh.pop %v884
    %v887 = vsub.f32 %v624, %v885
    %v888 = vsub.f32 %v625, %v886
    %v889 = vmul.f32 %v870, %v887
    %v890 = vmul.f32 %v872, %v888
    %v891 = vadd.f32 %v885, %v889
    %v892 = vadd.f32 %v886, %v890
    %893 = vst [vmem:[#allocation2] sm:$0xff] %v891
    %894 = vst [vmem:[#allocation2 + $0x8] sm:$0xff] %v892
    %v895 = vpack.c.bf16 %v892, %v891
    %v897 = vunpack.c.l.b16 %v895
    %v898 = vunpack.c.h.b16 %v895
    %v899 = vpack.c.b16 %v897, %v897
    %v900 = vpack.c.b16 %v898, %v898
    %903 = vst [vmem:[#allocation13] sm:$0xf] %v899
    %904 = vst [vmem:[#allocation13 + $0x4] sm:$0xf] %v900
    %v905 = vld [vmem:[#allocation2] sm:$0xff]
    %v906 = vld [vmem:[#allocation2 + $0x8] sm:$0xff]
    %s907 = scalar_lea.vmem [#allocation3], 48
    %v908 = vld [vmem:[%s907] sm:$0xff]
    %v909 = vld [vmem:[%s907 + $0x8] sm:$0xff]
    %v910 = vld [vmem:[%s907 + $0x10] sm:$0xff]
    %v911 = vld [vmem:[%s907 + $0x18] sm:$0xff]
    %v912 = vld [vmem:[%s907 + $0x20] sm:$0xff]
    %v913 = vld [vmem:[%s907 + $0x28] sm:$0xff]
    %v914 = vpack.c.bf16 %v906, %v905
    %915 = vmatprep.subr.bf16.mxu0 %v714
    %916 = vmatpush1.bf16.msra.mxu0 %v713
    %917 = vmatprep.subr.bf16.mxu0 %v717
    %918 = vmatpush1.bf16.msra.mxu0 %v716
    %919 = vmatprep.subr.bf16.mxu0 %v720
    %920 = vmatpush1.bf16.msra.mxu0 %v719
    %921 = vmatprep.subr.bf16.mxu0 %v723
    %922 = vmatpush1.bf16.msra.mxu0 %v722
    %923 = vmatprep.subr.bf16.mxu0 %v726
    %924 = vmatpush1.bf16.msra.mxu0 %v725
    %925 = vmatprep.subr.bf16.mxu0 %v729
    %926 = vmatpush1.bf16.msra.mxu0 %v728
    %927 = vmatprep.subr.bf16.mxu0 %v732
    %928 = vmatpush1.bf16.msra.mxu0 %v731
    %929 = vmatprep.subr.bf16.mxu0 %v735
    %930 = vmatpush1.bf16.msra.mxu0 %v734
    %931 = vmatprep.subr.bf16.mxu0 0
    %932 = vmatpush1.bf16.msra.mxu0 0
    %933 = vmatprep.subr.bf16.mxu0 0
    %934 = vmatpush1.bf16.msra.mxu0 0
    %935 = vmatprep.subr.bf16.mxu0 0
    %936 = vmatpush1.bf16.msra.mxu0 0
    %937 = vmatprep.subr.bf16.mxu0 0
    %938 = vmatpush1.bf16.msra.mxu0 0
    %939 = vmatprep.subr.bf16.mxu0 0
    %940 = vmatpush1.bf16.msra.mxu0 0
    %941 = vmatprep.subr.bf16.mxu0 0
    %942 = vmatpush1.bf16.msra.mxu0 0
    %943 = vmatprep.subr.bf16.mxu0 0
    %944 = vmatpush1.bf16.msra.mxu0 0
    %945 = vmatprep.subr.bf16.mxu0 0
    %946 = vmatpush1.bf16.msra.mxu0 0
    %947 = vmatprep.mubr.bf16.mxu0 0
    %948 = vmatmul.mubr.bf16.gmra.mrb[0].mxu0 %v914
    %v949 = vpop.f32.mrb[0].mxu0
    %v950 = vadd.f32 0.0, %v949
    %v951 = vpop.f32.mrb[0].mxu0
    %v952 = vadd.f32 0.0, %v951
    %v953 = vpop.f32.mrb[0].mxu0
    %v954 = vadd.f32 0.0, %v953
    %v955 = vpop.f32.mrb[0].mxu0
    %v956 = vadd.f32 0.0, %v955
    %957 = vdwg.mxu0
    %958 = vmatprep.subr.bf16.mxu0 0
    %959 = vmatpush1.bf16.msra.mxu0 %v715
    %960 = vmatprep.subr.bf16.mxu0 0
    %961 = vmatpush1.bf16.msra.mxu0 %v718
    %962 = vmatprep.subr.bf16.mxu0 0
    %963 = vmatpush1.bf16.msra.mxu0 %v721
    %964 = vmatprep.subr.bf16.mxu0 0
    %965 = vmatpush1.bf16.msra.mxu0 %v724
    %966 = vmatprep.subr.bf16.mxu0 0
    %967 = vmatpush1.bf16.msra.mxu0 %v727
    %968 = vmatprep.subr.bf16.mxu0 0
    %969 = vmatpush1.bf16.msra.mxu0 %v730
    %970 = vmatprep.subr.bf16.mxu0 0
    %971 = vmatpush1.bf16.msra.mxu0 %v733
    %972 = vmatprep.subr.bf16.mxu0 0
    %973 = vmatpush1.bf16.msra.mxu0 %v736
    %974 = vmatprep.subr.bf16.mxu0 0
    %975 = vmatpush1.bf16.msra.mxu0 0
    %976 = vmatprep.subr.bf16.mxu0 0
    %977 = vmatpush1.bf16.msra.mxu0 0
    %978 = vmatprep.subr.bf16.mxu0 0
    %979 = vmatpush1.bf16.msra.mxu0 0
    %980 = vmatprep.subr.bf16.mxu0 0
    %981 = vmatpush1.bf16.msra.mxu0 0
    %982 = vmatprep.subr.bf16.mxu0 0
    %983 = vmatpush1.bf16.msra.mxu0 0
    %984 = vmatprep.subr.bf16.mxu0 0
    %985 = vmatpush1.bf16.msra.mxu0 0
    %986 = vmatprep.subr.bf16.mxu0 0
    %987 = vmatpush1.bf16.msra.mxu0 0
    %988 = vmatprep.subr.bf16.mxu0 0
    %989 = vmatpush1.bf16.msra.mxu0 0
    %990 = vmatprep.mubr.bf16.mxu0 0
    %991 = vmatmul.mubr.bf16.gmra.mrb[0].mxu0 %v914
    %v992 = vpop.f32.mrb[0].mxu0
    %v993 = vadd.f32 0.0, %v992
    %v994 = vpop.f32.mrb[0].mxu0
    %v995 = vpop.f32.mrb[0].mxu0
    %v996 = vadd.f32 0.0, %v995
    %v997 = vpop.f32.mrb[0].mxu0
    %998 = vdwg.mxu0
    %v999 = vadd.f32 %v908, %v950
    %v1000 = vadd.f32 %v911, %v954
    %v1001 = vxor.u32 %v999, 2147483648
    %v1002 = vxor.u32 %v1000, 2147483648
    %v1003 = vmul.f32 %v1001, 1.442695
    %v1004 = vpow.pop %v1003
    %v1005 = vmul.f32 %v1002, 1.442695
    %v1006 = vpow.pop %v1005
    %v1007 = vadd.f32 %v1004, 1.0
    %v1008 = vadd.f32 %v1006, 1.0
    %v1009 = vrcp.pop %v1007
    %v1010 = vmul.f32 1.0, %v1009
    %v1011 = vrcp.pop %v1008
    %v1012 = vmul.f32 1.0, %v1011
    %v1013 = vadd.f32 %v909, %v952
    %v1014 = vadd.f32 %v912, %v956
    %v1015 = vxor.u32 %v1013, 2147483648
    %v1016 = vxor.u32 %v1014, 2147483648
    %v1017 = vmul.f32 %v1015, 1.442695
    %v1018 = vpow.pop %v1017
    %v1019 = vmul.f32 %v1016, 1.442695
    %v1020 = vpow.pop %v1019
    %v1021 = vadd.f32 %v1018, 1.0
    %v1022 = vadd.f32 %v1020, 1.0
    %v1023 = vrcp.pop %v1021
    %v1024 = vmul.f32 1.0, %v1023
    %v1025 = vrcp.pop %v1022
    %v1026 = vmul.f32 1.0, %v1025
    %v1027 = vadd.f32 %v993, %v877
    %v1028 = vadd.f32 %v996, %v877
    %v1029 = vmul.f32 %v1010, %v1027
    %v1030 = vmul.f32 %v1012, %v1028
    %v1031 = vadd.f32 %v910, %v1029
    %v1032 = vadd.f32 %v913, %v1030
    %v1033 = vtanh.pop %v1031
    %v1034 = vtanh.pop %v1032
    %v1035 = vsub.f32 %v905, %v1033
    %v1036 = vsub.f32 %v906, %v1034
    %v1037 = vmul.f32 %v1024, %v1035
    %v1038 = vmul.f32 %v1026, %v1036
    %v1039 = vadd.f32 %v1033, %v1037
    %v1040 = vadd.f32 %v1034, %v1038
    %1041 = vst [vmem:[#allocation2] sm:$0xff] %v1039
    %1042 = vst [vmem:[#allocation2 + $0x8] sm:$0xff] %v1040
    %v1043 = vpack.c.bf16 %v1040, %v1039
    %v1045 = vunpack.c.l.b16 %v1043
    %v1046 = vunpack.c.h.b16 %v1043
    %v1047 = vpack.c.b16 %v1045, %v1045
    %v1048 = vpack.c.b16 %v1046, %v1046
    %s1051 = scalar_lea.vmem [#allocation13], 8
    %1052 = vst [vmem:[%s1051] sm:$0xf] %v1047
    %1053 = vst [vmem:[%s1051 + $0x4] sm:$0xf] %v1048
    %v1054 = vld [vmem:[#allocation2] sm:$0xff]
    %v1055 = vld [vmem:[#allocation2 + $0x8] sm:$0xff]
    %s1056 = scalar_lea.vmem [#allocation3], 96
    %v1057 = vld [vmem:[%s1056] sm:$0xff]
    %v1058 = vld [vmem:[%s1056 + $0x8] sm:$0xff]
    %v1059 = vld [vmem:[%s1056 + $0x10] sm:$0xff]
    %v1060 = vld [vmem:[%s1056 + $0x18] sm:$0xff]
    %v1061 = vld [vmem:[%s1056 + $0x20] sm:$0xff]
    %v1062 = vld [vmem:[%s1056 + $0x28] sm:$0xff]
    %v1063 = vpack.c.bf16 %v1055, %v1054
    %1064 = vmatprep.subr.bf16.mxu0 %v714
    %1065 = vmatpush1.bf16.msra.mxu0 %v713
    %1066 = vmatprep.subr.bf16.mxu0 %v717
    %1067 = vmatpush1.bf16.msra.mxu0 %v716
    %1068 = vmatprep.subr.bf16.mxu0 %v720
    %1069 = vmatpush1.bf16.msra.mxu0 %v719
    %1070 = vmatprep.subr.bf16.mxu0 %v723
    %1071 = vmatpush1.bf16.msra.mxu0 %v722
    %1072 = vmatprep.subr.bf16.mxu0 %v726
    %1073 = vmatpush1.bf16.msra.mxu0 %v725
    %1074 = vmatprep.subr.bf16.mxu0 %v729
    %1075 = vmatpush1.bf16.msra.mxu0 %v728
    %1076 = vmatprep.subr.bf16.mxu0 %v732
    %1077 = vmatpush1.bf16.msra.mxu0 %v731
    %1078 = vmatprep.subr.bf16.mxu0 %v735
    %1079 = vmatpush1.bf16.msra.mxu0 %v734
    %1080 = vmatprep.subr.bf16.mxu0 0
    %1081 = vmatpush1.bf16.msra.mxu0 0
    %1082 = vmatprep.subr.bf16.mxu0 0
    %1083 = vmatpush1.bf16.msra.mxu0 0
    %1084 = vmatprep.subr.bf16.mxu0 0
    %1085 = vmatpush1.bf16.msra.mxu0 0
    %1086 = vmatprep.subr.bf16.mxu0 0
    %1087 = vmatpush1.bf16.msra.mxu0 0
    %1088 = vmatprep.subr.bf16.mxu0 0
    %1089 = vmatpush1.bf16.msra.mxu0 0
    %1090 = vmatprep.subr.bf16.mxu0 0
    %1091 = vmatpush1.bf16.msra.mxu0 0
    %1092 = vmatprep.subr.bf16.mxu0 0
    %1093 = vmatpush1.bf16.msra.mxu0 0
    %1094 = vmatprep.subr.bf16.mxu0 0
    %1095 = vmatpush1.bf16.msra.mxu0 0
    %1096 = vmatprep.mubr.bf16.mxu0 0
    %1097 = vmatmul.mubr.bf16.gmra.mrb[0].mxu0 %v1063
    %v1098 = vpop.f32.mrb[0].mxu0
    %v1099 = vadd.f32 0.0, %v1098
    %v1100 = vpop.f32.mrb[0].mxu0
    %v1101 = vadd.f32 0.0, %v1100
    %v1102 = vpop.f32.mrb[0].mxu0
    %v1103 = vadd.f32 0.0, %v1102
    %v1104 = vpop.f32.mrb[0].mxu0
    %v1105 = vadd.f32 0.0, %v1104
    %1106 = vdwg.mxu0
    %1107 = vmatprep.subr.bf16.mxu0 0
    %1108 = vmatpush1.bf16.msra.mxu0 %v715
    %1109 = vmatprep.subr.bf16.mxu0 0
    %1110 = vmatpush1.bf16.msra.mxu0 %v718
    %1111 = vmatprep.subr.bf16.mxu0 0
    %1112 = vmatpush1.bf16.msra.mxu0 %v721
    %1113 = vmatprep.subr.bf16.mxu0 0
    %1114 = vmatpush1.bf16.msra.mxu0 %v724
    %1115 = vmatprep.subr.bf16.mxu0 0
    %1116 = vmatpush1.bf16.msra.mxu0 %v727
    %1117 = vmatprep.subr.bf16.mxu0 0
    %1118 = vmatpush1.bf16.msra.mxu0 %v730
    %1119 = vmatprep.subr.bf16.mxu0 0
    %1120 = vmatpush1.bf16.msra.mxu0 %v733
    %1121 = vmatprep.subr.bf16.mxu0 0
    %1122 = vmatpush1.bf16.msra.mxu0 %v736
    %1123 = vmatprep.subr.bf16.mxu0 0
    %1124 = vmatpush1.bf16.msra.mxu0 0
    %1125 = vmatprep.subr.bf16.mxu0 0
    %1126 = vmatpush1.bf16.msra.mxu0 0
    %1127 = vmatprep.subr.bf16.mxu0 0
    %1128 = vmatpush1.bf16.msra.mxu0 0
    %1129 = vmatprep.subr.bf16.mxu0 0
    %1130 = vmatpush1.bf16.msra.mxu0 0
    %1131 = vmatprep.subr.bf16.mxu0 0
    %1132 = vmatpush1.bf16.msra.mxu0 0
    %1133 = vmatprep.subr.bf16.mxu0 0
    %1134 = vmatpush1.bf16.msra.mxu0 0
    %1135 = vmatprep.subr.bf16.mxu0 0
    %1136 = vmatpush1.bf16.msra.mxu0 0
    %1137 = vmatprep.subr.bf16.mxu0 0
    %1138 = vmatpush1.bf16.msra.mxu0 0
    %1139 = vmatprep.mubr.bf16.mxu0 0
    %1140 = vmatmul.mubr.bf16.gmra.mrb[0].mxu0 %v1063
    %v1141 = vpop.f32.mrb[0].mxu0
    %v1142 = vadd.f32 0.0, %v1141
    %v1143 = vpop.f32.mrb[0].mxu0
    %v1144 = vpop.f32.mrb[0].mxu0
    %v1145 = vadd.f32 0.0, %v1144
    %v1146 = vpop.f32.mrb[0].mxu0
    %1147 = vdwg.mxu0
    %v1148 = vadd.f32 %v1057, %v1099
    %v1149 = vadd.f32 %v1060, %v1103
    %v1150 = vxor.u32 %v1148, 2147483648
    %v1151 = vxor.u32 %v1149, 2147483648
    %v1152 = vmul.f32 %v1150, 1.442695
    %v1153 = vpow.pop %v1152
    %v1154 = vmul.f32 %v1151, 1.442695
    %v1155 = vpow.pop %v1154
    %v1156 = vadd.f32 %v1153, 1.0
    %v1157 = vadd.f32 %v1155, 1.0
    %v1158 = vrcp.pop %v1156
    %v1159 = vmul.f32 1.0, %v1158
    %v1160 = vrcp.pop %v1157
    %v1161 = vmul.f32 1.0, %v1160
    %v1162 = vadd.f32 %v1058, %v1101
    %v1163 = vadd.f32 %v1061, %v1105
    %v1164 = vxor.u32 %v1162, 2147483648
    %v1165 = vxor.u32 %v1163, 2147483648
    %v1166 = vmul.f32 %v1164, 1.442695
    %v1167 = vpow.pop %v1166
    %v1168 = vmul.f32 %v1165, 1.442695
    %v1169 = vpow.pop %v1168
    %v1170 = vadd.f32 %v1167, 1.0
    %v1171 = vadd.f32 %v1169, 1.0
    %v1172 = vrcp.pop %v1170
    %v1173 = vmul.f32 1.0, %v1172
    %v1174 = vrcp.pop %v1171
    %v1175 = vmul.f32 1.0, %v1174
    %v1176 = vadd.f32 %v1142, %v877
    %v1177 = vadd.f32 %v1145, %v877
    %v1178 = vmul.f32 %v1159, %v1176
    %v1179 = vmul.f32 %v1161, %v1177
    %v1180 = vadd.f32 %v1059, %v1178
    %v1181 = vadd.f32 %v1062, %v1179
    %v1182 = vtanh.pop %v1180
    %v1183 = vtanh.pop %v1181
    %v1184 = vsub.f32 %v1054, %v1182
    %v1185 = vsub.f32 %v1055, %v1183
    %v1186 = vmul.f32 %v1173, %v1184
    %v1187 = vmul.f32 %v1175, %v1185
    %v1188 = vadd.f32 %v1182, %v1186
    %v1189 = vadd.f32 %v1183, %v1187
    %1190 = vst [vmem:[#allocation2] sm:$0xff] %v1188
    %1191 = vst [vmem:[#allocation2 + $0x8] sm:$0xff] %v1189
    %v1192 = vpack.c.bf16 %v1189, %v1188
    %v1194 = vunpack.c.l.b16 %v1192
    %v1195 = vunpack.c.h.b16 %v1192
    %v1196 = vpack.c.b16 %v1194, %v1194
    %v1197 = vpack.c.b16 %v1195, %v1195
    %s1200 = scalar_lea.vmem [#allocation13], 16
    %1201 = vst [vmem:[%s1200] sm:$0xf] %v1196
    %1202 = vst [vmem:[%s1200 + $0x4] sm:$0xf] %v1197
    %v1203 = vld [vmem:[#allocation2] sm:$0xff]
    %v1204 = vld [vmem:[#allocation2 + $0x8] sm:$0xff]
    %s1205 = scalar_lea.vmem [#allocation3], 144
    %v1206 = vld [vmem:[%s1205] sm:$0xff]
    %v1207 = vld [vmem:[%s1205 + $0x8] sm:$0xff]
    %v1208 = vld [vmem:[%s1205 + $0x10] sm:$0xff]
    %v1209 = vld [vmem:[%s1205 + $0x18] sm:$0xff]
    %v1210 = vld [vmem:[%s1205 + $0x20] sm:$0xff]
    %v1211 = vld [vmem:[%s1205 + $0x28] sm:$0xff]
    %v1212 = vpack.c.bf16 %v1204, %v1203
    %1213 = vmatprep.subr.bf16.mxu0 %v714
    %1214 = vmatpush1.bf16.msra.mxu0 %v713
    %1215 = vmatprep.subr.bf16.mxu0 %v717
    %1216 = vmatpush1.bf16.msra.mxu0 %v716
    %1217 = vmatprep.subr.bf16.mxu0 %v720
    %1218 = vmatpush1.bf16.msra.mxu0 %v719
    %1219 = vmatprep.subr.bf16.mxu0 %v723
    %1220 = vmatpush1.bf16.msra.mxu0 %v722
    %1221 = vmatprep.subr.bf16.mxu0 %v726
    %1222 = vmatpush1.bf16.msra.mxu0 %v725
    %1223 = vmatprep.subr.bf16.mxu0 %v729
    %1224 = vmatpush1.bf16.msra.mxu0 %v728
    %1225 = vmatprep.subr.bf16.mxu0 %v732
    %1226 = vmatpush1.bf16.msra.mxu0 %v731
    %1227 = vmatprep.subr.bf16.mxu0 %v735
    %1228 = vmatpush1.bf16.msra.mxu0 %v734
    %1229 = vmatprep.subr.bf16.mxu0 0
    %1230 = vmatpush1.bf16.msra.mxu0 0
    %1231 = vmatprep.subr.bf16.mxu0 0
    %1232 = vmatpush1.bf16.msra.mxu0 0
    %1233 = vmatprep.subr.bf16.mxu0 0
    %1234 = vmatpush1.bf16.msra.mxu0 0
    %1235 = vmatprep.subr.bf16.mxu0 0
    %1236 = vmatpush1.bf16.msra.mxu0 0
    %1237 = vmatprep.subr.bf16.mxu0 0
    %1238 = vmatpush1.bf16.msra.mxu0 0
    %1239 = vmatprep.subr.bf16.mxu0 0
    %1240 = vmatpush1.bf16.msra.mxu0 0
    %1241 = vmatprep.subr.bf16.mxu0 0
    %1242 = vmatpush1.bf16.msra.mxu0 0
    %1243 = vmatprep.subr.bf16.mxu0 0
    %1244 = vmatpush1.bf16.msra.mxu0 0
    %1245 = vmatprep.mubr.bf16.mxu0 0
    %1246 = vmatmul.mubr.bf16.gmra.mrb[0].mxu0 %v1212
    %v1247 = vpop.f32.mrb[0].mxu0
    %v1248 = vadd.f32 0.0, %v1247
    %v1249 = vpop.f32.mrb[0].mxu0
    %v1250 = vadd.f32 0.0, %v1249
    %v1251 = vpop.f32.mrb[0].mxu0
    %v1252 = vadd.f32 0.0, %v1251
    %v1253 = vpop.f32.mrb[0].mxu0
    %v1254 = vadd.f32 0.0, %v1253
    %1255 = vdwg.mxu0
    %1256 = vmatprep.subr.bf16.mxu0 0
    %1257 = vmatpush1.bf16.msra.mxu0 %v715
    %1258 = vmatprep.subr.bf16.mxu0 0
    %1259 = vmatpush1.bf16.msra.mxu0 %v718
    %1260 = vmatprep.subr.bf16.mxu0 0
    %1261 = vmatpush1.bf16.msra.mxu0 %v721
    %1262 = vmatprep.subr.bf16.mxu0 0
    %1263 = vmatpush1.bf16.msra.mxu0 %v724
    %1264 = vmatprep.subr.bf16.mxu0 0
    %1265 = vmatpush1.bf16.msra.mxu0 %v727
    %1266 = vmatprep.subr.bf16.mxu0 0
    %1267 = vmatpush1.bf16.msra.mxu0 %v730
    %1268 = vmatprep.subr.bf16.mxu0 0
    %1269 = vmatpush1.bf16.msra.mxu0 %v733
    %1270 = vmatprep.subr.bf16.mxu0 0
    %1271 = vmatpush1.bf16.msra.mxu0 %v736
    %1272 = vmatprep.subr.bf16.mxu0 0
    %1273 = vmatpush1.bf16.msra.mxu0 0
    %1274 = vmatprep.subr.bf16.mxu0 0
    %1275 = vmatpush1.bf16.msra.mxu0 0
    %1276 = vmatprep.subr.bf16.mxu0 0
    %1277 = vmatpush1.bf16.msra.mxu0 0
    %1278 = vmatprep.subr.bf16.mxu0 0
    %1279 = vmatpush1.bf16.msra.mxu0 0
    %1280 = vmatprep.subr.bf16.mxu0 0
    %1281 = vmatpush1.bf16.msra.mxu0 0
    %1282 = vmatprep.subr.bf16.mxu0 0
    %1283 = vmatpush1.bf16.msra.mxu0 0
    %1284 = vmatprep.subr.bf16.mxu0 0
    %1285 = vmatpush1.bf16.msra.mxu0 0
    %1286 = vmatprep.subr.bf16.mxu0 0
    %1287 = vmatpush1.bf16.msra.mxu0 0
    %1288 = vmatprep.mubr.bf16.mxu0 0
    %1289 = vmatmul.mubr.bf16.gmra.mrb[0].mxu0 %v1212
    %v1290 = vpop.f32.mrb[0].mxu0
    %v1291 = vadd.f32 0.0, %v1290
    %v1292 = vpop.f32.mrb[0].mxu0
    %v1293 = vpop.f32.mrb[0].mxu0
    %v1294 = vadd.f32 0.0, %v1293
    %v1295 = vpop.f32.mrb[0].mxu0
    %1296 = vdwg.mxu0
    %v1297 = vadd.f32 %v1206, %v1248
    %v1298 = vadd.f32 %v1209, %v1252
    %v1299 = vxor.u32 %v1297, 2147483648
    %v1300 = vxor.u32 %v1298, 2147483648
    %v1301 = vmul.f32 %v1299, 1.442695
    %v1302 = vpow.pop %v1301
    %v1303 = vmul.f32 %v1300, 1.442695
    %v1304 = vpow.pop %v1303
    %v1305 = vadd.f32 %v1302, 1.0
    %v1306 = vadd.f32 %v1304, 1.0
    %v1307 = vrcp.pop %v1305
    %v1308 = vmul.f32 1.0, %v1307
    %v1309 = vrcp.pop %v1306
    %v1310 = vmul.f32 1.0, %v1309
    %v1311 = vadd.f32 %v1207, %v1250
    %v1312 = vadd.f32 %v1210, %v1254
    %v1313 = vxor.u32 %v1311, 2147483648
    %v1314 = vxor.u32 %v1312, 2147483648
    %v1315 = vmul.f32 %v1313, 1.442695
    %v1316 = vpow.pop %v1315
    %v1317 = vmul.f32 %v1314, 1.442695
    %v1318 = vpow.pop %v1317
    %v1319 = vadd.f32 %v1316, 1.0
    %v1320 = vadd.f32 %v1318, 1.0
    %v1321 = vrcp.pop %v1319
    %v1322 = vmul.f32 1.0, %v1321
    %v1323 = vrcp.pop %v1320
    %v1324 = vmul.f32 1.0, %v1323
    %v1325 = vadd.f32 %v1291, %v877
    %v1326 = vadd.f32 %v1294, %v877
    %v1327 = vmul.f32 %v1308, %v1325
    %v1328 = vmul.f32 %v1310, %v1326
    %v1329 = vadd.f32 %v1208, %v1327
    %v1330 = vadd.f32 %v1211, %v1328
    %v1331 = vtanh.pop %v1329
    %v1332 = vtanh.pop %v1330
    %v1333 = vsub.f32 %v1203, %v1331
    %v1334 = vsub.f32 %v1204, %v1332
    %v1335 = vmul.f32 %v1322, %v1333
    %v1336 = vmul.f32 %v1324, %v1334
    %v1337 = vadd.f32 %v1331, %v1335
    %v1338 = vadd.f32 %v1332, %v1336
    %1339 = vst [vmem:[#allocation2] sm:$0xff] %v1337
    %1340 = vst [vmem:[#allocation2 + $0x8] sm:$0xff] %v1338
    %v1341 = vpack.c.bf16 %v1338, %v1337
    %v1343 = vunpack.c.l.b16 %v1341
    %v1344 = vunpack.c.h.b16 %v1341
    %v1345 = vpack.c.b16 %v1343, %v1343
    %v1346 = vpack.c.b16 %v1344, %v1344
    %s1349 = scalar_lea.vmem [#allocation13], 24
    %1350 = vst [vmem:[%s1349] sm:$0xf] %v1345
    %1351 = vst [vmem:[%s1349 + $0x4] sm:$0xf] %v1346
    %v1352 = vld [vmem:[#allocation2] sm:$0xff]
    %v1353 = vld [vmem:[#allocation2 + $0x8] sm:$0xff]
    %s1354 = scalar_lea.vmem [#allocation3], 192
    %v1355 = vld [vmem:[%s1354] sm:$0xff]
    %v1356 = vld [vmem:[%s1354 + $0x8] sm:$0xff]
    %v1357 = vld [vmem:[%s1354 + $0x10] sm:$0xff]
    %v1358 = vld [vmem:[%s1354 + $0x18] sm:$0xff]
    %v1359 = vld [vmem:[%s1354 + $0x20] sm:$0xff]
    %v1360 = vld [vmem:[%s1354 + $0x28] sm:$0xff]
    %v1361 = vpack.c.bf16 %v1353, %v1352
    %1362 = vmatprep.subr.bf16.mxu0 %v714
    %1363 = vmatpush1.bf16.msra.mxu0 %v713
    %1364 = vmatprep.subr.bf16.mxu0 %v717
    %1365 = vmatpush1.bf16.msra.mxu0 %v716
    %1366 = vmatprep.subr.bf16.mxu0 %v720
    %1367 = vmatpush1.bf16.msra.mxu0 %v719
    %1368 = vmatprep.subr.bf16.mxu0 %v723
    %1369 = vmatpush1.bf16.msra.mxu0 %v722
    %1370 = vmatprep.subr.bf16.mxu0 %v726
    %1371 = vmatpush1.bf16.msra.mxu0 %v725
    %1372 = vmatprep.subr.bf16.mxu0 %v729
    %1373 = vmatpush1.bf16.msra.mxu0 %v728
    %1374 = vmatprep.subr.bf16.mxu0 %v732
    %1375 = vmatpush1.bf16.msra.mxu0 %v731
    %1376 = vmatprep.subr.bf16.mxu0 %v735
    %1377 = vmatpush1.bf16.msra.mxu0 %v734
    %1378 = vmatprep.subr.bf16.mxu0 0
    %1379 = vmatpush1.bf16.msra.mxu0 0
    %1380 = vmatprep.subr.bf16.mxu0 0
    %1381 = vmatpush1.bf16.msra.mxu0 0
    %1382 = vmatprep.subr.bf16.mxu0 0
    %1383 = vmatpush1.bf16.msra.mxu0 0
    %1384 = vmatprep.subr.bf16.mxu0 0
    %1385 = vmatpush1.bf16.msra.mxu0 0
    %1386 = vmatprep.subr.bf16.mxu0 0
    %1387 = vmatpush1.bf16.msra.mxu0 0
    %1388 = vmatprep.subr.bf16.mxu0 0
    %1389 = vmatpush1.bf16.msra.mxu0 0
    %1390 = vmatprep.subr.bf16.mxu0 0
    %1391 = vmatpush1.bf16.msra.mxu0 0
    %1392 = vmatprep.subr.bf16.mxu0 0
    %1393 = vmatpush1.bf16.msra.mxu0 0
    %1394 = vmatprep.mubr.bf16.mxu0 0
    %1395 = vmatmul.mubr.bf16.gmra.mrb[0].mxu0 %v1361
    %v1396 = vpop.f32.mrb[0].mxu0
    %v1397 = vadd.f32 0.0, %v1396
    %v1398 = vpop.f32.mrb[0].mxu0
    %v1399 = vadd.f32 0.0, %v1398
    %v1400 = vpop.f32.mrb[0].mxu0
    %v1401 = vadd.f32 0.0, %v1400
    %v1402 = vpop.f32.mrb[0].mxu0
    %v1403 = vadd.f32 0.0, %v1402
    %1404 = vdwg.mxu0
    %1405 = vmatprep.subr.bf16.mxu0 0
    %1406 = vmatpush1.bf16.msra.mxu0 %v715
    %1407 = vmatprep.subr.bf16.mxu0 0
    %1408 = vmatpush1.bf16.msra.mxu0 %v718
    %1409 = vmatprep.subr.bf16.mxu0 0
    %1410 = vmatpush1.bf16.msra.mxu0 %v721
    %1411 = vmatprep.subr.bf16.mxu0 0
    %1412 = vmatpush1.bf16.msra.mxu0 %v724
    %1413 = vmatprep.subr.bf16.mxu0 0
    %1414 = vmatpush1.bf16.msra.mxu0 %v727
    %1415 = vmatprep.subr.bf16.mxu0 0
    %1416 = vmatpush1.bf16.msra.mxu0 %v730
    %1417 = vmatprep.subr.bf16.mxu0 0
    %1418 = vmatpush1.bf16.msra.mxu0 %v733
    %1419 = vmatprep.subr.bf16.mxu0 0
    %1420 = vmatpush1.bf16.msra.mxu0 %v736
    %1421 = vmatprep.subr.bf16.mxu0 0
    %1422 = vmatpush1.bf16.msra.mxu0 0
    %1423 = vmatprep.subr.bf16.mxu0 0
    %1424 = vmatpush1.bf16.msra.mxu0 0
    %1425 = vmatprep.subr.bf16.mxu0 0
    %1426 = vmatpush1.bf16.msra.mxu0 0
    %1427 = vmatprep.subr.bf16.mxu0 0
    %1428 = vmatpush1.bf16.msra.mxu0 0
    %1429 = vmatprep.subr.bf16.mxu0 0
    %1430 = vmatpush1.bf16.msra.mxu0 0
    %1431 = vmatprep.subr.bf16.mxu0 0
    %1432 = vmatpush1.bf16.msra.mxu0 0
    %1433 = vmatprep.subr.bf16.mxu0 0
    %1434 = vmatpush1.bf16.msra.mxu0 0
    %1435 = vmatprep.subr.bf16.mxu0 0
    %1436 = vmatpush1.bf16.msra.mxu0 0
    %1437 = vmatprep.mubr.bf16.mxu0 0
    %1438 = vmatmul.mubr.bf16.gmra.mrb[0].mxu0 %v1361
    %v1439 = vpop.f32.mrb[0].mxu0
    %v1440 = vadd.f32 0.0, %v1439
    %v1441 = vpop.f32.mrb[0].mxu0
    %v1442 = vpop.f32.mrb[0].mxu0
    %v1443 = vadd.f32 0.0, %v1442
    %v1444 = vpop.f32.mrb[0].mxu0
    %1445 = vdwg.mxu0
    %v1446 = vadd.f32 %v1355, %v1397
    %v1447 = vadd.f32 %v1358, %v1401
    %v1448 = vxor.u32 %v1446, 2147483648
    %v1449 = vxor.u32 %v1447, 2147483648
    %v1450 = vmul.f32 %v1448, 1.442695
    %v1451 = vpow.pop %v1450
    %v1452 = vmul.f32 %v1449, 1.442695
    %v1453 = vpow.pop %v1452
    %v1454 = vadd.f32 %v1451, 1.0
    %v1455 = vadd.f32 %v1453, 1.0
    %v1456 = vrcp.pop %v1454
    %v1457 = vmul.f32 1.0, %v1456
    %v1458 = vrcp.pop %v1455
    %v1459 = vmul.f32 1.0, %v1458
    %v1460 = vadd.f32 %v1356, %v1399
    %v1461 = vadd.f32 %v1359, %v1403
    %v1462 = vxor.u32 %v1460, 2147483648
    %v1463 = vxor.u32 %v1461, 2147483648
    %v1464 = vmul.f32 %v1462, 1.442695
    %v1465 = vpow.pop %v1464
    %v1466 = vmul.f32 %v1463, 1.442695
    %v1467 = vpow.pop %v1466
    %v1468 = vadd.f32 %v1465, 1.0
    %v1469 = vadd.f32 %v1467, 1.0
    %v1470 = vrcp.pop %v1468
    %v1471 = vmul.f32 1.0, %v1470
    %v1472 = vrcp.pop %v1469
    %v1473 = vmul.f32 1.0, %v1472
    %v1474 = vadd.f32 %v1440, %v877
    %v1475 = vadd.f32 %v1443, %v877
    %v1476 = vmul.f32 %v1457, %v1474
    %v1477 = vmul.f32 %v1459, %v1475
    %v1478 = vadd.f32 %v1357, %v1476
    %v1479 = vadd.f32 %v1360, %v1477
    %v1480 = vtanh.pop %v1478
    %v1481 = vtanh.pop %v1479
    %v1482 = vsub.f32 %v1352, %v1480
    %v1483 = vsub.f32 %v1353, %v1481
    %v1484 = vmul.f32 %v1471, %v1482
    %v1485 = vmul.f32 %v1473, %v1483
    %v1486 = vadd.f32 %v1480, %v1484
    %v1487 = vadd.f32 %v1481, %v1485
    %1488 = vst [vmem:[#allocation2] sm:$0xff] %v1486
    %1489 = vst [vmem:[#allocation2 + $0x8] sm:$0xff] %v1487
    %v1490 = vpack.c.bf16 %v1487, %v1486
    %v1492 = vunpack.c.l.b16 %v1490
    %v1493 = vunpack.c.h.b16 %v1490
    %v1494 = vpack.c.b16 %v1492, %v1492
    %v1495 = vpack.c.b16 %v1493, %v1493
    %s1498 = scalar_lea.vmem [#allocation13], 32
    %1499 = vst [vmem:[%s1498] sm:$0xf] %v1494
    %1500 = vst [vmem:[%s1498 + $0x4] sm:$0xf] %v1495
    %v1501 = vld [vmem:[#allocation2] sm:$0xff]
    %v1502 = vld [vmem:[#allocation2 + $0x8] sm:$0xff]
    %s1503 = scalar_lea.vmem [#allocation3], 240
    %v1504 = vld [vmem:[%s1503] sm:$0xff]
    %v1505 = vld [vmem:[%s1503 + $0x8] sm:$0xff]
    %v1506 = vld [vmem:[%s1503 + $0x10] sm:$0xff]
    %v1507 = vld [vmem:[%s1503 + $0x18] sm:$0xff]
    %v1508 = vld [vmem:[%s1503 + $0x20] sm:$0xff]
    %v1509 = vld [vmem:[%s1503 + $0x28] sm:$0xff]
    %v1510 = vpack.c.bf16 %v1502, %v1501
    %1511 = vmatprep.subr.bf16.mxu0 %v714
    %1512 = vmatpush1.bf16.msra.mxu0 %v713
    %1513 = vmatprep.subr.bf16.mxu0 %v717
    %1514 = vmatpush1.bf16.msra.mxu0 %v716
    %1515 = vmatprep.subr.bf16.mxu0 %v720
    %1516 = vmatpush1.bf16.msra.mxu0 %v719
    %1517 = vmatprep.subr.bf16.mxu0 %v723
    %1518 = vmatpush1.bf16.msra.mxu0 %v722
    %1519 = vmatprep.subr.bf16.mxu0 %v726
    %1520 = vmatpush1.bf16.msra.mxu0 %v725
    %1521 = vmatprep.subr.bf16.mxu0 %v729
    %1522 = vmatpush1.bf16.msra.mxu0 %v728
    %1523 = vmatprep.subr.bf16.mxu0 %v732
    %1524 = vmatpush1.bf16.msra.mxu0 %v731
    %1525 = vmatprep.subr.bf16.mxu0 %v735
    %1526 = vmatpush1.bf16.msra.mxu0 %v734
    %1527 = vmatprep.subr.bf16.mxu0 0
    %1528 = vmatpush1.bf16.msra.mxu0 0
    %1529 = vmatprep.subr.bf16.mxu0 0
    %1530 = vmatpush1.bf16.msra.mxu0 0
    %1531 = vmatprep.subr.bf16.mxu0 0
    %1532 = vmatpush1.bf16.msra.mxu0 0
    %1533 = vmatprep.subr.bf16.mxu0 0
    %1534 = vmatpush1.bf16.msra.mxu0 0
    %1535 = vmatprep.subr.bf16.mxu0 0
    %1536 = vmatpush1.bf16.msra.mxu0 0
    %1537 = vmatprep.subr.bf16.mxu0 0
    %1538 = vmatpush1.bf16.msra.mxu0 0
    %1539 = vmatprep.subr.bf16.mxu0 0
    %1540 = vmatpush1.bf16.msra.mxu0 0
    %1541 = vmatprep.subr.bf16.mxu0 0
    %1542 = vmatpush1.bf16.msra.mxu0 0
    %1543 = vmatprep.mubr.bf16.mxu0 0
    %1544 = vmatmul.mubr.bf16.gmra.mrb[0].mxu0 %v1510
    %v1545 = vpop.f32.mrb[0].mxu0
    %v1546 = vadd.f32 0.0, %v1545
    %v1547 = vpop.f32.mrb[0].mxu0
    %v1548 = vadd.f32 0.0, %v1547
    %v1549 = vpop.f32.mrb[0].mxu0
    %v1550 = vadd.f32 0.0, %v1549
    %v1551 = vpop.f32.mrb[0].mxu0
    %v1552 = vadd.f32 0.0, %v1551
    %1553 = vdwg.mxu0
    %1554 = vmatprep.subr.bf16.mxu0 0
    %1555 = vmatpush1.bf16.msra.mxu0 %v715
    %1556 = vmatprep.subr.bf16.mxu0 0
    %1557 = vmatpush1.bf16.msra.mxu0 %v718
    %1558 = vmatprep.subr.bf16.mxu0 0
    %1559 = vmatpush1.bf16.msra.mxu0 %v721
    %1560 = vmatprep.subr.bf16.mxu0 0
    %1561 = vmatpush1.bf16.msra.mxu0 %v724
    %1562 = vmatprep.subr.bf16.mxu0 0
    %1563 = vmatpush1.bf16.msra.mxu0 %v727
    %1564 = vmatprep.subr.bf16.mxu0 0
    %1565 = vmatpush1.bf16.msra.mxu0 %v730
    %1566 = vmatprep.subr.bf16.mxu0 0
    %1567 = vmatpush1.bf16.msra.mxu0 %v733
    %1568 = vmatprep.subr.bf16.mxu0 0
    %1569 = vmatpush1.bf16.msra.mxu0 %v736
    %1570 = vmatprep.subr.bf16.mxu0 0
    %1571 = vmatpush1.bf16.msra.mxu0 0
    %1572 = vmatprep.subr.bf16.mxu0 0
    %1573 = vmatpush1.bf16.msra.mxu0 0
    %1574 = vmatprep.subr.bf16.mxu0 0
    %1575 = vmatpush1.bf16.msra.mxu0 0
    %1576 = vmatprep.subr.bf16.mxu0 0
    %1577 = vmatpush1.bf16.msra.mxu0 0
    %1578 = vmatprep.subr.bf16.mxu0 0
    %1579 = vmatpush1.bf16.msra.mxu0 0
    %1580 = vmatprep.subr.bf16.mxu0 0
    %1581 = vmatpush1.bf16.msra.mxu0 0
    %1582 = vmatprep.subr.bf16.mxu0 0
    %1583 = vmatpush1.bf16.msra.mxu0 0
    %1584 = vmatprep.subr.bf16.mxu0 0
    %1585 = vmatpush1.bf16.msra.mxu0 0
    %1586 = vmatprep.mubr.bf16.mxu0 0
    %1587 = vmatmul.mubr.bf16.gmra.mrb[0].mxu0 %v1510
    %v1588 = vpop.f32.mrb[0].mxu0
    %v1589 = vadd.f32 0.0, %v1588
    %v1590 = vpop.f32.mrb[0].mxu0
    %v1591 = vpop.f32.mrb[0].mxu0
    %v1592 = vadd.f32 0.0, %v1591
    %v1593 = vpop.f32.mrb[0].mxu0
    %1594 = vdwg.mxu0
    %v1595 = vadd.f32 %v1504, %v1546
    %v1596 = vadd.f32 %v1507, %v1550
    %v1597 = vxor.u32 %v1595, 2147483648
    %v1598 = vxor.u32 %v1596, 2147483648
    %v1599 = vmul.f32 %v1597, 1.442695
    %v1600 = vpow.pop %v1599
    %v1601 = vmul.f32 %v1598, 1.442695
    %v1602 = vpow.pop %v1601
    %v1603 = vadd.f32 %v1600, 1.0
    %v1604 = vadd.f32 %v1602, 1.0
    %v1605 = vrcp.pop %v1603
    %v1606 = vmul.f32 1.0, %v1605
    %v1607 = vrcp.pop %v1604
    %v1608 = vmul.f32 1.0, %v1607
    %v1609 = vadd.f32 %v1505, %v1548
    %v1610 = vadd.f32 %v1508, %v1552
    %v1611 = vxor.u32 %v1609, 2147483648
    %v1612 = vxor.u32 %v1610, 2147483648
    %v1613 = vmul.f32 %v1611, 1.442695
    %v1614 = vpow.pop %v1613
    %v1615 = vmul.f32 %v1612, 1.442695
    %v1616 = vpow.pop %v1615
    %v1617 = vadd.f32 %v1614, 1.0
    %v1618 = vadd.f32 %v1616, 1.0
    %v1619 = vrcp.pop %v1617
    %v1620 = vmul.f32 1.0, %v1619
    %v1621 = vrcp.pop %v1618
    %v1622 = vmul.f32 1.0, %v1621
    %v1623 = vadd.f32 %v1589, %v877
    %v1624 = vadd.f32 %v1592, %v877
    %v1625 = vmul.f32 %v1606, %v1623
    %v1626 = vmul.f32 %v1608, %v1624
    %v1627 = vadd.f32 %v1506, %v1625
    %v1628 = vadd.f32 %v1509, %v1626
    %v1629 = vtanh.pop %v1627
    %v1630 = vtanh.pop %v1628
    %v1631 = vsub.f32 %v1501, %v1629
    %v1632 = vsub.f32 %v1502, %v1630
    %v1633 = vmul.f32 %v1620, %v1631
    %v1634 = vmul.f32 %v1622, %v1632
    %v1635 = vadd.f32 %v1629, %v1633
    %v1636 = vadd.f32 %v1630, %v1634
    %1637 = vst [vmem:[#allocation2] sm:$0xff] %v1635
    %1638 = vst [vmem:[#allocation2 + $0x8] sm:$0xff] %v1636
    %v1639 = vpack.c.bf16 %v1636, %v1635
    %v1641 = vunpack.c.l.b16 %v1639
    %v1642 = vunpack.c.h.b16 %v1639
    %v1643 = vpack.c.b16 %v1641, %v1641
    %v1644 = vpack.c.b16 %v1642, %v1642
    %s1647 = scalar_lea.vmem [#allocation13], 40
    %1648 = vst [vmem:[%s1647] sm:$0xf] %v1643
    %1649 = vst [vmem:[%s1647 + $0x4] sm:$0xf] %v1644
    %v1650 = vld [vmem:[#allocation2] sm:$0xff]
    %v1651 = vld [vmem:[#allocation2 + $0x8] sm:$0xff]
    %s1652 = scalar_lea.vmem [#allocation3], 288
    %v1653 = vld [vmem:[%s1652] sm:$0xff]
    %v1654 = vld [vmem:[%s1652 + $0x8] sm:$0xff]
    %v1655 = vld [vmem:[%s1652 + $0x10] sm:$0xff]
    %v1656 = vld [vmem:[%s1652 + $0x18] sm:$0xff]
    %v1657 = vld [vmem:[%s1652 + $0x20] sm:$0xff]
    %v1658 = vld [vmem:[%s1652 + $0x28] sm:$0xff]
    %v1659 = vpack.c.bf16 %v1651, %v1650
    %1660 = vmatprep.subr.bf16.mxu0 %v714
    %1661 = vmatpush1.bf16.msra.mxu0 %v713
    %1662 = vmatprep.subr.bf16.mxu0 %v717
    %1663 = vmatpush1.bf16.msra.mxu0 %v716
    %1664 = vmatprep.subr.bf16.mxu0 %v720
    %1665 = vmatpush1.bf16.msra.mxu0 %v719
    %1666 = vmatprep.subr.bf16.mxu0 %v723
    %1667 = vmatpush1.bf16.msra.mxu0 %v722
    %1668 = vmatprep.subr.bf16.mxu0 %v726
    %1669 = vmatpush1.bf16.msra.mxu0 %v725
    %1670 = vmatprep.subr.bf16.mxu0 %v729
    %1671 = vmatpush1.bf16.msra.mxu0 %v728
    %1672 = vmatprep.subr.bf16.mxu0 %v732
    %1673 = vmatpush1.bf16.msra.mxu0 %v731
    %1674 = vmatprep.subr.bf16.mxu0 %v735
    %1675 = vmatpush1.bf16.msra.mxu0 %v734
    %1676 = vmatprep.subr.bf16.mxu0 0
    %1677 = vmatpush1.bf16.msra.mxu0 0
    %1678 = vmatprep.subr.bf16.mxu0 0
    %1679 = vmatpush1.bf16.msra.mxu0 0
    %1680 = vmatprep.subr.bf16.mxu0 0
    %1681 = vmatpush1.bf16.msra.mxu0 0
    %1682 = vmatprep.subr.bf16.mxu0 0
    %1683 = vmatpush1.bf16.msra.mxu0 0
    %1684 = vmatprep.subr.bf16.mxu0 0
    %1685 = vmatpush1.bf16.msra.mxu0 0
    %1686 = vmatprep.subr.bf16.mxu0 0
    %1687 = vmatpush1.bf16.msra.mxu0 0
    %1688 = vmatprep.subr.bf16.mxu0 0
    %1689 = vmatpush1.bf16.msra.mxu0 0
    %1690 = vmatprep.subr.bf16.mxu0 0
    %1691 = vmatpush1.bf16.msra.mxu0 0
    %1692 = vmatprep.mubr.bf16.mxu0 0
    %1693 = vmatmul.mubr.bf16.gmra.mrb[0].mxu0 %v1659
    %v1694 = vpop.f32.mrb[0].mxu0
    %v1695 = vadd.f32 0.0, %v1694
    %v1696 = vpop.f32.mrb[0].mxu0
    %v1697 = vadd.f32 0.0, %v1696
    %v1698 = vpop.f32.mrb[0].mxu0
    %v1699 = vadd.f32 0.0, %v1698
    %v1700 = vpop.f32.mrb[0].mxu0
    %v1701 = vadd.f32 0.0, %v1700
    %1702 = vdwg.mxu0
    %1703 = vmatprep.subr.bf16.mxu0 0
    %1704 = vmatpush1.bf16.msra.mxu0 %v715
    %1705 = vmatprep.subr.bf16.mxu0 0
    %1706 = vmatpush1.bf16.msra.mxu0 %v718
    %1707 = vmatprep.subr.bf16.mxu0 0
    %1708 = vmatpush1.bf16.msra.mxu0 %v721
    %1709 = vmatprep.subr.bf16.mxu0 0
    %1710 = vmatpush1.bf16.msra.mxu0 %v724
    %1711 = vmatprep.subr.bf16.mxu0 0
    %1712 = vmatpush1.bf16.msra.mxu0 %v727
    %1713 = vmatprep.subr.bf16.mxu0 0
    %1714 = vmatpush1.bf16.msra.mxu0 %v730
    %1715 = vmatprep.subr.bf16.mxu0 0
    %1716 = vmatpush1.bf16.msra.mxu0 %v733
    %1717 = vmatprep.subr.bf16.mxu0 0
    %1718 = vmatpush1.bf16.msra.mxu0 %v736
    %1719 = vmatprep.subr.bf16.mxu0 0
    %1720 = vmatpush1.bf16.msra.mxu0 0
    %1721 = vmatprep.subr.bf16.mxu0 0
    %1722 = vmatpush1.bf16.msra.mxu0 0
    %1723 = vmatprep.subr.bf16.mxu0 0
    %1724 = vmatpush1.bf16.msra.mxu0 0
    %1725 = vmatprep.subr.bf16.mxu0 0
    %1726 = vmatpush1.bf16.msra.mxu0 0
    %1727 = vmatprep.subr.bf16.mxu0 0
    %1728 = vmatpush1.bf16.msra.mxu0 0
    %1729 = vmatprep.subr.bf16.mxu0 0
    %1730 = vmatpush1.bf16.msra.mxu0 0
    %1731 = vmatprep.subr.bf16.mxu0 0
    %1732 = vmatpush1.bf16.msra.mxu0 0
    %1733 = vmatprep.subr.bf16.mxu0 0
    %1734 = vmatpush1.bf16.msra.mxu0 0
    %1735 = vmatprep.mubr.bf16.mxu0 0
    %1736 = vmatmul.mubr.bf16.gmra.mrb[0].mxu0 %v1659
    %v1737 = vpop.f32.mrb[0].mxu0
    %v1738 = vadd.f32 0.0, %v1737
    %v1739 = vpop.f32.mrb[0].mxu0
    %v1740 = vpop.f32.mrb[0].mxu0
    %v1741 = vadd.f32 0.0, %v1740
    %v1742 = vpop.f32.mrb[0].mxu0
    %1743 = vdwg.mxu0
    %v1744 = vadd.f32 %v1653, %v1695
    %v1745 = vadd.f32 %v1656, %v1699
    %v1746 = vxor.u32 %v1744, 2147483648
    %v1747 = vxor.u32 %v1745, 2147483648
    %v1748 = vmul.f32 %v1746, 1.442695
    %v1749 = vpow.pop %v1748
    %v1750 = vmul.f32 %v1747, 1.442695
    %v1751 = vpow.pop %v1750
    %v1752 = vadd.f32 %v1749, 1.0
    %v1753 = vadd.f32 %v1751, 1.0
    %v1754 = vrcp.pop %v1752
    %v1755 = vmul.f32 1.0, %v1754
    %v1756 = vrcp.pop %v1753
    %v1757 = vmul.f32 1.0, %v1756
    %v1758 = vadd.f32 %v1654, %v1697
    %v1759 = vadd.f32 %v1657, %v1701
    %v1760 = vxor.u32 %v1758, 2147483648
    %v1761 = vxor.u32 %v1759, 2147483648
    %v1762 = vmul.f32 %v1760, 1.442695
    %v1763 = vpow.pop %v1762
    %v1764 = vmul.f32 %v1761, 1.442695
    %v1765 = vpow.pop %v1764
    %v1766 = vadd.f32 %v1763, 1.0
    %v1767 = vadd.f32 %v1765, 1.0
    %v1768 = vrcp.pop %v1766
    %v1769 = vmul.f32 1.0, %v1768
    %v1770 = vrcp.pop %v1767
    %v1771 = vmul.f32 1.0, %v1770
    %v1772 = vadd.f32 %v1738, %v877
    %v1773 = vadd.f32 %v1741, %v877
    %v1774 = vmul.f32 %v1755, %v1772
    %v1775 = vmul.f32 %v1757, %v1773
    %v1776 = vadd.f32 %v1655, %v1774
    %v1777 = vadd.f32 %v1658, %v1775
    %v1778 = vtanh.pop %v1776
    %v1779 = vtanh.pop %v1777
    %v1780 = vsub.f32 %v1650, %v1778
    %v1781 = vsub.f32 %v1651, %v1779
    %v1782 = vmul.f32 %v1769, %v1780
    %v1783 = vmul.f32 %v1771, %v1781
    %v1784 = vadd.f32 %v1778, %v1782
    %v1785 = vadd.f32 %v1779, %v1783
    %1786 = vst [vmem:[#allocation2] sm:$0xff] %v1784
    %1787 = vst [vmem:[#allocation2 + $0x8] sm:$0xff] %v1785
    %v1788 = vpack.c.bf16 %v1785, %v1784
    %v1790 = vunpack.c.l.b16 %v1788
    %v1791 = vunpack.c.h.b16 %v1788
    %v1792 = vpack.c.b16 %v1790, %v1790
    %v1793 = vpack.c.b16 %v1791, %v1791
    %s1796 = scalar_lea.vmem [#allocation13], 48
    %1797 = vst [vmem:[%s1796] sm:$0xf] %v1792
    %1798 = vst [vmem:[%s1796 + $0x4] sm:$0xf] %v1793
    %v1799 = vld [vmem:[#allocation2] sm:$0xff]
    %v1800 = vld [vmem:[#allocation2 + $0x8] sm:$0xff]
    %s1801 = scalar_lea.vmem [#allocation3], 336
    %v1802 = vld [vmem:[%s1801] sm:$0xff]
    %v1803 = vld [vmem:[%s1801 + $0x8] sm:$0xff]
    %v1804 = vld [vmem:[%s1801 + $0x10] sm:$0xff]
    %v1805 = vld [vmem:[%s1801 + $0x18] sm:$0xff]
    %v1806 = vld [vmem:[%s1801 + $0x20] sm:$0xff]
    %v1807 = vld [vmem:[%s1801 + $0x28] sm:$0xff]
    %v1808 = vpack.c.bf16 %v1800, %v1799
    %1809 = vmatprep.subr.bf16.mxu0 %v714
    %1810 = vmatpush1.bf16.msra.mxu0 %v713
    %1811 = vmatprep.subr.bf16.mxu0 %v717
    %1812 = vmatpush1.bf16.msra.mxu0 %v716
    %1813 = vmatprep.subr.bf16.mxu0 %v720
    %1814 = vmatpush1.bf16.msra.mxu0 %v719
    %1815 = vmatprep.subr.bf16.mxu0 %v723
    %1816 = vmatpush1.bf16.msra.mxu0 %v722
    %1817 = vmatprep.subr.bf16.mxu0 %v726
    %1818 = vmatpush1.bf16.msra.mxu0 %v725
    %1819 = vmatprep.subr.bf16.mxu0 %v729
    %1820 = vmatpush1.bf16.msra.mxu0 %v728
    %1821 = vmatprep.subr.bf16.mxu0 %v732
    %1822 = vmatpush1.bf16.msra.mxu0 %v731
    %1823 = vmatprep.subr.bf16.mxu0 %v735
    %1824 = vmatpush1.bf16.msra.mxu0 %v734
    %1825 = vmatprep.subr.bf16.mxu0 0
    %1826 = vmatpush1.bf16.msra.mxu0 0
    %1827 = vmatprep.subr.bf16.mxu0 0
    %1828 = vmatpush1.bf16.msra.mxu0 0
    %1829 = vmatprep.subr.bf16.mxu0 0
    %1830 = vmatpush1.bf16.msra.mxu0 0
    %1831 = vmatprep.subr.bf16.mxu0 0
    %1832 = vmatpush1.bf16.msra.mxu0 0
    %1833 = vmatprep.subr.bf16.mxu0 0
    %1834 = vmatpush1.bf16.msra.mxu0 0
    %1835 = vmatprep.subr.bf16.mxu0 0
    %1836 = vmatpush1.bf16.msra.mxu0 0
    %1837 = vmatprep.subr.bf16.mxu0 0
    %1838 = vmatpush1.bf16.msra.mxu0 0
    %1839 = vmatprep.subr.bf16.mxu0 0
    %1840 = vmatpush1.bf16.msra.mxu0 0
    %1841 = vmatprep.mubr.bf16.mxu0 0
    %1842 = vmatmul.mubr.bf16.gmra.mrb[0].mxu0 %v1808
    %v1843 = vpop.f32.mrb[0].mxu0
    %v1844 = vadd.f32 0.0, %v1843
    %v1845 = vpop.f32.mrb[0].mxu0
    %v1846 = vadd.f32 0.0, %v1845
    %v1847 = vpop.f32.mrb[0].mxu0
    %v1848 = vadd.f32 0.0, %v1847
    %v1849 = vpop.f32.mrb[0].mxu0
    %v1850 = vadd.f32 0.0, %v1849
    %1851 = vdwg.mxu0
    %1852 = vmatprep.subr.bf16.mxu0 0
    %1853 = vmatpush1.bf16.msra.mxu0 %v715
    %1854 = vmatprep.subr.bf16.mxu0 0
    %1855 = vmatpush1.bf16.msra.mxu0 %v718
    %1856 = vmatprep.subr.bf16.mxu0 0
    %1857 = vmatpush1.bf16.msra.mxu0 %v721
    %1858 = vmatprep.subr.bf16.mxu0 0
    %1859 = vmatpush1.bf16.msra.mxu0 %v724
    %1860 = vmatprep.subr.bf16.mxu0 0
    %1861 = vmatpush1.bf16.msra.mxu0 %v727
    %1862 = vmatprep.subr.bf16.mxu0 0
    %1863 = vmatpush1.bf16.msra.mxu0 %v730
    %1864 = vmatprep.subr.bf16.mxu0 0
    %1865 = vmatpush1.bf16.msra.mxu0 %v733
    %1866 = vmatprep.subr.bf16.mxu0 0
    %1867 = vmatpush1.bf16.msra.mxu0 %v736
    %1868 = vmatprep.subr.bf16.mxu0 0
    %1869 = vmatpush1.bf16.msra.mxu0 0
    %1870 = vmatprep.subr.bf16.mxu0 0
    %1871 = vmatpush1.bf16.msra.mxu0 0
    %1872 = vmatprep.subr.bf16.mxu0 0
    %1873 = vmatpush1.bf16.msra.mxu0 0
    %1874 = vmatprep.subr.bf16.mxu0 0
    %1875 = vmatpush1.bf16.msra.mxu0 0
    %1876 = vmatprep.subr.bf16.mxu0 0
    %1877 = vmatpush1.bf16.msra.mxu0 0
    %1878 = vmatprep.subr.bf16.mxu0 0
    %1879 = vmatpush1.bf16.msra.mxu0 0
    %1880 = vmatprep.subr.bf16.mxu0 0
    %1881 = vmatpush1.bf16.msra.mxu0 0
    %1882 = vmatprep.subr.bf16.mxu0 0
    %1883 = vmatpush1.bf16.msra.mxu0 0
    %1884 = vmatprep.mubr.bf16.mxu0 0
    %1885 = vmatmul.mubr.bf16.gmra.mrb[0].mxu0 %v1808
    %v1886 = vpop.f32.mrb[0].mxu0
    %v1887 = vadd.f32 0.0, %v1886
    %v1888 = vpop.f32.mrb[0].mxu0
    %v1889 = vpop.f32.mrb[0].mxu0
    %v1890 = vadd.f32 0.0, %v1889
    %v1891 = vpop.f32.mrb[0].mxu0
    %1892 = vdwg.mxu0
    %v1893 = vadd.f32 %v1802, %v1844
    %v1894 = vadd.f32 %v1805, %v1848
    %v1895 = vxor.u32 %v1893, 2147483648
    %v1896 = vxor.u32 %v1894, 2147483648
    %v1897 = vmul.f32 %v1895, 1.442695
    %v1898 = vpow.pop %v1897
    %v1899 = vmul.f32 %v1896, 1.442695
    %v1900 = vpow.pop %v1899
    %v1901 = vadd.f32 %v1898, 1.0
    %v1902 = vadd.f32 %v1900, 1.0
    %v1903 = vrcp.pop %v1901
    %v1904 = vmul.f32 1.0, %v1903
    %v1905 = vrcp.pop %v1902
    %v1906 = vmul.f32 1.0, %v1905
    %v1907 = vadd.f32 %v1803, %v1846
    %v1908 = vadd.f32 %v1806, %v1850
    %v1909 = vxor.u32 %v1907, 2147483648
    %v1910 = vxor.u32 %v1908, 2147483648
    %v1911 = vmul.f32 %v1909, 1.442695
    %v1912 = vpow.pop %v1911
    %v1913 = vmul.f32 %v1910, 1.442695
    %v1914 = vpow.pop %v1913
    %v1915 = vadd.f32 %v1912, 1.0
    %v1916 = vadd.f32 %v1914, 1.0
    %v1917 = vrcp.pop %v1915
    %v1918 = vmul.f32 1.0, %v1917
    %v1919 = vrcp.pop %v1916
    %v1920 = vmul.f32 1.0, %v1919
    %v1921 = vadd.f32 %v1887, %v877
    %v1922 = vadd.f32 %v1890, %v877
    %v1923 = vmul.f32 %v1904, %v1921
    %v1924 = vmul.f32 %v1906, %v1922
    %v1925 = vadd.f32 %v1804, %v1923
    %v1926 = vadd.f32 %v1807, %v1924
    %v1927 = vtanh.pop %v1925
    %v1928 = vtanh.pop %v1926
    %v1929 = vsub.f32 %v1799, %v1927
    %v1930 = vsub.f32 %v1800, %v1928
    %v1931 = vmul.f32 %v1918, %v1929
    %v1932 = vmul.f32 %v1920, %v1930
    %v1933 = vadd.f32 %v1927, %v1931
    %v1934 = vadd.f32 %v1928, %v1932
    %1935 = vst [vmem:[#allocation2] sm:$0xff] %v1933
    %1936 = vst [vmem:[#allocation2 + $0x8] sm:$0xff] %v1934
    %v1937 = vpack.c.bf16 %v1934, %v1933
    %v1939 = vunpack.c.l.b16 %v1937
    %v1940 = vunpack.c.h.b16 %v1937
    %v1941 = vpack.c.b16 %v1939, %v1939
    %v1942 = vpack.c.b16 %v1940, %v1940
    %s1945 = scalar_lea.vmem [#allocation13], 56
    %1946 = vst [vmem:[%s1945] sm:$0xf] %v1941
    %1947 = vst [vmem:[%s1945 + $0x4] sm:$0xf] %v1942
    // Predicated region
    $region46: #{gru_model_forward.4} parent=1 // pred_check
      _
    $region47: #{gru_model_forward.4} parent=1 // pred_check_branch
      %1949 = sbr.rel (0) target = $region49
    $region48: #{gru_model_forward.4} parent=1 // pred_region
      %s1951 = ssub.s32 1024, 1024
      %1952 = vsyncadd [#allocation6], %s1951
      %s1953 = sshll.u32 [#allocation13], 4
      %s1954 = int_to_ptr.vmem [resolvable:$true] %s1953
      %1959 = dma.vmem_to_hbm [thread:$0]  %s1954, 1024, %s5, [#allocation6], 64, 64, 4
    $region49: #{gru_model_forward.4} parent=1 // pred_fallthru
      _
    // Predicated region
    $region50: #{gru_model_forward.4} parent=1 // pred_check
      _
    $region51: #{gru_model_forward.4} parent=1 // pred_check_branch
      %1961 = sbr.rel (0) target = $region53
    $region52: #{gru_model_forward.4} parent=1 // pred_region
      %1962 = dma.done [#allocation6], 1024
    $region53: #{gru_model_forward.4} parent=1 // pred_fallthru
      _
    %1963 = vsyncpa [#allocation5], 1
    %1964 = vsyncpa [#allocation8], 1
    %1965 = vsyncpa [#allocation11], 1
    %1966 = vsyncpa [#allocation6], 1

// kernel: gru_model_forward.5
$region0: #{gru_model_forward.5}
  #allocation0 [shape = 'u32[]', space=smem, size = 0x4, offset = 0x4, fixed_abs, tag = 'smem constant byte address 0x4 - core index']
  #allocation1 [shape = 'u32[144,128]{1,0:T(1,128)}', space=vmem, size = 0x12000, scoped, tag = 'internal scratch']
  %s0 = inlined_call_operand.vmem [shape: bf16[16,128], index: 0, kind: input, shape index: {}]
  %s1 = inlined_call_operand.hbm [shape: bf16[128,128], index: 1, kind: input, shape index: {}]
  %s2 = inlined_call_operand.vmem [shape: f32[1,128], index: 2, kind: input, shape index: {}]
  %s3 = inlined_call_operand.vmem [shape: f32[16,128], index: 3, kind: output, shape index: {}]
  %s4 = sld [smem:[#allocation0]]
  $region26: #{gru_model_forward.5} parent=0
    _
  %s6 = ssub.s32 1, %s4
  %s7 = scalar_select 0, %s6, %s4
  $region1: #{gru_model_forward.5} parent=0
    #allocation2 [shape = 'u8[32768]{0}', space=vmem, size = 0x8000, scoped, tag = 'input window, operand 1, single buffered']
    #allocation3 [shape = 's32[1]{0}', space=sflag, size = 0x4, scoped, tag = 'scoped memory for gru_model_forward.5']
    %8 = vsyncpa [#allocation3], 0
    // Predicated region
    $region2: #{gru_model_forward.5} parent=1 // pred_check
      _
    $region3: #{gru_model_forward.5} parent=1 // pred_check_branch
      %10 = sbr.rel (0) target = $region5
    $region4: #{gru_model_forward.5} parent=1 // pred_region
      _
    $region5: #{gru_model_forward.5} parent=1 // pred_fallthru
      _
    // Predicated region
    $region6: #{gru_model_forward.5} parent=1 // pred_check
      _
    $region7: #{gru_model_forward.5} parent=1 // pred_check_branch
      %12 = sbr.rel (0) target = $region9
    $region8: #{gru_model_forward.5} parent=1 // pred_region
      %s14 = ssub.s32 1024, 1024
      %15 = vsyncadd [#allocation3], %s14
      %s16 = sshll.u32 [#allocation2], 4
      %s17 = int_to_ptr.vmem [resolvable:$true] %s16
      %22 = dma.hbm_to_vmem [thread:$0]  %s1, 1024, %s17, [#allocation3], 64, 64, 4
    $region9: #{gru_model_forward.5} parent=1 // pred_fallthru
      _
    // Predicated region
    $region10: #{gru_model_forward.5} parent=1 // pred_check
      _
    $region11: #{gru_model_forward.5} parent=1 // pred_check_branch
      %24 = sbr.rel (0) target = $region13
    $region12: #{gru_model_forward.5} parent=1 // pred_region
      _
    $region13: #{gru_model_forward.5} parent=1 // pred_fallthru
      _
    // Predicated region
    $region14: #{gru_model_forward.5} parent=1 // pred_check
      _
    $region15: #{gru_model_forward.5} parent=1 // pred_check_branch
      %26 = sbr.rel (0) target = $region17
    $region16: #{gru_model_forward.5} parent=1 // pred_region
      %27 = dma.done [#allocation3], 1024
    $region17: #{gru_model_forward.5} parent=1 // pred_fallthru
      _
    %v29 = vld [vmem:[%s0] sm:$0xf]
    %v30 = vld [vmem:[%s0 + $0x4] sm:$0xf]
    %v31 = vld [vmem:[#allocation2] sm:$0xf]
    %v32 = vld [vmem:[#allocation2 + $0x4] sm:$0xf]
    %v33 = vld [vmem:[#allocation2 + $0x8] sm:$0xf]
    %v34 = vld [vmem:[#allocation2 + $0xc] sm:$0xf]
    %v35 = vld [vmem:[#allocation2 + $0x10] sm:$0xf]
    %v36 = vld [vmem:[#allocation2 + $0x14] sm:$0xf]
    %v37 = vld [vmem:[#allocation2 + $0x18] sm:$0xf]
    %v38 = vld [vmem:[#allocation2 + $0x1c] sm:$0xf]
    %v39 = vld [vmem:[#allocation2 + $0x20] sm:$0xf]
    %v40 = vld [vmem:[#allocation2 + $0x24] sm:$0xf]
    %v41 = vld [vmem:[#allocation2 + $0x28] sm:$0xf]
    %v42 = vld [vmem:[#allocation2 + $0x2c] sm:$0xf]
    %v43 = vld [vmem:[#allocation2 + $0x30] sm:$0xf]
    %v44 = vld [vmem:[#allocation2 + $0x34] sm:$0xf]
    %v45 = vld [vmem:[#allocation2 + $0x38] sm:$0xf]
    %v46 = vld [vmem:[#allocation2 + $0x3c] sm:$0xf]
    %v47 = vld [vmem:[%s2] sm:$0x1]
    %v49 = vlaneseq
    %v50 = vshrl.u32 %v49, 7
    %v51 = vsub.s32 0, %v50
    %v52 = vrot.slane %v47, %v51
    %v56 = vunpack.c.l.b16 %v29
    %v57 = vunpack.c.l.b16 %v30
    %v58 = vpack.c.b16 %v57, %v56
    %v76 = vunpack.c.l.b16 %v31
    %v77 = vunpack.c.l.b16 %v32
    %v78 = vunpack.c.l.b16 %v33
    %v79 = vunpack.c.l.b16 %v34
    %v80 = vunpack.c.l.b16 %v35
    %v81 = vunpack.c.l.b16 %v36
    %v82 = vunpack.c.l.b16 %v37
    %v83 = vunpack.c.l.b16 %v38
    %v84 = vunpack.c.l.b16 %v39
    %v85 = vunpack.c.l.b16 %v40
    %v86 = vunpack.c.l.b16 %v41
    %v87 = vunpack.c.l.b16 %v42
    %v88 = vunpack.c.l.b16 %v43
    %v89 = vunpack.c.l.b16 %v44
    %v90 = vunpack.c.l.b16 %v45
    %v91 = vunpack.c.l.b16 %v46
    %v92 = vpack.c.b16 %v77, %v76
    %v93 = vpack.c.b16 %v79, %v78
    %v94 = vpack.c.b16 %v81, %v80
    %v95 = vpack.c.b16 %v83, %v82
    %v96 = vpack.c.b16 %v85, %v84
    %v97 = vpack.c.b16 %v87, %v86
    %v98 = vpack.c.b16 %v89, %v88
    %v99 = vpack.c.b16 %v91, %v90
    %108 = vmatprep.subr.bf16.mxu0 0
    %109 = vmatpush1.bf16.msra.mxu0 %v92
    %110 = vmatprep.subr.bf16.mxu0 0
    %111 = vmatpush1.bf16.msra.mxu0 %v93
    %112 = vmatprep.subr.bf16.mxu0 0
    %113 = vmatpush1.bf16.msra.mxu0 %v94
    %114 = vmatprep.subr.bf16.mxu0 0
    %115 = vmatpush1.bf16.msra.mxu0 %v95
    %116 = vmatprep.subr.bf16.mxu0 0
    %117 = vmatpush1.bf16.msra.mxu0 %v96
    %118 = vmatprep.subr.bf16.mxu0 0
    %119 = vmatpush1.bf16.msra.mxu0 %v97
    %120 = vmatprep.subr.bf16.mxu0 0
    %121 = vmatpush1.bf16.msra.mxu0 %v98
    %122 = vmatprep.subr.bf16.mxu0 0
    %123 = vmatpush1.bf16.msra.mxu0 %v99
    %124 = vmatprep.subr.bf16.mxu0 0
    %125 = vmatpush1.bf16.msra.mxu0 0
    %126 = vmatprep.subr.bf16.mxu0 0
    %127 = vmatpush1.bf16.msra.mxu0 0
    %128 = vmatprep.subr.bf16.mxu0 0
    %129 = vmatpush1.bf16.msra.mxu0 0
    %130 = vmatprep.subr.bf16.mxu0 0
    %131 = vmatpush1.bf16.msra.mxu0 0
    %132 = vmatprep.subr.bf16.mxu0 0
    %133 = vmatpush1.bf16.msra.mxu0 0
    %134 = vmatprep.subr.bf16.mxu0 0
    %135 = vmatpush1.bf16.msra.mxu0 0
    %136 = vmatprep.subr.bf16.mxu0 0
    %137 = vmatpush1.bf16.msra.mxu0 0
    %138 = vmatprep.subr.bf16.mxu0 0
    %139 = vmatpush1.bf16.msra.mxu0 0
    %140 = vmatprep.mubr.bf16.mxu0 0
    %141 = vmatmul.mubr.bf16.gmra.mrb[0].mxu0 %v58
    %v142 = vpop.f32.mrb[0].mxu0
    %v143 = vadd.f32 %v52, %v142
    %v144 = vpop.f32.mrb[0].mxu0
    %v145 = vpop.f32.mrb[0].mxu0
    %v146 = vadd.f32 %v52, %v145
    %v147 = vpop.f32.mrb[0].mxu0
    %148 = vdwg.mxu0
    %v149 = vlaneseq
    %v150 = vand.u32 %v149, 127
    %vm151 = vcmp.lt.s32.totalorder %v150, 8
    %v152 = vsel %vm151, %v143, -1e+30
    %v153 = vsel %vm151, %v146, -1e+30
    %154 = vmax.xlane.f32.xlu0 %v152
    %v155 = vpop.xlane.xlu0 %154
    %156 = vmax.xlane.f32.xlu0 %v153
    %v157 = vpop.xlane.xlu0 %156
    %v158 = vsub.f32 %v152, %v155
    %v159 = vsub.f32 %v153, %v157
    %v160 = vmul.f32 %v158, 1.442695
    %v161 = vpow.pop %v160
    %v162 = vmul.f32 %v159, 1.442695
    %v163 = vpow.pop %v162
    %164 = vadd.xlane.f32.xlu0 %v161
    %v165 = vpop.xlane.xlu0 %164
    %166 = vadd.xlane.f32.xlu0 %v163
    %v167 = vpop.xlane.xlu0 %166
    %v168 = vrcp.pop %v165
    %v169 = vrcp.pop %v167
    %v170 = vmul.f32 %v165, %v168
    %v171 = vmul.f32 %v167, %v169
    %v172 = vsub.f32 2.0, %v170
    %v173 = vsub.f32 2.0, %v171
    %v174 = vmul.f32 %v168, %v172
    %v175 = vmul.f32 %v169, %v173
    %v176 = vmul.f32 %v165, %v174
    %v177 = vmul.f32 %v167, %v175
    %v178 = vsub.f32 2.0, %v176
    %v179 = vsub.f32 2.0, %v177
    %v180 = vmul.f32 %v174, %v178
    %v181 = vmul.f32 %v175, %v179
    %v182 = vmul.f32 %v161, %v180
    %v183 = vmul.f32 %v163, %v181
    %184 = vst [vmem:[%s3] sm:$0xff] %v182
    %185 = vst [vmem:[%s3 + $0x8] sm:$0xff] %v183
    // Predicated region
    $region18: #{gru_model_forward.5} parent=1 // pred_check
      _
    $region19: #{gru_model_forward.5} parent=1 // pred_check_branch
      %187 = sbr.rel (0) target = $region21
    $region20: #{gru_model_forward.5} parent=1 // pred_region
      _
    $region21: #{gru_model_forward.5} parent=1 // pred_fallthru
      _
    // Predicated region
    $region22: #{gru_model_forward.5} parent=1 // pred_check
      _
    $region23: #{gru_model_forward.5} parent=1 // pred_check_branch
      %189 = sbr.rel (0) target = $region25
    $region24: #{gru_model_forward.5} parent=1 // pred_region
      _
    $region25: #{gru_model_forward.5} parent=1 // pred_fallthru
      _
    %190 = vsyncpa [#allocation3], 1

// kernel: gru_model_forward.3
$region0: #{gru_model_forward.3}
  #allocation0 [shape = 'u32[]', space=smem, size = 0x4, offset = 0x4, fixed_abs, tag = 'smem constant byte address 0x4 - core index']
  #allocation1 [shape = 'u32[144,128]{1,0:T(1,128)}', space=vmem, size = 0x12000, scoped, tag = 'internal scratch']
  #allocation2 [shape = 'f32[16,128]{1,0:T(8,128)}', space=vmem, size = 0x2000, scoped, tag = 'scratch operand']
  #allocation3 [shape = 'f32[8,16,384]{2,1,0:T(8,128)}', space=vmem, size = 0x30000, scoped, tag = 'scratch operand']
  %s0 = inlined_call_operand.hbm [shape: f32[8,16,128], index: 0, kind: input, shape index: {}]
  %s1 = inlined_call_operand.hbm [shape: bf16[128,384], index: 1, kind: input, shape index: {}]
  %s2 = inlined_call_operand.hbm [shape: bf16[128,384], index: 2, kind: input, shape index: {}]
  %s3 = inlined_call_operand.hbm [shape: f32[1,384], index: 3, kind: input, shape index: {}]
  %s4 = inlined_call_operand.hbm [shape: f32[1,128], index: 4, kind: input, shape index: {}]
  %s5 = inlined_call_operand.hbm [shape: bf16[8,16,128], index: 5, kind: output, shape index: {}]
  %s6 = sld [smem:[#allocation0]]
  $region54: #{gru_model_forward.3} parent=0
    _
  %s8 = ssub.s32 1, %s6
  %s9 = scalar_select 0, %s8, %s6
  $region1: #{gru_model_forward.3} parent=0
    #allocation4 [shape = 'u8[65536]{0}', space=vmem, size = 0x10000, scoped, tag = 'input window, operand 0, single buffered']
    #allocation5 [shape = 's32[1]{0}', space=sflag, size = 0x4, scoped, tag = 'scoped memory for gru_model_forward.3']
    #allocation6 [shape = 's32[1]{0}', space=sflag, size = 0x4, scoped, tag = 'scoped memory for gru_model_forward.3']
    #allocation7 [shape = 'u8[98304]{0}', space=vmem, size = 0x18000, scoped, tag = 'input window, operand 1, single buffered']
    #allocation8 [shape = 's32[1]{0}', space=sflag, size = 0x4, scoped, tag = 'scoped memory for gru_model_forward.3']
    #allocation9 [shape = 'u8[98304]{0}', space=vmem, size = 0x18000, scoped, tag = 'input window, operand 2, single buffered']
    #allocation10 [shape = 'u8[1536]{0}', space=vmem, size = 0x800, scoped, tag = 'input window, operand 3, single buffered']
    #allocation11 [shape = 's32[1]{0}', space=sflag, size = 0x4, scoped, tag = 'scoped memory for gru_model_forward.3']
    #allocation12 [shape = 'u8[512]{0}', space=vmem, size = 0x400, scoped, tag = 'input window, operand 4, single buffered']
    #allocation13 [shape = 'u8[32768]{0}', space=vmem, size = 0x8000, scoped, tag = 'output window, operand 0, single buffered']
    %10 = vsyncpa [#allocation5], 0
    %11 = vsyncpa [#allocation8], 0
    %12 = vsyncpa [#allocation11], 0
    %13 = vsyncpa [#allocation6], 0
    // Predicated region
    $region2: #{gru_model_forward.3} parent=1 // pred_check
      _
    $region3: #{gru_model_forward.3} parent=1 // pred_check_branch
      %15 = sbr.rel (0) target = $region5
    $region4: #{gru_model_forward.3} parent=1 // pred_region
      %s17 = ssub.s32 2048, 2048
      %18 = vsyncadd [#allocation5], %s17
      %s19 = sshll.u32 [#allocation4], 4
      %s20 = int_to_ptr.vmem [resolvable:$true] %s19
      %25 = dma.hbm_to_vmem [thread:$0]  %s0, 2048, %s20, [#allocation5], 128, 128, 8
    $region5: #{gru_model_forward.3} parent=1 // pred_fallthru
      _
    // Predicated region
    $region6: #{gru_model_forward.3} parent=1 // pred_check
      _
    $region7: #{gru_model_forward.3} parent=1 // pred_check_branch
      %27 = sbr.rel (0) target = $region9
    $region8: #{gru_model_forward.3} parent=1 // pred_region
      %s29 = ssub.s32 3072, 3072
      %30 = vsyncadd [#allocation8], %s29
      %s31 = sshll.u32 [#allocation7], 4
      %s32 = int_to_ptr.vmem [resolvable:$true] %s31
      %37 = dma.hbm_to_vmem [thread:$0]  %s1, 3072, %s32, [#allocation8], 192, 192, 12
    $region9: #{gru_model_forward.3} parent=1 // pred_fallthru
      _
    // Predicated region
    $region10: #{gru_model_forward.3} parent=1 // pred_check
      _
    $region11: #{gru_model_forward.3} parent=1 // pred_check_branch
      %39 = sbr.rel (0) target = $region13
    $region12: #{gru_model_forward.3} parent=1 // pred_region
      %s41 = ssub.s32 3072, 3072
      %42 = vsyncadd [#allocation8], %s41
      %s43 = sshll.u32 [#allocation9], 4
      %s44 = int_to_ptr.vmem [resolvable:$true] %s43
      %49 = dma.hbm_to_vmem [thread:$0]  %s2, 3072, %s44, [#allocation8], 192, 192, 12
    $region13: #{gru_model_forward.3} parent=1 // pred_fallthru
      _
    // Predicated region
    $region14: #{gru_model_forward.3} parent=1 // pred_check
      _
    $region15: #{gru_model_forward.3} parent=1 // pred_check_branch
      %51 = sbr.rel (0) target = $region17
    $region16: #{gru_model_forward.3} parent=1 // pred_region
      %s53 = ssub.s32 48, 48
      %54 = vsyncadd [#allocation11], %s53
      %s56 = sshll.u32 [#allocation10], 4
      %s57 = int_to_ptr.vmem [resolvable:$true] %s56
      %59 = dma.hbm_to_vmem [thread:$0]  %s3, 48, %s57, [#allocation11]
    $region17: #{gru_model_forward.3} parent=1 // pred_fallthru
      _
    // Predicated region
    $region18: #{gru_model_forward.3} parent=1 // pred_check
      _
    $region19: #{gru_model_forward.3} parent=1 // pred_check_branch
      %61 = sbr.rel (0) target = $region21
    $region20: #{gru_model_forward.3} parent=1 // pred_region
      %s63 = ssub.s32 16, 16
      %64 = vsyncadd [#allocation11], %s63
      %s66 = sshll.u32 [#allocation12], 4
      %s67 = int_to_ptr.vmem [resolvable:$true] %s66
      %69 = dma.hbm_to_vmem [thread:$0]  %s4, 16, %s67, [#allocation11]
    $region21: #{gru_model_forward.3} parent=1 // pred_fallthru
      _
    // Predicated region
    $region22: #{gru_model_forward.3} parent=1 // pred_check
      _
    $region23: #{gru_model_forward.3} parent=1 // pred_check_branch
      %71 = sbr.rel (0) target = $region25
    $region24: #{gru_model_forward.3} parent=1 // pred_region
      %72 = dma.done [#allocation5], 2048
    $region25: #{gru_model_forward.3} parent=1 // pred_fallthru
      _
    // Predicated region
    $region26: #{gru_model_forward.3} parent=1 // pred_check
      _
    $region27: #{gru_model_forward.3} parent=1 // pred_check_branch
      %74 = sbr.rel (0) target = $region29
    $region28: #{gru_model_forward.3} parent=1 // pred_region
      %75 = dma.done [#allocation8], 3072
    $region29: #{gru_model_forward.3} parent=1 // pred_fallthru
      _
    // Predicated region
    $region30: #{gru_model_forward.3} parent=1 // pred_check
      _
    $region31: #{gru_model_forward.3} parent=1 // pred_check_branch
      %77 = sbr.rel (0) target = $region33
    $region32: #{gru_model_forward.3} parent=1 // pred_region
      %78 = dma.done [#allocation8], 3072
    $region33: #{gru_model_forward.3} parent=1 // pred_fallthru
      _
    // Predicated region
    $region34: #{gru_model_forward.3} parent=1 // pred_check
      _
    $region35: #{gru_model_forward.3} parent=1 // pred_check_branch
      %80 = sbr.rel (0) target = $region37
    $region36: #{gru_model_forward.3} parent=1 // pred_region
      %81 = dma.done [#allocation11], 48
    $region37: #{gru_model_forward.3} parent=1 // pred_fallthru
      _
    // Predicated region
    $region38: #{gru_model_forward.3} parent=1 // pred_check
      _
    $region39: #{gru_model_forward.3} parent=1 // pred_check_branch
      %83 = sbr.rel (0) target = $region41
    $region40: #{gru_model_forward.3} parent=1 // pred_region
      %84 = dma.done [#allocation11], 16
    $region41: #{gru_model_forward.3} parent=1 // pred_fallthru
      _
    %p86 = scmp.eq.s32.totalorder 0, 0
    // Predicated region
    $region42: #{gru_model_forward.3} parent=1 // pred_check
      %p87 = pneg %p86
    $region43: #{gru_model_forward.3} parent=1 // pred_check_branch
      %89 = sbr.rel (%p87) target = $region45
    $region44: #{gru_model_forward.3} parent=1 // pred_region
      %90 = vst [vmem:[#allocation2] sm:$0xff] 0.0
      %91 = vst [vmem:[#allocation2 + $0x8] sm:$0xff] 0.0
    $region45: #{gru_model_forward.3} parent=1 // pred_fallthru
      _
    %v92 = vld [vmem:[#allocation4] sm:$0xff]
    %v93 = vld [vmem:[#allocation4 + $0x8] sm:$0xff]
    %v94 = vld [vmem:[#allocation4 + $0x10] sm:$0xff]
    %v95 = vld [vmem:[#allocation4 + $0x18] sm:$0xff]
    %v96 = vld [vmem:[#allocation4 + $0x20] sm:$0xff]
    %v97 = vld [vmem:[#allocation4 + $0x28] sm:$0xff]
    %v98 = vld [vmem:[#allocation4 + $0x30] sm:$0xff]
    %v99 = vld [vmem:[#allocation4 + $0x38] sm:$0xff]
    %v100 = vld [vmem:[#allocation4 + $0x40] sm:$0xff]
    %v101 = vld [vmem:[#allocation4 + $0x48] sm:$0xff]
    %v102 = vld [vmem:[#allocation4 + $0x50] sm:$0xff]
    %v103 = vld [vmem:[#allocation4 + $0x58] sm:$0xff]
    %v104 = vld [vmem:[#allocation4 + $0x60] sm:$0xff]
    %v105 = vld [vmem:[#allocation4 + $0x68] sm:$0xff]
    %v106 = vld [vmem:[#allocation4 + $0x70] sm:$0xff]
    %v107 = vld [vmem:[#allocation4 + $0x78] sm:$0xff]
    %v108 = vpack.c.bf16 %v93, %v92
    %v109 = vpack.c.bf16 %v95, %v94
    %v110 = vpack.c.bf16 %v97, %v96
    %v111 = vpack.c.bf16 %v99, %v98
    %v112 = vpack.c.bf16 %v101, %v100
    %v113 = vpack.c.bf16 %v103, %v102
    %v114 = vpack.c.bf16 %v105, %v104
    %v115 = vpack.c.bf16 %v107, %v106
    %v116 = vld [vmem:[#allocation7] sm:$0xff]
    %v117 = vld [vmem:[#allocation7 + $0x8] sm:$0xf]
    %v118 = vld [vmem:[#allocation7 + $0xc] sm:$0xff]
    %v119 = vld [vmem:[#allocation7 + $0x14] sm:$0xf]
    %v120 = vld [vmem:[#allocation7 + $0x18] sm:$0xff]
    %v121 = vld [vmem:[#allocation7 + $0x20] sm:$0xf]
    %v122 = vld [vmem:[#allocation7 + $0x24] sm:$0xff]
    %v123 = vld [vmem:[#allocation7 + $0x2c] sm:$0xf]
    %v124 = vld [vmem:[#allocation7 + $0x30] sm:$0xff]
    %v125 = vld [vmem:[#allocation7 + $0x38] sm:$0xf]
    %v126 = vld [vmem:[#allocation7 + $0x3c] sm:$0xff]
    %v127 = vld [vmem:[#allocation7 + $0x44] sm:$0xf]
    %v128 = vld [vmem:[#allocation7 + $0x48] sm:$0xff]
    %v129 = vld [vmem:[#allocation7 + $0x50] sm:$0xf]
    %v130 = vld [vmem:[#allocation7 + $0x54] sm:$0xff]
    %v131 = vld [vmem:[#allocation7 + $0x5c] sm:$0xf]
    %v132 = vld [vmem:[#allocation7 + $0x60] sm:$0xff]
    %v133 = vld [vmem:[#allocation7 + $0x68] sm:$0xf]
    %v134 = vld [vmem:[#allocation7 + $0x6c] sm:$0xff]
    %v135 = vld [vmem:[#allocation7 + $0x74] sm:$0xf]
    %v136 = vld [vmem:[#allocation7 + $0x78] sm:$0xff]
    %v137 = vld [vmem:[#allocation7 + $0x80] sm:$0xf]
    %v138 = vld [vmem:[#allocation7 + $0x84] sm:$0xff]
    %v139 = vld [vmem:[#allocation7 + $0x8c] sm:$0xf]
    %v140 = vld [vmem:[#allocation7 + $0x90] sm:$0xff]
    %v141 = vld [vmem:[#allocation7 + $0x98] sm:$0xf]
    %v142 = vld [vmem:[#allocation7 + $0x9c] sm:$0xff]
    %v143 = vld [vmem:[#allocation7 + $0xa4] sm:$0xf]
    %v144 = vld [vmem:[#allocation7 + $0xa8] sm:$0xff]
    %v145 = vld [vmem:[#allocation7 + $0xb0] sm:$0xf]
    %v146 = vld [vmem:[#allocation7 + $0xb4] sm:$0xff]
    %v147 = vld [vmem:[#allocation7 + $0xbc] sm:$0xf]
    %v148 = vld [vmem:[#allocation10] sm:$0x7]
    %v150 = vlaneseq
    %v151 = vshrl.u32 %v150, 7
    %v152 = vsub.s32 0, %v151
    %v153 = vrot.slane %v148, %v152
    %v154 = vlaneseq
    %v155 = vshrl.u32 %v154, 7
    %v156 = vsub.s32 1, %v155
    %v157 = vrot.slane %v148, %v156
    %v158 = vlaneseq
    %v159 = vshrl.u32 %v158, 7
    %v160 = vsub.s32 2, %v159
    %v161 = vrot.slane %v148, %v160
    %v197 = vunpack.c.l.b16 %v116
    %v198 = vunpack.c.h.b16 %v116
    %v199 = vunpack.c.l.b16 %v117
    %v200 = vunpack.c.l.b16 %v118
    %v201 = vunpack.c.h.b16 %v118
    %v202 = vunpack.c.l.b16 %v119
    %v203 = vunpack.c.l.b16 %v120
    %v204 = vunpack.c.h.b16 %v120
    %v205 = vunpack.c.l.b16 %v121
    %v206 = vunpack.c.l.b16 %v122
    %v207 = vunpack.c.h.b16 %v122
    %v208 = vunpack.c.l.b16 %v123
    %v209 = vunpack.c.l.b16 %v124
    %v210 = vunpack.c.h.b16 %v124
    %v211 = vunpack.c.l.b16 %v125
    %v212 = vunpack.c.l.b16 %v126
    %v213 = vunpack.c.h.b16 %v126
    %v214 = vunpack.c.l.b16 %v127
    %v215 = vunpack.c.l.b16 %v128
    %v216 = vunpack.c.h.b16 %v128
    %v217 = vunpack.c.l.b16 %v129
    %v218 = vunpack.c.l.b16 %v130
    %v219 = vunpack.c.h.b16 %v130
    %v220 = vunpack.c.l.b16 %v131
    %v221 = vunpack.c.l.b16 %v132
    %v222 = vunpack.c.h.b16 %v132
    %v223 = vunpack.c.l.b16 %v133
    %v224 = vunpack.c.l.b16 %v134
    %v225 = vunpack.c.h.b16 %v134
    %v226 = vunpack.c.l.b16 %v135
    %v227 = vunpack.c.l.b16 %v136
    %v228 = vunpack.c.h.b16 %v136
    %v229 = vunpack.c.l.b16 %v137
    %v230 = vunpack.c.l.b16 %v138
    %v231 = vunpack.c.h.b16 %v138
    %v232 = vunpack.c.l.b16 %v139
    %v233 = vunpack.c.l.b16 %v140
    %v234 = vunpack.c.h.b16 %v140
    %v235 = vunpack.c.l.b16 %v141
    %v236 = vunpack.c.l.b16 %v142
    %v237 = vunpack.c.h.b16 %v142
    %v238 = vunpack.c.l.b16 %v143
    %v239 = vunpack.c.l.b16 %v144
    %v240 = vunpack.c.h.b16 %v144
    %v241 = vunpack.c.l.b16 %v145
    %v242 = vunpack.c.l.b16 %v146
    %v243 = vunpack.c.h.b16 %v146
    %v244 = vunpack.c.l.b16 %v147
    %v245 = vpack.c.b16 %v200, %v197
    %v246 = vpack.c.b16 %v201, %v198
    %v247 = vpack.c.b16 %v202, %v199
    %v248 = vpack.c.b16 %v206, %v203
    %v249 = vpack.c.b16 %v207, %v204
    %v250 = vpack.c.b16 %v208, %v205
    %v251 = vpack.c.b16 %v212, %v209
    %v252 = vpack.c.b16 %v213, %v210
    %v253 = vpack.c.b16 %v214, %v211
    %v254 = vpack.c.b16 %v218, %v215
    %v255 = vpack.c.b16 %v219, %v216
    %v256 = vpack.c.b16 %v220, %v217
    %v257 = vpack.c.b16 %v224, %v221
    %v258 = vpack.c.b16 %v225, %v222
    %v259 = vpack.c.b16 %v226, %v223
    %v260 = vpack.c.b16 %v230, %v227
    %v261 = vpack.c.b16 %v231, %v228
    %v262 = vpack.c.b16 %v232, %v229
    %v263 = vpack.c.b16 %v236, %v233
    %v264 = vpack.c.b16 %v237, %v234
    %v265 = vpack.c.b16 %v238, %v235
    %v266 = vpack.c.b16 %v242, %v239
    %v267 = vpack.c.b16 %v243, %v240
    %v268 = vpack.c.b16 %v244, %v241
    %293 = vmatprep.subr.bf16.mxu0 %v246
    %294 = vmatpush1.bf16.msra.mxu0 %v245
    %295 = vmatprep.subr.bf16.mxu0 %v249
    %296 = vmatpush1.bf16.msra.mxu0 %v248
    %297 = vmatprep.subr.bf16.mxu0 %v252
    %298 = vmatpush1.bf16.msra.mxu0 %v251
    %299 = vmatprep.subr.bf16.mxu0 %v255
    %300 = vmatpush1.bf16.msra.mxu0 %v254
    %301 = vmatprep.subr.bf16.mxu0 %v258
    %302 = vmatpush1.bf16.msra.mxu0 %v257
    %303 = vmatprep.subr.bf16.mxu0 %v261
    %304 = vmatpush1.bf16.msra.mxu0 %v260
    %305 = vmatprep.subr.bf16.mxu0 %v264
    %306 = vmatpush1.bf16.msra.mxu0 %v263
    %307 = vmatprep.subr.bf16.mxu0 %v267
    %308 = vmatpush1.bf16.msra.mxu0 %v266
    %309 = vmatprep.subr.bf16.mxu0 0
    %310 = vmatpush1.bf16.msra.mxu0 0
    %311 = vmatprep.subr.bf16.mxu0 0
    %312 = vmatpush1.bf16.msra.mxu0 0
    %313 = vmatprep.subr.bf16.mxu0 0
    %314 = vmatpush1.bf16.msra.mxu0 0
    %315 = vmatprep.subr.bf16.mxu0 0
    %316 = vmatpush1.bf16.msra.mxu0 0
    %317 = vmatprep.subr.bf16.mxu0 0
    %318 = vmatpush1.bf16.msra.mxu0 0
    %319 = vmatprep.subr.bf16.mxu0 0
    %320 = vmatpush1.bf16.msra.mxu0 0
    %321 = vmatprep.subr.bf16.mxu0 0
    %322 = vmatpush1.bf16.msra.mxu0 0
    %323 = vmatprep.subr.bf16.mxu0 0
    %324 = vmatpush1.bf16.msra.mxu0 0
    %325 = vmatprep.mubr.bf16.mxu0 0
    %326 = vmatmul.mubr.bf16.gmra.mrb[0].mxu0 %v108
    %v327 = vpop.f32.mrb[0].mxu0
    %v328 = vadd.f32 %v153, %v327
    %v329 = vpop.f32.mrb[0].mxu0
    %v330 = vadd.f32 %v157, %v329
    %v331 = vpop.f32.mrb[0].mxu0
    %v332 = vadd.f32 %v153, %v331
    %v333 = vpop.f32.mrb[0].mxu0
    %v334 = vadd.f32 %v157, %v333
    %335 = vmatprep.mubr.bf16.mxu0 0
    %336 = vmatmul.mubr.bf16.gmra.mrb[0].mxu0 %v109
    %v337 = vpop.f32.mrb[0].mxu0
    %v338 = vadd.f32 %v153, %v337
    %v339 = vpop.f32.mrb[0].mxu0
    %v340 = vadd.f32 %v157, %v339
    %v341 = vpop.f32.mrb[0].mxu0
    %v342 = vadd.f32 %v153, %v341
    %v343 = vpop.f32.mrb[0].mxu0
    %v344 = vadd.f32 %v157, %v343
    %345 = vmatprep.mubr.bf16.mxu0 0
    %346 = vmatmul.mubr.bf16.gmra.mrb[0].mxu0 %v110
    %v347 = vpop.f32.mrb[0].mxu0
    %v348 = vadd.f32 %v153, %v347
    %v349 = vpop.f32.mrb[0].mxu0
    %v350 = vadd.f32 %v157, %v349
    %v351 = vpop.f32.mrb[0].mxu0
    %v352 = vadd.f32 %v153, %v351
    %v353 = vpop.f32.mrb[0].mxu0
    %v354 = vadd.f32 %v157, %v353
    %355 = vmatprep.mubr.bf16.mxu0 0
    %356 = vmatmul.mubr.bf16.gmra.mrb[0].mxu0 %v111
    %v357 = vpop.f32.mrb[0].mxu0
    %v358 = vadd.f32 %v153, %v357
    %v359 = vpop.f32.mrb[0].mxu0
    %v360 = vadd.f32 %v157, %v359
    %v361 = vpop.f32.mrb[0].mxu0
    %v362 = vadd.f32 %v153, %v361
    %v363 = vpop.f32.mrb[0].mxu0
    %v364 = vadd.f32 %v157, %v363
    %365 = vmatprep.mubr.bf16.mxu0 0
    %366 = vmatmul.mubr.bf16.gmra.mrb[0].mxu0 %v112
    %v367 = vpop.f32.mrb[0].mxu0
    %v368 = vadd.f32 %v153, %v367
    %v369 = vpop.f32.mrb[0].mxu0
    %v370 = vadd.f32 %v157, %v369
    %v371 = vpop.f32.mrb[0].mxu0
    %v372 = vadd.f32 %v153, %v371
    %v373 = vpop.f32.mrb[0].mxu0
    %v374 = vadd.f32 %v157, %v373
    %375 = vmatprep.mubr.bf16.mxu0 0
    %376 = vmatmul.mubr.bf16.gmra.mrb[0].mxu0 %v113
    %v377 = vpop.f32.mrb[0].mxu0
    %v378 = vadd.f32 %v153, %v377
    %v379 = vpop.f32.mrb[0].mxu0
    %v380 = vadd.f32 %v157, %v379
    %v381 = vpop.f32.mrb[0].mxu0
    %v382 = vadd.f32 %v153, %v381
    %v383 = vpop.f32.mrb[0].mxu0
    %v384 = vadd.f32 %v157, %v383
    %385 = vmatprep.mubr.bf16.mxu0 0
    %386 = vmatmul.mubr.bf16.gmra.mrb[0].mxu0 %v114
    %v387 = vpop.f32.mrb[0].mxu0
    %v388 = vadd.f32 %v153, %v387
    %v389 = vpop.f32.mrb[0].mxu0
    %v390 = vadd.f32 %v157, %v389
    %v391 = vpop.f32.mrb[0].mxu0
    %v392 = vadd.f32 %v153, %v391
    %v393 = vpop.f32.mrb[0].mxu0
    %v394 = vadd.f32 %v157, %v393
    %395 = vmatprep.mubr.bf16.mxu0 0
    %396 = vmatmul.mubr.bf16.gmra.mrb[0].mxu0 %v115
    %v397 = vpop.f32.mrb[0].mxu0
    %v398 = vadd.f32 %v153, %v397
    %v399 = vpop.f32.mrb[0].mxu0
    %v400 = vadd.f32 %v157, %v399
    %v401 = vpop.f32.mrb[0].mxu0
    %v402 = vadd.f32 %v153, %v401
    %v403 = vpop.f32.mrb[0].mxu0
    %v404 = vadd.f32 %v157, %v403
    %405 = vdwg.mxu0
    %406 = vmatprep.subr.bf16.mxu0 0
    %407 = vmatpush1.bf16.msra.mxu0 %v247
    %408 = vmatprep.subr.bf16.mxu0 0
    %409 = vmatpush1.bf16.msra.mxu0 %v250
    %410 = vmatprep.subr.bf16.mxu0 0
    %411 = vmatpush1.bf16.msra.mxu0 %v253
    %412 = vmatprep.subr.bf16.mxu0 0
    %413 = vmatpush1.bf16.msra.mxu0 %v256
    %414 = vmatprep.subr.bf16.mxu0 0
    %415 = vmatpush1.bf16.msra.mxu0 %v259
    %416 = vmatprep.subr.bf16.mxu0 0
    %417 = vmatpush1.bf16.msra.mxu0 %v262
    %418 = vmatprep.subr.bf16.mxu0 0
    %419 = vmatpush1.bf16.msra.mxu0 %v265
    %420 = vmatprep.subr.bf16.mxu0 0
    %421 = vmatpush1.bf16.msra.mxu0 %v268
    %422 = vmatprep.subr.bf16.mxu0 0
    %423 = vmatpush1.bf16.msra.mxu0 0
    %424 = vmatprep.subr.bf16.mxu0 0
    %425 = vmatpush1.bf16.msra.mxu0 0
    %426 = vmatprep.subr.bf16.mxu0 0
    %427 = vmatpush1.bf16.msra.mxu0 0
    %428 = vmatprep.subr.bf16.mxu0 0
    %429 = vmatpush1.bf16.msra.mxu0 0
    %430 = vmatprep.subr.bf16.mxu0 0
    %431 = vmatpush1.bf16.msra.mxu0 0
    %432 = vmatprep.subr.bf16.mxu0 0
    %433 = vmatpush1.bf16.msra.mxu0 0
    %434 = vmatprep.subr.bf16.mxu0 0
    %435 = vmatpush1.bf16.msra.mxu0 0
    %436 = vmatprep.subr.bf16.mxu0 0
    %437 = vmatpush1.bf16.msra.mxu0 0
    %438 = vmatprep.mubr.bf16.mxu0 0
    %439 = vmatmul.mubr.bf16.gmra.mrb[0].mxu0 %v108
    %v440 = vpop.f32.mrb[0].mxu0
    %v441 = vadd.f32 %v161, %v440
    %v442 = vpop.f32.mrb[0].mxu0
    %v443 = vpop.f32.mrb[0].mxu0
    %v444 = vadd.f32 %v161, %v443
    %v445 = vpop.f32.mrb[0].mxu0
    %446 = vmatprep.mubr.bf16.mxu0 0
    %447 = vmatmul.mubr.bf16.gmra.mrb[0].mxu0 %v109
    %v448 = vpop.f32.mrb[0].mxu0
    %v449 = vadd.f32 %v161, %v448
    %v450 = vpop.f32.mrb[0].mxu0
    %v451 = vpop.f32.mrb[0].mxu0
    %v452 = vadd.f32 %v161, %v451
    %v453 = vpop.f32.mrb[0].mxu0
    %454 = vmatprep.mubr.bf16.mxu0 0
    %455 = vmatmul.mubr.bf16.gmra.mrb[0].mxu0 %v110
    %v456 = vpop.f32.mrb[0].mxu0
    %v457 = vadd.f32 %v161, %v456
    %v458 = vpop.f32.mrb[0].mxu0
    %v459 = vpop.f32.mrb[0].mxu0
    %v460 = vadd.f32 %v161, %v459
    %v461 = vpop.f32.mrb[0].mxu0
    %462 = vmatprep.mubr.bf16.mxu0 0
    %463 = vmatmul.mubr.bf16.gmra.mrb[0].mxu0 %v111
    %v464 = vpop.f32.mrb[0].mxu0
    %v465 = vadd.f32 %v161, %v464
    %v466 = vpop.f32.mrb[0].mxu0
    %v467 = vpop.f32.mrb[0].mxu0
    %v468 = vadd.f32 %v161, %v467
    %v469 = vpop.f32.mrb[0].mxu0
    %470 = vmatprep.mubr.bf16.mxu0 0
    %471 = vmatmul.mubr.bf16.gmra.mrb[0].mxu0 %v112
    %v472 = vpop.f32.mrb[0].mxu0
    %v473 = vadd.f32 %v161, %v472
    %v474 = vpop.f32.mrb[0].mxu0
    %v475 = vpop.f32.mrb[0].mxu0
    %v476 = vadd.f32 %v161, %v475
    %v477 = vpop.f32.mrb[0].mxu0
    %478 = vmatprep.mubr.bf16.mxu0 0
    %479 = vmatmul.mubr.bf16.gmra.mrb[0].mxu0 %v113
    %v480 = vpop.f32.mrb[0].mxu0
    %v481 = vadd.f32 %v161, %v480
    %v482 = vpop.f32.mrb[0].mxu0
    %v483 = vpop.f32.mrb[0].mxu0
    %v484 = vadd.f32 %v161, %v483
    %v485 = vpop.f32.mrb[0].mxu0
    %486 = vmatprep.mubr.bf16.mxu0 0
    %487 = vmatmul.mubr.bf16.gmra.mrb[0].mxu0 %v114
    %v488 = vpop.f32.mrb[0].mxu0
    %v489 = vadd.f32 %v161, %v488
    %v490 = vpop.f32.mrb[0].mxu0
    %v491 = vpop.f32.mrb[0].mxu0
    %v492 = vadd.f32 %v161, %v491
    %v493 = vpop.f32.mrb[0].mxu0
    %494 = vmatprep.mubr.bf16.mxu0 0
    %495 = vmatmul.mubr.bf16.gmra.mrb[0].mxu0 %v115
    %v496 = vpop.f32.mrb[0].mxu0
    %v497 = vadd.f32 %v161, %v496
    %v498 = vpop.f32.mrb[0].mxu0
    %v499 = vpop.f32.mrb[0].mxu0
    %v500 = vadd.f32 %v161, %v499
    %v501 = vpop.f32.mrb[0].mxu0
    %502 = vdwg.mxu0
    %503 = vst [vmem:[#allocation3] sm:$0xff] %v328
    %504 = vst [vmem:[#allocation3 + $0x8] sm:$0xff] %v330
    %505 = vst [vmem:[#allocation3 + $0x10] sm:$0xff] %v441
    %506 = vst [vmem:[#allocation3 + $0x18] sm:$0xff] %v332
    %507 = vst [vmem:[#allocation3 + $0x20] sm:$0xff] %v334
    %508 = vst [vmem:[#allocation3 + $0x28] sm:$0xff] %v444
    %509 = vst [vmem:[#allocation3 + $0x30] sm:$0xff] %v338
    %510 = vst [vmem:[#allocation3 + $0x38] sm:$0xff] %v340
    %511 = vst [vmem:[#allocation3 + $0x40] sm:$0xff] %v449
    %512 = vst [vmem:[#allocation3 + $0x48] sm:$0xff] %v342
    %513 = vst [vmem:[#allocation3 + $0x50] sm:$0xff] %v344
    %514 = vst [vmem:[#allocation3 + $0x58] sm:$0xff] %v452
    %515 = vst [vmem:[#allocation3 + $0x60] sm:$0xff] %v348
    %516 = vst [vmem:[#allocation3 + $0x68] sm:$0xff] %v350
    %517 = vst [vmem:[#allocation3 + $0x70] sm:$0xff] %v457
    %518 = vst [vmem:[#allocation3 + $0x78] sm:$0xff] %v352
    %519 = vst [vmem:[#allocation3 + $0x80] sm:$0xff] %v354
    %520 = vst [vmem:[#allocation3 + $0x88] sm:$0xff] %v460
    %521 = vst [vmem:[#allocation3 + $0x90] sm:$0xff] %v358
    %522 = vst [vmem:[#allocation3 + $0x98] sm:$0xff] %v360
    %523 = vst [vmem:[#allocation3 + $0xa0] sm:$0xff] %v465
    %524 = vst [vmem:[#allocation3 + $0xa8] sm:$0xff] %v362
    %525 = vst [vmem:[#allocation3 + $0xb0] sm:$0xff] %v364
    %526 = vst [vmem:[#allocation3 + $0xb8] sm:$0xff] %v468
    %527 = vst [vmem:[#allocation3 + $0xc0] sm:$0xff] %v368
    %528 = vst [vmem:[#allocation3 + $0xc8] sm:$0xff] %v370
    %529 = vst [vmem:[#allocation3 + $0xd0] sm:$0xff] %v473
    %530 = vst [vmem:[#allocation3 + $0xd8] sm:$0xff] %v372
    %531 = vst [vmem:[#allocation3 + $0xe0] sm:$0xff] %v374
    %532 = vst [vmem:[#allocation3 + $0xe8] sm:$0xff] %v476
    %533 = vst [vmem:[#allocation3 + $0xf0] sm:$0xff] %v378
    %534 = vst [vmem:[#allocation3 + $0xf8] sm:$0xff] %v380
    %535 = vst [vmem:[#allocation3 + $0x100] sm:$0xff] %v481
    %536 = vst [vmem:[#allocation3 + $0x108] sm:$0xff] %v382
    %537 = vst [vmem:[#allocation3 + $0x110] sm:$0xff] %v384
    %538 = vst [vmem:[#allocation3 + $0x118] sm:$0xff] %v484
    %539 = vst [vmem:[#allocation3 + $0x120] sm:$0xff] %v388
    %540 = vst [vmem:[#allocation3 + $0x128] sm:$0xff] %v390
    %541 = vst [vmem:[#allocation3 + $0x130] sm:$0xff] %v489
    %542 = vst [vmem:[#allocation3 + $0x138] sm:$0xff] %v392
    %543 = vst [vmem:[#allocation3 + $0x140] sm:$0xff] %v394
    %544 = vst [vmem:[#allocation3 + $0x148] sm:$0xff] %v492
    %545 = vst [vmem:[#allocation3 + $0x150] sm:$0xff] %v398
    %546 = vst [vmem:[#allocation3 + $0x158] sm:$0xff] %v400
    %547 = vst [vmem:[#allocation3 + $0x160] sm:$0xff] %v497
    %548 = vst [vmem:[#allocation3 + $0x168] sm:$0xff] %v402
    %549 = vst [vmem:[#allocation3 + $0x170] sm:$0xff] %v404
    %550 = vst [vmem:[#allocation3 + $0x178] sm:$0xff] %v500
    %v551 = vld [vmem:[#allocation9] sm:$0xff]
    %v552 = vld [vmem:[#allocation9 + $0x8] sm:$0xf]
    %v553 = vld [vmem:[#allocation9 + $0xc] sm:$0xff]
    %v554 = vld [vmem:[#allocation9 + $0x14] sm:$0xf]
    %v555 = vld [vmem:[#allocation9 + $0x18] sm:$0xff]
    %v556 = vld [vmem:[#allocation9 + $0x20] sm:$0xf]
    %v557 = vld [vmem:[#allocation9 + $0x24] sm:$0xff]
    %v558 = vld [vmem:[#allocation9 + $0x2c] sm:$0xf]
    %v559 = vld [vmem:[#allocation9 + $0x30] sm:$0xff]
    %v560 = vld [vmem:[#allocation9 + $0x38] sm:$0xf]
    %v561 = vld [vmem:[#allocation9 + $0x3c] sm:$0xff]
    %v562 = vld [vmem:[#allocation9 + $0x44] sm:$0xf]
    %v563 = vld [vmem:[#allocation9 + $0x48] sm:$0xff]
    %v564 = vld [vmem:[#allocation9 + $0x50] sm:$0xf]
    %v565 = vld [vmem:[#allocation9 + $0x54] sm:$0xff]
    %v566 = vld [vmem:[#allocation9 + $0x5c] sm:$0xf]
    %v567 = vld [vmem:[#allocation9 + $0x60] sm:$0xff]
    %v568 = vld [vmem:[#allocation9 + $0x68] sm:$0xf]
    %v569 = vld [vmem:[#allocation9 + $0x6c] sm:$0xff]
    %v570 = vld [vmem:[#allocation9 + $0x74] sm:$0xf]
    %v571 = vld [vmem:[#allocation9 + $0x78] sm:$0xff]
    %v572 = vld [vmem:[#allocation9 + $0x80] sm:$0xf]
    %v573 = vld [vmem:[#allocation9 + $0x84] sm:$0xff]
    %v574 = vld [vmem:[#allocation9 + $0x8c] sm:$0xf]
    %v575 = vld [vmem:[#allocation9 + $0x90] sm:$0xff]
    %v576 = vld [vmem:[#allocation9 + $0x98] sm:$0xf]
    %v577 = vld [vmem:[#allocation9 + $0x9c] sm:$0xff]
    %v578 = vld [vmem:[#allocation9 + $0xa4] sm:$0xf]
    %v579 = vld [vmem:[#allocation9 + $0xa8] sm:$0xff]
    %v580 = vld [vmem:[#allocation9 + $0xb0] sm:$0xf]
    %v581 = vld [vmem:[#allocation9 + $0xb4] sm:$0xff]
    %v582 = vld [vmem:[#allocation9 + $0xbc] sm:$0xf]
    %v583 = vld [vmem:[#allocation12] sm:$0x1]
    %v584 = vld [vmem:[#allocation2] sm:$0xff]
    %v585 = vld [vmem:[#allocation2 + $0x8] sm:$0xff]
    %v586 = vld [vmem:[#allocation3] sm:$0xff]
    %v587 = vld [vmem:[#allocation3 + $0x8] sm:$0xff]
    %v588 = vld [vmem:[#allocation3 + $0x10] sm:$0xff]
    %v589 = vld [vmem:[#allocation3 + $0x18] sm:$0xff]
    %v590 = vld [vmem:[#allocation3 + $0x20] sm:$0xff]
    %v591 = vld [vmem:[#allocation3 + $0x28] sm:$0xff]
    %v592 = vpack.c.bf16 %v585, %v584
    %v625 = vunpack.c.l.b16 %v551
    %v626 = vunpack.c.h.b16 %v551
    %v627 = vunpack.c.l.b16 %v552
    %v628 = vunpack.c.l.b16 %v553
    %v629 = vunpack.c.h.b16 %v553
    %v630 = vunpack.c.l.b16 %v554
    %v631 = vunpack.c.l.b16 %v555
    %v632 = vunpack.c.h.b16 %v555
    %v633 = vunpack.c.l.b16 %v556
    %v634 = vunpack.c.l.b16 %v557
    %v635 = vunpack.c.h.b16 %v557
    %v636 = vunpack.c.l.b16 %v558
    %v637 = vunpack.c.l.b16 %v559
    %v638 = vunpack.c.h.b16 %v559
    %v639 = vunpack.c.l.b16 %v560
    %v640 = vunpack.c.l.b16 %v561
    %v641 = vunpack.c.h.b16 %v561
    %v642 = vunpack.c.l.b16 %v562
    %v643 = vunpack.c.l.b16 %v563
    %v644 = vunpack.c.h.b16 %v563
    %v645 = vunpack.c.l.b16 %v564
    %v646 = vunpack.c.l.b16 %v565
    %v647 = vunpack.c.h.b16 %v565
    %v648 = vunpack.c.l.b16 %v566
    %v649 = vunpack.c.l.b16 %v567
    %v650 = vunpack.c.h.b16 %v567
    %v651 = vunpack.c.l.b16 %v568
    %v652 = vunpack.c.l.b16 %v569
    %v653 = vunpack.c.h.b16 %v569
    %v654 = vunpack.c.l.b16 %v570
    %v655 = vunpack.c.l.b16 %v571
    %v656 = vunpack.c.h.b16 %v571
    %v657 = vunpack.c.l.b16 %v572
    %v658 = vunpack.c.l.b16 %v573
    %v659 = vunpack.c.h.b16 %v573
    %v660 = vunpack.c.l.b16 %v574
    %v661 = vunpack.c.l.b16 %v575
    %v662 = vunpack.c.h.b16 %v575
    %v663 = vunpack.c.l.b16 %v576
    %v664 = vunpack.c.l.b16 %v577
    %v665 = vunpack.c.h.b16 %v577
    %v666 = vunpack.c.l.b16 %v578
    %v667 = vunpack.c.l.b16 %v579
    %v668 = vunpack.c.h.b16 %v579
    %v669 = vunpack.c.l.b16 %v580
    %v670 = vunpack.c.l.b16 %v581
    %v671 = vunpack.c.h.b16 %v581
    %v672 = vunpack.c.l.b16 %v582
    %v673 = vpack.c.b16 %v628, %v625
    %v674 = vpack.c.b16 %v629, %v626
    %v675 = vpack.c.b16 %v630, %v627
    %v676 = vpack.c.b16 %v634, %v631
    %v677 = vpack.c.b16 %v635, %v632
    %v678 = vpack.c.b16 %v636, %v633
    %v679 = vpack.c.b16 %v640, %v637
    %v680 = vpack.c.b16 %v641, %v638
    %v681 = vpack.c.b16 %v642, %v639
    %v682 = vpack.c.b16 %v646, %v643
    %v683 = vpack.c.b16 %v647, %v644
    %v684 = vpack.c.b16 %v648, %v645
    %v685 = vpack.c.b16 %v652, %v649
    %v686 = vpack.c.b16 %v653, %v650
    %v687 = vpack.c.b16 %v654, %v651
    %v688 = vpack.c.b16 %v658, %v655
    %v689 = vpack.c.b16 %v659, %v656
    %v690 = vpack.c.b16 %v660, %v657
    %v691 = vpack.c.b16 %v664, %v661
    %v692 = vpack.c.b16 %v665, %v662
    %v693 = vpack.c.b16 %v666, %v663
    %v694 = vpack.c.b16 %v670, %v667
    %v695 = vpack.c.b16 %v671, %v668
    %v696 = vpack.c.b16 %v672, %v669
    %721 = vmatprep.subr.bf16.mxu0 %v674
    %722 = vmatpush1.bf16.msra.mxu0 %v673
    %723 = vmatprep.subr.bf16.mxu0 %v677
    %724 = vmatpush1.bf16.msra.mxu0 %v676
    %725 = vmatprep.subr.bf16.mxu0 %v680
    %726 = vmatpush1.bf16.msra.mxu0 %v679
    %727 = vmatprep.subr.bf16.mxu0 %v683
    %728 = vmatpush1.bf16.msra.mxu0 %v682
    %729 = vmatprep.subr.bf16.mxu0 %v686
    %730 = vmatpush1.bf16.msra.mxu0 %v685
    %731 = vmatprep.subr.bf16.mxu0 %v689
    %732 = vmatpush1.bf16.msra.mxu0 %v688
    %733 = vmatprep.subr.bf16.mxu0 %v692
    %734 = vmatpush1.bf16.msra.mxu0 %v691
    %735 = vmatprep.subr.bf16.mxu0 %v695
    %736 = vmatpush1.bf16.msra.mxu0 %v694
    %737 = vmatprep.subr.bf16.mxu0 0
    %738 = vmatpush1.bf16.msra.mxu0 0
    %739 = vmatprep.subr.bf16.mxu0 0
    %740 = vmatpush1.bf16.msra.mxu0 0
    %741 = vmatprep.subr.bf16.mxu0 0
    %742 = vmatpush1.bf16.msra.mxu0 0
    %743 = vmatprep.subr.bf16.mxu0 0
    %744 = vmatpush1.bf16.msra.mxu0 0
    %745 = vmatprep.subr.bf16.mxu0 0
    %746 = vmatpush1.bf16.msra.mxu0 0
    %747 = vmatprep.subr.bf16.mxu0 0
    %748 = vmatpush1.bf16.msra.mxu0 0
    %749 = vmatprep.subr.bf16.mxu0 0
    %750 = vmatpush1.bf16.msra.mxu0 0
    %751 = vmatprep.subr.bf16.mxu0 0
    %752 = vmatpush1.bf16.msra.mxu0 0
    %753 = vmatprep.mubr.bf16.mxu0 0
    %754 = vmatmul.mubr.bf16.gmra.mrb[0].mxu0 %v592
    %v755 = vpop.f32.mrb[0].mxu0
    %v756 = vadd.f32 0.0, %v755
    %v757 = vpop.f32.mrb[0].mxu0
    %v758 = vadd.f32 0.0, %v757
    %v759 = vpop.f32.mrb[0].mxu0
    %v760 = vadd.f32 0.0, %v759
    %v761 = vpop.f32.mrb[0].mxu0
    %v762 = vadd.f32 0.0, %v761
    %763 = vdwg.mxu0
    %764 = vmatprep.subr.bf16.mxu0 0
    %765 = vmatpush1.bf16.msra.mxu0 %v675
    %766 = vmatprep.subr.bf16.mxu0 0
    %767 = vmatpush1.bf16.msra.mxu0 %v678
    %768 = vmatprep.subr.bf16.mxu0 0
    %769 = vmatpush1.bf16.msra.mxu0 %v681
    %770 = vmatprep.subr.bf16.mxu0 0
    %771 = vmatpush1.bf16.msra.mxu0 %v684
    %772 = vmatprep.subr.bf16.mxu0 0
    %773 = vmatpush1.bf16.msra.mxu0 %v687
    %774 = vmatprep.subr.bf16.mxu0 0
    %775 = vmatpush1.bf16.msra.mxu0 %v690
    %776 = vmatprep.subr.bf16.mxu0 0
    %777 = vmatpush1.bf16.msra.mxu0 %v693
    %778 = vmatprep.subr.bf16.mxu0 0
    %779 = vmatpush1.bf16.msra.mxu0 %v696
    %780 = vmatprep.subr.bf16.mxu0 0
    %781 = vmatpush1.bf16.msra.mxu0 0
    %782 = vmatprep.subr.bf16.mxu0 0
    %783 = vmatpush1.bf16.msra.mxu0 0
    %784 = vmatprep.subr.bf16.mxu0 0
    %785 = vmatpush1.bf16.msra.mxu0 0
    %786 = vmatprep.subr.bf16.mxu0 0
    %787 = vmatpush1.bf16.msra.mxu0 0
    %788 = vmatprep.subr.bf16.mxu0 0
    %789 = vmatpush1.bf16.msra.mxu0 0
    %790 = vmatprep.subr.bf16.mxu0 0
    %791 = vmatpush1.bf16.msra.mxu0 0
    %792 = vmatprep.subr.bf16.mxu0 0
    %793 = vmatpush1.bf16.msra.mxu0 0
    %794 = vmatprep.subr.bf16.mxu0 0
    %795 = vmatpush1.bf16.msra.mxu0 0
    %796 = vmatprep.mubr.bf16.mxu0 0
    %797 = vmatmul.mubr.bf16.gmra.mrb[0].mxu0 %v592
    %v798 = vpop.f32.mrb[0].mxu0
    %v799 = vadd.f32 0.0, %v798
    %v800 = vpop.f32.mrb[0].mxu0
    %v801 = vpop.f32.mrb[0].mxu0
    %v802 = vadd.f32 0.0, %v801
    %v803 = vpop.f32.mrb[0].mxu0
    %804 = vdwg.mxu0
    %v805 = vadd.f32 %v586, %v756
    %v806 = vadd.f32 %v589, %v760
    %v807 = vxor.u32 %v805, 2147483648
    %v808 = vxor.u32 %v806, 2147483648
    %v809 = vmul.f32 %v807, 1.442695
    %v810 = vpow.pop %v809
    %v811 = vmul.f32 %v808, 1.442695
    %v812 = vpow.pop %v811
    %v813 = vadd.f32 %v810, 1.0
    %v814 = vadd.f32 %v812, 1.0
    %v815 = vrcp.pop %v813
    %v816 = vmul.f32 1.0, %v815
    %v817 = vrcp.pop %v814
    %v818 = vmul.f32 1.0, %v817
    %v819 = vadd.f32 %v587, %v758
    %v820 = vadd.f32 %v590, %v762
    %v821 = vxor.u32 %v819, 2147483648
    %v822 = vxor.u32 %v820, 2147483648
    %v823 = vmul.f32 %v821, 1.442695
    %v824 = vpow.pop %v823
    %v825 = vmul.f32 %v822, 1.442695
    %v826 = vpow.pop %v825
    %v827 = vadd.f32 %v824, 1.0
    %v828 = vadd.f32 %v826, 1.0
    %v829 = vrcp.pop %v827
    %v830 = vmul.f32 1.0, %v829
    %v831 = vrcp.pop %v828
    %v832 = vmul.f32 1.0, %v831
    %v834 = vlaneseq
    %v835 = vshrl.u32 %v834, 7
    %v836 = vsub.s32 0, %v835
    %v837 = vrot.slane %v583, %v836
    %v839 = vadd.f32 %v799, %v837
    %v840 = vadd.f32 %v802, %v837
    %v841 = vmul.f32 %v816, %v839
    %v842 = vmul.f32 %v818, %v840
    %v843 = vadd.f32 %v588, %v841
    %v844 = vadd.f32 %v591, %v842
    %v845 = vtanh.pop %v843
    %v846 = vtanh.pop %v844
    %v847 = vsub.f32 %v584, %v845
    %v848 = vsub.f32 %v585, %v846
    %v849 = vmul.f32 %v830, %v847
    %v850 = vmul.f32 %v832, %v848
    %v851 = vadd.f32 %v845, %v849
    %v852 = vadd.f32 %v846, %v850
    %853 = vst [vmem:[#allocation2] sm:$0xff] %v851
    %854 = vst [vmem:[#allocation2 + $0x8] sm:$0xff] %v852
    %v855 = vpack.c.bf16 %v852, %v851
    %v857 = vunpack.c.l.b16 %v855
    %v858 = vunpack.c.h.b16 %v855
    %v859 = vpack.c.b16 %v857, %v857
    %v860 = vpack.c.b16 %v858, %v858
    %863 = vst [vmem:[#allocation13] sm:$0xf] %v859
    %864 = vst [vmem:[#allocation13 + $0x4] sm:$0xf] %v860
    %v865 = vld [vmem:[#allocation2] sm:$0xff]
    %v866 = vld [vmem:[#allocation2 + $0x8] sm:$0xff]
    %s867 = scalar_lea.vmem [#allocation3], 48
    %v868 = vld [vmem:[%s867] sm:$0xff]
    %v869 = vld [vmem:[%s867 + $0x8] sm:$0xff]
    %v870 = vld [vmem:[%s867 + $0x10] sm:$0xff]
    %v871 = vld [vmem:[%s867 + $0x18] sm:$0xff]
    %v872 = vld [vmem:[%s867 + $0x20] sm:$0xff]
    %v873 = vld [vmem:[%s867 + $0x28] sm:$0xff]
    %v874 = vpack.c.bf16 %v866, %v865
    %875 = vmatprep.subr.bf16.mxu0 %v674
    %876 = vmatpush1.bf16.msra.mxu0 %v673
    %877 = vmatprep.subr.bf16.mxu0 %v677
    %878 = vmatpush1.bf16.msra.mxu0 %v676
    %879 = vmatprep.subr.bf16.mxu0 %v680
    %880 = vmatpush1.bf16.msra.mxu0 %v679
    %881 = vmatprep.subr.bf16.mxu0 %v683
    %882 = vmatpush1.bf16.msra.mxu0 %v682
    %883 = vmatprep.subr.bf16.mxu0 %v686
    %884 = vmatpush1.bf16.msra.mxu0 %v685
    %885 = vmatprep.subr.bf16.mxu0 %v689
    %886 = vmatpush1.bf16.msra.mxu0 %v688
    %887 = vmatprep.subr.bf16.mxu0 %v692
    %888 = vmatpush1.bf16.msra.mxu0 %v691
    %889 = vmatprep.subr.bf16.mxu0 %v695
    %890 = vmatpush1.bf16.msra.mxu0 %v694
    %891 = vmatprep.subr.bf16.mxu0 0
    %892 = vmatpush1.bf16.msra.mxu0 0
    %893 = vmatprep.subr.bf16.mxu0 0
    %894 = vmatpush1.bf16.msra.mxu0 0
    %895 = vmatprep.subr.bf16.mxu0 0
    %896 = vmatpush1.bf16.msra.mxu0 0
    %897 = vmatprep.subr.bf16.mxu0 0
    %898 = vmatpush1.bf16.msra.mxu0 0
    %899 = vmatprep.subr.bf16.mxu0 0
    %900 = vmatpush1.bf16.msra.mxu0 0
    %901 = vmatprep.subr.bf16.mxu0 0
    %902 = vmatpush1.bf16.msra.mxu0 0
    %903 = vmatprep.subr.bf16.mxu0 0
    %904 = vmatpush1.bf16.msra.mxu0 0
    %905 = vmatprep.subr.bf16.mxu0 0
    %906 = vmatpush1.bf16.msra.mxu0 0
    %907 = vmatprep.mubr.bf16.mxu0 0
    %908 = vmatmul.mubr.bf16.gmra.mrb[0].mxu0 %v874
    %v909 = vpop.f32.mrb[0].mxu0
    %v910 = vadd.f32 0.0, %v909
    %v911 = vpop.f32.mrb[0].mxu0
    %v912 = vadd.f32 0.0, %v911
    %v913 = vpop.f32.mrb[0].mxu0
    %v914 = vadd.f32 0.0, %v913
    %v915 = vpop.f32.mrb[0].mxu0
    %v916 = vadd.f32 0.0, %v915
    %917 = vdwg.mxu0
    %918 = vmatprep.subr.bf16.mxu0 0
    %919 = vmatpush1.bf16.msra.mxu0 %v675
    %920 = vmatprep.subr.bf16.mxu0 0
    %921 = vmatpush1.bf16.msra.mxu0 %v678
    %922 = vmatprep.subr.bf16.mxu0 0
    %923 = vmatpush1.bf16.msra.mxu0 %v681
    %924 = vmatprep.subr.bf16.mxu0 0
    %925 = vmatpush1.bf16.msra.mxu0 %v684
    %926 = vmatprep.subr.bf16.mxu0 0
    %927 = vmatpush1.bf16.msra.mxu0 %v687
    %928 = vmatprep.subr.bf16.mxu0 0
    %929 = vmatpush1.bf16.msra.mxu0 %v690
    %930 = vmatprep.subr.bf16.mxu0 0
    %931 = vmatpush1.bf16.msra.mxu0 %v693
    %932 = vmatprep.subr.bf16.mxu0 0
    %933 = vmatpush1.bf16.msra.mxu0 %v696
    %934 = vmatprep.subr.bf16.mxu0 0
    %935 = vmatpush1.bf16.msra.mxu0 0
    %936 = vmatprep.subr.bf16.mxu0 0
    %937 = vmatpush1.bf16.msra.mxu0 0
    %938 = vmatprep.subr.bf16.mxu0 0
    %939 = vmatpush1.bf16.msra.mxu0 0
    %940 = vmatprep.subr.bf16.mxu0 0
    %941 = vmatpush1.bf16.msra.mxu0 0
    %942 = vmatprep.subr.bf16.mxu0 0
    %943 = vmatpush1.bf16.msra.mxu0 0
    %944 = vmatprep.subr.bf16.mxu0 0
    %945 = vmatpush1.bf16.msra.mxu0 0
    %946 = vmatprep.subr.bf16.mxu0 0
    %947 = vmatpush1.bf16.msra.mxu0 0
    %948 = vmatprep.subr.bf16.mxu0 0
    %949 = vmatpush1.bf16.msra.mxu0 0
    %950 = vmatprep.mubr.bf16.mxu0 0
    %951 = vmatmul.mubr.bf16.gmra.mrb[0].mxu0 %v874
    %v952 = vpop.f32.mrb[0].mxu0
    %v953 = vadd.f32 0.0, %v952
    %v954 = vpop.f32.mrb[0].mxu0
    %v955 = vpop.f32.mrb[0].mxu0
    %v956 = vadd.f32 0.0, %v955
    %v957 = vpop.f32.mrb[0].mxu0
    %958 = vdwg.mxu0
    %v959 = vadd.f32 %v868, %v910
    %v960 = vadd.f32 %v871, %v914
    %v961 = vxor.u32 %v959, 2147483648
    %v962 = vxor.u32 %v960, 2147483648
    %v963 = vmul.f32 %v961, 1.442695
    %v964 = vpow.pop %v963
    %v965 = vmul.f32 %v962, 1.442695
    %v966 = vpow.pop %v965
    %v967 = vadd.f32 %v964, 1.0
    %v968 = vadd.f32 %v966, 1.0
    %v969 = vrcp.pop %v967
    %v970 = vmul.f32 1.0, %v969
    %v971 = vrcp.pop %v968
    %v972 = vmul.f32 1.0, %v971
    %v973 = vadd.f32 %v869, %v912
    %v974 = vadd.f32 %v872, %v916
    %v975 = vxor.u32 %v973, 2147483648
    %v976 = vxor.u32 %v974, 2147483648
    %v977 = vmul.f32 %v975, 1.442695
    %v978 = vpow.pop %v977
    %v979 = vmul.f32 %v976, 1.442695
    %v980 = vpow.pop %v979
    %v981 = vadd.f32 %v978, 1.0
    %v982 = vadd.f32 %v980, 1.0
    %v983 = vrcp.pop %v981
    %v984 = vmul.f32 1.0, %v983
    %v985 = vrcp.pop %v982
    %v986 = vmul.f32 1.0, %v985
    %v987 = vadd.f32 %v953, %v837
    %v988 = vadd.f32 %v956, %v837
    %v989 = vmul.f32 %v970, %v987
    %v990 = vmul.f32 %v972, %v988
    %v991 = vadd.f32 %v870, %v989
    %v992 = vadd.f32 %v873, %v990
    %v993 = vtanh.pop %v991
    %v994 = vtanh.pop %v992
    %v995 = vsub.f32 %v865, %v993
    %v996 = vsub.f32 %v866, %v994
    %v997 = vmul.f32 %v984, %v995
    %v998 = vmul.f32 %v986, %v996
    %v999 = vadd.f32 %v993, %v997
    %v1000 = vadd.f32 %v994, %v998
    %1001 = vst [vmem:[#allocation2] sm:$0xff] %v999
    %1002 = vst [vmem:[#allocation2 + $0x8] sm:$0xff] %v1000
    %v1003 = vpack.c.bf16 %v1000, %v999
    %v1005 = vunpack.c.l.b16 %v1003
    %v1006 = vunpack.c.h.b16 %v1003
    %v1007 = vpack.c.b16 %v1005, %v1005
    %v1008 = vpack.c.b16 %v1006, %v1006
    %s1011 = scalar_lea.vmem [#allocation13], 8
    %1012 = vst [vmem:[%s1011] sm:$0xf] %v1007
    %1013 = vst [vmem:[%s1011 + $0x4] sm:$0xf] %v1008
    %v1014 = vld [vmem:[#allocation2] sm:$0xff]
    %v1015 = vld [vmem:[#allocation2 + $0x8] sm:$0xff]
    %s1016 = scalar_lea.vmem [#allocation3], 96
    %v1017 = vld [vmem:[%s1016] sm:$0xff]
    %v1018 = vld [vmem:[%s1016 + $0x8] sm:$0xff]
    %v1019 = vld [vmem:[%s1016 + $0x10] sm:$0xff]
    %v1020 = vld [vmem:[%s1016 + $0x18] sm:$0xff]
    %v1021 = vld [vmem:[%s1016 + $0x20] sm:$0xff]
    %v1022 = vld [vmem:[%s1016 + $0x28] sm:$0xff]
    %v1023 = vpack.c.bf16 %v1015, %v1014
    %1024 = vmatprep.subr.bf16.mxu0 %v674
    %1025 = vmatpush1.bf16.msra.mxu0 %v673
    %1026 = vmatprep.subr.bf16.mxu0 %v677
    %1027 = vmatpush1.bf16.msra.mxu0 %v676
    %1028 = vmatprep.subr.bf16.mxu0 %v680
    %1029 = vmatpush1.bf16.msra.mxu0 %v679
    %1030 = vmatprep.subr.bf16.mxu0 %v683
    %1031 = vmatpush1.bf16.msra.mxu0 %v682
    %1032 = vmatprep.subr.bf16.mxu0 %v686
    %1033 = vmatpush1.bf16.msra.mxu0 %v685
    %1034 = vmatprep.subr.bf16.mxu0 %v689
    %1035 = vmatpush1.bf16.msra.mxu0 %v688
    %1036 = vmatprep.subr.bf16.mxu0 %v692
    %1037 = vmatpush1.bf16.msra.mxu0 %v691
    %1038 = vmatprep.subr.bf16.mxu0 %v695
    %1039 = vmatpush1.bf16.msra.mxu0 %v694
    %1040 = vmatprep.subr.bf16.mxu0 0
    %1041 = vmatpush1.bf16.msra.mxu0 0
    %1042 = vmatprep.subr.bf16.mxu0 0
    %1043 = vmatpush1.bf16.msra.mxu0 0
    %1044 = vmatprep.subr.bf16.mxu0 0
    %1045 = vmatpush1.bf16.msra.mxu0 0
    %1046 = vmatprep.subr.bf16.mxu0 0
    %1047 = vmatpush1.bf16.msra.mxu0 0
    %1048 = vmatprep.subr.bf16.mxu0 0
    %1049 = vmatpush1.bf16.msra.mxu0 0
    %1050 = vmatprep.subr.bf16.mxu0 0
    %1051 = vmatpush1.bf16.msra.mxu0 0
    %1052 = vmatprep.subr.bf16.mxu0 0
    %1053 = vmatpush1.bf16.msra.mxu0 0
    %1054 = vmatprep.subr.bf16.mxu0 0
    %1055 = vmatpush1.bf16.msra.mxu0 0
    %1056 = vmatprep.mubr.bf16.mxu0 0
    %1057 = vmatmul.mubr.bf16.gmra.mrb[0].mxu0 %v1023
    %v1058 = vpop.f32.mrb[0].mxu0
    %v1059 = vadd.f32 0.0, %v1058
    %v1060 = vpop.f32.mrb[0].mxu0
    %v1061 = vadd.f32 0.0, %v1060
    %v1062 = vpop.f32.mrb[0].mxu0
    %v1063 = vadd.f32 0.0, %v1062
    %v1064 = vpop.f32.mrb[0].mxu0
    %v1065 = vadd.f32 0.0, %v1064
    %1066 = vdwg.mxu0
    %1067 = vmatprep.subr.bf16.mxu0 0
    %1068 = vmatpush1.bf16.msra.mxu0 %v675
    %1069 = vmatprep.subr.bf16.mxu0 0
    %1070 = vmatpush1.bf16.msra.mxu0 %v678
    %1071 = vmatprep.subr.bf16.mxu0 0
    %1072 = vmatpush1.bf16.msra.mxu0 %v681
    %1073 = vmatprep.subr.bf16.mxu0 0
    %1074 = vmatpush1.bf16.msra.mxu0 %v684
    %1075 = vmatprep.subr.bf16.mxu0 0
    %1076 = vmatpush1.bf16.msra.mxu0 %v687
    %1077 = vmatprep.subr.bf16.mxu0 0
    %1078 = vmatpush1.bf16.msra.mxu0 %v690
    %1079 = vmatprep.subr.bf16.mxu0 0
    %1080 = vmatpush1.bf16.msra.mxu0 %v693
    %1081 = vmatprep.subr.bf16.mxu0 0
    %1082 = vmatpush1.bf16.msra.mxu0 %v696
    %1083 = vmatprep.subr.bf16.mxu0 0
    %1084 = vmatpush1.bf16.msra.mxu0 0
    %1085 = vmatprep.subr.bf16.mxu0 0
    %1086 = vmatpush1.bf16.msra.mxu0 0
    %1087 = vmatprep.subr.bf16.mxu0 0
    %1088 = vmatpush1.bf16.msra.mxu0 0
    %1089 = vmatprep.subr.bf16.mxu0 0
    %1090 = vmatpush1.bf16.msra.mxu0 0
    %1091 = vmatprep.subr.bf16.mxu0 0
    %1092 = vmatpush1.bf16.msra.mxu0 0
    %1093 = vmatprep.subr.bf16.mxu0 0
    %1094 = vmatpush1.bf16.msra.mxu0 0
    %1095 = vmatprep.subr.bf16.mxu0 0
    %1096 = vmatpush1.bf16.msra.mxu0 0
    %1097 = vmatprep.subr.bf16.mxu0 0
    %1098 = vmatpush1.bf16.msra.mxu0 0
    %1099 = vmatprep.mubr.bf16.mxu0 0
    %1100 = vmatmul.mubr.bf16.gmra.mrb[0].mxu0 %v1023
    %v1101 = vpop.f32.mrb[0].mxu0
    %v1102 = vadd.f32 0.0, %v1101
    %v1103 = vpop.f32.mrb[0].mxu0
    %v1104 = vpop.f32.mrb[0].mxu0
    %v1105 = vadd.f32 0.0, %v1104
    %v1106 = vpop.f32.mrb[0].mxu0
    %1107 = vdwg.mxu0
    %v1108 = vadd.f32 %v1017, %v1059
    %v1109 = vadd.f32 %v1020, %v1063
    %v1110 = vxor.u32 %v1108, 2147483648
    %v1111 = vxor.u32 %v1109, 2147483648
    %v1112 = vmul.f32 %v1110, 1.442695
    %v1113 = vpow.pop %v1112
    %v1114 = vmul.f32 %v1111, 1.442695
    %v1115 = vpow.pop %v1114
    %v1116 = vadd.f32 %v1113, 1.0
    %v1117 = vadd.f32 %v1115, 1.0
    %v1118 = vrcp.pop %v1116
    %v1119 = vmul.f32 1.0, %v1118
    %v1120 = vrcp.pop %v1117
    %v1121 = vmul.f32 1.0, %v1120
    %v1122 = vadd.f32 %v1018, %v1061
    %v1123 = vadd.f32 %v1021, %v1065
    %v1124 = vxor.u32 %v1122, 2147483648
    %v1125 = vxor.u32 %v1123, 2147483648
    %v1126 = vmul.f32 %v1124, 1.442695
    %v1127 = vpow.pop %v1126
    %v1128 = vmul.f32 %v1125, 1.442695
    %v1129 = vpow.pop %v1128
    %v1130 = vadd.f32 %v1127, 1.0
    %v1131 = vadd.f32 %v1129, 1.0
    %v1132 = vrcp.pop %v1130
    %v1133 = vmul.f32 1.0, %v1132
    %v1134 = vrcp.pop %v1131
    %v1135 = vmul.f32 1.0, %v1134
    %v1136 = vadd.f32 %v1102, %v837
    %v1137 = vadd.f32 %v1105, %v837
    %v1138 = vmul.f32 %v1119, %v1136
    %v1139 = vmul.f32 %v1121, %v1137
    %v1140 = vadd.f32 %v1019, %v1138
    %v1141 = vadd.f32 %v1022, %v1139
    %v1142 = vtanh.pop %v1140
    %v1143 = vtanh.pop %v1141
    %v1144 = vsub.f32 %v1014, %v1142
    %v1145 = vsub.f32 %v1015, %v1143
    %v1146 = vmul.f32 %v1133, %v1144
    %v1147 = vmul.f32 %v1135, %v1145
    %v1148 = vadd.f32 %v1142, %v1146
    %v1149 = vadd.f32 %v1143, %v1147
    %1150 = vst [vmem:[#allocation2] sm:$0xff] %v1148
    %1151 = vst [vmem:[#allocation2 + $0x8] sm:$0xff] %v1149
    %v1152 = vpack.c.bf16 %v1149, %v1148
    %v1154 = vunpack.c.l.b16 %v1152
    %v1155 = vunpack.c.h.b16 %v1152
    %v1156 = vpack.c.b16 %v1154, %v1154
    %v1157 = vpack.c.b16 %v1155, %v1155
    %s1160 = scalar_lea.vmem [#allocation13], 16
    %1161 = vst [vmem:[%s1160] sm:$0xf] %v1156
    %1162 = vst [vmem:[%s1160 + $0x4] sm:$0xf] %v1157
    %v1163 = vld [vmem:[#allocation2] sm:$0xff]
    %v1164 = vld [vmem:[#allocation2 + $0x8] sm:$0xff]
    %s1165 = scalar_lea.vmem [#allocation3], 144
    %v1166 = vld [vmem:[%s1165] sm:$0xff]
    %v1167 = vld [vmem:[%s1165 + $0x8] sm:$0xff]
    %v1168 = vld [vmem:[%s1165 + $0x10] sm:$0xff]
    %v1169 = vld [vmem:[%s1165 + $0x18] sm:$0xff]
    %v1170 = vld [vmem:[%s1165 + $0x20] sm:$0xff]
    %v1171 = vld [vmem:[%s1165 + $0x28] sm:$0xff]
    %v1172 = vpack.c.bf16 %v1164, %v1163
    %1173 = vmatprep.subr.bf16.mxu0 %v674
    %1174 = vmatpush1.bf16.msra.mxu0 %v673
    %1175 = vmatprep.subr.bf16.mxu0 %v677
    %1176 = vmatpush1.bf16.msra.mxu0 %v676
    %1177 = vmatprep.subr.bf16.mxu0 %v680
    %1178 = vmatpush1.bf16.msra.mxu0 %v679
    %1179 = vmatprep.subr.bf16.mxu0 %v683
    %1180 = vmatpush1.bf16.msra.mxu0 %v682
    %1181 = vmatprep.subr.bf16.mxu0 %v686
    %1182 = vmatpush1.bf16.msra.mxu0 %v685
    %1183 = vmatprep.subr.bf16.mxu0 %v689
    %1184 = vmatpush1.bf16.msra.mxu0 %v688
    %1185 = vmatprep.subr.bf16.mxu0 %v692
    %1186 = vmatpush1.bf16.msra.mxu0 %v691
    %1187 = vmatprep.subr.bf16.mxu0 %v695
    %1188 = vmatpush1.bf16.msra.mxu0 %v694
    %1189 = vmatprep.subr.bf16.mxu0 0
    %1190 = vmatpush1.bf16.msra.mxu0 0
    %1191 = vmatprep.subr.bf16.mxu0 0
    %1192 = vmatpush1.bf16.msra.mxu0 0
    %1193 = vmatprep.subr.bf16.mxu0 0
    %1194 = vmatpush1.bf16.msra.mxu0 0
    %1195 = vmatprep.subr.bf16.mxu0 0
    %1196 = vmatpush1.bf16.msra.mxu0 0
    %1197 = vmatprep.subr.bf16.mxu0 0
    %1198 = vmatpush1.bf16.msra.mxu0 0
    %1199 = vmatprep.subr.bf16.mxu0 0
    %1200 = vmatpush1.bf16.msra.mxu0 0
    %1201 = vmatprep.subr.bf16.mxu0 0
    %1202 = vmatpush1.bf16.msra.mxu0 0
    %1203 = vmatprep.subr.bf16.mxu0 0
    %1204 = vmatpush1.bf16.msra.mxu0 0
    %1205 = vmatprep.mubr.bf16.mxu0 0
    %1206 = vmatmul.mubr.bf16.gmra.mrb[0].mxu0 %v1172
    %v1207 = vpop.f32.mrb[0].mxu0
    %v1208 = vadd.f32 0.0, %v1207
    %v1209 = vpop.f32.mrb[0].mxu0
    %v1210 = vadd.f32 0.0, %v1209
    %v1211 = vpop.f32.mrb[0].mxu0
    %v1212 = vadd.f32 0.0, %v1211
    %v1213 = vpop.f32.mrb[0].mxu0
    %v1214 = vadd.f32 0.0, %v1213
    %1215 = vdwg.mxu0
    %1216 = vmatprep.subr.bf16.mxu0 0
    %1217 = vmatpush1.bf16.msra.mxu0 %v675
    %1218 = vmatprep.subr.bf16.mxu0 0
    %1219 = vmatpush1.bf16.msra.mxu0 %v678
    %1220 = vmatprep.subr.bf16.mxu0 0
    %1221 = vmatpush1.bf16.msra.mxu0 %v681
    %1222 = vmatprep.subr.bf16.mxu0 0
    %1223 = vmatpush1.bf16.msra.mxu0 %v684
    %1224 = vmatprep.subr.bf16.mxu0 0
    %1225 = vmatpush1.bf16.msra.mxu0 %v687
    %1226 = vmatprep.subr.bf16.mxu0 0
    %1227 = vmatpush1.bf16.msra.mxu0 %v690
    %1228 = vmatprep.subr.bf16.mxu0 0
    %1229 = vmatpush1.bf16.msra.mxu0 %v693
    %1230 = vmatprep.subr.bf16.mxu0 0
    %1231 = vmatpush1.bf16.msra.mxu0 %v696
    %1232 = vmatprep.subr.bf16.mxu0 0
    %1233 = vmatpush1.bf16.msra.mxu0 0
    %1234 = vmatprep.subr.bf16.mxu0 0
    %1235 = vmatpush1.bf16.msra.mxu0 0
    %1236 = vmatprep.subr.bf16.mxu0 0
    %1237 = vmatpush1.bf16.msra.mxu0 0
    %1238 = vmatprep.subr.bf16.mxu0 0
    %1239 = vmatpush1.bf16.msra.mxu0 0
    %1240 = vmatprep.subr.bf16.mxu0 0
    %1241 = vmatpush1.bf16.msra.mxu0 0
    %1242 = vmatprep.subr.bf16.mxu0 0
    %1243 = vmatpush1.bf16.msra.mxu0 0
    %1244 = vmatprep.subr.bf16.mxu0 0
    %1245 = vmatpush1.bf16.msra.mxu0 0
    %1246 = vmatprep.subr.bf16.mxu0 0
    %1247 = vmatpush1.bf16.msra.mxu0 0
    %1248 = vmatprep.mubr.bf16.mxu0 0
    %1249 = vmatmul.mubr.bf16.gmra.mrb[0].mxu0 %v1172
    %v1250 = vpop.f32.mrb[0].mxu0
    %v1251 = vadd.f32 0.0, %v1250
    %v1252 = vpop.f32.mrb[0].mxu0
    %v1253 = vpop.f32.mrb[0].mxu0
    %v1254 = vadd.f32 0.0, %v1253
    %v1255 = vpop.f32.mrb[0].mxu0
    %1256 = vdwg.mxu0
    %v1257 = vadd.f32 %v1166, %v1208
    %v1258 = vadd.f32 %v1169, %v1212
    %v1259 = vxor.u32 %v1257, 2147483648
    %v1260 = vxor.u32 %v1258, 2147483648
    %v1261 = vmul.f32 %v1259, 1.442695
    %v1262 = vpow.pop %v1261
    %v1263 = vmul.f32 %v1260, 1.442695
    %v1264 = vpow.pop %v1263
    %v1265 = vadd.f32 %v1262, 1.0
    %v1266 = vadd.f32 %v1264, 1.0
    %v1267 = vrcp.pop %v1265
    %v1268 = vmul.f32 1.0, %v1267
    %v1269 = vrcp.pop %v1266
    %v1270 = vmul.f32 1.0, %v1269
    %v1271 = vadd.f32 %v1167, %v1210
    %v1272 = vadd.f32 %v1170, %v1214
    %v1273 = vxor.u32 %v1271, 2147483648
    %v1274 = vxor.u32 %v1272, 2147483648
    %v1275 = vmul.f32 %v1273, 1.442695
    %v1276 = vpow.pop %v1275
    %v1277 = vmul.f32 %v1274, 1.442695
    %v1278 = vpow.pop %v1277
    %v1279 = vadd.f32 %v1276, 1.0
    %v1280 = vadd.f32 %v1278, 1.0
    %v1281 = vrcp.pop %v1279
    %v1282 = vmul.f32 1.0, %v1281
    %v1283 = vrcp.pop %v1280
    %v1284 = vmul.f32 1.0, %v1283
    %v1285 = vadd.f32 %v1251, %v837
    %v1286 = vadd.f32 %v1254, %v837
    %v1287 = vmul.f32 %v1268, %v1285
    %v1288 = vmul.f32 %v1270, %v1286
    %v1289 = vadd.f32 %v1168, %v1287
    %v1290 = vadd.f32 %v1171, %v1288
    %v1291 = vtanh.pop %v1289
    %v1292 = vtanh.pop %v1290
    %v1293 = vsub.f32 %v1163, %v1291
    %v1294 = vsub.f32 %v1164, %v1292
    %v1295 = vmul.f32 %v1282, %v1293
    %v1296 = vmul.f32 %v1284, %v1294
    %v1297 = vadd.f32 %v1291, %v1295
    %v1298 = vadd.f32 %v1292, %v1296
    %1299 = vst [vmem:[#allocation2] sm:$0xff] %v1297
    %1300 = vst [vmem:[#allocation2 + $0x8] sm:$0xff] %v1298
    %v1301 = vpack.c.bf16 %v1298, %v1297
    %v1303 = vunpack.c.l.b16 %v1301
    %v1304 = vunpack.c.h.b16 %v1301
    %v1305 = vpack.c.b16 %v1303, %v1303
    %v1306 = vpack.c.b16 %v1304, %v1304
    %s1309 = scalar_lea.vmem [#allocation13], 24
    %1310 = vst [vmem:[%s1309] sm:$0xf] %v1305
    %1311 = vst [vmem:[%s1309 + $0x4] sm:$0xf] %v1306
    %v1312 = vld [vmem:[#allocation2] sm:$0xff]
    %v1313 = vld [vmem:[#allocation2 + $0x8] sm:$0xff]
    %s1314 = scalar_lea.vmem [#allocation3], 192
    %v1315 = vld [vmem:[%s1314] sm:$0xff]
    %v1316 = vld [vmem:[%s1314 + $0x8] sm:$0xff]
    %v1317 = vld [vmem:[%s1314 + $0x10] sm:$0xff]
    %v1318 = vld [vmem:[%s1314 + $0x18] sm:$0xff]
    %v1319 = vld [vmem:[%s1314 + $0x20] sm:$0xff]
    %v1320 = vld [vmem:[%s1314 + $0x28] sm:$0xff]
    %v1321 = vpack.c.bf16 %v1313, %v1312
    %1322 = vmatprep.subr.bf16.mxu0 %v674
    %1323 = vmatpush1.bf16.msra.mxu0 %v673
    %1324 = vmatprep.subr.bf16.mxu0 %v677
    %1325 = vmatpush1.bf16.msra.mxu0 %v676
    %1326 = vmatprep.subr.bf16.mxu0 %v680
    %1327 = vmatpush1.bf16.msra.mxu0 %v679
    %1328 = vmatprep.subr.bf16.mxu0 %v683
    %1329 = vmatpush1.bf16.msra.mxu0 %v682
    %1330 = vmatprep.subr.bf16.mxu0 %v686
    %1331 = vmatpush1.bf16.msra.mxu0 %v685
    %1332 = vmatprep.subr.bf16.mxu0 %v689
    %1333 = vmatpush1.bf16.msra.mxu0 %v688
    %1334 = vmatprep.subr.bf16.mxu0 %v692
    %1335 = vmatpush1.bf16.msra.mxu0 %v691
    %1336 = vmatprep.subr.bf16.mxu0 %v695
    %1337 = vmatpush1.bf16.msra.mxu0 %v694
    %1338 = vmatprep.subr.bf16.mxu0 0
    %1339 = vmatpush1.bf16.msra.mxu0 0
    %1340 = vmatprep.subr.bf16.mxu0 0
    %1341 = vmatpush1.bf16.msra.mxu0 0
    %1342 = vmatprep.subr.bf16.mxu0 0
    %1343 = vmatpush1.bf16.msra.mxu0 0
    %1344 = vmatprep.subr.bf16.mxu0 0
    %1345 = vmatpush1.bf16.msra.mxu0 0
    %1346 = vmatprep.subr.bf16.mxu0 0
    %1347 = vmatpush1.bf16.msra.mxu0 0
    %1348 = vmatprep.subr.bf16.mxu0 0
    %1349 = vmatpush1.bf16.msra.mxu0 0
    %1350 = vmatprep.subr.bf16.mxu0 0
    %1351 = vmatpush1.bf16.msra.mxu0 0
    %1352 = vmatprep.subr.bf16.mxu0 0
    %1353 = vmatpush1.bf16.msra.mxu0 0
    %1354 = vmatprep.mubr.bf16.mxu0 0
    %1355 = vmatmul.mubr.bf16.gmra.mrb[0].mxu0 %v1321
    %v1356 = vpop.f32.mrb[0].mxu0
    %v1357 = vadd.f32 0.0, %v1356
    %v1358 = vpop.f32.mrb[0].mxu0
    %v1359 = vadd.f32 0.0, %v1358
    %v1360 = vpop.f32.mrb[0].mxu0
    %v1361 = vadd.f32 0.0, %v1360
    %v1362 = vpop.f32.mrb[0].mxu0
    %v1363 = vadd.f32 0.0, %v1362
    %1364 = vdwg.mxu0
    %1365 = vmatprep.subr.bf16.mxu0 0
    %1366 = vmatpush1.bf16.msra.mxu0 %v675
    %1367 = vmatprep.subr.bf16.mxu0 0
    %1368 = vmatpush1.bf16.msra.mxu0 %v678
    %1369 = vmatprep.subr.bf16.mxu0 0
    %1370 = vmatpush1.bf16.msra.mxu0 %v681
    %1371 = vmatprep.subr.bf16.mxu0 0
    %1372 = vmatpush1.bf16.msra.mxu0 %v684
    %1373 = vmatprep.subr.bf16.mxu0 0
    %1374 = vmatpush1.bf16.msra.mxu0 %v687
    %1375 = vmatprep.subr.bf16.mxu0 0
    %1376 = vmatpush1.bf16.msra.mxu0 %v690
    %1377 = vmatprep.subr.bf16.mxu0 0
    %1378 = vmatpush1.bf16.msra.mxu0 %v693
    %1379 = vmatprep.subr.bf16.mxu0 0
    %1380 = vmatpush1.bf16.msra.mxu0 %v696
    %1381 = vmatprep.subr.bf16.mxu0 0
    %1382 = vmatpush1.bf16.msra.mxu0 0
    %1383 = vmatprep.subr.bf16.mxu0 0
    %1384 = vmatpush1.bf16.msra.mxu0 0
    %1385 = vmatprep.subr.bf16.mxu0 0
    %1386 = vmatpush1.bf16.msra.mxu0 0
    %1387 = vmatprep.subr.bf16.mxu0 0
    %1388 = vmatpush1.bf16.msra.mxu0 0
    %1389 = vmatprep.subr.bf16.mxu0 0
    %1390 = vmatpush1.bf16.msra.mxu0 0
    %1391 = vmatprep.subr.bf16.mxu0 0
    %1392 = vmatpush1.bf16.msra.mxu0 0
    %1393 = vmatprep.subr.bf16.mxu0 0
    %1394 = vmatpush1.bf16.msra.mxu0 0
    %1395 = vmatprep.subr.bf16.mxu0 0
    %1396 = vmatpush1.bf16.msra.mxu0 0
    %1397 = vmatprep.mubr.bf16.mxu0 0
    %1398 = vmatmul.mubr.bf16.gmra.mrb[0].mxu0 %v1321
    %v1399 = vpop.f32.mrb[0].mxu0
    %v1400 = vadd.f32 0.0, %v1399
    %v1401 = vpop.f32.mrb[0].mxu0
    %v1402 = vpop.f32.mrb[0].mxu0
    %v1403 = vadd.f32 0.0, %v1402
    %v1404 = vpop.f32.mrb[0].mxu0
    %1405 = vdwg.mxu0
    %v1406 = vadd.f32 %v1315, %v1357
    %v1407 = vadd.f32 %v1318, %v1361
    %v1408 = vxor.u32 %v1406, 2147483648
    %v1409 = vxor.u32 %v1407, 2147483648
    %v1410 = vmul.f32 %v1408, 1.442695
    %v1411 = vpow.pop %v1410
    %v1412 = vmul.f32 %v1409, 1.442695
    %v1413 = vpow.pop %v1412
    %v1414 = vadd.f32 %v1411, 1.0
    %v1415 = vadd.f32 %v1413, 1.0
    %v1416 = vrcp.pop %v1414
    %v1417 = vmul.f32 1.0, %v1416
    %v1418 = vrcp.pop %v1415
    %v1419 = vmul.f32 1.0, %v1418
    %v1420 = vadd.f32 %v1316, %v1359
    %v1421 = vadd.f32 %v1319, %v1363
    %v1422 = vxor.u32 %v1420, 2147483648
    %v1423 = vxor.u32 %v1421, 2147483648
    %v1424 = vmul.f32 %v1422, 1.442695
    %v1425 = vpow.pop %v1424
    %v1426 = vmul.f32 %v1423, 1.442695
    %v1427 = vpow.pop %v1426
    %v1428 = vadd.f32 %v1425, 1.0
    %v1429 = vadd.f32 %v1427, 1.0
    %v1430 = vrcp.pop %v1428
    %v1431 = vmul.f32 1.0, %v1430
    %v1432 = vrcp.pop %v1429
    %v1433 = vmul.f32 1.0, %v1432
    %v1434 = vadd.f32 %v1400, %v837
    %v1435 = vadd.f32 %v1403, %v837
    %v1436 = vmul.f32 %v1417, %v1434
    %v1437 = vmul.f32 %v1419, %v1435
    %v1438 = vadd.f32 %v1317, %v1436
    %v1439 = vadd.f32 %v1320, %v1437
    %v1440 = vtanh.pop %v1438
    %v1441 = vtanh.pop %v1439
    %v1442 = vsub.f32 %v1312, %v1440
    %v1443 = vsub.f32 %v1313, %v1441
    %v1444 = vmul.f32 %v1431, %v1442
    %v1445 = vmul.f32 %v1433, %v1443
    %v1446 = vadd.f32 %v1440, %v1444
    %v1447 = vadd.f32 %v1441, %v1445
    %1448 = vst [vmem:[#allocation2] sm:$0xff] %v1446
    %1449 = vst [vmem:[#allocation2 + $0x8] sm:$0xff] %v1447
    %v1450 = vpack.c.bf16 %v1447, %v1446
    %v1452 = vunpack.c.l.b16 %v1450
    %v1453 = vunpack.c.h.b16 %v1450
    %v1454 = vpack.c.b16 %v1452, %v1452
    %v1455 = vpack.c.b16 %v1453, %v1453
    %s1458 = scalar_lea.vmem [#allocation13], 32
    %1459 = vst [vmem:[%s1458] sm:$0xf] %v1454
    %1460 = vst [vmem:[%s1458 + $0x4] sm:$0xf] %v1455
    %v1461 = vld [vmem:[#allocation2] sm:$0xff]
    %v1462 = vld [vmem:[#allocation2 + $0x8] sm:$0xff]
    %s1463 = scalar_lea.vmem [#allocation3], 240
    %v1464 = vld [vmem:[%s1463] sm:$0xff]
    %v1465 = vld [vmem:[%s1463 + $0x8] sm:$0xff]
    %v1466 = vld [vmem:[%s1463 + $0x10] sm:$0xff]
    %v1467 = vld [vmem:[%s1463 + $0x18] sm:$0xff]
    %v1468 = vld [vmem:[%s1463 + $0x20] sm:$0xff]
    %v1469 = vld [vmem:[%s1463 + $0x28] sm:$0xff]
    %v1470 = vpack.c.bf16 %v1462, %v1461
    %1471 = vmatprep.subr.bf16.mxu0 %v674
    %1472 = vmatpush1.bf16.msra.mxu0 %v673
    %1473 = vmatprep.subr.bf16.mxu0 %v677
    %1474 = vmatpush1.bf16.msra.mxu0 %v676
    %1475 = vmatprep.subr.bf16.mxu0 %v680
    %1476 = vmatpush1.bf16.msra.mxu0 %v679
    %1477 = vmatprep.subr.bf16.mxu0 %v683
    %1478 = vmatpush1.bf16.msra.mxu0 %v682
    %1479 = vmatprep.subr.bf16.mxu0 %v686
    %1480 = vmatpush1.bf16.msra.mxu0 %v685
    %1481 = vmatprep.subr.bf16.mxu0 %v689
    %1482 = vmatpush1.bf16.msra.mxu0 %v688
    %1483 = vmatprep.subr.bf16.mxu0 %v692
    %1484 = vmatpush1.bf16.msra.mxu0 %v691
    %1485 = vmatprep.subr.bf16.mxu0 %v695
    %1486 = vmatpush1.bf16.msra.mxu0 %v694
    %1487 = vmatprep.subr.bf16.mxu0 0
    %1488 = vmatpush1.bf16.msra.mxu0 0
    %1489 = vmatprep.subr.bf16.mxu0 0
    %1490 = vmatpush1.bf16.msra.mxu0 0
    %1491 = vmatprep.subr.bf16.mxu0 0
    %1492 = vmatpush1.bf16.msra.mxu0 0
    %1493 = vmatprep.subr.bf16.mxu0 0
    %1494 = vmatpush1.bf16.msra.mxu0 0
    %1495 = vmatprep.subr.bf16.mxu0 0
    %1496 = vmatpush1.bf16.msra.mxu0 0
    %1497 = vmatprep.subr.bf16.mxu0 0
    %1498 = vmatpush1.bf16.msra.mxu0 0
    %1499 = vmatprep.subr.bf16.mxu0 0
    %1500 = vmatpush1.bf16.msra.mxu0 0
    %1501 = vmatprep.subr.bf16.mxu0 0
    %1502 = vmatpush1.bf16.msra.mxu0 0
    %1503 = vmatprep.mubr.bf16.mxu0 0
    %1504 = vmatmul.mubr.bf16.gmra.mrb[0].mxu0 %v1470
    %v1505 = vpop.f32.mrb[0].mxu0
    %v1506 = vadd.f32 0.0, %v1505
    %v1507 = vpop.f32.mrb[0].mxu0
    %v1508 = vadd.f32 0.0, %v1507
    %v1509 = vpop.f32.mrb[0].mxu0
    %v1510 = vadd.f32 0.0, %v1509
    %v1511 = vpop.f32.mrb[0].mxu0
    %v1512 = vadd.f32 0.0, %v1511
    %1513 = vdwg.mxu0
    %1514 = vmatprep.subr.bf16.mxu0 0
    %1515 = vmatpush1.bf16.msra.mxu0 %v675
    %1516 = vmatprep.subr.bf16.mxu0 0
    %1517 = vmatpush1.bf16.msra.mxu0 %v678
    %1518 = vmatprep.subr.bf16.mxu0 0
    %1519 = vmatpush1.bf16.msra.mxu0 %v681
    %1520 = vmatprep.subr.bf16.mxu0 0
    %1521 = vmatpush1.bf16.msra.mxu0 %v684
    %1522 = vmatprep.subr.bf16.mxu0 0
    %1523 = vmatpush1.bf16.msra.mxu0 %v687
    %1524 = vmatprep.subr.bf16.mxu0 0
    %1525 = vmatpush1.bf16.msra.mxu0 %v690
    %1526 = vmatprep.subr.bf16.mxu0 0
    %1527 = vmatpush1.bf16.msra.mxu0 %v693
    %1528 = vmatprep.subr.bf16.mxu0 0
    %1529 = vmatpush1.bf16.msra.mxu0 %v696
    %1530 = vmatprep.subr.bf16.mxu0 0
    %1531 = vmatpush1.bf16.msra.mxu0 0
    %1532 = vmatprep.subr.bf16.mxu0 0
    %1533 = vmatpush1.bf16.msra.mxu0 0
    %1534 = vmatprep.subr.bf16.mxu0 0
    %1535 = vmatpush1.bf16.msra.mxu0 0
    %1536 = vmatprep.subr.bf16.mxu0 0
    %1537 = vmatpush1.bf16.msra.mxu0 0
    %1538 = vmatprep.subr.bf16.mxu0 0
    %1539 = vmatpush1.bf16.msra.mxu0 0
    %1540 = vmatprep.subr.bf16.mxu0 0
    %1541 = vmatpush1.bf16.msra.mxu0 0
    %1542 = vmatprep.subr.bf16.mxu0 0
    %1543 = vmatpush1.bf16.msra.mxu0 0
    %1544 = vmatprep.subr.bf16.mxu0 0
    %1545 = vmatpush1.bf16.msra.mxu0 0
    %1546 = vmatprep.mubr.bf16.mxu0 0
    %1547 = vmatmul.mubr.bf16.gmra.mrb[0].mxu0 %v1470
    %v1548 = vpop.f32.mrb[0].mxu0
    %v1549 = vadd.f32 0.0, %v1548
    %v1550 = vpop.f32.mrb[0].mxu0
    %v1551 = vpop.f32.mrb[0].mxu0
    %v1552 = vadd.f32 0.0, %v1551
    %v1553 = vpop.f32.mrb[0].mxu0
    %1554 = vdwg.mxu0
    %v1555 = vadd.f32 %v1464, %v1506
    %v1556 = vadd.f32 %v1467, %v1510
    %v1557 = vxor.u32 %v1555, 2147483648
    %v1558 = vxor.u32 %v1556, 2147483648
    %v1559 = vmul.f32 %v1557, 1.442695
    %v1560 = vpow.pop %v1559
    %v1561 = vmul.f32 %v1558, 1.442695
    %v1562 = vpow.pop %v1561
    %v1563 = vadd.f32 %v1560, 1.0
    %v1564 = vadd.f32 %v1562, 1.0
    %v1565 = vrcp.pop %v1563
    %v1566 = vmul.f32 1.0, %v1565
    %v1567 = vrcp.pop %v1564
    %v1568 = vmul.f32 1.0, %v1567
    %v1569 = vadd.f32 %v1465, %v1508
    %v1570 = vadd.f32 %v1468, %v1512
    %v1571 = vxor.u32 %v1569, 2147483648
    %v1572 = vxor.u32 %v1570, 2147483648
    %v1573 = vmul.f32 %v1571, 1.442695
    %v1574 = vpow.pop %v1573
    %v1575 = vmul.f32 %v1572, 1.442695
    %v1576 = vpow.pop %v1575
    %v1577 = vadd.f32 %v1574, 1.0
    %v1578 = vadd.f32 %v1576, 1.0
    %v1579 = vrcp.pop %v1577
    %v1580 = vmul.f32 1.0, %v1579
    %v1581 = vrcp.pop %v1578
    %v1582 = vmul.f32 1.0, %v1581
    %v1583 = vadd.f32 %v1549, %v837
    %v1584 = vadd.f32 %v1552, %v837
    %v1585 = vmul.f32 %v1566, %v1583
    %v1586 = vmul.f32 %v1568, %v1584
    %v1587 = vadd.f32 %v1466, %v1585
    %v1588 = vadd.f32 %v1469, %v1586
    %v1589 = vtanh.pop %v1587
    %v1590 = vtanh.pop %v1588
    %v1591 = vsub.f32 %v1461, %v1589
    %v1592 = vsub.f32 %v1462, %v1590
    %v1593 = vmul.f32 %v1580, %v1591
    %v1594 = vmul.f32 %v1582, %v1592
    %v1595 = vadd.f32 %v1589, %v1593
    %v1596 = vadd.f32 %v1590, %v1594
    %1597 = vst [vmem:[#allocation2] sm:$0xff] %v1595
    %1598 = vst [vmem:[#allocation2 + $0x8] sm:$0xff] %v1596
    %v1599 = vpack.c.bf16 %v1596, %v1595
    %v1601 = vunpack.c.l.b16 %v1599
    %v1602 = vunpack.c.h.b16 %v1599
    %v1603 = vpack.c.b16 %v1601, %v1601
    %v1604 = vpack.c.b16 %v1602, %v1602
    %s1607 = scalar_lea.vmem [#allocation13], 40
    %1608 = vst [vmem:[%s1607] sm:$0xf] %v1603
    %1609 = vst [vmem:[%s1607 + $0x4] sm:$0xf] %v1604
    %v1610 = vld [vmem:[#allocation2] sm:$0xff]
    %v1611 = vld [vmem:[#allocation2 + $0x8] sm:$0xff]
    %s1612 = scalar_lea.vmem [#allocation3], 288
    %v1613 = vld [vmem:[%s1612] sm:$0xff]
    %v1614 = vld [vmem:[%s1612 + $0x8] sm:$0xff]
    %v1615 = vld [vmem:[%s1612 + $0x10] sm:$0xff]
    %v1616 = vld [vmem:[%s1612 + $0x18] sm:$0xff]
    %v1617 = vld [vmem:[%s1612 + $0x20] sm:$0xff]
    %v1618 = vld [vmem:[%s1612 + $0x28] sm:$0xff]
    %v1619 = vpack.c.bf16 %v1611, %v1610
    %1620 = vmatprep.subr.bf16.mxu0 %v674
    %1621 = vmatpush1.bf16.msra.mxu0 %v673
    %1622 = vmatprep.subr.bf16.mxu0 %v677
    %1623 = vmatpush1.bf16.msra.mxu0 %v676
    %1624 = vmatprep.subr.bf16.mxu0 %v680
    %1625 = vmatpush1.bf16.msra.mxu0 %v679
    %1626 = vmatprep.subr.bf16.mxu0 %v683
    %1627 = vmatpush1.bf16.msra.mxu0 %v682
    %1628 = vmatprep.subr.bf16.mxu0 %v686
    %1629 = vmatpush1.bf16.msra.mxu0 %v685
    %1630 = vmatprep.subr.bf16.mxu0 %v689
    %1631 = vmatpush1.bf16.msra.mxu0 %v688
    %1632 = vmatprep.subr.bf16.mxu0 %v692
    %1633 = vmatpush1.bf16.msra.mxu0 %v691
    %1634 = vmatprep.subr.bf16.mxu0 %v695
    %1635 = vmatpush1.bf16.msra.mxu0 %v694
    %1636 = vmatprep.subr.bf16.mxu0 0
    %1637 = vmatpush1.bf16.msra.mxu0 0
    %1638 = vmatprep.subr.bf16.mxu0 0
    %1639 = vmatpush1.bf16.msra.mxu0 0
    %1640 = vmatprep.subr.bf16.mxu0 0
    %1641 = vmatpush1.bf16.msra.mxu0 0
    %1642 = vmatprep.subr.bf16.mxu0 0
    %1643 = vmatpush1.bf16.msra.mxu0 0
    %1644 = vmatprep.subr.bf16.mxu0 0
    %1645 = vmatpush1.bf16.msra.mxu0 0
    %1646 = vmatprep.subr.bf16.mxu0 0
    %1647 = vmatpush1.bf16.msra.mxu0 0
    %1648 = vmatprep.subr.bf16.mxu0 0
    %1649 = vmatpush1.bf16.msra.mxu0 0
    %1650 = vmatprep.subr.bf16.mxu0 0
    %1651 = vmatpush1.bf16.msra.mxu0 0
    %1652 = vmatprep.mubr.bf16.mxu0 0
    %1653 = vmatmul.mubr.bf16.gmra.mrb[0].mxu0 %v1619
    %v1654 = vpop.f32.mrb[0].mxu0
    %v1655 = vadd.f32 0.0, %v1654
    %v1656 = vpop.f32.mrb[0].mxu0
    %v1657 = vadd.f32 0.0, %v1656
    %v1658 = vpop.f32.mrb[0].mxu0
    %v1659 = vadd.f32 0.0, %v1658
    %v1660 = vpop.f32.mrb[0].mxu0
    %v1661 = vadd.f32 0.0, %v1660
    %1662 = vdwg.mxu0
    %1663 = vmatprep.subr.bf16.mxu0 0
    %1664 = vmatpush1.bf16.msra.mxu0 %v675
    %1665 = vmatprep.subr.bf16.mxu0 0
    %1666 = vmatpush1.bf16.msra.mxu0 %v678
    %1667 = vmatprep.subr.bf16.mxu0 0
    %1668 = vmatpush1.bf16.msra.mxu0 %v681
    %1669 = vmatprep.subr.bf16.mxu0 0
    %1670 = vmatpush1.bf16.msra.mxu0 %v684
    %1671 = vmatprep.subr.bf16.mxu0 0
    %1672 = vmatpush1.bf16.msra.mxu0 %v687
    %1673 = vmatprep.subr.bf16.mxu0 0
    %1674 = vmatpush1.bf16.msra.mxu0 %v690
    %1675 = vmatprep.subr.bf16.mxu0 0
    %1676 = vmatpush1.bf16.msra.mxu0 %v693
    %1677 = vmatprep.subr.bf16.mxu0 0
    %1678 = vmatpush1.bf16.msra.mxu0 %v696
    %1679 = vmatprep.subr.bf16.mxu0 0
    %1680 = vmatpush1.bf16.msra.mxu0 0
    %1681 = vmatprep.subr.bf16.mxu0 0
    %1682 = vmatpush1.bf16.msra.mxu0 0
    %1683 = vmatprep.subr.bf16.mxu0 0
    %1684 = vmatpush1.bf16.msra.mxu0 0
    %1685 = vmatprep.subr.bf16.mxu0 0
    %1686 = vmatpush1.bf16.msra.mxu0 0
    %1687 = vmatprep.subr.bf16.mxu0 0
    %1688 = vmatpush1.bf16.msra.mxu0 0
    %1689 = vmatprep.subr.bf16.mxu0 0
    %1690 = vmatpush1.bf16.msra.mxu0 0
    %1691 = vmatprep.subr.bf16.mxu0 0
    %1692 = vmatpush1.bf16.msra.mxu0 0
    %1693 = vmatprep.subr.bf16.mxu0 0
    %1694 = vmatpush1.bf16.msra.mxu0 0
    %1695 = vmatprep.mubr.bf16.mxu0 0
    %1696 = vmatmul.mubr.bf16.gmra.mrb[0].mxu0 %v1619
    %v1697 = vpop.f32.mrb[0].mxu0
    %v1698 = vadd.f32 0.0, %v1697
    %v1699 = vpop.f32.mrb[0].mxu0
    %v1700 = vpop.f32.mrb[0].mxu0
    %v1701 = vadd.f32 0.0, %v1700
    %v1702 = vpop.f32.mrb[0].mxu0
    %1703 = vdwg.mxu0
    %v1704 = vadd.f32 %v1613, %v1655
    %v1705 = vadd.f32 %v1616, %v1659
    %v1706 = vxor.u32 %v1704, 2147483648
    %v1707 = vxor.u32 %v1705, 2147483648
    %v1708 = vmul.f32 %v1706, 1.442695
    %v1709 = vpow.pop %v1708
    %v1710 = vmul.f32 %v1707, 1.442695
    %v1711 = vpow.pop %v1710
    %v1712 = vadd.f32 %v1709, 1.0
    %v1713 = vadd.f32 %v1711, 1.0
    %v1714 = vrcp.pop %v1712
    %v1715 = vmul.f32 1.0, %v1714
    %v1716 = vrcp.pop %v1713
    %v1717 = vmul.f32 1.0, %v1716
    %v1718 = vadd.f32 %v1614, %v1657
    %v1719 = vadd.f32 %v1617, %v1661
    %v1720 = vxor.u32 %v1718, 2147483648
    %v1721 = vxor.u32 %v1719, 2147483648
    %v1722 = vmul.f32 %v1720, 1.442695
    %v1723 = vpow.pop %v1722
    %v1724 = vmul.f32 %v1721, 1.442695
    %v1725 = vpow.pop %v1724
    %v1726 = vadd.f32 %v1723, 1.0
    %v1727 = vadd.f32 %v1725, 1.0
    %v1728 = vrcp.pop %v1726
    %v1729 = vmul.f32 1.0, %v1728
    %v1730 = vrcp.pop %v1727
    %v1731 = vmul.f32 1.0, %v1730
    %v1732 = vadd.f32 %v1698, %v837
    %v1733 = vadd.f32 %v1701, %v837
    %v1734 = vmul.f32 %v1715, %v1732
    %v1735 = vmul.f32 %v1717, %v1733
    %v1736 = vadd.f32 %v1615, %v1734
    %v1737 = vadd.f32 %v1618, %v1735
    %v1738 = vtanh.pop %v1736
    %v1739 = vtanh.pop %v1737
    %v1740 = vsub.f32 %v1610, %v1738
    %v1741 = vsub.f32 %v1611, %v1739
    %v1742 = vmul.f32 %v1729, %v1740
    %v1743 = vmul.f32 %v1731, %v1741
    %v1744 = vadd.f32 %v1738, %v1742
    %v1745 = vadd.f32 %v1739, %v1743
    %1746 = vst [vmem:[#allocation2] sm:$0xff] %v1744
    %1747 = vst [vmem:[#allocation2 + $0x8] sm:$0xff] %v1745
    %v1748 = vpack.c.bf16 %v1745, %v1744
    %v1750 = vunpack.c.l.b16 %v1748
    %v1751 = vunpack.c.h.b16 %v1748
    %v1752 = vpack.c.b16 %v1750, %v1750
    %v1753 = vpack.c.b16 %v1751, %v1751
    %s1756 = scalar_lea.vmem [#allocation13], 48
    %1757 = vst [vmem:[%s1756] sm:$0xf] %v1752
    %1758 = vst [vmem:[%s1756 + $0x4] sm:$0xf] %v1753
    %v1759 = vld [vmem:[#allocation2] sm:$0xff]
    %v1760 = vld [vmem:[#allocation2 + $0x8] sm:$0xff]
    %s1761 = scalar_lea.vmem [#allocation3], 336
    %v1762 = vld [vmem:[%s1761] sm:$0xff]
    %v1763 = vld [vmem:[%s1761 + $0x8] sm:$0xff]
    %v1764 = vld [vmem:[%s1761 + $0x10] sm:$0xff]
    %v1765 = vld [vmem:[%s1761 + $0x18] sm:$0xff]
    %v1766 = vld [vmem:[%s1761 + $0x20] sm:$0xff]
    %v1767 = vld [vmem:[%s1761 + $0x28] sm:$0xff]
    %v1768 = vpack.c.bf16 %v1760, %v1759
    %1769 = vmatprep.subr.bf16.mxu0 %v674
    %1770 = vmatpush1.bf16.msra.mxu0 %v673
    %1771 = vmatprep.subr.bf16.mxu0 %v677
    %1772 = vmatpush1.bf16.msra.mxu0 %v676
    %1773 = vmatprep.subr.bf16.mxu0 %v680
    %1774 = vmatpush1.bf16.msra.mxu0 %v679
    %1775 = vmatprep.subr.bf16.mxu0 %v683
    %1776 = vmatpush1.bf16.msra.mxu0 %v682
    %1777 = vmatprep.subr.bf16.mxu0 %v686
    %1778 = vmatpush1.bf16.msra.mxu0 %v685
    %1779 = vmatprep.subr.bf16.mxu0 %v689
    %1780 = vmatpush1.bf16.msra.mxu0 %v688
    %1781 = vmatprep.subr.bf16.mxu0 %v692
    %1782 = vmatpush1.bf16.msra.mxu0 %v691
    %1783 = vmatprep.subr.bf16.mxu0 %v695
    %1784 = vmatpush1.bf16.msra.mxu0 %v694
    %1785 = vmatprep.subr.bf16.mxu0 0
    %1786 = vmatpush1.bf16.msra.mxu0 0
    %1787 = vmatprep.subr.bf16.mxu0 0
    %1788 = vmatpush1.bf16.msra.mxu0 0
    %1789 = vmatprep.subr.bf16.mxu0 0
    %1790 = vmatpush1.bf16.msra.mxu0 0
    %1791 = vmatprep.subr.bf16.mxu0 0
    %1792 = vmatpush1.bf16.msra.mxu0 0
    %1793 = vmatprep.subr.bf16.mxu0 0
    %1794 = vmatpush1.bf16.msra.mxu0 0
    %1795 = vmatprep.subr.bf16.mxu0 0
    %1796 = vmatpush1.bf16.msra.mxu0 0
    %1797 = vmatprep.subr.bf16.mxu0 0
    %1798 = vmatpush1.bf16.msra.mxu0 0
    %1799 = vmatprep.subr.bf16.mxu0 0
    %1800 = vmatpush1.bf16.msra.mxu0 0
    %1801 = vmatprep.mubr.bf16.mxu0 0
    %1802 = vmatmul.mubr.bf16.gmra.mrb[0].mxu0 %v1768
    %v1803 = vpop.f32.mrb[0].mxu0
    %v1804 = vadd.f32 0.0, %v1803
    %v1805 = vpop.f32.mrb[0].mxu0
    %v1806 = vadd.f32 0.0, %v1805
    %v1807 = vpop.f32.mrb[0].mxu0
    %v1808 = vadd.f32 0.0, %v1807
    %v1809 = vpop.f32.mrb[0].mxu0
    %v1810 = vadd.f32 0.0, %v1809
    %1811 = vdwg.mxu0
    %1812 = vmatprep.subr.bf16.mxu0 0
    %1813 = vmatpush1.bf16.msra.mxu0 %v675
    %1814 = vmatprep.subr.bf16.mxu0 0
    %1815 = vmatpush1.bf16.msra.mxu0 %v678
    %1816 = vmatprep.subr.bf16.mxu0 0
    %1817 = vmatpush1.bf16.msra.mxu0 %v681
    %1818 = vmatprep.subr.bf16.mxu0 0
    %1819 = vmatpush1.bf16.msra.mxu0 %v684
    %1820 = vmatprep.subr.bf16.mxu0 0
    %1821 = vmatpush1.bf16.msra.mxu0 %v687
    %1822 = vmatprep.subr.bf16.mxu0 0
    %1823 = vmatpush1.bf16.msra.mxu0 %v690
    %1824 = vmatprep.subr.bf16.mxu0 0
    %1825 = vmatpush1.bf16.msra.mxu0 %v693
    %1826 = vmatprep.subr.bf16.mxu0 0
    %1827 = vmatpush1.bf16.msra.mxu0 %v696
    %1828 = vmatprep.subr.bf16.mxu0 0
    %1829 = vmatpush1.bf16.msra.mxu0 0
    %1830 = vmatprep.subr.bf16.mxu0 0
    %1831 = vmatpush1.bf16.msra.mxu0 0
    %1832 = vmatprep.subr.bf16.mxu0 0
    %1833 = vmatpush1.bf16.msra.mxu0 0
    %1834 = vmatprep.subr.bf16.mxu0 0
    %1835 = vmatpush1.bf16.msra.mxu0 0
    %1836 = vmatprep.subr.bf16.mxu0 0
    %1837 = vmatpush1.bf16.msra.mxu0 0
    %1838 = vmatprep.subr.bf16.mxu0 0
    %1839 = vmatpush1.bf16.msra.mxu0 0
    %1840 = vmatprep.subr.bf16.mxu0 0
    %1841 = vmatpush1.bf16.msra.mxu0 0
    %1842 = vmatprep.subr.bf16.mxu0 0
    %1843 = vmatpush1.bf16.msra.mxu0 0
    %1844 = vmatprep.mubr.bf16.mxu0 0
    %1845 = vmatmul.mubr.bf16.gmra.mrb[0].mxu0 %v1768
    %v1846 = vpop.f32.mrb[0].mxu0
    %v1847 = vadd.f32 0.0, %v1846
    %v1848 = vpop.f32.mrb[0].mxu0
    %v1849 = vpop.f32.mrb[0].mxu0
    %v1850 = vadd.f32 0.0, %v1849
    %v1851 = vpop.f32.mrb[0].mxu0
    %1852 = vdwg.mxu0
    %v1853 = vadd.f32 %v1762, %v1804
    %v1854 = vadd.f32 %v1765, %v1808
    %v1855 = vxor.u32 %v1853, 2147483648
    %v1856 = vxor.u32 %v1854, 2147483648
    %v1857 = vmul.f32 %v1855, 1.442695
    %v1858 = vpow.pop %v1857
    %v1859 = vmul.f32 %v1856, 1.442695
    %v1860 = vpow.pop %v1859
    %v1861 = vadd.f32 %v1858, 1.0
    %v1862 = vadd.f32 %v1860, 1.0
    %v1863 = vrcp.pop %v1861
    %v1864 = vmul.f32 1.0, %v1863
    %v1865 = vrcp.pop %v1862
    %v1866 = vmul.f32 1.0, %v1865
    %v1867 = vadd.f32 %v1763, %v1806
    %v1868 = vadd.f32 %v1766, %v1810
    %v1869 = vxor.u32 %v1867, 2147483648
    %v1870 = vxor.u32 %v1868, 2147483648
    %v1871 = vmul.f32 %v1869, 1.442695
    %v1872 = vpow.pop %v1871
    %v1873 = vmul.f32 %v1870, 1.442695
    %v1874 = vpow.pop %v1873
    %v1875 = vadd.f32 %v1872, 1.0
    %v1876 = vadd.f32 %v1874, 1.0
    %v1877 = vrcp.pop %v1875
    %v1878 = vmul.f32 1.0, %v1877
    %v1879 = vrcp.pop %v1876
    %v1880 = vmul.f32 1.0, %v1879
    %v1881 = vadd.f32 %v1847, %v837
    %v1882 = vadd.f32 %v1850, %v837
    %v1883 = vmul.f32 %v1864, %v1881
    %v1884 = vmul.f32 %v1866, %v1882
    %v1885 = vadd.f32 %v1764, %v1883
    %v1886 = vadd.f32 %v1767, %v1884
    %v1887 = vtanh.pop %v1885
    %v1888 = vtanh.pop %v1886
    %v1889 = vsub.f32 %v1759, %v1887
    %v1890 = vsub.f32 %v1760, %v1888
    %v1891 = vmul.f32 %v1878, %v1889
    %v1892 = vmul.f32 %v1880, %v1890
    %v1893 = vadd.f32 %v1887, %v1891
    %v1894 = vadd.f32 %v1888, %v1892
    %1895 = vst [vmem:[#allocation2] sm:$0xff] %v1893
    %1896 = vst [vmem:[#allocation2 + $0x8] sm:$0xff] %v1894
    %v1897 = vpack.c.bf16 %v1894, %v1893
    %v1899 = vunpack.c.l.b16 %v1897
    %v1900 = vunpack.c.h.b16 %v1897
    %v1901 = vpack.c.b16 %v1899, %v1899
    %v1902 = vpack.c.b16 %v1900, %v1900
    %s1905 = scalar_lea.vmem [#allocation13], 56
    %1906 = vst [vmem:[%s1905] sm:$0xf] %v1901
    %1907 = vst [vmem:[%s1905 + $0x4] sm:$0xf] %v1902
    // Predicated region
    $region46: #{gru_model_forward.3} parent=1 // pred_check
      _
    $region47: #{gru_model_forward.3} parent=1 // pred_check_branch
      %1909 = sbr.rel (0) target = $region49
    $region48: #{gru_model_forward.3} parent=1 // pred_region
      %s1911 = ssub.s32 1024, 1024
      %1912 = vsyncadd [#allocation6], %s1911
      %s1913 = sshll.u32 [#allocation13], 4
      %s1914 = int_to_ptr.vmem [resolvable:$true] %s1913
      %1919 = dma.vmem_to_hbm [thread:$0]  %s1914, 1024, %s5, [#allocation6], 64, 64, 4
    $region49: #{gru_model_forward.3} parent=1 // pred_fallthru
      _
    // Predicated region
    $region50: #{gru_model_forward.3} parent=1 // pred_check
      _
    $region51: #{gru_model_forward.3} parent=1 // pred_check_branch
      %1921 = sbr.rel (0) target = $region53
    $region52: #{gru_model_forward.3} parent=1 // pred_region
      %1922 = dma.done [#allocation6], 1024
    $region53: #{gru_model_forward.3} parent=1 // pred_fallthru
      _
    %1923 = vsyncpa [#allocation5], 1
    %1924 = vsyncpa [#allocation8], 1
    %1925 = vsyncpa [#allocation11], 1
    %1926 = vsyncpa [#allocation6], 1

// kernel: gru_model_forward.4
$region0: #{gru_model_forward.4}
  #allocation0 [shape = 'u32[]', space=smem, size = 0x4, offset = 0x4, fixed_abs, tag = 'smem constant byte address 0x4 - core index']
  #allocation1 [shape = 'u32[144,128]{1,0:T(1,128)}', space=vmem, size = 0x12000, scoped, tag = 'internal scratch']
  #allocation2 [shape = 'f32[16,128]{1,0:T(8,128)}', space=vmem, size = 0x2000, scoped, tag = 'scratch operand']
  #allocation3 [shape = 'f32[8,16,384]{2,1,0:T(8,128)}', space=vmem, size = 0x30000, scoped, tag = 'scratch operand']
  %s0 = inlined_call_operand.hbm [shape: bf16[8,16,128], index: 0, kind: input, shape index: {}]
  %s1 = inlined_call_operand.hbm [shape: bf16[128,384], index: 1, kind: input, shape index: {}]
  %s2 = inlined_call_operand.hbm [shape: bf16[128,384], index: 2, kind: input, shape index: {}]
  %s3 = inlined_call_operand.hbm [shape: f32[1,384], index: 3, kind: input, shape index: {}]
  %s4 = inlined_call_operand.hbm [shape: f32[1,128], index: 4, kind: input, shape index: {}]
  %s5 = inlined_call_operand.hbm [shape: bf16[8,16,128], index: 5, kind: output, shape index: {}]
  %s6 = sld [smem:[#allocation0]]
  $region54: #{gru_model_forward.4} parent=0
    _
  %s8 = ssub.s32 1, %s6
  %s9 = scalar_select 0, %s8, %s6
  $region1: #{gru_model_forward.4} parent=0
    #allocation4 [shape = 'u8[32768]{0}', space=vmem, size = 0x8000, scoped, tag = 'input window, operand 0, single buffered']
    #allocation5 [shape = 's32[1]{0}', space=sflag, size = 0x4, scoped, tag = 'scoped memory for gru_model_forward.4']
    #allocation6 [shape = 's32[1]{0}', space=sflag, size = 0x4, scoped, tag = 'scoped memory for gru_model_forward.4']
    #allocation7 [shape = 'u8[98304]{0}', space=vmem, size = 0x18000, scoped, tag = 'input window, operand 1, single buffered']
    #allocation8 [shape = 's32[1]{0}', space=sflag, size = 0x4, scoped, tag = 'scoped memory for gru_model_forward.4']
    #allocation9 [shape = 'u8[98304]{0}', space=vmem, size = 0x18000, scoped, tag = 'input window, operand 2, single buffered']
    #allocation10 [shape = 'u8[1536]{0}', space=vmem, size = 0x800, scoped, tag = 'input window, operand 3, single buffered']
    #allocation11 [shape = 's32[1]{0}', space=sflag, size = 0x4, scoped, tag = 'scoped memory for gru_model_forward.4']
    #allocation12 [shape = 'u8[512]{0}', space=vmem, size = 0x400, scoped, tag = 'input window, operand 4, single buffered']
    #allocation13 [shape = 'u8[32768]{0}', space=vmem, size = 0x8000, scoped, tag = 'output window, operand 0, single buffered']
    %10 = vsyncpa [#allocation5], 0
    %11 = vsyncpa [#allocation8], 0
    %12 = vsyncpa [#allocation11], 0
    %13 = vsyncpa [#allocation6], 0
    // Predicated region
    $region2: #{gru_model_forward.4} parent=1 // pred_check
      _
    $region3: #{gru_model_forward.4} parent=1 // pred_check_branch
      %15 = sbr.rel (0) target = $region5
    $region4: #{gru_model_forward.4} parent=1 // pred_region
      %s17 = ssub.s32 1024, 1024
      %18 = vsyncadd [#allocation5], %s17
      %s19 = sshll.u32 [#allocation4], 4
      %s20 = int_to_ptr.vmem [resolvable:$true] %s19
      %25 = dma.hbm_to_vmem [thread:$0]  %s0, 1024, %s20, [#allocation5], 64, 64, 4
    $region5: #{gru_model_forward.4} parent=1 // pred_fallthru
      _
    // Predicated region
    $region6: #{gru_model_forward.4} parent=1 // pred_check
      _
    $region7: #{gru_model_forward.4} parent=1 // pred_check_branch
      %27 = sbr.rel (0) target = $region9
    $region8: #{gru_model_forward.4} parent=1 // pred_region
      %s29 = ssub.s32 3072, 3072
      %30 = vsyncadd [#allocation8], %s29
      %s31 = sshll.u32 [#allocation7], 4
      %s32 = int_to_ptr.vmem [resolvable:$true] %s31
      %37 = dma.hbm_to_vmem [thread:$0]  %s1, 3072, %s32, [#allocation8], 192, 192, 12
    $region9: #{gru_model_forward.4} parent=1 // pred_fallthru
      _
    // Predicated region
    $region10: #{gru_model_forward.4} parent=1 // pred_check
      _
    $region11: #{gru_model_forward.4} parent=1 // pred_check_branch
      %39 = sbr.rel (0) target = $region13
    $region12: #{gru_model_forward.4} parent=1 // pred_region
      %s41 = ssub.s32 3072, 3072
      %42 = vsyncadd [#allocation8], %s41
      %s43 = sshll.u32 [#allocation9], 4
      %s44 = int_to_ptr.vmem [resolvable:$true] %s43
      %49 = dma.hbm_to_vmem [thread:$0]  %s2, 3072, %s44, [#allocation8], 192, 192, 12
    $region13: #{gru_model_forward.4} parent=1 // pred_fallthru
      _
    // Predicated region
    $region14: #{gru_model_forward.4} parent=1 // pred_check
      _
    $region15: #{gru_model_forward.4} parent=1 // pred_check_branch
      %51 = sbr.rel (0) target = $region17
    $region16: #{gru_model_forward.4} parent=1 // pred_region
      %s53 = ssub.s32 48, 48
      %54 = vsyncadd [#allocation11], %s53
      %s56 = sshll.u32 [#allocation10], 4
      %s57 = int_to_ptr.vmem [resolvable:$true] %s56
      %59 = dma.hbm_to_vmem [thread:$0]  %s3, 48, %s57, [#allocation11]
    $region17: #{gru_model_forward.4} parent=1 // pred_fallthru
      _
    // Predicated region
    $region18: #{gru_model_forward.4} parent=1 // pred_check
      _
    $region19: #{gru_model_forward.4} parent=1 // pred_check_branch
      %61 = sbr.rel (0) target = $region21
    $region20: #{gru_model_forward.4} parent=1 // pred_region
      %s63 = ssub.s32 16, 16
      %64 = vsyncadd [#allocation11], %s63
      %s66 = sshll.u32 [#allocation12], 4
      %s67 = int_to_ptr.vmem [resolvable:$true] %s66
      %69 = dma.hbm_to_vmem [thread:$0]  %s4, 16, %s67, [#allocation11]
    $region21: #{gru_model_forward.4} parent=1 // pred_fallthru
      _
    // Predicated region
    $region22: #{gru_model_forward.4} parent=1 // pred_check
      _
    $region23: #{gru_model_forward.4} parent=1 // pred_check_branch
      %71 = sbr.rel (0) target = $region25
    $region24: #{gru_model_forward.4} parent=1 // pred_region
      %72 = dma.done [#allocation5], 1024
    $region25: #{gru_model_forward.4} parent=1 // pred_fallthru
      _
    // Predicated region
    $region26: #{gru_model_forward.4} parent=1 // pred_check
      _
    $region27: #{gru_model_forward.4} parent=1 // pred_check_branch
      %74 = sbr.rel (0) target = $region29
    $region28: #{gru_model_forward.4} parent=1 // pred_region
      %75 = dma.done [#allocation8], 3072
    $region29: #{gru_model_forward.4} parent=1 // pred_fallthru
      _
    // Predicated region
    $region30: #{gru_model_forward.4} parent=1 // pred_check
      _
    $region31: #{gru_model_forward.4} parent=1 // pred_check_branch
      %77 = sbr.rel (0) target = $region33
    $region32: #{gru_model_forward.4} parent=1 // pred_region
      %78 = dma.done [#allocation8], 3072
    $region33: #{gru_model_forward.4} parent=1 // pred_fallthru
      _
    // Predicated region
    $region34: #{gru_model_forward.4} parent=1 // pred_check
      _
    $region35: #{gru_model_forward.4} parent=1 // pred_check_branch
      %80 = sbr.rel (0) target = $region37
    $region36: #{gru_model_forward.4} parent=1 // pred_region
      %81 = dma.done [#allocation11], 48
    $region37: #{gru_model_forward.4} parent=1 // pred_fallthru
      _
    // Predicated region
    $region38: #{gru_model_forward.4} parent=1 // pred_check
      _
    $region39: #{gru_model_forward.4} parent=1 // pred_check_branch
      %83 = sbr.rel (0) target = $region41
    $region40: #{gru_model_forward.4} parent=1 // pred_region
      %84 = dma.done [#allocation11], 16
    $region41: #{gru_model_forward.4} parent=1 // pred_fallthru
      _
    %p86 = scmp.eq.s32.totalorder 0, 0
    // Predicated region
    $region42: #{gru_model_forward.4} parent=1 // pred_check
      %p87 = pneg %p86
    $region43: #{gru_model_forward.4} parent=1 // pred_check_branch
      %89 = sbr.rel (%p87) target = $region45
    $region44: #{gru_model_forward.4} parent=1 // pred_region
      %90 = vst [vmem:[#allocation2] sm:$0xff] 0.0
      %91 = vst [vmem:[#allocation2 + $0x8] sm:$0xff] 0.0
    $region45: #{gru_model_forward.4} parent=1 // pred_fallthru
      _
    %v92 = vld [vmem:[#allocation4] sm:$0xf]
    %v93 = vld [vmem:[#allocation4 + $0x4] sm:$0xf]
    %v94 = vld [vmem:[#allocation4 + $0x8] sm:$0xf]
    %v95 = vld [vmem:[#allocation4 + $0xc] sm:$0xf]
    %v96 = vld [vmem:[#allocation4 + $0x10] sm:$0xf]
    %v97 = vld [vmem:[#allocation4 + $0x14] sm:$0xf]
    %v98 = vld [vmem:[#allocation4 + $0x18] sm:$0xf]
    %v99 = vld [vmem:[#allocation4 + $0x1c] sm:$0xf]
    %v100 = vld [vmem:[#allocation4 + $0x20] sm:$0xf]
    %v101 = vld [vmem:[#allocation4 + $0x24] sm:$0xf]
    %v102 = vld [vmem:[#allocation4 + $0x28] sm:$0xf]
    %v103 = vld [vmem:[#allocation4 + $0x2c] sm:$0xf]
    %v104 = vld [vmem:[#allocation4 + $0x30] sm:$0xf]
    %v105 = vld [vmem:[#allocation4 + $0x34] sm:$0xf]
    %v106 = vld [vmem:[#allocation4 + $0x38] sm:$0xf]
    %v107 = vld [vmem:[#allocation4 + $0x3c] sm:$0xf]
    %v108 = vld [vmem:[#allocation7] sm:$0xff]
    %v109 = vld [vmem:[#allocation7 + $0x8] sm:$0xf]
    %v110 = vld [vmem:[#allocation7 + $0xc] sm:$0xff]
    %v111 = vld [vmem:[#allocation7 + $0x14] sm:$0xf]
    %v112 = vld [vmem:[#allocation7 + $0x18] sm:$0xff]
    %v113 = vld [vmem:[#allocation7 + $0x20] sm:$0xf]
    %v114 = vld [vmem:[#allocation7 + $0x24] sm:$0xff]
    %v115 = vld [vmem:[#allocation7 + $0x2c] sm:$0xf]
    %v116 = vld [vmem:[#allocation7 + $0x30] sm:$0xff]
    %v117 = vld [vmem:[#allocation7 + $0x38] sm:$0xf]
    %v118 = vld [vmem:[#allocation7 + $0x3c] sm:$0xff]
    %v119 = vld [vmem:[#allocation7 + $0x44] sm:$0xf]
    %v120 = vld [vmem:[#allocation7 + $0x48] sm:$0xff]
    %v121 = vld [vmem:[#allocation7 + $0x50] sm:$0xf]
    %v122 = vld [vmem:[#allocation7 + $0x54] sm:$0xff]
    %v123 = vld [vmem:[#allocation7 + $0x5c] sm:$0xf]
    %v124 = vld [vmem:[#allocation7 + $0x60] sm:$0xff]
    %v125 = vld [vmem:[#allocation7 + $0x68] sm:$0xf]
    %v126 = vld [vmem:[#allocation7 + $0x6c] sm:$0xff]
    %v127 = vld [vmem:[#allocation7 + $0x74] sm:$0xf]
    %v128 = vld [vmem:[#allocation7 + $0x78] sm:$0xff]
    %v129 = vld [vmem:[#allocation7 + $0x80] sm:$0xf]
    %v130 = vld [vmem:[#allocation7 + $0x84] sm:$0xff]
    %v131 = vld [vmem:[#allocation7 + $0x8c] sm:$0xf]
    %v132 = vld [vmem:[#allocation7 + $0x90] sm:$0xff]
    %v133 = vld [vmem:[#allocation7 + $0x98] sm:$0xf]
    %v134 = vld [vmem:[#allocation7 + $0x9c] sm:$0xff]
    %v135 = vld [vmem:[#allocation7 + $0xa4] sm:$0xf]
    %v136 = vld [vmem:[#allocation7 + $0xa8] sm:$0xff]
    %v137 = vld [vmem:[#allocation7 + $0xb0] sm:$0xf]
    %v138 = vld [vmem:[#allocation7 + $0xb4] sm:$0xff]
    %v139 = vld [vmem:[#allocation7 + $0xbc] sm:$0xf]
    %v140 = vld [vmem:[#allocation10] sm:$0x7]
    %v142 = vlaneseq
    %v143 = vshrl.u32 %v142, 7
    %v144 = vsub.s32 0, %v143
    %v145 = vrot.slane %v140, %v144
    %v146 = vlaneseq
    %v147 = vshrl.u32 %v146, 7
    %v148 = vsub.s32 1, %v147
    %v149 = vrot.slane %v140, %v148
    %v150 = vlaneseq
    %v151 = vshrl.u32 %v150, 7
    %v152 = vsub.s32 2, %v151
    %v153 = vrot.slane %v140, %v152
    %v173 = vunpack.c.l.b16 %v92
    %v174 = vunpack.c.l.b16 %v93
    %v175 = vunpack.c.l.b16 %v94
    %v176 = vunpack.c.l.b16 %v95
    %v177 = vunpack.c.l.b16 %v96
    %v178 = vunpack.c.l.b16 %v97
    %v179 = vunpack.c.l.b16 %v98
    %v180 = vunpack.c.l.b16 %v99
    %v181 = vunpack.c.l.b16 %v100
    %v182 = vunpack.c.l.b16 %v101
    %v183 = vunpack.c.l.b16 %v102
    %v184 = vunpack.c.l.b16 %v103
    %v185 = vunpack.c.l.b16 %v104
    %v186 = vunpack.c.l.b16 %v105
    %v187 = vunpack.c.l.b16 %v106
    %v188 = vunpack.c.l.b16 %v107
    %v189 = vpack.c.b16 %v174, %v173
    %v190 = vpack.c.b16 %v176, %v175
    %v191 = vpack.c.b16 %v178, %v177
    %v192 = vpack.c.b16 %v180, %v179
    %v193 = vpack.c.b16 %v182, %v181
    %v194 = vpack.c.b16 %v184, %v183
    %v195 = vpack.c.b16 %v186, %v185
    %v196 = vpack.c.b16 %v188, %v187
    %v237 = vunpack.c.l.b16 %v108
    %v238 = vunpack.c.h.b16 %v108
    %v239 = vunpack.c.l.b16 %v109
    %v240 = vunpack.c.l.b16 %v110
    %v241 = vunpack.c.h.b16 %v110
    %v242 = vunpack.c.l.b16 %v111
    %v243 = vunpack.c.l.b16 %v112
    %v244 = vunpack.c.h.b16 %v112
    %v245 = vunpack.c.l.b16 %v113
    %v246 = vunpack.c.l.b16 %v114
    %v247 = vunpack.c.h.b16 %v114
    %v248 = vunpack.c.l.b16 %v115
    %v249 = vunpack.c.l.b16 %v116
    %v250 = vunpack.c.h.b16 %v116
    %v251 = vunpack.c.l.b16 %v117
    %v252 = vunpack.c.l.b16 %v118
    %v253 = vunpack.c.h.b16 %v118
    %v254 = vunpack.c.l.b16 %v119
    %v255 = vunpack.c.l.b16 %v120
    %v256 = vunpack.c.h.b16 %v120
    %v257 = vunpack.c.l.b16 %v121
    %v258 = vunpack.c.l.b16 %v122
    %v259 = vunpack.c.h.b16 %v122
    %v260 = vunpack.c.l.b16 %v123
    %v261 = vunpack.c.l.b16 %v124
    %v262 = vunpack.c.h.b16 %v124
    %v263 = vunpack.c.l.b16 %v125
    %v264 = vunpack.c.l.b16 %v126
    %v265 = vunpack.c.h.b16 %v126
    %v266 = vunpack.c.l.b16 %v127
    %v267 = vunpack.c.l.b16 %v128
    %v268 = vunpack.c.h.b16 %v128
    %v269 = vunpack.c.l.b16 %v129
    %v270 = vunpack.c.l.b16 %v130
    %v271 = vunpack.c.h.b16 %v130
    %v272 = vunpack.c.l.b16 %v131
    %v273 = vunpack.c.l.b16 %v132
    %v274 = vunpack.c.h.b16 %v132
    %v275 = vunpack.c.l.b16 %v133
    %v276 = vunpack.c.l.b16 %v134
    %v277 = vunpack.c.h.b16 %v134
    %v278 = vunpack.c.l.b16 %v135
    %v279 = vunpack.c.l.b16 %v136
    %v280 = vunpack.c.h.b16 %v136
    %v281 = vunpack.c.l.b16 %v137
    %v282 = vunpack.c.l.b16 %v138
    %v283 = vunpack.c.h.b16 %v138
    %v284 = vunpack.c.l.b16 %v139
    %v285 = vpack.c.b16 %v240, %v237
    %v286 = vpack.c.b16 %v241, %v238
    %v287 = vpack.c.b16 %v242, %v239
    %v288 = vpack.c.b16 %v246, %v243
    %v289 = vpack.c.b16 %v247, %v244
    %v290 = vpack.c.b16 %v248, %v245
    %v291 = vpack.c.b16 %v252, %v249
    %v292 = vpack.c.b16 %v253, %v250
    %v293 = vpack.c.b16 %v254, %v251
    %v294 = vpack.c.b16 %v258, %v255
    %v295 = vpack.c.b16 %v259, %v256
    %v296 = vpack.c.b16 %v260, %v257
    %v297 = vpack.c.b16 %v264, %v261
    %v298 = vpack.c.b16 %v265, %v262
    %v299 = vpack.c.b16 %v266, %v263
    %v300 = vpack.c.b16 %v270, %v267
    %v301 = vpack.c.b16 %v271, %v268
    %v302 = vpack.c.b16 %v272, %v269
    %v303 = vpack.c.b16 %v276, %v273
    %v304 = vpack.c.b16 %v277, %v274
    %v305 = vpack.c.b16 %v278, %v275
    %v306 = vpack.c.b16 %v282, %v279
    %v307 = vpack.c.b16 %v283, %v280
    %v308 = vpack.c.b16 %v284, %v281
    %333 = vmatprep.subr.bf16.mxu0 %v286
    %334 = vmatpush1.bf16.msra.mxu0 %v285
    %335 = vmatprep.subr.bf16.mxu0 %v289
    %336 = vmatpush1.bf16.msra.mxu0 %v288
    %337 = vmatprep.subr.bf16.mxu0 %v292
    %338 = vmatpush1.bf16.msra.mxu0 %v291
    %339 = vmatprep.subr.bf16.mxu0 %v295
    %340 = vmatpush1.bf16.msra.mxu0 %v294
    %341 = vmatprep.subr.bf16.mxu0 %v298
    %342 = vmatpush1.bf16.msra.mxu0 %v297
    %343 = vmatprep.subr.bf16.mxu0 %v301
    %344 = vmatpush1.bf16.msra.mxu0 %v300
    %345 = vmatprep.subr.bf16.mxu0 %v304
    %346 = vmatpush1.bf16.msra.mxu0 %v303
    %347 = vmatprep.subr.bf16.mxu0 %v307
    %348 = vmatpush1.bf16.msra.mxu0 %v306
    %349 = vmatprep.subr.bf16.mxu0 0
    %350 = vmatpush1.bf16.msra.mxu0 0
    %351 = vmatprep.subr.bf16.mxu0 0
    %352 = vmatpush1.bf16.msra.mxu0 0
    %353 = vmatprep.subr.bf16.mxu0 0
    %354 = vmatpush1.bf16.msra.mxu0 0
    %355 = vmatprep.subr.bf16.mxu0 0
    %356 = vmatpush1.bf16.msra.mxu0 0
    %357 = vmatprep.subr.bf16.mxu0 0
    %358 = vmatpush1.bf16.msra.mxu0 0
    %359 = vmatprep.subr.bf16.mxu0 0
    %360 = vmatpush1.bf16.msra.mxu0 0
    %361 = vmatprep.subr.bf16.mxu0 0
    %362 = vmatpush1.bf16.msra.mxu0 0
    %363 = vmatprep.subr.bf16.mxu0 0
    %364 = vmatpush1.bf16.msra.mxu0 0
    %365 = vmatprep.mubr.bf16.mxu0 0
    %366 = vmatmul.mubr.bf16.gmra.mrb[0].mxu0 %v189
    %v367 = vpop.f32.mrb[0].mxu0
    %v368 = vadd.f32 %v145, %v367
    %v369 = vpop.f32.mrb[0].mxu0
    %v370 = vadd.f32 %v149, %v369
    %v371 = vpop.f32.mrb[0].mxu0
    %v372 = vadd.f32 %v145, %v371
    %v373 = vpop.f32.mrb[0].mxu0
    %v374 = vadd.f32 %v149, %v373
    %375 = vmatprep.mubr.bf16.mxu0 0
    %376 = vmatmul.mubr.bf16.gmra.mrb[0].mxu0 %v190
    %v377 = vpop.f32.mrb[0].mxu0
    %v378 = vadd.f32 %v145, %v377
    %v379 = vpop.f32.mrb[0].mxu0
    %v380 = vadd.f32 %v149, %v379
    %v381 = vpop.f32.mrb[0].mxu0
    %v382 = vadd.f32 %v145, %v381
    %v383 = vpop.f32.mrb[0].mxu0
    %v384 = vadd.f32 %v149, %v383
    %385 = vmatprep.mubr.bf16.mxu0 0
    %386 = vmatmul.mubr.bf16.gmra.mrb[0].mxu0 %v191
    %v387 = vpop.f32.mrb[0].mxu0
    %v388 = vadd.f32 %v145, %v387
    %v389 = vpop.f32.mrb[0].mxu0
    %v390 = vadd.f32 %v149, %v389
    %v391 = vpop.f32.mrb[0].mxu0
    %v392 = vadd.f32 %v145, %v391
    %v393 = vpop.f32.mrb[0].mxu0
    %v394 = vadd.f32 %v149, %v393
    %395 = vmatprep.mubr.bf16.mxu0 0
    %396 = vmatmul.mubr.bf16.gmra.mrb[0].mxu0 %v192
    %v397 = vpop.f32.mrb[0].mxu0
    %v398 = vadd.f32 %v145, %v397
    %v399 = vpop.f32.mrb[0].mxu0
    %v400 = vadd.f32 %v149, %v399
    %v401 = vpop.f32.mrb[0].mxu0
    %v402 = vadd.f32 %v145, %v401
    %v403 = vpop.f32.mrb[0].mxu0
    %v404 = vadd.f32 %v149, %v403
    %405 = vmatprep.mubr.bf16.mxu0 0
    %406 = vmatmul.mubr.bf16.gmra.mrb[0].mxu0 %v193
    %v407 = vpop.f32.mrb[0].mxu0
    %v408 = vadd.f32 %v145, %v407
    %v409 = vpop.f32.mrb[0].mxu0
    %v410 = vadd.f32 %v149, %v409
    %v411 = vpop.f32.mrb[0].mxu0
    %v412 = vadd.f32 %v145, %v411
    %v413 = vpop.f32.mrb[0].mxu0
    %v414 = vadd.f32 %v149, %v413
    %415 = vmatprep.mubr.bf16.mxu0 0
    %416 = vmatmul.mubr.bf16.gmra.mrb[0].mxu0 %v194
    %v417 = vpop.f32.mrb[0].mxu0
    %v418 = vadd.f32 %v145, %v417
    %v419 = vpop.f32.mrb[0].mxu0
    %v420 = vadd.f32 %v149, %v419
    %v421 = vpop.f32.mrb[0].mxu0
    %v422 = vadd.f32 %v145, %v421
    %v423 = vpop.f32.mrb[0].mxu0
    %v424 = vadd.f32 %v149, %v423
    %425 = vmatprep.mubr.bf16.mxu0 0
    %426 = vmatmul.mubr.bf16.gmra.mrb[0].mxu0 %v195
    %v427 = vpop.f32.mrb[0].mxu0
    %v428 = vadd.f32 %v145, %v427
    %v429 = vpop.f32.mrb[0].mxu0
    %v430 = vadd.f32 %v149, %v429
    %v431 = vpop.f32.mrb[0].mxu0
    %v432 = vadd.f32 %v145, %v431
    %v433 = vpop.f32.mrb[0].mxu0
    %v434 = vadd.f32 %v149, %v433
    %435 = vmatprep.mubr.bf16.mxu0 0
    %436 = vmatmul.mubr.bf16.gmra.mrb[0].mxu0 %v196
    %v437 = vpop.f32.mrb[0].mxu0
    %v438 = vadd.f32 %v145, %v437
    %v439 = vpop.f32.mrb[0].mxu0
    %v440 = vadd.f32 %v149, %v439
    %v441 = vpop.f32.mrb[0].mxu0
    %v442 = vadd.f32 %v145, %v441
    %v443 = vpop.f32.mrb[0].mxu0
    %v444 = vadd.f32 %v149, %v443
    %445 = vdwg.mxu0
    %446 = vmatprep.subr.bf16.mxu0 0
    %447 = vmatpush1.bf16.msra.mxu0 %v287
    %448 = vmatprep.subr.bf16.mxu0 0
    %449 = vmatpush1.bf16.msra.mxu0 %v290
    %450 = vmatprep.subr.bf16.mxu0 0
    %451 = vmatpush1.bf16.msra.mxu0 %v293
    %452 = vmatprep.subr.bf16.mxu0 0
    %453 = vmatpush1.bf16.msra.mxu0 %v296
    %454 = vmatprep.subr.bf16.mxu0 0
    %455 = vmatpush1.bf16.msra.mxu0 %v299
    %456 = vmatprep.subr.bf16.mxu0 0
    %457 = vmatpush1.bf16.msra.mxu0 %v302
    %458 = vmatprep.subr.bf16.mxu0 0
    %459 = vmatpush1.bf16.msra.mxu0 %v305
    %460 = vmatprep.subr.bf16.mxu0 0
    %461 = vmatpush1.bf16.msra.mxu0 %v308
    %462 = vmatprep.subr.bf16.mxu0 0
    %463 = vmatpush1.bf16.msra.mxu0 0
    %464 = vmatprep.subr.bf16.mxu0 0
    %465 = vmatpush1.bf16.msra.mxu0 0
    %466 = vmatprep.subr.bf16.mxu0 0
    %467 = vmatpush1.bf16.msra.mxu0 0
    %468 = vmatprep.subr.bf16.mxu0 0
    %469 = vmatpush1.bf16.msra.mxu0 0
    %470 = vmatprep.subr.bf16.mxu0 0
    %471 = vmatpush1.bf16.msra.mxu0 0
    %472 = vmatprep.subr.bf16.mxu0 0
    %473 = vmatpush1.bf16.msra.mxu0 0
    %474 = vmatprep.subr.bf16.mxu0 0
    %475 = vmatpush1.bf16.msra.mxu0 0
    %476 = vmatprep.subr.bf16.mxu0 0
    %477 = vmatpush1.bf16.msra.mxu0 0
    %478 = vmatprep.mubr.bf16.mxu0 0
    %479 = vmatmul.mubr.bf16.gmra.mrb[0].mxu0 %v189
    %v480 = vpop.f32.mrb[0].mxu0
    %v481 = vadd.f32 %v153, %v480
    %v482 = vpop.f32.mrb[0].mxu0
    %v483 = vpop.f32.mrb[0].mxu0
    %v484 = vadd.f32 %v153, %v483
    %v485 = vpop.f32.mrb[0].mxu0
    %486 = vmatprep.mubr.bf16.mxu0 0
    %487 = vmatmul.mubr.bf16.gmra.mrb[0].mxu0 %v190
    %v488 = vpop.f32.mrb[0].mxu0
    %v489 = vadd.f32 %v153, %v488
    %v490 = vpop.f32.mrb[0].mxu0
    %v491 = vpop.f32.mrb[0].mxu0
    %v492 = vadd.f32 %v153, %v491
    %v493 = vpop.f32.mrb[0].mxu0
    %494 = vmatprep.mubr.bf16.mxu0 0
    %495 = vmatmul.mubr.bf16.gmra.mrb[0].mxu0 %v191
    %v496 = vpop.f32.mrb[0].mxu0
    %v497 = vadd.f32 %v153, %v496
    %v498 = vpop.f32.mrb[0].mxu0
    %v499 = vpop.f32.mrb[0].mxu0
    %v500 = vadd.f32 %v153, %v499
    %v501 = vpop.f32.mrb[0].mxu0
    %502 = vmatprep.mubr.bf16.mxu0 0
    %503 = vmatmul.mubr.bf16.gmra.mrb[0].mxu0 %v192
    %v504 = vpop.f32.mrb[0].mxu0
    %v505 = vadd.f32 %v153, %v504
    %v506 = vpop.f32.mrb[0].mxu0
    %v507 = vpop.f32.mrb[0].mxu0
    %v508 = vadd.f32 %v153, %v507
    %v509 = vpop.f32.mrb[0].mxu0
    %510 = vmatprep.mubr.bf16.mxu0 0
    %511 = vmatmul.mubr.bf16.gmra.mrb[0].mxu0 %v193
    %v512 = vpop.f32.mrb[0].mxu0
    %v513 = vadd.f32 %v153, %v512
    %v514 = vpop.f32.mrb[0].mxu0
    %v515 = vpop.f32.mrb[0].mxu0
    %v516 = vadd.f32 %v153, %v515
    %v517 = vpop.f32.mrb[0].mxu0
    %518 = vmatprep.mubr.bf16.mxu0 0
    %519 = vmatmul.mubr.bf16.gmra.mrb[0].mxu0 %v194
    %v520 = vpop.f32.mrb[0].mxu0
    %v521 = vadd.f32 %v153, %v520
    %v522 = vpop.f32.mrb[0].mxu0
    %v523 = vpop.f32.mrb[0].mxu0
    %v524 = vadd.f32 %v153, %v523
    %v525 = vpop.f32.mrb[0].mxu0
    %526 = vmatprep.mubr.bf16.mxu0 0
    %527 = vmatmul.mubr.bf16.gmra.mrb[0].mxu0 %v195
    %v528 = vpop.f32.mrb[0].mxu0
    %v529 = vadd.f32 %v153, %v528
    %v530 = vpop.f32.mrb[0].mxu0
    %v531 = vpop.f32.mrb[0].mxu0
    %v532 = vadd.f32 %v153, %v531
    %v533 = vpop.f32.mrb[0].mxu0
    %534 = vmatprep.mubr.bf16.mxu0 0
    %535 = vmatmul.mubr.bf16.gmra.mrb[0].mxu0 %v196
    %v536 = vpop.f32.mrb[0].mxu0
    %v537 = vadd.f32 %v153, %v536
    %v538 = vpop.f32.mrb[0].mxu0
    %v539 = vpop.f32.mrb[0].mxu0
    %v540 = vadd.f32 %v153, %v539
    %v541 = vpop.f32.mrb[0].mxu0
    %542 = vdwg.mxu0
    %543 = vst [vmem:[#allocation3] sm:$0xff] %v368
    %544 = vst [vmem:[#allocation3 + $0x8] sm:$0xff] %v370
    %545 = vst [vmem:[#allocation3 + $0x10] sm:$0xff] %v481
    %546 = vst [vmem:[#allocation3 + $0x18] sm:$0xff] %v372
    %547 = vst [vmem:[#allocation3 + $0x20] sm:$0xff] %v374
    %548 = vst [vmem:[#allocation3 + $0x28] sm:$0xff] %v484
    %549 = vst [vmem:[#allocation3 + $0x30] sm:$0xff] %v378
    %550 = vst [vmem:[#allocation3 + $0x38] sm:$0xff] %v380
    %551 = vst [vmem:[#allocation3 + $0x40] sm:$0xff] %v489
    %552 = vst [vmem:[#allocation3 + $0x48] sm:$0xff] %v382
    %553 = vst [vmem:[#allocation3 + $0x50] sm:$0xff] %v384
    %554 = vst [vmem:[#allocation3 + $0x58] sm:$0xff] %v492
    %555 = vst [vmem:[#allocation3 + $0x60] sm:$0xff] %v388
    %556 = vst [vmem:[#allocation3 + $0x68] sm:$0xff] %v390
    %557 = vst [vmem:[#allocation3 + $0x70] sm:$0xff] %v497
    %558 = vst [vmem:[#allocation3 + $0x78] sm:$0xff] %v392
    %559 = vst [vmem:[#allocation3 + $0x80] sm:$0xff] %v394
    %560 = vst [vmem:[#allocation3 + $0x88] sm:$0xff] %v500
    %561 = vst [vmem:[#allocation3 + $0x90] sm:$0xff] %v398
    %562 = vst [vmem:[#allocation3 + $0x98] sm:$0xff] %v400
    %563 = vst [vmem:[#allocation3 + $0xa0] sm:$0xff] %v505
    %564 = vst [vmem:[#allocation3 + $0xa8] sm:$0xff] %v402
    %565 = vst [vmem:[#allocation3 + $0xb0] sm:$0xff] %v404
    %566 = vst [vmem:[#allocation3 + $0xb8] sm:$0xff] %v508
    %567 = vst [vmem:[#allocation3 + $0xc0] sm:$0xff] %v408
    %568 = vst [vmem:[#allocation3 + $0xc8] sm:$0xff] %v410
    %569 = vst [vmem:[#allocation3 + $0xd0] sm:$0xff] %v513
    %570 = vst [vmem:[#allocation3 + $0xd8] sm:$0xff] %v412
    %571 = vst [vmem:[#allocation3 + $0xe0] sm:$0xff] %v414
    %572 = vst [vmem:[#allocation3 + $0xe8] sm:$0xff] %v516
    %573 = vst [vmem:[#allocation3 + $0xf0] sm:$0xff] %v418
    %574 = vst [vmem:[#allocation3 + $0xf8] sm:$0xff] %v420
    %575 = vst [vmem:[#allocation3 + $0x100] sm:$0xff] %v521
    %576 = vst [vmem:[#allocation3 + $0x108] sm:$0xff] %v422
    %577 = vst [vmem:[#allocation3 + $0x110] sm:$0xff] %v424
    %578 = vst [vmem:[#allocation3 + $0x118] sm:$0xff] %v524
    %579 = vst [vmem:[#allocation3 + $0x120] sm:$0xff] %v428
    %580 = vst [vmem:[#allocation3 + $0x128] sm:$0xff] %v430
    %581 = vst [vmem:[#allocation3 + $0x130] sm:$0xff] %v529
    %582 = vst [vmem:[#allocation3 + $0x138] sm:$0xff] %v432
    %583 = vst [vmem:[#allocation3 + $0x140] sm:$0xff] %v434
    %584 = vst [vmem:[#allocation3 + $0x148] sm:$0xff] %v532
    %585 = vst [vmem:[#allocation3 + $0x150] sm:$0xff] %v438
    %586 = vst [vmem:[#allocation3 + $0x158] sm:$0xff] %v440
    %587 = vst [vmem:[#allocation3 + $0x160] sm:$0xff] %v537
    %588 = vst [vmem:[#allocation3 + $0x168] sm:$0xff] %v442
    %589 = vst [vmem:[#allocation3 + $0x170] sm:$0xff] %v444
    %590 = vst [vmem:[#allocation3 + $0x178] sm:$0xff] %v540
    %v591 = vld [vmem:[#allocation9] sm:$0xff]
    %v592 = vld [vmem:[#allocation9 + $0x8] sm:$0xf]
    %v593 = vld [vmem:[#allocation9 + $0xc] sm:$0xff]
    %v594 = vld [vmem:[#allocation9 + $0x14] sm:$0xf]
    %v595 = vld [vmem:[#allocation9 + $0x18] sm:$0xff]
    %v596 = vld [vmem:[#allocation9 + $0x20] sm:$0xf]
    %v597 = vld [vmem:[#allocation9 + $0x24] sm:$0xff]
    %v598 = vld [vmem:[#allocation9 + $0x2c] sm:$0xf]
    %v599 = vld [vmem:[#allocation9 + $0x30] sm:$0xff]
    %v600 = vld [vmem:[#allocation9 + $0x38] sm:$0xf]
    %v601 = vld [vmem:[#allocation9 + $0x3c] sm:$0xff]
    %v602 = vld [vmem:[#allocation9 + $0x44] sm:$0xf]
    %v603 = vld [vmem:[#allocation9 + $0x48] sm:$0xff]
    %v604 = vld [vmem:[#allocation9 + $0x50] sm:$0xf]
    %v605 = vld [vmem:[#allocation9 + $0x54] sm:$0xff]
    %v606 = vld [vmem:[#allocation9 + $0x5c] sm:$0xf]
    %v607 = vld [vmem:[#allocation9 + $0x60] sm:$0xff]
    %v608 = vld [vmem:[#allocation9 + $0x68] sm:$0xf]
    %v609 = vld [vmem:[#allocation9 + $0x6c] sm:$0xff]
    %v610 = vld [vmem:[#allocation9 + $0x74] sm:$0xf]
    %v611 = vld [vmem:[#allocation9 + $0x78] sm:$0xff]
    %v612 = vld [vmem:[#allocation9 + $0x80] sm:$0xf]
    %v613 = vld [vmem:[#allocation9 + $0x84] sm:$0xff]
    %v614 = vld [vmem:[#allocation9 + $0x8c] sm:$0xf]
    %v615 = vld [vmem:[#allocation9 + $0x90] sm:$0xff]
    %v616 = vld [vmem:[#allocation9 + $0x98] sm:$0xf]
    %v617 = vld [vmem:[#allocation9 + $0x9c] sm:$0xff]
    %v618 = vld [vmem:[#allocation9 + $0xa4] sm:$0xf]
    %v619 = vld [vmem:[#allocation9 + $0xa8] sm:$0xff]
    %v620 = vld [vmem:[#allocation9 + $0xb0] sm:$0xf]
    %v621 = vld [vmem:[#allocation9 + $0xb4] sm:$0xff]
    %v622 = vld [vmem:[#allocation9 + $0xbc] sm:$0xf]
    %v623 = vld [vmem:[#allocation12] sm:$0x1]
    %v624 = vld [vmem:[#allocation2] sm:$0xff]
    %v625 = vld [vmem:[#allocation2 + $0x8] sm:$0xff]
    %v626 = vld [vmem:[#allocation3] sm:$0xff]
    %v627 = vld [vmem:[#allocation3 + $0x8] sm:$0xff]
    %v628 = vld [vmem:[#allocation3 + $0x10] sm:$0xff]
    %v629 = vld [vmem:[#allocation3 + $0x18] sm:$0xff]
    %v630 = vld [vmem:[#allocation3 + $0x20] sm:$0xff]
    %v631 = vld [vmem:[#allocation3 + $0x28] sm:$0xff]
    %v632 = vpack.c.bf16 %v625, %v624
    %v665 = vunpack.c.l.b16 %v591
    %v666 = vunpack.c.h.b16 %v591
    %v667 = vunpack.c.l.b16 %v592
    %v668 = vunpack.c.l.b16 %v593
    %v669 = vunpack.c.h.b16 %v593
    %v670 = vunpack.c.l.b16 %v594
    %v671 = vunpack.c.l.b16 %v595
    %v672 = vunpack.c.h.b16 %v595
    %v673 = vunpack.c.l.b16 %v596
    %v674 = vunpack.c.l.b16 %v597
    %v675 = vunpack.c.h.b16 %v597
    %v676 = vunpack.c.l.b16 %v598
    %v677 = vunpack.c.l.b16 %v599
    %v678 = vunpack.c.h.b16 %v599
    %v679 = vunpack.c.l.b16 %v600
    %v680 = vunpack.c.l.b16 %v601
    %v681 = vunpack.c.h.b16 %v601
    %v682 = vunpack.c.l.b16 %v602
    %v683 = vunpack.c.l.b16 %v603
    %v684 = vunpack.c.h.b16 %v603
    %v685 = vunpack.c.l.b16 %v604
    %v686 = vunpack.c.l.b16 %v605
    %v687 = vunpack.c.h.b16 %v605
    %v688 = vunpack.c.l.b16 %v606
    %v689 = vunpack.c.l.b16 %v607
    %v690 = vunpack.c.h.b16 %v607
    %v691 = vunpack.c.l.b16 %v608
    %v692 = vunpack.c.l.b16 %v609
    %v693 = vunpack.c.h.b16 %v609
    %v694 = vunpack.c.l.b16 %v610
    %v695 = vunpack.c.l.b16 %v611
    %v696 = vunpack.c.h.b16 %v611
    %v697 = vunpack.c.l.b16 %v612
    %v698 = vunpack.c.l.b16 %v613
    %v699 = vunpack.c.h.b16 %v613
    %v700 = vunpack.c.l.b16 %v614
    %v701 = vunpack.c.l.b16 %v615
    %v702 = vunpack.c.h.b16 %v615
    %v703 = vunpack.c.l.b16 %v616
    %v704 = vunpack.c.l.b16 %v617
    %v705 = vunpack.c.h.b16 %v617
    %v706 = vunpack.c.l.b16 %v618
    %v707 = vunpack.c.l.b16 %v619
    %v708 = vunpack.c.h.b16 %v619
    %v709 = vunpack.c.l.b16 %v620
    %v710 = vunpack.c.l.b16 %v621
    %v711 = vunpack.c.h.b16 %v621
    %v712 = vunpack.c.l.b16 %v622
    %v713 = vpack.c.b16 %v668, %v665
    %v714 = vpack.c.b16 %v669, %v666
    %v715 = vpack.c.b16 %v670, %v667
    %v716 = vpack.c.b16 %v674, %v671
    %v717 = vpack.c.b16 %v675, %v672
    %v718 = vpack.c.b16 %v676, %v673
    %v719 = vpack.c.b16 %v680, %v677
    %v720 = vpack.c.b16 %v681, %v678
    %v721 = vpack.c.b16 %v682, %v679
    %v722 = vpack.c.b16 %v686, %v683
    %v723 = vpack.c.b16 %v687, %v684
    %v724 = vpack.c.b16 %v688, %v685
    %v725 = vpack.c.b16 %v692, %v689
    %v726 = vpack.c.b16 %v693, %v690
    %v727 = vpack.c.b16 %v694, %v691
    %v728 = vpack.c.b16 %v698, %v695
    %v729 = vpack.c.b16 %v699, %v696
    %v730 = vpack.c.b16 %v700, %v697
    %v731 = vpack.c.b16 %v704, %v701
    %v732 = vpack.c.b16 %v705, %v702
    %v733 = vpack.c.b16 %v706, %v703
    %v734 = vpack.c.b16 %v710, %v707
    %v735 = vpack.c.b16 %v711, %v708
    %v736 = vpack.c.b16 %v712, %v709
    %761 = vmatprep.subr.bf16.mxu0 %v714
    %762 = vmatpush1.bf16.msra.mxu0 %v713
    %763 = vmatprep.subr.bf16.mxu0 %v717
    %764 = vmatpush1.bf16.msra.mxu0 %v716
    %765 = vmatprep.subr.bf16.mxu0 %v720
    %766 = vmatpush1.bf16.msra.mxu0 %v719
    %767 = vmatprep.subr.bf16.mxu0 %v723
    %768 = vmatpush1.bf16.msra.mxu0 %v722
    %769 = vmatprep.subr.bf16.mxu0 %v726
    %770 = vmatpush1.bf16.msra.mxu0 %v725
    %771 = vmatprep.subr.bf16.mxu0 %v729
    %772 = vmatpush1.bf16.msra.mxu0 %v728
    %773 = vmatprep.subr.bf16.mxu0 %v732
    %774 = vmatpush1.bf16.msra.mxu0 %v731
    %775 = vmatprep.subr.bf16.mxu0 %v735
    %776 = vmatpush1.bf16.msra.mxu0 %v734
    %777 = vmatprep.subr.bf16.mxu0 0
    %778 = vmatpush1.bf16.msra.mxu0 0
    %779 = vmatprep.subr.bf16.mxu0 0
    %780 = vmatpush1.bf16.msra.mxu0 0
    %781 = vmatprep.subr.bf16.mxu0 0
    %782 = vmatpush1.bf16.msra.mxu0 0
    %783 = vmatprep.subr.bf16.mxu0 0
    %784 = vmatpush1.bf16.msra.mxu0 0
    %785 = vmatprep.subr.bf16.mxu0 0
    %786 = vmatpush1.bf16.msra.mxu0 0
    %787 = vmatprep.subr.bf16.mxu0 0
    %788 = vmatpush1.bf16.msra.mxu0 0
    %789 = vmatprep.subr.bf16.mxu0 0
    %790 = vmatpush1.bf16.msra.mxu0 0
    %791 = vmatprep.subr.bf16.mxu0 0
    %792 = vmatpush1.bf16.msra.mxu0 0
    %793 = vmatprep.mubr.bf16.mxu0 0
    %794 = vmatmul.mubr.bf16.gmra.mrb[0].mxu0 %v632
    %v795 = vpop.f32.mrb[0].mxu0
    %v796 = vadd.f32 0.0, %v795
    %v797 = vpop.f32.mrb[0].mxu0
    %v798 = vadd.f32 0.0, %v797
    %v799 = vpop.f32.mrb[0].mxu0
    %v800 = vadd.f32 0.0, %v799
    %v801 = vpop.f32.mrb[0].mxu0
    %v802 = vadd.f32 0.0, %v801
    %803 = vdwg.mxu0
    %804 = vmatprep.subr.bf16.mxu0 0
    %805 = vmatpush1.bf16.msra.mxu0 %v715
    %806 = vmatprep.subr.bf16.mxu0 0
    %807 = vmatpush1.bf16.msra.mxu0 %v718
    %808 = vmatprep.subr.bf16.mxu0 0
    %809 = vmatpush1.bf16.msra.mxu0 %v721
    %810 = vmatprep.subr.bf16.mxu0 0
    %811 = vmatpush1.bf16.msra.mxu0 %v724
    %812 = vmatprep.subr.bf16.mxu0 0
    %813 = vmatpush1.bf16.msra.mxu0 %v727
    %814 = vmatprep.subr.bf16.mxu0 0
    %815 = vmatpush1.bf16.msra.mxu0 %v730
    %816 = vmatprep.subr.bf16.mxu0 0
    %817 = vmatpush1.bf16.msra.mxu0 %v733
    %818 = vmatprep.subr.bf16.mxu0 0
    %819 = vmatpush1.bf16.msra.mxu0 %v736
    %820 = vmatprep.subr.bf16.mxu0 0
    %821 = vmatpush1.bf16.msra.mxu0 0
    %822 = vmatprep.subr.bf16.mxu0 0
    %823 = vmatpush1.bf16.msra.mxu0 0
    %824 = vmatprep.subr.bf16.mxu0 0
    %825 = vmatpush1.bf16.msra.mxu0 0
    %826 = vmatprep.subr.bf16.mxu0 0
    %827 = vmatpush1.bf16.msra.mxu0 0
    %828 = vmatprep.subr.bf16.mxu0 0
    %829 = vmatpush1.bf16.msra.mxu0 0
    %830 = vmatprep.subr.bf16.mxu0 0
    %831 = vmatpush1.bf16.msra.mxu0 0
    %832 = vmatprep.subr.bf16.mxu0 0
    %833 = vmatpush1.bf16.msra.mxu0 0
    %834 = vmatprep.subr.bf16.mxu0 0
    %835 = vmatpush1.bf16.msra.mxu0 0
    %836 = vmatprep.mubr.bf16.mxu0 0
    %837 = vmatmul.mubr.bf16.gmra.mrb[0].mxu0 %v632
    %v838 = vpop.f32.mrb[0].mxu0
    %v839 = vadd.f32 0.0, %v838
    %v840 = vpop.f32.mrb[0].mxu0
    %v841 = vpop.f32.mrb[0].mxu0
    %v842 = vadd.f32 0.0, %v841
    %v843 = vpop.f32.mrb[0].mxu0
    %844 = vdwg.mxu0
    %v845 = vadd.f32 %v626, %v796
    %v846 = vadd.f32 %v629, %v800
    %v847 = vxor.u32 %v845, 2147483648
    %v848 = vxor.u32 %v846, 2147483648
    %v849 = vmul.f32 %v847, 1.442695
    %v850 = vpow.pop %v849
    %v851 = vmul.f32 %v848, 1.442695
    %v852 = vpow.pop %v851
    %v853 = vadd.f32 %v850, 1.0
    %v854 = vadd.f32 %v852, 1.0
    %v855 = vrcp.pop %v853
    %v856 = vmul.f32 1.0, %v855
    %v857 = vrcp.pop %v854
    %v858 = vmul.f32 1.0, %v857
    %v859 = vadd.f32 %v627, %v798
    %v860 = vadd.f32 %v630, %v802
    %v861 = vxor.u32 %v859, 2147483648
    %v862 = vxor.u32 %v860, 2147483648
    %v863 = vmul.f32 %v861, 1.442695
    %v864 = vpow.pop %v863
    %v865 = vmul.f32 %v862, 1.442695
    %v866 = vpow.pop %v865
    %v867 = vadd.f32 %v864, 1.0
    %v868 = vadd.f32 %v866, 1.0
    %v869 = vrcp.pop %v867
    %v870 = vmul.f32 1.0, %v869
    %v871 = vrcp.pop %v868
    %v872 = vmul.f32 1.0, %v871
    %v874 = vlaneseq
    %v875 = vshrl.u32 %v874, 7
    %v876 = vsub.s32 0, %v875
    %v877 = vrot.slane %v623, %v876
    %v879 = vadd.f32 %v839, %v877
    %v880 = vadd.f32 %v842, %v877
    %v881 = vmul.f32 %v856, %v879
    %v882 = vmul.f32 %v858, %v880
    %v883 = vadd.f32 %v628, %v881
    %v884 = vadd.f32 %v631, %v882
    %v885 = vtanh.pop %v883
    %v886 = vtanh.pop %v884
    %v887 = vsub.f32 %v624, %v885
    %v888 = vsub.f32 %v625, %v886
    %v889 = vmul.f32 %v870, %v887
    %v890 = vmul.f32 %v872, %v888
    %v891 = vadd.f32 %v885, %v889
    %v892 = vadd.f32 %v886, %v890
    %893 = vst [vmem:[#allocation2] sm:$0xff] %v891
    %894 = vst [vmem:[#allocation2 + $0x8] sm:$0xff] %v892
    %v895 = vpack.c.bf16 %v892, %v891
    %v897 = vunpack.c.l.b16 %v895
    %v898 = vunpack.c.h.b16 %v895
    %v899 = vpack.c.b16 %v897, %v897
    %v900 = vpack.c.b16 %v898, %v898
    %903 = vst [vmem:[#allocation13] sm:$0xf] %v899
    %904 = vst [vmem:[#allocation13 + $0x4] sm:$0xf] %v900
    %v905 = vld [vmem:[#allocation2] sm:$0xff]
    %v906 = vld [vmem:[#allocation2 + $0x8] sm:$0xff]
    %s907 = scalar_lea.vmem [#allocation3], 48
    %v908 = vld [vmem:[%s907] sm:$0xff]
    %v909 = vld [vmem:[%s907 + $0x8] sm:$0xff]
    %v910 = vld [vmem:[%s907 + $0x10] sm:$0xff]
    %v911 = vld [vmem:[%s907 + $0x18] sm:$0xff]
    %v912 = vld [vmem:[%s907 + $0x20] sm:$0xff]
    %v913 = vld [vmem:[%s907 + $0x28] sm:$0xff]
    %v914 = vpack.c.bf16 %v906, %v905
    %915 = vmatprep.subr.bf16.mxu0 %v714
    %916 = vmatpush1.bf16.msra.mxu0 %v713
    %917 = vmatprep.subr.bf16.mxu0 %v717
    %918 = vmatpush1.bf16.msra.mxu0 %v716
    %919 = vmatprep.subr.bf16.mxu0 %v720
    %920 = vmatpush1.bf16.msra.mxu0 %v719
    %921 = vmatprep.subr.bf16.mxu0 %v723
    %922 = vmatpush1.bf16.msra.mxu0 %v722
    %923 = vmatprep.subr.bf16.mxu0 %v726
    %924 = vmatpush1.bf16.msra.mxu0 %v725
    %925 = vmatprep.subr.bf16.mxu0 %v729
    %926 = vmatpush1.bf16.msra.mxu0 %v728
    %927 = vmatprep.subr.bf16.mxu0 %v732
    %928 = vmatpush1.bf16.msra.mxu0 %v731
    %929 = vmatprep.subr.bf16.mxu0 %v735
    %930 = vmatpush1.bf16.msra.mxu0 %v734
    %931 = vmatprep.subr.bf16.mxu0 0
    %932 = vmatpush1.bf16.msra.mxu0 0
    %933 = vmatprep.subr.bf16.mxu0 0
    %934 = vmatpush1.bf16.msra.mxu0 0
    %935 = vmatprep.subr.bf16.mxu0 0
    %936 = vmatpush1.bf16.msra.mxu0 0
    %937 = vmatprep.subr.bf16.mxu0 0
    %938 = vmatpush1.bf16.msra.mxu0 0
    %939 = vmatprep.subr.bf16.mxu0 0
    %940 = vmatpush1.bf16.msra.mxu0 0
    %941 = vmatprep.subr.bf16.mxu0 0
    %942 = vmatpush1.bf16.msra.mxu0 0
    %943 = vmatprep.subr.bf16.mxu0 0
    %944 = vmatpush1.bf16.msra.mxu0 0
    %945 = vmatprep.subr.bf16.mxu0 0
    %946 = vmatpush1.bf16.msra.mxu0 0
    %947 = vmatprep.mubr.bf16.mxu0 0
    %948 = vmatmul.mubr.bf16.gmra.mrb[0].mxu0 %v914
    %v949 = vpop.f32.mrb[0].mxu0
    %v950 = vadd.f32 0.0, %v949
    %v951 = vpop.f32.mrb[0].mxu0
    %v952 = vadd.f32 0.0, %v951
    %v953 = vpop.f32.mrb[0].mxu0
    %v954 = vadd.f32 0.0, %v953
    %v955 = vpop.f32.mrb[0].mxu0
    %v956 = vadd.f32 0.0, %v955
    %957 = vdwg.mxu0
    %958 = vmatprep.subr.bf16.mxu0 0
    %959 = vmatpush1.bf16.msra.mxu0 %v715
    %960 = vmatprep.subr.bf16.mxu0 0
    %961 = vmatpush1.bf16.msra.mxu0 %v718
    %962 = vmatprep.subr.bf16.mxu0 0
    %963 = vmatpush1.bf16.msra.mxu0 %v721
    %964 = vmatprep.subr.bf16.mxu0 0
    %965 = vmatpush1.bf16.msra.mxu0 %v724
    %966 = vmatprep.subr.bf16.mxu0 0
    %967 = vmatpush1.bf16.msra.mxu0 %v727
    %968 = vmatprep.subr.bf16.mxu0 0
    %969 = vmatpush1.bf16.msra.mxu0 %v730
    %970 = vmatprep.subr.bf16.mxu0 0
    %971 = vmatpush1.bf16.msra.mxu0 %v733
    %972 = vmatprep.subr.bf16.mxu0 0
    %973 = vmatpush1.bf16.msra.mxu0 %v736
    %974 = vmatprep.subr.bf16.mxu0 0
    %975 = vmatpush1.bf16.msra.mxu0 0
    %976 = vmatprep.subr.bf16.mxu0 0
    %977 = vmatpush1.bf16.msra.mxu0 0
    %978 = vmatprep.subr.bf16.mxu0 0
    %979 = vmatpush1.bf16.msra.mxu0 0
    %980 = vmatprep.subr.bf16.mxu0 0
    %981 = vmatpush1.bf16.msra.mxu0 0
    %982 = vmatprep.subr.bf16.mxu0 0
    %983 = vmatpush1.bf16.msra.mxu0 0
    %984 = vmatprep.subr.bf16.mxu0 0
    %985 = vmatpush1.bf16.msra.mxu0 0
    %986 = vmatprep.subr.bf16.mxu0 0
    %987 = vmatpush1.bf16.msra.mxu0 0
    %988 = vmatprep.subr.bf16.mxu0 0
    %989 = vmatpush1.bf16.msra.mxu0 0
    %990 = vmatprep.mubr.bf16.mxu0 0
    %991 = vmatmul.mubr.bf16.gmra.mrb[0].mxu0 %v914
    %v992 = vpop.f32.mrb[0].mxu0
    %v993 = vadd.f32 0.0, %v992
    %v994 = vpop.f32.mrb[0].mxu0
    %v995 = vpop.f32.mrb[0].mxu0
    %v996 = vadd.f32 0.0, %v995
    %v997 = vpop.f32.mrb[0].mxu0
    %998 = vdwg.mxu0
    %v999 = vadd.f32 %v908, %v950
    %v1000 = vadd.f32 %v911, %v954
    %v1001 = vxor.u32 %v999, 2147483648
    %v1002 = vxor.u32 %v1000, 2147483648
    %v1003 = vmul.f32 %v1001, 1.442695
    %v1004 = vpow.pop %v1003
    %v1005 = vmul.f32 %v1002, 1.442695
    %v1006 = vpow.pop %v1005
    %v1007 = vadd.f32 %v1004, 1.0
    %v1008 = vadd.f32 %v1006, 1.0
    %v1009 = vrcp.pop %v1007
    %v1010 = vmul.f32 1.0, %v1009
    %v1011 = vrcp.pop %v1008
    %v1012 = vmul.f32 1.0, %v1011
    %v1013 = vadd.f32 %v909, %v952
    %v1014 = vadd.f32 %v912, %v956
    %v1015 = vxor.u32 %v1013, 2147483648
    %v1016 = vxor.u32 %v1014, 2147483648
    %v1017 = vmul.f32 %v1015, 1.442695
    %v1018 = vpow.pop %v1017
    %v1019 = vmul.f32 %v1016, 1.442695
    %v1020 = vpow.pop %v1019
    %v1021 = vadd.f32 %v1018, 1.0
    %v1022 = vadd.f32 %v1020, 1.0
    %v1023 = vrcp.pop %v1021
    %v1024 = vmul.f32 1.0, %v1023
    %v1025 = vrcp.pop %v1022
    %v1026 = vmul.f32 1.0, %v1025
    %v1027 = vadd.f32 %v993, %v877
    %v1028 = vadd.f32 %v996, %v877
    %v1029 = vmul.f32 %v1010, %v1027
    %v1030 = vmul.f32 %v1012, %v1028
    %v1031 = vadd.f32 %v910, %v1029
    %v1032 = vadd.f32 %v913, %v1030
    %v1033 = vtanh.pop %v1031
    %v1034 = vtanh.pop %v1032
    %v1035 = vsub.f32 %v905, %v1033
    %v1036 = vsub.f32 %v906, %v1034
    %v1037 = vmul.f32 %v1024, %v1035
    %v1038 = vmul.f32 %v1026, %v1036
    %v1039 = vadd.f32 %v1033, %v1037
    %v1040 = vadd.f32 %v1034, %v1038
    %1041 = vst [vmem:[#allocation2] sm:$0xff] %v1039
    %1042 = vst [vmem:[#allocation2 + $0x8] sm:$0xff] %v1040
    %v1043 = vpack.c.bf16 %v1040, %v1039
    %v1045 = vunpack.c.l.b16 %v1043
    %v1046 = vunpack.c.h.b16 %v1043
    %v1047 = vpack.c.b16 %v1045, %v1045
    %v1048 = vpack.c.b16 %v1046, %v1046
    %s1051 = scalar_lea.vmem [#allocation13], 8
    %1052 = vst [vmem:[%s1051] sm:$0xf] %v1047
    %1053 = vst [vmem:[%s1051 + $0x4] sm:$0xf] %v1048
    %v1054 = vld [vmem:[#allocation2] sm:$0xff]
    %v1055 = vld [vmem:[#allocation2 + $0x8] sm:$0xff]
    %s1056 = scalar_lea.vmem [#allocation3], 96
    %v1057 = vld [vmem:[%s1056] sm:$0xff]
    %v1058 = vld [vmem:[%s1056 + $0x8] sm:$0xff]
    %v1059 = vld [vmem:[%s1056 + $0x10] sm:$0xff]
    %v1060 = vld [vmem:[%s1056 + $0x18] sm:$0xff]
    %v1061 = vld [vmem:[%s1056 + $0x20] sm:$0xff]
    %v1062 = vld [vmem:[%s1056 + $0x28] sm:$0xff]
    %v1063 = vpack.c.bf16 %v1055, %v1054
    %1064 = vmatprep.subr.bf16.mxu0 %v714
    %1065 = vmatpush1.bf16.msra.mxu0 %v713
    %1066 = vmatprep.subr.bf16.mxu0 %v717
    %1067 = vmatpush1.bf16.msra.mxu0 %v716
    %1068 = vmatprep.subr.bf16.mxu0 %v720
    %1069 = vmatpush1.bf16.msra.mxu0 %v719
    %1070 = vmatprep.subr.bf16.mxu0 %v723
    %1071 = vmatpush1.bf16.msra.mxu0 %v722
    %1072 = vmatprep.subr.bf16.mxu0 %v726
    %1073 = vmatpush1.bf16.msra.mxu0 %v725
    %1074 = vmatprep.subr.bf16.mxu0 %v729
    %1075 = vmatpush1.bf16.msra.mxu0 %v728
    %1076 = vmatprep.subr.bf16.mxu0 %v732
    %1077 = vmatpush1.bf16.msra.mxu0 %v731
    %1078 = vmatprep.subr.bf16.mxu0 %v735
    %1079 = vmatpush1.bf16.msra.mxu0 %v734
    %1080 = vmatprep.subr.bf16.mxu0 0
    %1081 = vmatpush1.bf16.msra.mxu0 0
    %1082 = vmatprep.subr.bf16.mxu0 0
    %1083 = vmatpush1.bf16.msra.mxu0 0
    %1084 = vmatprep.subr.bf16.mxu0 0
    %1085 = vmatpush1.bf16.msra.mxu0 0
    %1086 = vmatprep.subr.bf16.mxu0 0
    %1087 = vmatpush1.bf16.msra.mxu0 0
    %1088 = vmatprep.subr.bf16.mxu0 0
    %1089 = vmatpush1.bf16.msra.mxu0 0
    %1090 = vmatprep.subr.bf16.mxu0 0
    %1091 = vmatpush1.bf16.msra.mxu0 0
    %1092 = vmatprep.subr.bf16.mxu0 0
    %1093 = vmatpush1.bf16.msra.mxu0 0
    %1094 = vmatprep.subr.bf16.mxu0 0
    %1095 = vmatpush1.bf16.msra.mxu0 0
    %1096 = vmatprep.mubr.bf16.mxu0 0
    %1097 = vmatmul.mubr.bf16.gmra.mrb[0].mxu0 %v1063
    %v1098 = vpop.f32.mrb[0].mxu0
    %v1099 = vadd.f32 0.0, %v1098
    %v1100 = vpop.f32.mrb[0].mxu0
    %v1101 = vadd.f32 0.0, %v1100
    %v1102 = vpop.f32.mrb[0].mxu0
    %v1103 = vadd.f32 0.0, %v1102
    %v1104 = vpop.f32.mrb[0].mxu0
    %v1105 = vadd.f32 0.0, %v1104
    %1106 = vdwg.mxu0
    %1107 = vmatprep.subr.bf16.mxu0 0
    %1108 = vmatpush1.bf16.msra.mxu0 %v715
    %1109 = vmatprep.subr.bf16.mxu0 0
    %1110 = vmatpush1.bf16.msra.mxu0 %v718
    %1111 = vmatprep.subr.bf16.mxu0 0
    %1112 = vmatpush1.bf16.msra.mxu0 %v721
    %1113 = vmatprep.subr.bf16.mxu0 0
    %1114 = vmatpush1.bf16.msra.mxu0 %v724
    %1115 = vmatprep.subr.bf16.mxu0 0
    %1116 = vmatpush1.bf16.msra.mxu0 %v727
    %1117 = vmatprep.subr.bf16.mxu0 0
    %1118 = vmatpush1.bf16.msra.mxu0 %v730
    %1119 = vmatprep.subr.bf16.mxu0 0
    %1120 = vmatpush1.bf16.msra.mxu0 %v733
    %1121 = vmatprep.subr.bf16.mxu0 0
    %1122 = vmatpush1.bf16.msra.mxu0 %v736
    %1123 = vmatprep.subr.bf16.mxu0 0
    %1124 = vmatpush1.bf16.msra.mxu0 0
    %1125 = vmatprep.subr.bf16.mxu0 0
    %1126 = vmatpush1.bf16.msra.mxu0 0
    %1127 = vmatprep.subr.bf16.mxu0 0
    %1128 = vmatpush1.bf16.msra.mxu0 0
    %1129 = vmatprep.subr.bf16.mxu0 0
    %1130 = vmatpush1.bf16.msra.mxu0 0
    %1131 = vmatprep.subr.bf16.mxu0 0
    %1132 = vmatpush1.bf16.msra.mxu0 0
    %1133 = vmatprep.subr.bf16.mxu0 0
    %1134 = vmatpush1.bf16.msra.mxu0 0
    %1135 = vmatprep.subr.bf16.mxu0 0
    %1136 = vmatpush1.bf16.msra.mxu0 0
    %1137 = vmatprep.subr.bf16.mxu0 0
    %1138 = vmatpush1.bf16.msra.mxu0 0
    %1139 = vmatprep.mubr.bf16.mxu0 0
    %1140 = vmatmul.mubr.bf16.gmra.mrb[0].mxu0 %v1063
    %v1141 = vpop.f32.mrb[0].mxu0
    %v1142 = vadd.f32 0.0, %v1141
    %v1143 = vpop.f32.mrb[0].mxu0
    %v1144 = vpop.f32.mrb[0].mxu0
    %v1145 = vadd.f32 0.0, %v1144
    %v1146 = vpop.f32.mrb[0].mxu0
    %1147 = vdwg.mxu0
    %v1148 = vadd.f32 %v1057, %v1099
    %v1149 = vadd.f32 %v1060, %v1103
    %v1150 = vxor.u32 %v1148, 2147483648
    %v1151 = vxor.u32 %v1149, 2147483648
    %v1152 = vmul.f32 %v1150, 1.442695
    %v1153 = vpow.pop %v1152
    %v1154 = vmul.f32 %v1151, 1.442695
    %v1155 = vpow.pop %v1154
    %v1156 = vadd.f32 %v1153, 1.0
    %v1157 = vadd.f32 %v1155, 1.0
    %v1158 = vrcp.pop %v1156
    %v1159 = vmul.f32 1.0, %v1158
    %v1160 = vrcp.pop %v1157
    %v1161 = vmul.f32 1.0, %v1160
    %v1162 = vadd.f32 %v1058, %v1101
    %v1163 = vadd.f32 %v1061, %v1105
    %v1164 = vxor.u32 %v1162, 2147483648
    %v1165 = vxor.u32 %v1163, 2147483648
    %v1166 = vmul.f32 %v1164, 1.442695
    %v1167 = vpow.pop %v1166
    %v1168 = vmul.f32 %v1165, 1.442695
    %v1169 = vpow.pop %v1168
    %v1170 = vadd.f32 %v1167, 1.0
    %v1171 = vadd.f32 %v1169, 1.0
    %v1172 = vrcp.pop %v1170
    %v1173 = vmul.f32 1.0, %v1172
    %v1174 = vrcp.pop %v1171
    %v1175 = vmul.f32 1.0, %v1174
    %v1176 = vadd.f32 %v1142, %v877
    %v1177 = vadd.f32 %v1145, %v877
    %v1178 = vmul.f32 %v1159, %v1176
    %v1179 = vmul.f32 %v1161, %v1177
    %v1180 = vadd.f32 %v1059, %v1178
    %v1181 = vadd.f32 %v1062, %v1179
    %v1182 = vtanh.pop %v1180
    %v1183 = vtanh.pop %v1181
    %v1184 = vsub.f32 %v1054, %v1182
    %v1185 = vsub.f32 %v1055, %v1183
    %v1186 = vmul.f32 %v1173, %v1184
    %v1187 = vmul.f32 %v1175, %v1185
    %v1188 = vadd.f32 %v1182, %v1186
    %v1189 = vadd.f32 %v1183, %v1187
    %1190 = vst [vmem:[#allocation2] sm:$0xff] %v1188
    %1191 = vst [vmem:[#allocation2 + $0x8] sm:$0xff] %v1189
    %v1192 = vpack.c.bf16 %v1189, %v1188
    %v1194 = vunpack.c.l.b16 %v1192
    %v1195 = vunpack.c.h.b16 %v1192
    %v1196 = vpack.c.b16 %v1194, %v1194
    %v1197 = vpack.c.b16 %v1195, %v1195
    %s1200 = scalar_lea.vmem [#allocation13], 16
    %1201 = vst [vmem:[%s1200] sm:$0xf] %v1196
    %1202 = vst [vmem:[%s1200 + $0x4] sm:$0xf] %v1197
    %v1203 = vld [vmem:[#allocation2] sm:$0xff]
    %v1204 = vld [vmem:[#allocation2 + $0x8] sm:$0xff]
    %s1205 = scalar_lea.vmem [#allocation3], 144
    %v1206 = vld [vmem:[%s1205] sm:$0xff]
    %v1207 = vld [vmem:[%s1205 + $0x8] sm:$0xff]
    %v1208 = vld [vmem:[%s1205 + $0x10] sm:$0xff]
    %v1209 = vld [vmem:[%s1205 + $0x18] sm:$0xff]
    %v1210 = vld [vmem:[%s1205 + $0x20] sm:$0xff]
    %v1211 = vld [vmem:[%s1205 + $0x28] sm:$0xff]
    %v1212 = vpack.c.bf16 %v1204, %v1203
    %1213 = vmatprep.subr.bf16.mxu0 %v714
    %1214 = vmatpush1.bf16.msra.mxu0 %v713
    %1215 = vmatprep.subr.bf16.mxu0 %v717
    %1216 = vmatpush1.bf16.msra.mxu0 %v716
    %1217 = vmatprep.subr.bf16.mxu0 %v720
    %1218 = vmatpush1.bf16.msra.mxu0 %v719
    %1219 = vmatprep.subr.bf16.mxu0 %v723
    %1220 = vmatpush1.bf16.msra.mxu0 %v722
    %1221 = vmatprep.subr.bf16.mxu0 %v726
    %1222 = vmatpush1.bf16.msra.mxu0 %v725
    %1223 = vmatprep.subr.bf16.mxu0 %v729
    %1224 = vmatpush1.bf16.msra.mxu0 %v728
    %1225 = vmatprep.subr.bf16.mxu0 %v732
    %1226 = vmatpush1.bf16.msra.mxu0 %v731
    %1227 = vmatprep.subr.bf16.mxu0 %v735
    %1228 = vmatpush1.bf16.msra.mxu0 %v734
    %1229 = vmatprep.subr.bf16.mxu0 0
    %1230 = vmatpush1.bf16.msra.mxu0 0
    %1231 = vmatprep.subr.bf16.mxu0 0
    %1232 = vmatpush1.bf16.msra.mxu0 0
    %1233 = vmatprep.subr.bf16.mxu0 0
    %1234 = vmatpush1.bf16.msra.mxu0 0
    %1235 = vmatprep.subr.bf16.mxu0 0
    %1236 = vmatpush1.bf16.msra.mxu0 0
    %1237 = vmatprep.subr.bf16.mxu0 0
    %1238 = vmatpush1.bf16.msra.mxu0 0
    %1239 = vmatprep.subr.bf16.mxu0 0
    %1240 = vmatpush1.bf16.msra.mxu0 0
    %1241 = vmatprep.subr.bf16.mxu0 0
    %1242 = vmatpush1.bf16.msra.mxu0 0
    %1243 = vmatprep.subr.bf16.mxu0 0
    %1244 = vmatpush1.bf16.msra.mxu0 0
    %1245 = vmatprep.mubr.bf16.mxu0 0
    %1246 = vmatmul.mubr.bf16.gmra.mrb[0].mxu0 %v1212
    %v1247 = vpop.f32.mrb[0].mxu0
    %v1248 = vadd.f32 0.0, %v1247
    %v1249 = vpop.f32.mrb[0].mxu0
    %v1250 = vadd.f32 0.0, %v1249
    %v1251 = vpop.f32.mrb[0].mxu0
    %v1252 = vadd.f32 0.0, %v1251
    %v1253 = vpop.f32.mrb[0].mxu0
    %v1254 = vadd.f32 0.0, %v1253
    %1255 = vdwg.mxu0
    %1256 = vmatprep.subr.bf16.mxu0 0
    %1257 = vmatpush1.bf16.msra.mxu0 %v715
    %1258 = vmatprep.subr.bf16.mxu0 0
    %1259 = vmatpush1.bf16.msra.mxu0 %v718
    %1260 = vmatprep.subr.bf16.mxu0 0
    %1261 = vmatpush1.bf16.msra.mxu0 %v721
    %1262 = vmatprep.subr.bf16.mxu0 0
    %1263 = vmatpush1.bf16.msra.mxu0 %v724
    %1264 = vmatprep.subr.bf16.mxu0 0
    %1265 = vmatpush1.bf16.msra.mxu0 %v727
    %1266 = vmatprep.subr.bf16.mxu0 0
    %1267 = vmatpush1.bf16.msra.mxu0 %v730
    %1268 = vmatprep.subr.bf16.mxu0 0
    %1269 = vmatpush1.bf16.msra.mxu0 %v733
    %1270 = vmatprep.subr.bf16.mxu0 0
    %1271 = vmatpush1.bf16.msra.mxu0 %v736
    %1272 = vmatprep.subr.bf16.mxu0 0
    %1273 = vmatpush1.bf16.msra.mxu0 0
    %1274 = vmatprep.subr.bf16.mxu0 0
    %1275 = vmatpush1.bf16.msra.mxu0 0
    %1276 = vmatprep.subr.bf16.mxu0 0
    %1277 = vmatpush1.bf16.msra.mxu0 0
    %1278 = vmatprep.subr.bf16.mxu0 0
    %1279 = vmatpush1.bf16.msra.mxu0 0
    %1280 = vmatprep.subr.bf16.mxu0 0
    %1281 = vmatpush1.bf16.msra.mxu0 0
    %1282 = vmatprep.subr.bf16.mxu0 0
    %1283 = vmatpush1.bf16.msra.mxu0 0
    %1284 = vmatprep.subr.bf16.mxu0 0
    %1285 = vmatpush1.bf16.msra.mxu0 0
    %1286 = vmatprep.subr.bf16.mxu0 0
    %1287 = vmatpush1.bf16.msra.mxu0 0
    %1288 = vmatprep.mubr.bf16.mxu0 0
    %1289 = vmatmul.mubr.bf16.gmra.mrb[0].mxu0 %v1212
    %v1290 = vpop.f32.mrb[0].mxu0
    %v1291 = vadd.f32 0.0, %v1290
    %v1292 = vpop.f32.mrb[0].mxu0
    %v1293 = vpop.f32.mrb[0].mxu0
    %v1294 = vadd.f32 0.0, %v1293
    %v1295 = vpop.f32.mrb[0].mxu0
    %1296 = vdwg.mxu0
    %v1297 = vadd.f32 %v1206, %v1248
    %v1298 = vadd.f32 %v1209, %v1252
    %v1299 = vxor.u32 %v1297, 2147483648
    %v1300 = vxor.u32 %v1298, 2147483648
    %v1301 = vmul.f32 %v1299, 1.442695
    %v1302 = vpow.pop %v1301
    %v1303 = vmul.f32 %v1300, 1.442695
    %v1304 = vpow.pop %v1303
    %v1305 = vadd.f32 %v1302, 1.0
    %v1306 = vadd.f32 %v1304, 1.0
    %v1307 = vrcp.pop %v1305
    %v1308 = vmul.f32 1.0, %v1307
    %v1309 = vrcp.pop %v1306
    %v1310 = vmul.f32 1.0, %v1309
    %v1311 = vadd.f32 %v1207, %v1250
    %v1312 = vadd.f32 %v1210, %v1254
    %v1313 = vxor.u32 %v1311, 2147483648
    %v1314 = vxor.u32 %v1312, 2147483648
    %v1315 = vmul.f32 %v1313, 1.442695
    %v1316 = vpow.pop %v1315
    %v1317 = vmul.f32 %v1314, 1.442695
    %v1318 = vpow.pop %v1317
    %v1319 = vadd.f32 %v1316, 1.0
    %v1320 = vadd.f32 %v1318, 1.0
    %v1321 = vrcp.pop %v1319
    %v1322 = vmul.f32 1.0, %v1321
    %v1323 = vrcp.pop %v1320
    %v1324 = vmul.f32 1.0, %v1323
    %v1325 = vadd.f32 %v1291, %v877
    %v1326 = vadd.f32 %v1294, %v877
    %v1327 = vmul.f32 %v1308, %v1325
    %v1328 = vmul.f32 %v1310, %v1326
    %v1329 = vadd.f32 %v1208, %v1327
    %v1330 = vadd.f32 %v1211, %v1328
    %v1331 = vtanh.pop %v1329
    %v1332 = vtanh.pop %v1330
    %v1333 = vsub.f32 %v1203, %v1331
    %v1334 = vsub.f32 %v1204, %v1332
    %v1335 = vmul.f32 %v1322, %v1333
    %v1336 = vmul.f32 %v1324, %v1334
    %v1337 = vadd.f32 %v1331, %v1335
    %v1338 = vadd.f32 %v1332, %v1336
    %1339 = vst [vmem:[#allocation2] sm:$0xff] %v1337
    %1340 = vst [vmem:[#allocation2 + $0x8] sm:$0xff] %v1338
    %v1341 = vpack.c.bf16 %v1338, %v1337
    %v1343 = vunpack.c.l.b16 %v1341
    %v1344 = vunpack.c.h.b16 %v1341
    %v1345 = vpack.c.b16 %v1343, %v1343
    %v1346 = vpack.c.b16 %v1344, %v1344
    %s1349 = scalar_lea.vmem [#allocation13], 24
    %1350 = vst [vmem:[%s1349] sm:$0xf] %v1345
    %1351 = vst [vmem:[%s1349 + $0x4] sm:$0xf] %v1346
    %v1352 = vld [vmem:[#allocation2] sm:$0xff]
    %v1353 = vld [vmem:[#allocation2 + $0x8] sm:$0xff]
    %s1354 = scalar_lea.vmem [#allocation3], 192
    %v1355 = vld [vmem:[%s1354] sm:$0xff]
    %v1356 = vld [vmem:[%s1354 + $0x8] sm:$0xff]
    %v1357 = vld [vmem:[%s1354 + $0x10] sm:$0xff]
    %v1358 = vld [vmem:[%s1354 + $0x18] sm:$0xff]
    %v1359 = vld [vmem:[%s1354 + $0x20] sm:$0xff]
    %v1360 = vld [vmem:[%s1354 + $0x28] sm:$0xff]
    %v1361 = vpack.c.bf16 %v1353, %v1352
    %1362 = vmatprep.subr.bf16.mxu0 %v714
    %1363 = vmatpush1.bf16.msra.mxu0 %v713
    %1364 = vmatprep.subr.bf16.mxu0 %v717
    %1365 = vmatpush1.bf16.msra.mxu0 %v716
    %1366 = vmatprep.subr.bf16.mxu0 %v720
    %1367 = vmatpush1.bf16.msra.mxu0 %v719
    %1368 = vmatprep.subr.bf16.mxu0 %v723
    %1369 = vmatpush1.bf16.msra.mxu0 %v722
    %1370 = vmatprep.subr.bf16.mxu0 %v726
    %1371 = vmatpush1.bf16.msra.mxu0 %v725
    %1372 = vmatprep.subr.bf16.mxu0 %v729
    %1373 = vmatpush1.bf16.msra.mxu0 %v728
    %1374 = vmatprep.subr.bf16.mxu0 %v732
    %1375 = vmatpush1.bf16.msra.mxu0 %v731
    %1376 = vmatprep.subr.bf16.mxu0 %v735
    %1377 = vmatpush1.bf16.msra.mxu0 %v734
    %1378 = vmatprep.subr.bf16.mxu0 0
    %1379 = vmatpush1.bf16.msra.mxu0 0
    %1380 = vmatprep.subr.bf16.mxu0 0
    %1381 = vmatpush1.bf16.msra.mxu0 0
    %1382 = vmatprep.subr.bf16.mxu0 0
    %1383 = vmatpush1.bf16.msra.mxu0 0
    %1384 = vmatprep.subr.bf16.mxu0 0
    %1385 = vmatpush1.bf16.msra.mxu0 0
    %1386 = vmatprep.subr.bf16.mxu0 0
    %1387 = vmatpush1.bf16.msra.mxu0 0
    %1388 = vmatprep.subr.bf16.mxu0 0
    %1389 = vmatpush1.bf16.msra.mxu0 0
    %1390 = vmatprep.subr.bf16.mxu0 0
    %1391 = vmatpush1.bf16.msra.mxu0 0
    %1392 = vmatprep.subr.bf16.mxu0 0
    %1393 = vmatpush1.bf16.msra.mxu0 0
    %1394 = vmatprep.mubr.bf16.mxu0 0
    %1395 = vmatmul.mubr.bf16.gmra.mrb[0].mxu0 %v1361
    %v1396 = vpop.f32.mrb[0].mxu0
    %v1397 = vadd.f32 0.0, %v1396
    %v1398 = vpop.f32.mrb[0].mxu0
    %v1399 = vadd.f32 0.0, %v1398
    %v1400 = vpop.f32.mrb[0].mxu0
    %v1401 = vadd.f32 0.0, %v1400
    %v1402 = vpop.f32.mrb[0].mxu0
    %v1403 = vadd.f32 0.0, %v1402
    %1404 = vdwg.mxu0
    %1405 = vmatprep.subr.bf16.mxu0 0
    %1406 = vmatpush1.bf16.msra.mxu0 %v715
    %1407 = vmatprep.subr.bf16.mxu0 0
    %1408 = vmatpush1.bf16.msra.mxu0 %v718
    %1409 = vmatprep.subr.bf16.mxu0 0
    %1410 = vmatpush1.bf16.msra.mxu0 %v721
    %1411 = vmatprep.subr.bf16.mxu0 0
    %1412 = vmatpush1.bf16.msra.mxu0 %v724
    %1413 = vmatprep.subr.bf16.mxu0 0
    %1414 = vmatpush1.bf16.msra.mxu0 %v727
    %1415 = vmatprep.subr.bf16.mxu0 0
    %1416 = vmatpush1.bf16.msra.mxu0 %v730
    %1417 = vmatprep.subr.bf16.mxu0 0
    %1418 = vmatpush1.bf16.msra.mxu0 %v733
    %1419 = vmatprep.subr.bf16.mxu0 0
    %1420 = vmatpush1.bf16.msra.mxu0 %v736
    %1421 = vmatprep.subr.bf16.mxu0 0
    %1422 = vmatpush1.bf16.msra.mxu0 0
    %1423 = vmatprep.subr.bf16.mxu0 0
    %1424 = vmatpush1.bf16.msra.mxu0 0
    %1425 = vmatprep.subr.bf16.mxu0 0
    %1426 = vmatpush1.bf16.msra.mxu0 0
    %1427 = vmatprep.subr.bf16.mxu0 0
    %1428 = vmatpush1.bf16.msra.mxu0 0
    %1429 = vmatprep.subr.bf16.mxu0 0
    %1430 = vmatpush1.bf16.msra.mxu0 0
    %1431 = vmatprep.subr.bf16.mxu0 0
    %1432 = vmatpush1.bf16.msra.mxu0 0
    %1433 = vmatprep.subr.bf16.mxu0 0
    %1434 = vmatpush1.bf16.msra.mxu0 0
    %1435 = vmatprep.subr.bf16.mxu0 0
    %1436 = vmatpush1.bf16.msra.mxu0 0
    %1437 = vmatprep.mubr.bf16.mxu0 0
    %1438 = vmatmul.mubr.bf16.gmra.mrb[0].mxu0 %v1361
    %v1439 = vpop.f32.mrb[0].mxu0
    %v1440 = vadd.f32 0.0, %v1439
    %v1441 = vpop.f32.mrb[0].mxu0
    %v1442 = vpop.f32.mrb[0].mxu0
    %v1443 = vadd.f32 0.0, %v1442
    %v1444 = vpop.f32.mrb[0].mxu0
    %1445 = vdwg.mxu0
    %v1446 = vadd.f32 %v1355, %v1397
    %v1447 = vadd.f32 %v1358, %v1401
    %v1448 = vxor.u32 %v1446, 2147483648
    %v1449 = vxor.u32 %v1447, 2147483648
    %v1450 = vmul.f32 %v1448, 1.442695
    %v1451 = vpow.pop %v1450
    %v1452 = vmul.f32 %v1449, 1.442695
    %v1453 = vpow.pop %v1452
    %v1454 = vadd.f32 %v1451, 1.0
    %v1455 = vadd.f32 %v1453, 1.0
    %v1456 = vrcp.pop %v1454
    %v1457 = vmul.f32 1.0, %v1456
    %v1458 = vrcp.pop %v1455
    %v1459 = vmul.f32 1.0, %v1458
    %v1460 = vadd.f32 %v1356, %v1399
    %v1461 = vadd.f32 %v1359, %v1403
    %v1462 = vxor.u32 %v1460, 2147483648
    %v1463 = vxor.u32 %v1461, 2147483648
    %v1464 = vmul.f32 %v1462, 1.442695
    %v1465 = vpow.pop %v1464
    %v1466 = vmul.f32 %v1463, 1.442695
    %v1467 = vpow.pop %v1466
    %v1468 = vadd.f32 %v1465, 1.0
    %v1469 = vadd.f32 %v1467, 1.0
    %v1470 = vrcp.pop %v1468
    %v1471 = vmul.f32 1.0, %v1470
    %v1472 = vrcp.pop %v1469
    %v1473 = vmul.f32 1.0, %v1472
    %v1474 = vadd.f32 %v1440, %v877
    %v1475 = vadd.f32 %v1443, %v877
    %v1476 = vmul.f32 %v1457, %v1474
    %v1477 = vmul.f32 %v1459, %v1475
    %v1478 = vadd.f32 %v1357, %v1476
    %v1479 = vadd.f32 %v1360, %v1477
    %v1480 = vtanh.pop %v1478
    %v1481 = vtanh.pop %v1479
    %v1482 = vsub.f32 %v1352, %v1480
    %v1483 = vsub.f32 %v1353, %v1481
    %v1484 = vmul.f32 %v1471, %v1482
    %v1485 = vmul.f32 %v1473, %v1483
    %v1486 = vadd.f32 %v1480, %v1484
    %v1487 = vadd.f32 %v1481, %v1485
    %1488 = vst [vmem:[#allocation2] sm:$0xff] %v1486
    %1489 = vst [vmem:[#allocation2 + $0x8] sm:$0xff] %v1487
    %v1490 = vpack.c.bf16 %v1487, %v1486
    %v1492 = vunpack.c.l.b16 %v1490
    %v1493 = vunpack.c.h.b16 %v1490
    %v1494 = vpack.c.b16 %v1492, %v1492
    %v1495 = vpack.c.b16 %v1493, %v1493
    %s1498 = scalar_lea.vmem [#allocation13], 32
    %1499 = vst [vmem:[%s1498] sm:$0xf] %v1494
    %1500 = vst [vmem:[%s1498 + $0x4] sm:$0xf] %v1495
    %v1501 = vld [vmem:[#allocation2] sm:$0xff]
    %v1502 = vld [vmem:[#allocation2 + $0x8] sm:$0xff]
    %s1503 = scalar_lea.vmem [#allocation3], 240
    %v1504 = vld [vmem:[%s1503] sm:$0xff]
    %v1505 = vld [vmem:[%s1503 + $0x8] sm:$0xff]
    %v1506 = vld [vmem:[%s1503 + $0x10] sm:$0xff]
    %v1507 = vld [vmem:[%s1503 + $0x18] sm:$0xff]
    %v1508 = vld [vmem:[%s1503 + $0x20] sm:$0xff]
    %v1509 = vld [vmem:[%s1503 + $0x28] sm:$0xff]
    %v1510 = vpack.c.bf16 %v1502, %v1501
    %1511 = vmatprep.subr.bf16.mxu0 %v714
    %1512 = vmatpush1.bf16.msra.mxu0 %v713
    %1513 = vmatprep.subr.bf16.mxu0 %v717
    %1514 = vmatpush1.bf16.msra.mxu0 %v716
    %1515 = vmatprep.subr.bf16.mxu0 %v720
    %1516 = vmatpush1.bf16.msra.mxu0 %v719
    %1517 = vmatprep.subr.bf16.mxu0 %v723
    %1518 = vmatpush1.bf16.msra.mxu0 %v722
    %1519 = vmatprep.subr.bf16.mxu0 %v726
    %1520 = vmatpush1.bf16.msra.mxu0 %v725
    %1521 = vmatprep.subr.bf16.mxu0 %v729
    %1522 = vmatpush1.bf16.msra.mxu0 %v728
    %1523 = vmatprep.subr.bf16.mxu0 %v732
    %1524 = vmatpush1.bf16.msra.mxu0 %v731
    %1525 = vmatprep.subr.bf16.mxu0 %v735
    %1526 = vmatpush1.bf16.msra.mxu0 %v734
    %1527 = vmatprep.subr.bf16.mxu0 0
    %1528 = vmatpush1.bf16.msra.mxu0 0
    %1529 = vmatprep.subr.bf16.mxu0 0
    %1530 = vmatpush1.bf16.msra.mxu0 0
    %1531 = vmatprep.subr.bf16.mxu0 0
    %1532 = vmatpush1.bf16.msra.mxu0 0
    %1533 = vmatprep.subr.bf16.mxu0 0
    %1534 = vmatpush1.bf16.msra.mxu0 0
    %1535 = vmatprep.subr.bf16.mxu0 0
    %1536 = vmatpush1.bf16.msra.mxu0 0
    %1537 = vmatprep.subr.bf16.mxu0 0
    %1538 = vmatpush1.bf16.msra.mxu0 0
    %1539 = vmatprep.subr.bf16.mxu0 0
    %1540 = vmatpush1.bf16.msra.mxu0 0
    %1541 = vmatprep.subr.bf16.mxu0 0
    %1542 = vmatpush1.bf16.msra.mxu0 0
    %1543 = vmatprep.mubr.bf16.mxu0 0
    %1544 = vmatmul.mubr.bf16.gmra.mrb[0].mxu0 %v1510
    %v1545 = vpop.f32.mrb[0].mxu0
    %v1546 = vadd.f32 0.0, %v1545
    %v1547 = vpop.f32.mrb[0].mxu0
    %v1548 = vadd.f32 0.0, %v1547
    %v1549 = vpop.f32.mrb[0].mxu0
    %v1550 = vadd.f32 0.0, %v1549
    %v1551 = vpop.f32.mrb[0].mxu0
    %v1552 = vadd.f32 0.0, %v1551
    %1553 = vdwg.mxu0
    %1554 = vmatprep.subr.bf16.mxu0 0
    %1555 = vmatpush1.bf16.msra.mxu0 %v715
    %1556 = vmatprep.subr.bf16.mxu0 0
    %1557 = vmatpush1.bf16.msra.mxu0 %v718
    %1558 = vmatprep.subr.bf16.mxu0 0
    %1559 = vmatpush1.bf16.msra.mxu0 %v721
    %1560 = vmatprep.subr.bf16.mxu0 0
    %1561 = vmatpush1.bf16.msra.mxu0 %v724
    %1562 = vmatprep.subr.bf16.mxu0 0
    %1563 = vmatpush1.bf16.msra.mxu0 %v727
    %1564 = vmatprep.subr.bf16.mxu0 0
    %1565 = vmatpush1.bf16.msra.mxu0 %v730
    %1566 = vmatprep.subr.bf16.mxu0 0
    %1567 = vmatpush1.bf16.msra.mxu0 %v733
    %1568 = vmatprep.subr.bf16.mxu0 0
    %1569 = vmatpush1.bf16.msra.mxu0 %v736
    %1570 = vmatprep.subr.bf16.mxu0 0
    %1571 = vmatpush1.bf16.msra.mxu0 0
    %1572 = vmatprep.subr.bf16.mxu0 0
    %1573 = vmatpush1.bf16.msra.mxu0 0
    %1574 = vmatprep.subr.bf16.mxu0 0
    %1575 = vmatpush1.bf16.msra.mxu0 0
    %1576 = vmatprep.subr.bf16.mxu0 0
    %1577 = vmatpush1.bf16.msra.mxu0 0
    %1578 = vmatprep.subr.bf16.mxu0 0
    %1579 = vmatpush1.bf16.msra.mxu0 0
    %1580 = vmatprep.subr.bf16.mxu0 0
    %1581 = vmatpush1.bf16.msra.mxu0 0
    %1582 = vmatprep.subr.bf16.mxu0 0
    %1583 = vmatpush1.bf16.msra.mxu0 0
    %1584 = vmatprep.subr.bf16.mxu0 0
    %1585 = vmatpush1.bf16.msra.mxu0 0
    %1586 = vmatprep.mubr.bf16.mxu0 0
    %1587 = vmatmul.mubr.bf16.gmra.mrb[0].mxu0 %v1510
    %v1588 = vpop.f32.mrb[0].mxu0
    %v1589 = vadd.f32 0.0, %v1588
    %v1590 = vpop.f32.mrb[0].mxu0
    %v1591 = vpop.f32.mrb[0].mxu0
    %v1592 = vadd.f32 0.0, %v1591
    %v1593 = vpop.f32.mrb[0].mxu0
    %1594 = vdwg.mxu0
    %v1595 = vadd.f32 %v1504, %v1546
    %v1596 = vadd.f32 %v1507, %v1550
    %v1597 = vxor.u32 %v1595, 2147483648
    %v1598 = vxor.u32 %v1596, 2147483648
    %v1599 = vmul.f32 %v1597, 1.442695
    %v1600 = vpow.pop %v1599
    %v1601 = vmul.f32 %v1598, 1.442695
    %v1602 = vpow.pop %v1601
    %v1603 = vadd.f32 %v1600, 1.0
    %v1604 = vadd.f32 %v1602, 1.0
    %v1605 = vrcp.pop %v1603
    %v1606 = vmul.f32 1.0, %v1605
    %v1607 = vrcp.pop %v1604
    %v1608 = vmul.f32 1.0, %v1607
    %v1609 = vadd.f32 %v1505, %v1548
    %v1610 = vadd.f32 %v1508, %v1552
    %v1611 = vxor.u32 %v1609, 2147483648
    %v1612 = vxor.u32 %v1610, 2147483648
    %v1613 = vmul.f32 %v1611, 1.442695
    %v1614 = vpow.pop %v1613
    %v1615 = vmul.f32 %v1612, 1.442695
    %v1616 = vpow.pop %v1615
    %v1617 = vadd.f32 %v1614, 1.0
    %v1618 = vadd.f32 %v1616, 1.0
    %v1619 = vrcp.pop %v1617
    %v1620 = vmul.f32 1.0, %v1619
    %v1621 = vrcp.pop %v1618
    %v1622 = vmul.f32 1.0, %v1621
    %v1623 = vadd.f32 %v1589, %v877
    %v1624 = vadd.f32 %v1592, %v877
    %v1625 = vmul.f32 %v1606, %v1623
    %v1626 = vmul.f32 %v1608, %v1624
    %v1627 = vadd.f32 %v1506, %v1625
    %v1628 = vadd.f32 %v1509, %v1626
    %v1629 = vtanh.pop %v1627
    %v1630 = vtanh.pop %v1628
    %v1631 = vsub.f32 %v1501, %v1629
    %v1632 = vsub.f32 %v1502, %v1630
    %v1633 = vmul.f32 %v1620, %v1631
    %v1634 = vmul.f32 %v1622, %v1632
    %v1635 = vadd.f32 %v1629, %v1633
    %v1636 = vadd.f32 %v1630, %v1634
    %1637 = vst [vmem:[#allocation2] sm:$0xff] %v1635
    %1638 = vst [vmem:[#allocation2 + $0x8] sm:$0xff] %v1636
    %v1639 = vpack.c.bf16 %v1636, %v1635
    %v1641 = vunpack.c.l.b16 %v1639
    %v1642 = vunpack.c.h.b16 %v1639
    %v1643 = vpack.c.b16 %v1641, %v1641
    %v1644 = vpack.c.b16 %v1642, %v1642
    %s1647 = scalar_lea.vmem [#allocation13], 40
    %1648 = vst [vmem:[%s1647] sm:$0xf] %v1643
    %1649 = vst [vmem:[%s1647 + $0x4] sm:$0xf] %v1644
    %v1650 = vld [vmem:[#allocation2] sm:$0xff]
    %v1651 = vld [vmem:[#allocation2 + $0x8] sm:$0xff]
    %s1652 = scalar_lea.vmem [#allocation3], 288
    %v1653 = vld [vmem:[%s1652] sm:$0xff]
    %v1654 = vld [vmem:[%s1652 + $0x8] sm:$0xff]
    %v1655 = vld [vmem:[%s1652 + $0x10] sm:$0xff]
    %v1656 = vld [vmem:[%s1652 + $0x18] sm:$0xff]
    %v1657 = vld [vmem:[%s1652 + $0x20] sm:$0xff]
    %v1658 = vld [vmem:[%s1652 + $0x28] sm:$0xff]
    %v1659 = vpack.c.bf16 %v1651, %v1650
    %1660 = vmatprep.subr.bf16.mxu0 %v714
    %1661 = vmatpush1.bf16.msra.mxu0 %v713
    %1662 = vmatprep.subr.bf16.mxu0 %v717
    %1663 = vmatpush1.bf16.msra.mxu0 %v716
    %1664 = vmatprep.subr.bf16.mxu0 %v720
    %1665 = vmatpush1.bf16.msra.mxu0 %v719
    %1666 = vmatprep.subr.bf16.mxu0 %v723
    %1667 = vmatpush1.bf16.msra.mxu0 %v722
    %1668 = vmatprep.subr.bf16.mxu0 %v726
    %1669 = vmatpush1.bf16.msra.mxu0 %v725
    %1670 = vmatprep.subr.bf16.mxu0 %v729
    %1671 = vmatpush1.bf16.msra.mxu0 %v728
    %1672 = vmatprep.subr.bf16.mxu0 %v732
    %1673 = vmatpush1.bf16.msra.mxu0 %v731
    %1674 = vmatprep.subr.bf16.mxu0 %v735
    %1675 = vmatpush1.bf16.msra.mxu0 %v734
    %1676 = vmatprep.subr.bf16.mxu0 0
    %1677 = vmatpush1.bf16.msra.mxu0 0
    %1678 = vmatprep.subr.bf16.mxu0 0
    %1679 = vmatpush1.bf16.msra.mxu0 0
    %1680 = vmatprep.subr.bf16.mxu0 0
    %1681 = vmatpush1.bf16.msra.mxu0 0
    %1682 = vmatprep.subr.bf16.mxu0 0
    %1683 = vmatpush1.bf16.msra.mxu0 0
    %1684 = vmatprep.subr.bf16.mxu0 0
    %1685 = vmatpush1.bf16.msra.mxu0 0
    %1686 = vmatprep.subr.bf16.mxu0 0
    %1687 = vmatpush1.bf16.msra.mxu0 0
    %1688 = vmatprep.subr.bf16.mxu0 0
    %1689 = vmatpush1.bf16.msra.mxu0 0
    %1690 = vmatprep.subr.bf16.mxu0 0
    %1691 = vmatpush1.bf16.msra.mxu0 0
    %1692 = vmatprep.mubr.bf16.mxu0 0
    %1693 = vmatmul.mubr.bf16.gmra.mrb[0].mxu0 %v1659
    %v1694 = vpop.f32.mrb[0].mxu0
    %v1695 = vadd.f32 0.0, %v1694
    %v1696 = vpop.f32.mrb[0].mxu0
    %v1697 = vadd.f32 0.0, %v1696
    %v1698 = vpop.f32.mrb[0].mxu0
    %v1699 = vadd.f32 0.0, %v1698
    %v1700 = vpop.f32.mrb[0].mxu0
    %v1701 = vadd.f32 0.0, %v1700
    %1702 = vdwg.mxu0
    %1703 = vmatprep.subr.bf16.mxu0 0
    %1704 = vmatpush1.bf16.msra.mxu0 %v715
    %1705 = vmatprep.subr.bf16.mxu0 0
    %1706 = vmatpush1.bf16.msra.mxu0 %v718
    %1707 = vmatprep.subr.bf16.mxu0 0
    %1708 = vmatpush1.bf16.msra.mxu0 %v721
    %1709 = vmatprep.subr.bf16.mxu0 0
    %1710 = vmatpush1.bf16.msra.mxu0 %v724
    %1711 = vmatprep.subr.bf16.mxu0 0
    %1712 = vmatpush1.bf16.msra.mxu0 %v727
    %1713 = vmatprep.subr.bf16.mxu0 0
    %1714 = vmatpush1.bf16.msra.mxu0 %v730
    %1715 = vmatprep.subr.bf16.mxu0 0
    %1716 = vmatpush1.bf16.msra.mxu0 %v733
    %1717 = vmatprep.subr.bf16.mxu0 0
    %1718 = vmatpush1.bf16.msra.mxu0 %v736
    %1719 = vmatprep.subr.bf16.mxu0 0
    %1720 = vmatpush1.bf16.msra.mxu0 0
    %1721 = vmatprep.subr.bf16.mxu0 0
    %1722 = vmatpush1.bf16.msra.mxu0 0
    %1723 = vmatprep.subr.bf16.mxu0 0
    %1724 = vmatpush1.bf16.msra.mxu0 0
    %1725 = vmatprep.subr.bf16.mxu0 0
    %1726 = vmatpush1.bf16.msra.mxu0 0
    %1727 = vmatprep.subr.bf16.mxu0 0
    %1728 = vmatpush1.bf16.msra.mxu0 0
    %1729 = vmatprep.subr.bf16.mxu0 0
    %1730 = vmatpush1.bf16.msra.mxu0 0
    %1731 = vmatprep.subr.bf16.mxu0 0
    %1732 = vmatpush1.bf16.msra.mxu0 0
    %1733 = vmatprep.subr.bf16.mxu0 0
    %1734 = vmatpush1.bf16.msra.mxu0 0
    %1735 = vmatprep.mubr.bf16.mxu0 0
    %1736 = vmatmul.mubr.bf16.gmra.mrb[0].mxu0 %v1659
    %v1737 = vpop.f32.mrb[0].mxu0
    %v1738 = vadd.f32 0.0, %v1737
    %v1739 = vpop.f32.mrb[0].mxu0
    %v1740 = vpop.f32.mrb[0].mxu0
    %v1741 = vadd.f32 0.0, %v1740
    %v1742 = vpop.f32.mrb[0].mxu0
    %1743 = vdwg.mxu0
    %v1744 = vadd.f32 %v1653, %v1695
    %v1745 = vadd.f32 %v1656, %v1699
    %v1746 = vxor.u32 %v1744, 2147483648
    %v1747 = vxor.u32 %v1745, 2147483648
    %v1748 = vmul.f32 %v1746, 1.442695
    %v1749 = vpow.pop %v1748
    %v1750 = vmul.f32 %v1747, 1.442695
    %v1751 = vpow.pop %v1750
    %v1752 = vadd.f32 %v1749, 1.0
    %v1753 = vadd.f32 %v1751, 1.0
    %v1754 = vrcp.pop %v1752
    %v1755 = vmul.f32 1.0, %v1754
    %v1756 = vrcp.pop %v1753
    %v1757 = vmul.f32 1.0, %v1756
    %v1758 = vadd.f32 %v1654, %v1697
    %v1759 = vadd.f32 %v1657, %v1701
    %v1760 = vxor.u32 %v1758, 2147483648
    %v1761 = vxor.u32 %v1759, 2147483648
    %v1762 = vmul.f32 %v1760, 1.442695
    %v1763 = vpow.pop %v1762
    %v1764 = vmul.f32 %v1761, 1.442695
    %v1765 = vpow.pop %v1764
    %v1766 = vadd.f32 %v1763, 1.0
    %v1767 = vadd.f32 %v1765, 1.0
    %v1768 = vrcp.pop %v1766
    %v1769 = vmul.f32 1.0, %v1768
    %v1770 = vrcp.pop %v1767
    %v1771 = vmul.f32 1.0, %v1770
    %v1772 = vadd.f32 %v1738, %v877
    %v1773 = vadd.f32 %v1741, %v877
    %v1774 = vmul.f32 %v1755, %v1772
    %v1775 = vmul.f32 %v1757, %v1773
    %v1776 = vadd.f32 %v1655, %v1774
    %v1777 = vadd.f32 %v1658, %v1775
    %v1778 = vtanh.pop %v1776
    %v1779 = vtanh.pop %v1777
    %v1780 = vsub.f32 %v1650, %v1778
    %v1781 = vsub.f32 %v1651, %v1779
    %v1782 = vmul.f32 %v1769, %v1780
    %v1783 = vmul.f32 %v1771, %v1781
    %v1784 = vadd.f32 %v1778, %v1782
    %v1785 = vadd.f32 %v1779, %v1783
    %1786 = vst [vmem:[#allocation2] sm:$0xff] %v1784
    %1787 = vst [vmem:[#allocation2 + $0x8] sm:$0xff] %v1785
    %v1788 = vpack.c.bf16 %v1785, %v1784
    %v1790 = vunpack.c.l.b16 %v1788
    %v1791 = vunpack.c.h.b16 %v1788
    %v1792 = vpack.c.b16 %v1790, %v1790
    %v1793 = vpack.c.b16 %v1791, %v1791
    %s1796 = scalar_lea.vmem [#allocation13], 48
    %1797 = vst [vmem:[%s1796] sm:$0xf] %v1792
    %1798 = vst [vmem:[%s1796 + $0x4] sm:$0xf] %v1793
    %v1799 = vld [vmem:[#allocation2] sm:$0xff]
    %v1800 = vld [vmem:[#allocation2 + $0x8] sm:$0xff]
    %s1801 = scalar_lea.vmem [#allocation3], 336
    %v1802 = vld [vmem:[%s1801] sm:$0xff]
    %v1803 = vld [vmem:[%s1801 + $0x8] sm:$0xff]
    %v1804 = vld [vmem:[%s1801 + $0x10] sm:$0xff]
    %v1805 = vld [vmem:[%s1801 + $0x18] sm:$0xff]
    %v1806 = vld [vmem:[%s1801 + $0x20] sm:$0xff]
    %v1807 = vld [vmem:[%s1801 + $0x28] sm:$0xff]
    %v1808 = vpack.c.bf16 %v1800, %v1799
    %1809 = vmatprep.subr.bf16.mxu0 %v714
    %1810 = vmatpush1.bf16.msra.mxu0 %v713
    %1811 = vmatprep.subr.bf16.mxu0 %v717
    %1812 = vmatpush1.bf16.msra.mxu0 %v716
    %1813 = vmatprep.subr.bf16.mxu0 %v720
    %1814 = vmatpush1.bf16.msra.mxu0 %v719
    %1815 = vmatprep.subr.bf16.mxu0 %v723
    %1816 = vmatpush1.bf16.msra.mxu0 %v722
    %1817 = vmatprep.subr.bf16.mxu0 %v726
    %1818 = vmatpush1.bf16.msra.mxu0 %v725
    %1819 = vmatprep.subr.bf16.mxu0 %v729
    %1820 = vmatpush1.bf16.msra.mxu0 %v728
    %1821 = vmatprep.subr.bf16.mxu0 %v732
    %1822 = vmatpush1.bf16.msra.mxu0 %v731
    %1823 = vmatprep.subr.bf16.mxu0 %v735
    %1824 = vmatpush1.bf16.msra.mxu0 %v734
    %1825 = vmatprep.subr.bf16.mxu0 0
    %1826 = vmatpush1.bf16.msra.mxu0 0
    %1827 = vmatprep.subr.bf16.mxu0 0
    %1828 = vmatpush1.bf16.msra.mxu0 0
    %1829 = vmatprep.subr.bf16.mxu0 0
    %1830 = vmatpush1.bf16.msra.mxu0 0
    %1831 = vmatprep.subr.bf16.mxu0 0
    %1832 = vmatpush1.bf16.msra.mxu0 0
    %1833 = vmatprep.subr.bf16.mxu0 0
    %1834 = vmatpush1.bf16.msra.mxu0 0
    %1835 = vmatprep.subr.bf16.mxu0 0
    %1836 = vmatpush1.bf16.msra.mxu0 0
    %1837 = vmatprep.subr.bf16.mxu0 0
    %1838 = vmatpush1.bf16.msra.mxu0 0
    %1839 = vmatprep.subr.bf16.mxu0 0
    %1840 = vmatpush1.bf16.msra.mxu0 0
    %1841 = vmatprep.mubr.bf16.mxu0 0
    %1842 = vmatmul.mubr.bf16.gmra.mrb[0].mxu0 %v1808
    %v1843 = vpop.f32.mrb[0].mxu0
    %v1844 = vadd.f32 0.0, %v1843
    %v1845 = vpop.f32.mrb[0].mxu0
    %v1846 = vadd.f32 0.0, %v1845
    %v1847 = vpop.f32.mrb[0].mxu0
    %v1848 = vadd.f32 0.0, %v1847
    %v1849 = vpop.f32.mrb[0].mxu0
    %v1850 = vadd.f32 0.0, %v1849
    %1851 = vdwg.mxu0
    %1852 = vmatprep.subr.bf16.mxu0 0
    %1853 = vmatpush1.bf16.msra.mxu0 %v715
    %1854 = vmatprep.subr.bf16.mxu0 0
    %1855 = vmatpush1.bf16.msra.mxu0 %v718
    %1856 = vmatprep.subr.bf16.mxu0 0
    %1857 = vmatpush1.bf16.msra.mxu0 %v721
    %1858 = vmatprep.subr.bf16.mxu0 0
    %1859 = vmatpush1.bf16.msra.mxu0 %v724
    %1860 = vmatprep.subr.bf16.mxu0 0
    %1861 = vmatpush1.bf16.msra.mxu0 %v727
    %1862 = vmatprep.subr.bf16.mxu0 0
    %1863 = vmatpush1.bf16.msra.mxu0 %v730
    %1864 = vmatprep.subr.bf16.mxu0 0
    %1865 = vmatpush1.bf16.msra.mxu0 %v733
    %1866 = vmatprep.subr.bf16.mxu0 0
    %1867 = vmatpush1.bf16.msra.mxu0 %v736
    %1868 = vmatprep.subr.bf16.mxu0 0
    %1869 = vmatpush1.bf16.msra.mxu0 0
    %1870 = vmatprep.subr.bf16.mxu0 0
    %1871 = vmatpush1.bf16.msra.mxu0 0
    %1872 = vmatprep.subr.bf16.mxu0 0
    %1873 = vmatpush1.bf16.msra.mxu0 0
    %1874 = vmatprep.subr.bf16.mxu0 0
    %1875 = vmatpush1.bf16.msra.mxu0 0
    %1876 = vmatprep.subr.bf16.mxu0 0
    %1877 = vmatpush1.bf16.msra.mxu0 0
    %1878 = vmatprep.subr.bf16.mxu0 0
    %1879 = vmatpush1.bf16.msra.mxu0 0
    %1880 = vmatprep.subr.bf16.mxu0 0
    %1881 = vmatpush1.bf16.msra.mxu0 0
    %1882 = vmatprep.subr.bf16.mxu0 0
    %1883 = vmatpush1.bf16.msra.mxu0 0
    %1884 = vmatprep.mubr.bf16.mxu0 0
    %1885 = vmatmul.mubr.bf16.gmra.mrb[0].mxu0 %v1808
    %v1886 = vpop.f32.mrb[0].mxu0
    %v1887 = vadd.f32 0.0, %v1886
    %v1888 = vpop.f32.mrb[0].mxu0
    %v1889 = vpop.f32.mrb[0].mxu0
    %v1890 = vadd.f32 0.0, %v1889
    %v1891 = vpop.f32.mrb[0].mxu0
    %1892 = vdwg.mxu0
    %v1893 = vadd.f32 %v1802, %v1844
    %v1894 = vadd.f32 %v1805, %v1848
    %v1895 = vxor.u32 %v1893, 2147483648
    %v1896 = vxor.u32 %v1894, 2147483648
    %v1897 = vmul.f32 %v1895, 1.442695
    %v1898 = vpow.pop %v1897
    %v1899 = vmul.f32 %v1896, 1.442695
    %v1900 = vpow.pop %v1899
    %v1901 = vadd.f32 %v1898, 1.0
    %v1902 = vadd.f32 %v1900, 1.0
    %v1903 = vrcp.pop %v1901
    %v1904 = vmul.f32 1.0, %v1903
    %v1905 = vrcp.pop %v1902
    %v1906 = vmul.f32 1.0, %v1905
    %v1907 = vadd.f32 %v1803, %v1846
    %v1908 = vadd.f32 %v1806, %v1850
    %v1909 = vxor.u32 %v1907, 2147483648
    %v1910 = vxor.u32 %v1908, 2147483648
    %v1911 = vmul.f32 %v1909, 1.442695
    %v1912 = vpow.pop %v1911
    %v1913 = vmul.f32 %v1910, 1.442695
    %v1914 = vpow.pop %v1913
    %v1915 = vadd.f32 %v1912, 1.0
    %v1916 = vadd.f32 %v1914, 1.0
    %v1917 = vrcp.pop %v1915
    %v1918 = vmul.f32 1.0, %v1917
    %v1919 = vrcp.pop %v1916
    %v1920 = vmul.f32 1.0, %v1919
    %v1921 = vadd.f32 %v1887, %v877
    %v1922 = vadd.f32 %v1890, %v877
    %v1923 = vmul.f32 %v1904, %v1921
    %v1924 = vmul.f32 %v1906, %v1922
    %v1925 = vadd.f32 %v1804, %v1923
    %v1926 = vadd.f32 %v1807, %v1924
    %v1927 = vtanh.pop %v1925
    %v1928 = vtanh.pop %v1926
    %v1929 = vsub.f32 %v1799, %v1927
    %v1930 = vsub.f32 %v1800, %v1928
    %v1931 = vmul.f32 %v1918, %v1929
    %v1932 = vmul.f32 %v1920, %v1930
    %v1933 = vadd.f32 %v1927, %v1931
    %v1934 = vadd.f32 %v1928, %v1932
    %1935 = vst [vmem:[#allocation2] sm:$0xff] %v1933
    %1936 = vst [vmem:[#allocation2 + $0x8] sm:$0xff] %v1934
    %v1937 = vpack.c.bf16 %v1934, %v1933
    %v1939 = vunpack.c.l.b16 %v1937
    %v1940 = vunpack.c.h.b16 %v1937
    %v1941 = vpack.c.b16 %v1939, %v1939
    %v1942 = vpack.c.b16 %v1940, %v1940
    %s1945 = scalar_lea.vmem [#allocation13], 56
    %1946 = vst [vmem:[%s1945] sm:$0xf] %v1941
    %1947 = vst [vmem:[%s1945 + $0x4] sm:$0xf] %v1942
    // Predicated region
    $region46: #{gru_model_forward.4} parent=1 // pred_check
      _
    $region47: #{gru_model_forward.4} parent=1 // pred_check_branch
      %1949 = sbr.rel (0) target = $region49
    $region48: #{gru_model_forward.4} parent=1 // pred_region
      %s1951 = ssub.s32 1024, 1024
      %1952 = vsyncadd [#allocation6], %s1951
      %s1953 = sshll.u32 [#allocation13], 4
      %s1954 = int_to_ptr.vmem [resolvable:$true] %s1953
      %1959 = dma.vmem_to_hbm [thread:$0]  %s1954, 1024, %s5, [#allocation6], 64, 64, 4
    $region49: #{gru_model_forward.4} parent=1 // pred_fallthru
      _
    // Predicated region
    $region50: #{gru_model_forward.4} parent=1 // pred_check
      _
    $region51: #{gru_model_forward.4} parent=1 // pred_check_branch
      %1961 = sbr.rel (0) target = $region53
    $region52: #{gru_model_forward.4} parent=1 // pred_region
      %1962 = dma.done [#allocation6], 1024
    $region53: #{gru_model_forward.4} parent=1 // pred_fallthru
      _
    %1963 = vsyncpa [#allocation5], 1
    %1964 = vsyncpa [#allocation8], 1
    %1965 = vsyncpa [#allocation11], 1
    %1966 = vsyncpa [#allocation6], 1

</llo_original>
